<compile_context>
chip_gen: v5e
topology: v5e:2x2
jax: 0.10.0
libtpu: 0.0.40
codegen_flags: <defaults>
</compile_context>

<pallas_src>
import jax
import jax.numpy as jnp
from jax.experimental import pallas as pl
from jax.experimental.pallas import tpu as pltpu

LATENT_DIMS = 8
IN_H, IN_W = 42, 49
FLAT = IN_H * IN_W            # 2058
HID = 400

FLAT_P = 2176                 # 17 * 128  (lane / MXU friendly)
HID_P = 512                   # 4  * 128
MS_P = 128                    # lane-dense latent slab ([mu | sigma] in first 16 lanes)


def _round_up(n, m):
    return ((n + m - 1) // m) * m


def _pad2(a, rows, cols):
    return jnp.pad(a, ((0, rows - a.shape[0]), (0, cols - a.shape[1])))


def _autoencoder_kernel(x_ref,
                        w1e_ref, b1e_ref,
                        wms_ref, bms_ref,
                        u_ref,
                        w1d_ref, b1d_ref,
                        w2d_ref, b2d_ref,
                        dec_ref, ms_ref):
    L = LATENT_DIMS

    x = x_ref[...]                                              # (TM, FLAT_P) bf16

    # ----- Variational encoder -----
    h = jnp.dot(x, w1e_ref[...], preferred_element_type=jnp.float32)
    h = jnp.maximum(h + b1e_ref[...], 0.0)                      # relu, (TM, HID_P) f32

    # Fused mu / log-sigma projection, padded to a full 128-lane slab.
    ms = jnp.dot(h, wms_ref[...], preferred_element_type=jnp.float32) + bms_ref[...]
    lane = jax.lax.broadcasted_iota(jnp.int32, ms.shape, 1)
    # lanes [0,L): mu ; lanes [L,2L): sigma = exp(.) ; lanes >= 2L: exp(0)=1 (sliced off)
    ms_out = jnp.where(lane >= L, jnp.exp(ms), ms)
    ms_ref[...] = ms_out                                        # lane-dense store

    # Reparameterization fused into the decoder's first matmul:
    #   u carries 1.0 in mu lanes, U[0,1) noise in sigma lanes, 0 elsewhere,
    #   and w1d_stacked = [w1d; w1d; 0], so (ms_out * u) @ w1d_stacked == z @ w1d.
    t = ms_out * u_ref[...]                                     # (TM, MS_P)

    # ----- Decoder -----
    d = jnp.dot(t, w1d_ref[...], preferred_element_type=jnp.float32)
    d = jnp.maximum(d + b1d_ref[...], 0.0)                      # relu, (TM, HID_P)

    logits = jnp.dot(d.astype(jnp.bfloat16), w2d_ref[...],
                     preferred_element_type=jnp.float32) + b2d_ref[...]
    dec_ref[...] = jax.nn.sigmoid(logits)                       # (TM, FLAT_P) f32


def prepare_params(params):
    """One-time weight preprocessing (hoisted out of the forward pass):
    pad to MXU/lane-friendly sizes, cast the two big weights to bf16, fuse the
    mu/sigma projections, and stack w1d for the fused reparameterization matmul.
    Call once at init and reuse across forwards."""
    (w1e, b1e, w2e, b2e, w3e, b3e, w1d, b1d, w2d, b2d) = params

    wms = jnp.concatenate([w2e, w3e], axis=1)                   # (HID, 2L)
    bms = jnp.concatenate([b2e, b3e], axis=1)                   # (1, 2L)
    w1d_stacked = jnp.concatenate([w1d, w1d], axis=0)           # (2L, HID)

    w1e_p = _pad2(w1e, FLAT_P, HID_P).astype(jnp.bfloat16)      # big: bf16
    b1e_p = _pad2(b1e, 1, HID_P)
    wms_p = _pad2(wms, HID_P, MS_P)
    bms_p = _pad2(bms, 1, MS_P)
    w1d_p = _pad2(w1d_stacked, MS_P, HID_P)
    b1d_p = _pad2(b1d, 1, HID_P)
    w2d_p = _pad2(w2d, HID_P, FLAT_P).astype(jnp.bfloat16)      # big: bf16
    b2d_p = _pad2(b2d, 1, FLAT_P)
    return (w1e_p, b1e_p, wms_p, bms_p, w1d_p, b1d_p, w2d_p, b2d_p)


def autoencoder_forward(x, prepped, rand_u):
    """x: (B, 42, 49) f32.  prepped: output of prepare_params().
    rand_u: (B, L) U[0,1) noise.  Returns (decoded (B,42,49), mu, sigma)."""
    B = x.shape[0]
    L = LATENT_DIMS
    (w1e_p, b1e_p, wms_p, bms_p, w1d_p, b1d_p, w2d_p, b2d_p) = prepped

    # Batch tile: multiple of 8 sublanes, capped at 128 so medium batches still
    # give >= 2 grid steps (megacore split + pipeline overlap).
    TM = min(128, _round_up(B, 8))
    Bp = _round_up(B, TM)

    # Pad + cast x in one fused wrapper op; the kernel consumes bf16 directly.
    xp = jnp.pad(x.reshape(B, FLAT),
                 ((0, Bp - B), (0, FLAT_P - FLAT))).astype(jnp.bfloat16)

    # u: 1.0 in mu lanes, noise in sigma lanes, 0 in padding lanes/rows.
    u = jnp.concatenate([jnp.ones((B, L), jnp.float32), rand_u], axis=1)
    up = jnp.pad(u, ((0, Bp - B), (0, MS_P - 2 * L)))

    def row_spec(cols):
        return pl.BlockSpec((TM, cols), lambda i: (i, 0))

    def const_spec(a):
        # Grid-invariant: constant block index -> fetched once, VMEM-resident.
        return pl.BlockSpec(a.shape, lambda i: (0, 0))

    grid = (Bp // TM,)

    dec_p, ms = pl.pallas_call(
        _autoencoder_kernel,
        out_shape=(
            jax.ShapeDtypeStruct((Bp, FLAT_P), jnp.float32),
            jax.ShapeDtypeStruct((Bp, MS_P), jnp.float32),
        ),
        grid=grid,
        in_specs=[
            row_spec(FLAT_P),                 # x (bf16)
            const_spec(w1e_p), const_spec(b1e_p),
            const_spec(wms_p), const_spec(bms_p),
            row_spec(MS_P),                   # u (reparameterization noise slab)
            const_spec(w1d_p), const_spec(b1d_p),
            const_spec(w2d_p), const_spec(b2d_p),
        ],
        out_specs=(
            row_spec(FLAT_P),                 # decoded (lane-dense, 2176 cols)
            row_spec(MS_P),                   # [mu | sigma] lane-dense slab
        ),
        compiler_params=pltpu.CompilerParams(
            dimension_semantics=("parallel",),   # shard batch over TCs (v7x)
            vmem_limit_bytes=48 << 20,           # ample on all gens, < v7x 64 MiB
        ),
    )(xp, w1e_p, b1e_p, wms_p, bms_p, up, w1d_p, b1d_p, w2d_p, b2d_p)

    dec = dec_p[:B, :FLAT].reshape(B, IN_H, IN_W)
    mu = ms[:B, :L]
    sigma = ms[:B, L:2 * L]
    return dec, mu, sigma


def init_params(key):
    """PyTorch nn.Linear-style init (U[-1/sqrt(fan_in), +1/sqrt(fan_in)]).
    Weights stored as (in, out); biases as (1, out)."""
    def linear(key, fan_in, fan_out):
        kw, kb = jax.random.split(key)
        bound = 1.0 / jnp.sqrt(fan_in)
        w = jax.random.uniform(kw, (fan_in, fan_out), jnp.float32, -bound, bound)
        b = jax.random.uniform(kb, (1, fan_out), jnp.float32, -bound, bound)
        return w, b

    k1, k2, k3, k4, k5 = jax.random.split(key, 5)
    w1e, b1e = linear(k1, FLAT, HID)          # encoder.linear1
    w2e, b2e = linear(k2, HID, LATENT_DIMS)   # encoder.linear2 (mu)
    w3e, b3e = linear(k3, HID, LATENT_DIMS)   # encoder.linear3 (sigma, pre-exp)
    w1d, b1d = linear(k4, LATENT_DIMS, HID)   # decoder.linear1
    w2d, b2d = linear(k5, HID, FLAT)          # decoder.linear2
    return (w1e, b1e, w2e, b2e, w3e, b3e, w1d, b1d, w2d, b2d)


def reference_forward(x, params, rand_u):
    """Pure-JAX reference with the same bf16 weight/input storage as the kernel."""
    (w1e, b1e, w2e, b2e, w3e, b3e, w1d, b1d, w2d, b2d) = params
    B = x.shape[0]
    xf = x.reshape(B, FLAT)
    h = jnp.dot(xf.astype(jnp.bfloat16), w1e.astype(jnp.bfloat16),
                preferred_element_type=jnp.float32)
    h = jnp.maximum(h + b1e, 0.0)
    mu = h @ w2e + b2e
    sigma = jnp.exp(h @ w3e + b3e)
    z = mu + sigma * rand_u
    d = jnp.maximum(z @ w1d + b1d, 0.0)
    dec = jax.nn.sigmoid(
        jnp.dot(d.astype(jnp.bfloat16), w2d.astype(jnp.bfloat16),
                preferred_element_type=jnp.float32) + b2d)
    return dec.reshape(B, IN_H, IN_W), mu, sigma


if __name__ == "__main__":
    key = jax.random.PRNGKey(0)
    kx, kp, kr = jax.random.split(key, 3)

    B = 2
    x = jax.random.normal(kx, (B, IN_H, IN_W), jnp.float32)
    params = init_params(kp)
    prepped = prepare_params(params)          # one-time weight preprocessing
    # Uniform [0,1) noise for the reparameterization step (torch.rand_like).
    rand_u = jax.random.uniform(kr, (B, LATENT_DIMS), jnp.float32)

    fwd = jax.jit(autoencoder_forward)
    dec, mu, sigma = fwd(x, prepped, rand_u)
    jax.block_until_ready((dec, mu, sigma))

    dec_r, mu_r, sigma_r = reference_forward(x, params, rand_u)
    assert dec.shape == (B, IN_H, IN_W)
    assert mu.shape == (B, LATENT_DIMS)
    assert sigma.shape == (B, LATENT_DIMS)
    assert jnp.allclose(dec, dec_r, atol=2e-4, rtol=1e-3)
    assert jnp.allclose(mu, mu_r, atol=2e-4, rtol=1e-3)
    assert jnp.allclose(sigma, sigma_r, atol=2e-4, rtol=1e-3)

    print("KERNEL_OK")
</pallas_src>

<mosaic_0001>
module attributes {stable_mosaic.version = 11 : i64} {
  func.func @_autoencoder_kernel(%arg0: i32, %arg1: memref<8x2176xbf16, #tpu.memory_space<vmem>>, %arg2: memref<2176x512xbf16, #tpu.memory_space<vmem>>, %arg3: memref<1x512xf32, #tpu.memory_space<vmem>>, %arg4: memref<512x128xf32, #tpu.memory_space<vmem>>, %arg5: memref<1x128xf32, #tpu.memory_space<vmem>>, %arg6: memref<8x128xf32, #tpu.memory_space<vmem>>, %arg7: memref<128x512xf32, #tpu.memory_space<vmem>>, %arg8: memref<1x512xf32, #tpu.memory_space<vmem>>, %arg9: memref<512x2176xbf16, #tpu.memory_space<vmem>>, %arg10: memref<1x2176xf32, #tpu.memory_space<vmem>>, %arg11: memref<8x2176xf32, #tpu.memory_space<vmem>>, %arg12: memref<8x128xf32, #tpu.memory_space<vmem>>) attributes {dimension_semantics = [#tpu.dimension_semantics<parallel>], iteration_bounds = array<i64: 1>, scalar_prefetch = 0 : i64, scratch_operands = 0 : i64, tpu.core_type = #tpu.core_type<tc>, window_params = [{transform_indices = @transform_0, window_bounds = array<i64: 8, 2176>}, {pipeline_mode = #tpu.pipeline_mode<synchronous>, transform_indices = @transform_1, window_bounds = array<i64: 2176, 512>}, {pipeline_mode = #tpu.pipeline_mode<synchronous>, transform_indices = @transform_2, window_bounds = array<i64: 1, 512>}, {pipeline_mode = #tpu.pipeline_mode<synchronous>, transform_indices = @transform_3, window_bounds = array<i64: 512, 128>}, {pipeline_mode = #tpu.pipeline_mode<synchronous>, transform_indices = @transform_4, window_bounds = array<i64: 1, 128>}, {transform_indices = @transform_5, window_bounds = array<i64: 8, 128>}, {pipeline_mode = #tpu.pipeline_mode<synchronous>, transform_indices = @transform_6, window_bounds = array<i64: 128, 512>}, {pipeline_mode = #tpu.pipeline_mode<synchronous>, transform_indices = @transform_7, window_bounds = array<i64: 1, 512>}, {pipeline_mode = #tpu.pipeline_mode<synchronous>, transform_indices = @transform_8, window_bounds = array<i64: 512, 2176>}, {pipeline_mode = #tpu.pipeline_mode<synchronous>, transform_indices = @transform_9, window_bounds = array<i64: 1, 2176>}, {transform_indices = @transform_10, window_bounds = array<i64: 8, 2176>}, {transform_indices = @transform_11, window_bounds = array<i64: 8, 128>}]} {
    %c0 = arith.constant 0 : index
    %c0_0 = arith.constant 0 : index
    %0 = vector.load %arg1[%c0, %c0_0] : memref<8x2176xbf16, #tpu.memory_space<vmem>>, vector<8x2176xbf16>
    %c0_1 = arith.constant 0 : index
    %c0_2 = arith.constant 0 : index
    %1 = vector.load %arg2[%c0_1, %c0_2] : memref<2176x512xbf16, #tpu.memory_space<vmem>>, vector<2176x512xbf16>
    %cst = arith.constant dense<0.000000e+00> : vector<8x512xf32>
    %2 = tpu.matmul %0, %1, %cst {dimension_numbers = #tpu.dot_dimension_numbers<[1], [0], [0], [1], [0, 0, 1, 1], [], []>} : vector<8x2176xbf16>, vector<2176x512xbf16>, vector<8x512xf32> -> vector<8x512xf32>
    %c0_3 = arith.constant 0 : index
    %c0_4 = arith.constant 0 : index
    %3 = vector.load %arg3[%c0_3, %c0_4] : memref<1x512xf32, #tpu.memory_space<vmem>>, vector<1x512xf32>
    %4 = vector.broadcast %3 : vector<1x512xf32> to vector<8x512xf32>
    %5 = arith.addf %2, %4 : vector<8x512xf32>
    %cst_5 = arith.constant 0.000000e+00 : f32
    %6 = vector.broadcast %cst_5 : f32 to vector<8x512xf32>
    %7 = arith.maximumf %5, %6 : vector<8x512xf32>
    %c0_6 = arith.constant 0 : index
    %c0_7 = arith.constant 0 : index
    %8 = vector.load %arg4[%c0_6, %c0_7] : memref<512x128xf32, #tpu.memory_space<vmem>>, vector<512x128xf32>
    %cst_8 = arith.constant dense<0.000000e+00> : vector<8x128xf32>
    %9 = tpu.matmul %7, %8, %cst_8 {dimension_numbers = #tpu.dot_dimension_numbers<[1], [0], [0], [1], [0, 0, 1, 1], [], []>} : vector<8x512xf32>, vector<512x128xf32>, vector<8x128xf32> -> vector<8x128xf32>
    %c0_9 = arith.constant 0 : index
    %c0_10 = arith.constant 0 : index
    %10 = vector.load %arg5[%c0_9, %c0_10] : memref<1x128xf32, #tpu.memory_space<vmem>>, vector<1x128xf32>
    %11 = vector.broadcast %10 : vector<1x128xf32> to vector<8x128xf32>
    %12 = arith.addf %9, %11 : vector<8x128xf32>
    %13 = tpu.iota {dimensions = array<i32: 1>} : vector<8x128xi32>
    %c8_i32 = arith.constant 8 : i32
    %14 = vector.broadcast %c8_i32 : i32 to vector<8x128xi32>
    %15 = arith.cmpi sge, %13, %14 : vector<8x128xi32>
    %16 = math.exp %12 : vector<8x128xf32>
    %17 = arith.select %15, %16, %12 : vector<8x128xi1>, vector<8x128xf32>
    %c0_11 = arith.constant 0 : index
    %c0_12 = arith.constant 0 : index
    %18 = vector.load %arg12[%c0_11, %c0_12] : memref<8x128xf32, #tpu.memory_space<vmem>>, vector<8x128xf32>
    tpu.vector_store %arg12[%c0_11, %c0_12], %17 {strides = array<i32>} : memref<8x128xf32, #tpu.memory_space<vmem>>, vector<8x128xf32>,
    %c0_13 = arith.constant 0 : index
    %c0_14 = arith.constant 0 : index
    %19 = vector.load %arg6[%c0_13, %c0_14] : memref<8x128xf32, #tpu.memory_space<vmem>>, vector<8x128xf32>
    %20 = arith.mulf %17, %19 : vector<8x128xf32>
    %c0_15 = arith.constant 0 : index
    %c0_16 = arith.constant 0 : index
    %21 = vector.load %arg7[%c0_15, %c0_16] : memref<128x512xf32, #tpu.memory_space<vmem>>, vector<128x512xf32>
    %cst_17 = arith.constant dense<0.000000e+00> : vector<8x512xf32>
    %22 = tpu.matmul %20, %21, %cst_17 {dimension_numbers = #tpu.dot_dimension_numbers<[1], [0], [0], [1], [0, 0, 1, 1], [], []>} : vector<8x128xf32>, vector<128x512xf32>, vector<8x512xf32> -> vector<8x512xf32>
    %c0_18 = arith.constant 0 : index
    %c0_19 = arith.constant 0 : index
    %23 = vector.load %arg8[%c0_18, %c0_19] : memref<1x512xf32, #tpu.memory_space<vmem>>, vector<1x512xf32>
    %24 = vector.broadcast %23 : vector<1x512xf32> to vector<8x512xf32>
    %25 = arith.addf %22, %24 : vector<8x512xf32>
    %cst_20 = arith.constant 0.000000e+00 : f32
    %26 = vector.broadcast %cst_20 : f32 to vector<8x512xf32>
    %27 = arith.maximumf %25, %26 : vector<8x512xf32>
    %28 = arith.truncf %27 : vector<8x512xf32> to vector<8x512xbf16>
    %c0_21 = arith.constant 0 : index
    %c0_22 = arith.constant 0 : index
    %29 = vector.load %arg9[%c0_21, %c0_22] : memref<512x2176xbf16, #tpu.memory_space<vmem>>, vector<512x2176xbf16>
    %cst_23 = arith.constant dense<0.000000e+00> : vector<8x2176xf32>
    %30 = tpu.matmul %28, %29, %cst_23 {dimension_numbers = #tpu.dot_dimension_numbers<[1], [0], [0], [1], [0, 0, 1, 1], [], []>} : vector<8x512xbf16>, vector<512x2176xbf16>, vector<8x2176xf32> -> vector<8x2176xf32>
    %c0_24 = arith.constant 0 : index
    %c0_25 = arith.constant 0 : index
    %31 = vector.load %arg10[%c0_24, %c0_25] : memref<1x2176xf32, #tpu.memory_space<vmem>>, vector<1x2176xf32>
    %32 = vector.broadcast %31 : vector<1x2176xf32> to vector<8x2176xf32>
    %33 = arith.addf %30, %32 : vector<8x2176xf32>
    %34 = arith.negf %33 : vector<8x2176xf32>
    %35 = math.exp %34 : vector<8x2176xf32>
    %cst_26 = arith.constant 1.000000e+00 : f32
    %36 = vector.broadcast %cst_26 : f32 to vector<8x2176xf32>
    %37 = arith.addf %36, %35 : vector<8x2176xf32>
    %38 = arith.divf %36, %37 : vector<8x2176xf32>
    %c0_27 = arith.constant 0 : index
    %c0_28 = arith.constant 0 : index
    %39 = vector.load %arg11[%c0_27, %c0_28] : memref<8x2176xf32, #tpu.memory_space<vmem>>, vector<8x2176xf32>
    tpu.vector_store %arg11[%c0_27, %c0_28], %38 {strides = array<i32>} : memref<8x2176xf32, #tpu.memory_space<vmem>>, vector<8x2176xf32>,
    return
  }
  func.func @transform_0(%arg0: i32) -> (i32, i32) {
    %c0_i32 = arith.constant 0 : i32
    %c0_i32_0 = arith.constant 0 : i32
    return %arg0, %c0_i32 : i32, i32
  }
  func.func @transform_1(%arg0: i32) -> (i32, i32) {
    %c0_i32 = arith.constant 0 : i32
    %c0_i32_0 = arith.constant 0 : i32
    %c0_i32_1 = arith.constant 0 : i32
    return %c0_i32, %c0_i32_0 : i32, i32
  }
  func.func @transform_2(%arg0: i32) -> (i32, i32) {
    %c0_i32 = arith.constant 0 : i32
    %c0_i32_0 = arith.constant 0 : i32
    %c0_i32_1 = arith.constant 0 : i32
    return %c0_i32, %c0_i32_0 : i32, i32
  }
  func.func @transform_3(%arg0: i32) -> (i32, i32) {
    %c0_i32 = arith.constant 0 : i32
    %c0_i32_0 = arith.constant 0 : i32
    %c0_i32_1 = arith.constant 0 : i32
    return %c0_i32, %c0_i32_0 : i32, i32
  }
  func.func @transform_4(%arg0: i32) -> (i32, i32) {
    %c0_i32 = arith.constant 0 : i32
    %c0_i32_0 = arith.constant 0 : i32
    %c0_i32_1 = arith.constant 0 : i32
    return %c0_i32, %c0_i32_0 : i32, i32
  }
  func.func @transform_5(%arg0: i32) -> (i32, i32) {
    %c0_i32 = arith.constant 0 : i32
    %c0_i32_0 = arith.constant 0 : i32
    return %arg0, %c0_i32 : i32, i32
  }
  func.func @transform_6(%arg0: i32) -> (i32, i32) {
    %c0_i32 = arith.constant 0 : i32
    %c0_i32_0 = arith.constant 0 : i32
    %c0_i32_1 = arith.constant 0 : i32
    return %c0_i32, %c0_i32_0 : i32, i32
  }
  func.func @transform_7(%arg0: i32) -> (i32, i32) {
    %c0_i32 = arith.constant 0 : i32
    %c0_i32_0 = arith.constant 0 : i32
    %c0_i32_1 = arith.constant 0 : i32
    return %c0_i32, %c0_i32_0 : i32, i32
  }
  func.func @transform_8(%arg0: i32) -> (i32, i32) {
    %c0_i32 = arith.constant 0 : i32
    %c0_i32_0 = arith.constant 0 : i32
    %c0_i32_1 = arith.constant 0 : i32
    return %c0_i32, %c0_i32_0 : i32, i32
  }
  func.func @transform_9(%arg0: i32) -> (i32, i32) {
    %c0_i32 = arith.constant 0 : i32
    %c0_i32_0 = arith.constant 0 : i32
    %c0_i32_1 = arith.constant 0 : i32
    return %c0_i32, %c0_i32_0 : i32, i32
  }
  func.func @transform_10(%arg0: i32) -> (i32, i32) {
    %c0_i32 = arith.constant 0 : i32
    %c0_i32_0 = arith.constant 0 : i32
    return %arg0, %c0_i32 : i32, i32
  }
  func.func @transform_11(%arg0: i32) -> (i32, i32) {
    %c0_i32 = arith.constant 0 : i32
    %c0_i32_0 = arith.constant 0 : i32
    return %arg0, %c0_i32 : i32, i32
  }
}

</mosaic_0001>

<llo_original>
// kernel: autoencoder_forward.1
$region0: #{autoencoder_forward.1}
  #allocation0 [shape = 'u32[]', space=smem, size = 0x4, offset = 0x4, fixed_abs, tag = 'smem constant byte address 0x4 - core index']
  #allocation1 [shape = 'u32[72,128]{1,0:T(1,128)}', space=vmem, size = 0x9000, scoped, tag = 'internal scratch']
  %s0 = inlined_call_operand.vmem [shape: bf16[8,2176], index: 0, kind: input, shape index: {}]
  %s1 = inlined_call_operand.hbm [shape: bf16[2176,512], index: 1, kind: input, shape index: {}]
  %s2 = inlined_call_operand.hbm [shape: f32[1,512], index: 2, kind: input, shape index: {}]
  %s3 = inlined_call_operand.hbm [shape: f32[512,128], index: 3, kind: input, shape index: {}]
  %s4 = inlined_call_operand.hbm [shape: f32[1,128], index: 4, kind: input, shape index: {}]
  %s5 = inlined_call_operand.vmem [shape: f32[8,128], index: 5, kind: input, shape index: {}]
  %s6 = inlined_call_operand.hbm [shape: f32[128,512], index: 6, kind: input, shape index: {}]
  %s7 = inlined_call_operand.hbm [shape: f32[1,512], index: 7, kind: input, shape index: {}]
  %s8 = inlined_call_operand.hbm [shape: bf16[512,2176], index: 8, kind: input, shape index: {}]
  %s9 = inlined_call_operand.hbm [shape: f32[1,2176], index: 9, kind: input, shape index: {}]
  %s10 = inlined_call_operand.vmem [shape: f32[8,2176], index: 10, kind: output, shape index: {0}]
  %s11 = inlined_call_operand.vmem [shape: f32[8,128], index: 11, kind: output, shape index: {1}]
  %12 = xla_tuple %s10, %s11
  %s13 = sld [smem:[#allocation0]]
  $region90: #{autoencoder_forward.1} parent=0
    _
  %s15 = ssub.s32 1, %s13
  %s16 = scalar_select 0, %s15, %s13
  $region1: #{autoencoder_forward.1} parent=0
    #allocation2 [shape = 'u8[2228224]{0}', space=vmem, size = 0x220000, scoped, tag = 'input window, operand 1, single buffered']
    #allocation3 [shape = 's32[1]{0}', space=sflag, size = 0x4, scoped, tag = 'scoped memory for autoencoder_forward.1']
    #allocation4 [shape = 'u8[2048]{0}', space=vmem, size = 0x800, scoped, tag = 'input window, operand 2, single buffered']
    #allocation5 [shape = 's32[1]{0}', space=sflag, size = 0x4, scoped, tag = 'scoped memory for autoencoder_forward.1']
    #allocation6 [shape = 'u8[262144]{0}', space=vmem, size = 0x40000, scoped, tag = 'input window, operand 3, single buffered']
    #allocation7 [shape = 'u8[512]{0}', space=vmem, size = 0x400, scoped, tag = 'input window, operand 4, single buffered']
    #allocation8 [shape = 's32[1]{0}', space=sflag, size = 0x4, scoped, tag = 'scoped memory for autoencoder_forward.1']
    #allocation9 [shape = 'u8[262144]{0}', space=vmem, size = 0x40000, scoped, tag = 'input window, operand 6, single buffered']
    #allocation10 [shape = 'u8[2048]{0}', space=vmem, size = 0x800, scoped, tag = 'input window, operand 7, single buffered']
    #allocation11 [shape = 's32[1]{0}', space=sflag, size = 0x4, scoped, tag = 'scoped memory for autoencoder_forward.1']
    #allocation12 [shape = 'u8[2228224]{0}', space=vmem, size = 0x220000, scoped, tag = 'input window, operand 8, single buffered']
    #allocation13 [shape = 'u8[8704]{0}', space=vmem, size = 0x2400, scoped, tag = 'input window, operand 9, single buffered']
    #allocation14 [shape = 's32[1]{0}', space=sflag, size = 0x4, scoped, tag = 'scoped memory for autoencoder_forward.1']
    %17 = vsyncpa [#allocation3], 0
    %18 = vsyncpa [#allocation5], 0
    %19 = vsyncpa [#allocation8], 0
    %20 = vsyncpa [#allocation11], 0
    %21 = vsyncpa [#allocation14], 0
    // Predicated region
    $region2: #{autoencoder_forward.1} parent=1 // pred_check
      _
    $region3: #{autoencoder_forward.1} parent=1 // pred_check_branch
      %23 = sbr.rel (0) target = $region5
    $region4: #{autoencoder_forward.1} parent=1 // pred_region
      _
    $region5: #{autoencoder_forward.1} parent=1 // pred_fallthru
      _
    // Predicated region
    $region6: #{autoencoder_forward.1} parent=1 // pred_check
      _
    $region7: #{autoencoder_forward.1} parent=1 // pred_check_branch
      %25 = sbr.rel (0) target = $region9
    $region8: #{autoencoder_forward.1} parent=1 // pred_region
      %27 = vsyncadd [#allocation3], 0
      %s28 = sshll.u32 %s1, 4
      %s29 = int_to_ptr.hbm [resolvable:$true] %s28
      %s30 = sshll.u32 [#allocation2], 4
      %s31 = int_to_ptr.vmem [resolvable:$true] %s30
      %36 = dma.hbm_to_vmem [thread:$0]  %s29, 69632, %s31, [#allocation3], 256, 256, 16
    $region9: #{autoencoder_forward.1} parent=1 // pred_fallthru
      _
    // Predicated region
    $region10: #{autoencoder_forward.1} parent=1 // pred_check
      _
    $region11: #{autoencoder_forward.1} parent=1 // pred_check_branch
      %38 = sbr.rel (0) target = $region13
    $region12: #{autoencoder_forward.1} parent=1 // pred_region
      %40 = vsyncadd [#allocation5], 0
      %s42 = sshll.u32 %s2, 4
      %s43 = int_to_ptr.hbm [resolvable:$true] %s42
      %s44 = sshll.u32 [#allocation4], 4
      %s45 = int_to_ptr.vmem [resolvable:$true] %s44
      %47 = dma.hbm_to_vmem [thread:$0]  %s43, 64, %s45, [#allocation5]
    $region13: #{autoencoder_forward.1} parent=1 // pred_fallthru
      _
    // Predicated region
    $region14: #{autoencoder_forward.1} parent=1 // pred_check
      _
    $region15: #{autoencoder_forward.1} parent=1 // pred_check_branch
      %49 = sbr.rel (0) target = $region17
    $region16: #{autoencoder_forward.1} parent=1 // pred_region
      %51 = vsyncadd [#allocation5], 0
      %s52 = sshll.u32 %s3, 4
      %s53 = int_to_ptr.hbm [resolvable:$true] %s52
      %s54 = sshll.u32 [#allocation6], 4
      %s55 = int_to_ptr.vmem [resolvable:$true] %s54
      %60 = dma.hbm_to_vmem [thread:$0]  %s53, 8192, %s55, [#allocation5], 128, 128, 8
    $region17: #{autoencoder_forward.1} parent=1 // pred_fallthru
      _
    // Predicated region
    $region18: #{autoencoder_forward.1} parent=1 // pred_check
      _
    $region19: #{autoencoder_forward.1} parent=1 // pred_check_branch
      %62 = sbr.rel (0) target = $region21
    $region20: #{autoencoder_forward.1} parent=1 // pred_region
      %64 = vsyncadd [#allocation8], 0
      %s66 = sshll.u32 %s4, 4
      %s67 = int_to_ptr.hbm [resolvable:$true] %s66
      %s68 = sshll.u32 [#allocation7], 4
      %s69 = int_to_ptr.vmem [resolvable:$true] %s68
      %71 = dma.hbm_to_vmem [thread:$0]  %s67, 16, %s69, [#allocation8]
    $region21: #{autoencoder_forward.1} parent=1 // pred_fallthru
      _
    // Predicated region
    $region22: #{autoencoder_forward.1} parent=1 // pred_check
      _
    $region23: #{autoencoder_forward.1} parent=1 // pred_check_branch
      %73 = sbr.rel (0) target = $region25
    $region24: #{autoencoder_forward.1} parent=1 // pred_region
      _
    $region25: #{autoencoder_forward.1} parent=1 // pred_fallthru
      _
    // Predicated region
    $region26: #{autoencoder_forward.1} parent=1 // pred_check
      _
    $region27: #{autoencoder_forward.1} parent=1 // pred_check_branch
      %75 = sbr.rel (0) target = $region29
    $region28: #{autoencoder_forward.1} parent=1 // pred_region
      %77 = vsyncadd [#allocation8], 0
      %s78 = sshll.u32 %s6, 4
      %s79 = int_to_ptr.hbm [resolvable:$true] %s78
      %s80 = sshll.u32 [#allocation9], 4
      %s81 = int_to_ptr.vmem [resolvable:$true] %s80
      %86 = dma.hbm_to_vmem [thread:$0]  %s79, 8192, %s81, [#allocation8], 512, 512, 32
    $region29: #{autoencoder_forward.1} parent=1 // pred_fallthru
      _
    // Predicated region
    $region30: #{autoencoder_forward.1} parent=1 // pred_check
      _
    $region31: #{autoencoder_forward.1} parent=1 // pred_check_branch
      %88 = sbr.rel (0) target = $region33
    $region32: #{autoencoder_forward.1} parent=1 // pred_region
      %90 = vsyncadd [#allocation11], 0
      %s92 = sshll.u32 %s7, 4
      %s93 = int_to_ptr.hbm [resolvable:$true] %s92
      %s94 = sshll.u32 [#allocation10], 4
      %s95 = int_to_ptr.vmem [resolvable:$true] %s94
      %97 = dma.hbm_to_vmem [thread:$0]  %s93, 64, %s95, [#allocation11]
    $region33: #{autoencoder_forward.1} parent=1 // pred_fallthru
      _
    // Predicated region
    $region34: #{autoencoder_forward.1} parent=1 // pred_check
      _
    $region35: #{autoencoder_forward.1} parent=1 // pred_check_branch
      %99 = sbr.rel (0) target = $region37
    $region36: #{autoencoder_forward.1} parent=1 // pred_region
      %101 = vsyncadd [#allocation11], 0
      %s102 = sshll.u32 %s8, 4
      %s103 = int_to_ptr.hbm [resolvable:$true] %s102
      %s104 = sshll.u32 [#allocation12], 4
      %s105 = int_to_ptr.vmem [resolvable:$true] %s104
      %110 = dma.hbm_to_vmem [thread:$0]  %s103, 69632, %s105, [#allocation11], 1088, 1088, 68
    $region37: #{autoencoder_forward.1} parent=1 // pred_fallthru
      _
    // Predicated region
    $region38: #{autoencoder_forward.1} parent=1 // pred_check
      _
    $region39: #{autoencoder_forward.1} parent=1 // pred_check_branch
      %112 = sbr.rel (0) target = $region41
    $region40: #{autoencoder_forward.1} parent=1 // pred_region
      %114 = vsyncadd [#allocation14], 0
      %s116 = sshll.u32 %s9, 4
      %s117 = int_to_ptr.hbm [resolvable:$true] %s116
      %s118 = sshll.u32 [#allocation13], 4
      %s119 = int_to_ptr.vmem [resolvable:$true] %s118
      %121 = dma.hbm_to_vmem [thread:$0]  %s117, 272, %s119, [#allocation14]
    $region41: #{autoencoder_forward.1} parent=1 // pred_fallthru
      _
    // Predicated region
    $region42: #{autoencoder_forward.1} parent=1 // pred_check
      _
    $region43: #{autoencoder_forward.1} parent=1 // pred_check_branch
      %123 = sbr.rel (0) target = $region45
    $region44: #{autoencoder_forward.1} parent=1 // pred_region
      %125 = dma.done [#allocation3], 69632
    $region45: #{autoencoder_forward.1} parent=1 // pred_fallthru
      _
    // Predicated region
    $region46: #{autoencoder_forward.1} parent=1 // pred_check
      _
    $region47: #{autoencoder_forward.1} parent=1 // pred_check_branch
      %127 = sbr.rel (0) target = $region49
    $region48: #{autoencoder_forward.1} parent=1 // pred_region
      %129 = dma.done [#allocation5], 64
    $region49: #{autoencoder_forward.1} parent=1 // pred_fallthru
      _
    // Predicated region
    $region50: #{autoencoder_forward.1} parent=1 // pred_check
      _
    $region51: #{autoencoder_forward.1} parent=1 // pred_check_branch
      %131 = sbr.rel (0) target = $region53
    $region52: #{autoencoder_forward.1} parent=1 // pred_region
      %133 = dma.done [#allocation5], 8192
    $region53: #{autoencoder_forward.1} parent=1 // pred_fallthru
      _
    // Predicated region
    $region54: #{autoencoder_forward.1} parent=1 // pred_check
      _
    $region55: #{autoencoder_forward.1} parent=1 // pred_check_branch
      %135 = sbr.rel (0) target = $region57
    $region56: #{autoencoder_forward.1} parent=1 // pred_region
      %137 = dma.done [#allocation8], 16
    $region57: #{autoencoder_forward.1} parent=1 // pred_fallthru
      _
    // Predicated region
    $region58: #{autoencoder_forward.1} parent=1 // pred_check
      _
    $region59: #{autoencoder_forward.1} parent=1 // pred_check_branch
      %139 = sbr.rel (0) target = $region61
    $region60: #{autoencoder_forward.1} parent=1 // pred_region
      %141 = dma.done [#allocation8], 8192
    $region61: #{autoencoder_forward.1} parent=1 // pred_fallthru
      _
    // Predicated region
    $region62: #{autoencoder_forward.1} parent=1 // pred_check
      _
    $region63: #{autoencoder_forward.1} parent=1 // pred_check_branch
      %143 = sbr.rel (0) target = $region65
    $region64: #{autoencoder_forward.1} parent=1 // pred_region
      %145 = dma.done [#allocation11], 64
    $region65: #{autoencoder_forward.1} parent=1 // pred_fallthru
      _
    // Predicated region
    $region66: #{autoencoder_forward.1} parent=1 // pred_check
      _
    $region67: #{autoencoder_forward.1} parent=1 // pred_check_branch
      %147 = sbr.rel (0) target = $region69
    $region68: #{autoencoder_forward.1} parent=1 // pred_region
      %149 = dma.done [#allocation11], 69632
    $region69: #{autoencoder_forward.1} parent=1 // pred_fallthru
      _
    // Predicated region
    $region70: #{autoencoder_forward.1} parent=1 // pred_check
      _
    $region71: #{autoencoder_forward.1} parent=1 // pred_check_branch
      %151 = sbr.rel (0) target = $region73
    $region72: #{autoencoder_forward.1} parent=1 // pred_region
      %153 = dma.done [#allocation14], 272
    $region73: #{autoencoder_forward.1} parent=1 // pred_fallthru
      _
    %v154 = vld [vmem:[%s0] sm:$0xff]
    %v155 = vld [vmem:[%s0 + $0x8] sm:$0xff]
    %v156 = vld [vmem:[%s0 + $0x10] sm:$0xff]
    %v157 = vld [vmem:[%s0 + $0x18] sm:$0xff]
    %v158 = vld [vmem:[%s0 + $0x20] sm:$0xff]
    %v159 = vld [vmem:[%s0 + $0x28] sm:$0xff]
    %v160 = vld [vmem:[%s0 + $0x30] sm:$0xff]
    %v161 = vld [vmem:[%s0 + $0x38] sm:$0xff]
    %v162 = vld [vmem:[%s0 + $0x40] sm:$0xf]
    %v163 = vld [vmem:[#allocation2] sm:$0xff]
    %v164 = vld [vmem:[#allocation2 + $0x8] sm:$0xff]
    %v165 = vld [vmem:[#allocation2 + $0x10] sm:$0xff]
    %v166 = vld [vmem:[#allocation2 + $0x18] sm:$0xff]
    %v167 = vld [vmem:[#allocation2 + $0x20] sm:$0xff]
    %v168 = vld [vmem:[#allocation2 + $0x28] sm:$0xff]
    %v169 = vld [vmem:[#allocation2 + $0x30] sm:$0xff]
    %v170 = vld [vmem:[#allocation2 + $0x38] sm:$0xff]
    %v171 = vld [vmem:[#allocation2 + $0x40] sm:$0xff]
    %v172 = vld [vmem:[#allocation2 + $0x48] sm:$0xff]
    %v173 = vld [vmem:[#allocation2 + $0x50] sm:$0xff]
    %v174 = vld [vmem:[#allocation2 + $0x58] sm:$0xff]
    %v175 = vld [vmem:[#allocation2 + $0x60] sm:$0xff]
    %v176 = vld [vmem:[#allocation2 + $0x68] sm:$0xff]
    %v177 = vld [vmem:[#allocation2 + $0x70] sm:$0xff]
    %v178 = vld [vmem:[#allocation2 + $0x78] sm:$0xff]
    %v179 = vld [vmem:[#allocation2 + $0x80] sm:$0xff]
    %v180 = vld [vmem:[#allocation2 + $0x88] sm:$0xff]
    %v181 = vld [vmem:[#allocation2 + $0x90] sm:$0xff]
    %v182 = vld [vmem:[#allocation2 + $0x98] sm:$0xff]
    %v183 = vld [vmem:[#allocation2 + $0xa0] sm:$0xff]
    %v184 = vld [vmem:[#allocation2 + $0xa8] sm:$0xff]
    %v185 = vld [vmem:[#allocation2 + $0xb0] sm:$0xff]
    %v186 = vld [vmem:[#allocation2 + $0xb8] sm:$0xff]
    %v187 = vld [vmem:[#allocation2 + $0xc0] sm:$0xff]
    %v188 = vld [vmem:[#allocation2 + $0xc8] sm:$0xff]
    %v189 = vld [vmem:[#allocation2 + $0xd0] sm:$0xff]
    %v190 = vld [vmem:[#allocation2 + $0xd8] sm:$0xff]
    %v191 = vld [vmem:[#allocation2 + $0xe0] sm:$0xff]
    %v192 = vld [vmem:[#allocation2 + $0xe8] sm:$0xff]
    %v193 = vld [vmem:[#allocation2 + $0xf0] sm:$0xff]
    %v194 = vld [vmem:[#allocation2 + $0xf8] sm:$0xff]
    %v195 = vld [vmem:[#allocation2 + $0x100] sm:$0xff]
    %v196 = vld [vmem:[#allocation2 + $0x108] sm:$0xff]
    %v197 = vld [vmem:[#allocation2 + $0x110] sm:$0xff]
    %v198 = vld [vmem:[#allocation2 + $0x118] sm:$0xff]
    %v199 = vld [vmem:[#allocation2 + $0x120] sm:$0xff]
    %v200 = vld [vmem:[#allocation2 + $0x128] sm:$0xff]
    %v201 = vld [vmem:[#allocation2 + $0x130] sm:$0xff]
    %v202 = vld [vmem:[#allocation2 + $0x138] sm:$0xff]
    %v203 = vld [vmem:[#allocation2 + $0x140] sm:$0xff]
    %v204 = vld [vmem:[#allocation2 + $0x148] sm:$0xff]
    %v205 = vld [vmem:[#allocation2 + $0x150] sm:$0xff]
    %v206 = vld [vmem:[#allocation2 + $0x158] sm:$0xff]
    %v207 = vld [vmem:[#allocation2 + $0x160] sm:$0xff]
    %v208 = vld [vmem:[#allocation2 + $0x168] sm:$0xff]
    %v209 = vld [vmem:[#allocation2 + $0x170] sm:$0xff]
    %v210 = vld [vmem:[#allocation2 + $0x178] sm:$0xff]
    %v211 = vld [vmem:[#allocation2 + $0x180] sm:$0xff]
    %v212 = vld [vmem:[#allocation2 + $0x188] sm:$0xff]
    %v213 = vld [vmem:[#allocation2 + $0x190] sm:$0xff]
    %v214 = vld [vmem:[#allocation2 + $0x198] sm:$0xff]
    %v215 = vld [vmem:[#allocation2 + $0x1a0] sm:$0xff]
    %v216 = vld [vmem:[#allocation2 + $0x1a8] sm:$0xff]
    %v217 = vld [vmem:[#allocation2 + $0x1b0] sm:$0xff]
    %v218 = vld [vmem:[#allocation2 + $0x1b8] sm:$0xff]
    %v219 = vld [vmem:[#allocation2 + $0x1c0] sm:$0xff]
    %v220 = vld [vmem:[#allocation2 + $0x1c8] sm:$0xff]
    %v221 = vld [vmem:[#allocation2 + $0x1d0] sm:$0xff]
    %v222 = vld [vmem:[#allocation2 + $0x1d8] sm:$0xff]
    %v223 = vld [vmem:[#allocation2 + $0x1e0] sm:$0xff]
    %v224 = vld [vmem:[#allocation2 + $0x1e8] sm:$0xff]
    %v225 = vld [vmem:[#allocation2 + $0x1f0] sm:$0xff]
    %v226 = vld [vmem:[#allocation2 + $0x1f8] sm:$0xff]
    %v227 = vld [vmem:[#allocation2 + $0x200] sm:$0xff]
    %v228 = vld [vmem:[#allocation2 + $0x208] sm:$0xff]
    %v229 = vld [vmem:[#allocation2 + $0x210] sm:$0xff]
    %v230 = vld [vmem:[#allocation2 + $0x218] sm:$0xff]
    %v231 = vld [vmem:[#allocation2 + $0x220] sm:$0xff]
    %v232 = vld [vmem:[#allocation2 + $0x228] sm:$0xff]
    %v233 = vld [vmem:[#allocation2 + $0x230] sm:$0xff]
    %v234 = vld [vmem:[#allocation2 + $0x238] sm:$0xff]
    %v235 = vld [vmem:[#allocation2 + $0x240] sm:$0xff]
    %v236 = vld [vmem:[#allocation2 + $0x248] sm:$0xff]
    %v237 = vld [vmem:[#allocation2 + $0x250] sm:$0xff]
    %v238 = vld [vmem:[#allocation2 + $0x258] sm:$0xff]
    %v239 = vld [vmem:[#allocation2 + $0x260] sm:$0xff]
    %v240 = vld [vmem:[#allocation2 + $0x268] sm:$0xff]
    %v241 = vld [vmem:[#allocation2 + $0x270] sm:$0xff]
    %v242 = vld [vmem:[#allocation2 + $0x278] sm:$0xff]
    %v243 = vld [vmem:[#allocation2 + $0x280] sm:$0xff]
    %v244 = vld [vmem:[#allocation2 + $0x288] sm:$0xff]
    %v245 = vld [vmem:[#allocation2 + $0x290] sm:$0xff]
    %v246 = vld [vmem:[#allocation2 + $0x298] sm:$0xff]
    %v247 = vld [vmem:[#allocation2 + $0x2a0] sm:$0xff]
    %v248 = vld [vmem:[#allocation2 + $0x2a8] sm:$0xff]
    %v249 = vld [vmem:[#allocation2 + $0x2b0] sm:$0xff]
    %v250 = vld [vmem:[#allocation2 + $0x2b8] sm:$0xff]
    %v251 = vld [vmem:[#allocation2 + $0x2c0] sm:$0xff]
    %v252 = vld [vmem:[#allocation2 + $0x2c8] sm:$0xff]
    %v253 = vld [vmem:[#allocation2 + $0x2d0] sm:$0xff]
    %v254 = vld [vmem:[#allocation2 + $0x2d8] sm:$0xff]
    %v255 = vld [vmem:[#allocation2 + $0x2e0] sm:$0xff]
    %v256 = vld [vmem:[#allocation2 + $0x2e8] sm:$0xff]
    %v257 = vld [vmem:[#allocation2 + $0x2f0] sm:$0xff]
    %v258 = vld [vmem:[#allocation2 + $0x2f8] sm:$0xff]
    %v259 = vld [vmem:[#allocation2 + $0x300] sm:$0xff]
    %v260 = vld [vmem:[#allocation2 + $0x308] sm:$0xff]
    %v261 = vld [vmem:[#allocation2 + $0x310] sm:$0xff]
    %v262 = vld [vmem:[#allocation2 + $0x318] sm:$0xff]
    %v263 = vld [vmem:[#allocation2 + $0x320] sm:$0xff]
    %v264 = vld [vmem:[#allocation2 + $0x328] sm:$0xff]
    %v265 = vld [vmem:[#allocation2 + $0x330] sm:$0xff]
    %v266 = vld [vmem:[#allocation2 + $0x338] sm:$0xff]
    %v267 = vld [vmem:[#allocation2 + $0x340] sm:$0xff]
    %v268 = vld [vmem:[#allocation2 + $0x348] sm:$0xff]
    %v269 = vld [vmem:[#allocation2 + $0x350] sm:$0xff]
    %v270 = vld [vmem:[#allocation2 + $0x358] sm:$0xff]
    %v271 = vld [vmem:[#allocation2 + $0x360] sm:$0xff]
    %v272 = vld [vmem:[#allocation2 + $0x368] sm:$0xff]
    %v273 = vld [vmem:[#allocation2 + $0x370] sm:$0xff]
    %v274 = vld [vmem:[#allocation2 + $0x378] sm:$0xff]
    %v275 = vld [vmem:[#allocation2 + $0x380] sm:$0xff]
    %v276 = vld [vmem:[#allocation2 + $0x388] sm:$0xff]
    %v277 = vld [vmem:[#allocation2 + $0x390] sm:$0xff]
    %v278 = vld [vmem:[#allocation2 + $0x398] sm:$0xff]
    %v279 = vld [vmem:[#allocation2 + $0x3a0] sm:$0xff]
    %v280 = vld [vmem:[#allocation2 + $0x3a8] sm:$0xff]
    %v281 = vld [vmem:[#allocation2 + $0x3b0] sm:$0xff]
    %v282 = vld [vmem:[#allocation2 + $0x3b8] sm:$0xff]
    %v283 = vld [vmem:[#allocation2 + $0x3c0] sm:$0xff]
    %v284 = vld [vmem:[#allocation2 + $0x3c8] sm:$0xff]
    %v285 = vld [vmem:[#allocation2 + $0x3d0] sm:$0xff]
    %v286 = vld [vmem:[#allocation2 + $0x3d8] sm:$0xff]
    %v287 = vld [vmem:[#allocation2 + $0x3e0] sm:$0xff]
    %v288 = vld [vmem:[#allocation2 + $0x3e8] sm:$0xff]
    %v289 = vld [vmem:[#allocation2 + $0x3f0] sm:$0xff]
    %v290 = vld [vmem:[#allocation2 + $0x3f8] sm:$0xff]
    %v291 = vld [vmem:[#allocation2 + $0x400] sm:$0xff]
    %v292 = vld [vmem:[#allocation2 + $0x408] sm:$0xff]
    %v293 = vld [vmem:[#allocation2 + $0x410] sm:$0xff]
    %v294 = vld [vmem:[#allocation2 + $0x418] sm:$0xff]
    %v295 = vld [vmem:[#allocation2 + $0x420] sm:$0xff]
    %v296 = vld [vmem:[#allocation2 + $0x428] sm:$0xff]
    %v297 = vld [vmem:[#allocation2 + $0x430] sm:$0xff]
    %v298 = vld [vmem:[#allocation2 + $0x438] sm:$0xff]
    %v299 = vld [vmem:[#allocation2 + $0x440] sm:$0xff]
    %v300 = vld [vmem:[#allocation2 + $0x448] sm:$0xff]
    %v301 = vld [vmem:[#allocation2 + $0x450] sm:$0xff]
    %v302 = vld [vmem:[#allocation2 + $0x458] sm:$0xff]
    %v303 = vld [vmem:[#allocation2 + $0x460] sm:$0xff]
    %v304 = vld [vmem:[#allocation2 + $0x468] sm:$0xff]
    %v305 = vld [vmem:[#allocation2 + $0x470] sm:$0xff]
    %v306 = vld [vmem:[#allocation2 + $0x478] sm:$0xff]
    %v307 = vld [vmem:[#allocation2 + $0x480] sm:$0xff]
    %v308 = vld [vmem:[#allocation2 + $0x488] sm:$0xff]
    %v309 = vld [vmem:[#allocation2 + $0x490] sm:$0xff]
    %v310 = vld [vmem:[#allocation2 + $0x498] sm:$0xff]
    %v311 = vld [vmem:[#allocation2 + $0x4a0] sm:$0xff]
    %v312 = vld [vmem:[#allocation2 + $0x4a8] sm:$0xff]
    %v313 = vld [vmem:[#allocation2 + $0x4b0] sm:$0xff]
    %v314 = vld [vmem:[#allocation2 + $0x4b8] sm:$0xff]
    %v315 = vld [vmem:[#allocation2 + $0x4c0] sm:$0xff]
    %v316 = vld [vmem:[#allocation2 + $0x4c8] sm:$0xff]
    %v317 = vld [vmem:[#allocation2 + $0x4d0] sm:$0xff]
    %v318 = vld [vmem:[#allocation2 + $0x4d8] sm:$0xff]
    %v319 = vld [vmem:[#allocation2 + $0x4e0] sm:$0xff]
    %v320 = vld [vmem:[#allocation2 + $0x4e8] sm:$0xff]
    %v321 = vld [vmem:[#allocation2 + $0x4f0] sm:$0xff]
    %v322 = vld [vmem:[#allocation2 + $0x4f8] sm:$0xff]
    %v323 = vld [vmem:[#allocation2 + $0x500] sm:$0xff]
    %v324 = vld [vmem:[#allocation2 + $0x508] sm:$0xff]
    %v325 = vld [vmem:[#allocation2 + $0x510] sm:$0xff]
    %v326 = vld [vmem:[#allocation2 + $0x518] sm:$0xff]
    %v327 = vld [vmem:[#allocation2 + $0x520] sm:$0xff]
    %v328 = vld [vmem:[#allocation2 + $0x528] sm:$0xff]
    %v329 = vld [vmem:[#allocation2 + $0x530] sm:$0xff]
    %v330 = vld [vmem:[#allocation2 + $0x538] sm:$0xff]
    %v331 = vld [vmem:[#allocation2 + $0x540] sm:$0xff]
    %v332 = vld [vmem:[#allocation2 + $0x548] sm:$0xff]
    %v333 = vld [vmem:[#allocation2 + $0x550] sm:$0xff]
    %v334 = vld [vmem:[#allocation2 + $0x558] sm:$0xff]
    %v335 = vld [vmem:[#allocation2 + $0x560] sm:$0xff]
    %v336 = vld [vmem:[#allocation2 + $0x568] sm:$0xff]
    %v337 = vld [vmem:[#allocation2 + $0x570] sm:$0xff]
    %v338 = vld [vmem:[#allocation2 + $0x578] sm:$0xff]
    %v339 = vld [vmem:[#allocation2 + $0x580] sm:$0xff]
    %v340 = vld [vmem:[#allocation2 + $0x588] sm:$0xff]
    %v341 = vld [vmem:[#allocation2 + $0x590] sm:$0xff]
    %v342 = vld [vmem:[#allocation2 + $0x598] sm:$0xff]
    %v343 = vld [vmem:[#allocation2 + $0x5a0] sm:$0xff]
    %v344 = vld [vmem:[#allocation2 + $0x5a8] sm:$0xff]
    %v345 = vld [vmem:[#allocation2 + $0x5b0] sm:$0xff]
    %v346 = vld [vmem:[#allocation2 + $0x5b8] sm:$0xff]
    %v347 = vld [vmem:[#allocation2 + $0x5c0] sm:$0xff]
    %v348 = vld [vmem:[#allocation2 + $0x5c8] sm:$0xff]
    %v349 = vld [vmem:[#allocation2 + $0x5d0] sm:$0xff]
    %v350 = vld [vmem:[#allocation2 + $0x5d8] sm:$0xff]
    %v351 = vld [vmem:[#allocation2 + $0x5e0] sm:$0xff]
    %v352 = vld [vmem:[#allocation2 + $0x5e8] sm:$0xff]
    %v353 = vld [vmem:[#allocation2 + $0x5f0] sm:$0xff]
    %v354 = vld [vmem:[#allocation2 + $0x5f8] sm:$0xff]
    %v355 = vld [vmem:[#allocation2 + $0x600] sm:$0xff]
    %v356 = vld [vmem:[#allocation2 + $0x608] sm:$0xff]
    %v357 = vld [vmem:[#allocation2 + $0x610] sm:$0xff]
    %v358 = vld [vmem:[#allocation2 + $0x618] sm:$0xff]
    %v359 = vld [vmem:[#allocation2 + $0x620] sm:$0xff]
    %v360 = vld [vmem:[#allocation2 + $0x628] sm:$0xff]
    %v361 = vld [vmem:[#allocation2 + $0x630] sm:$0xff]
    %v362 = vld [vmem:[#allocation2 + $0x638] sm:$0xff]
    %v363 = vld [vmem:[#allocation2 + $0x640] sm:$0xff]
    %v364 = vld [vmem:[#allocation2 + $0x648] sm:$0xff]
    %v365 = vld [vmem:[#allocation2 + $0x650] sm:$0xff]
    %v366 = vld [vmem:[#allocation2 + $0x658] sm:$0xff]
    %v367 = vld [vmem:[#allocation2 + $0x660] sm:$0xff]
    %v368 = vld [vmem:[#allocation2 + $0x668] sm:$0xff]
    %v369 = vld [vmem:[#allocation2 + $0x670] sm:$0xff]
    %v370 = vld [vmem:[#allocation2 + $0x678] sm:$0xff]
    %v371 = vld [vmem:[#allocation2 + $0x680] sm:$0xff]
    %v372 = vld [vmem:[#allocation2 + $0x688] sm:$0xff]
    %v373 = vld [vmem:[#allocation2 + $0x690] sm:$0xff]
    %v374 = vld [vmem:[#allocation2 + $0x698] sm:$0xff]
    %v375 = vld [vmem:[#allocation2 + $0x6a0] sm:$0xff]
    %v376 = vld [vmem:[#allocation2 + $0x6a8] sm:$0xff]
    %v377 = vld [vmem:[#allocation2 + $0x6b0] sm:$0xff]
    %v378 = vld [vmem:[#allocation2 + $0x6b8] sm:$0xff]
    %v379 = vld [vmem:[#allocation2 + $0x6c0] sm:$0xff]
    %v380 = vld [vmem:[#allocation2 + $0x6c8] sm:$0xff]
    %v381 = vld [vmem:[#allocation2 + $0x6d0] sm:$0xff]
    %v382 = vld [vmem:[#allocation2 + $0x6d8] sm:$0xff]
    %v383 = vld [vmem:[#allocation2 + $0x6e0] sm:$0xff]
    %v384 = vld [vmem:[#allocation2 + $0x6e8] sm:$0xff]
    %v385 = vld [vmem:[#allocation2 + $0x6f0] sm:$0xff]
    %v386 = vld [vmem:[#allocation2 + $0x6f8] sm:$0xff]
    %v387 = vld [vmem:[#allocation2 + $0x700] sm:$0xff]
    %v388 = vld [vmem:[#allocation2 + $0x708] sm:$0xff]
    %v389 = vld [vmem:[#allocation2 + $0x710] sm:$0xff]
    %v390 = vld [vmem:[#allocation2 + $0x718] sm:$0xff]
    %v391 = vld [vmem:[#allocation2 + $0x720] sm:$0xff]
    %v392 = vld [vmem:[#allocation2 + $0x728] sm:$0xff]
    %v393 = vld [vmem:[#allocation2 + $0x730] sm:$0xff]
    %v394 = vld [vmem:[#allocation2 + $0x738] sm:$0xff]
    %v395 = vld [vmem:[#allocation2 + $0x740] sm:$0xff]
    %v396 = vld [vmem:[#allocation2 + $0x748] sm:$0xff]
    %v397 = vld [vmem:[#allocation2 + $0x750] sm:$0xff]
    %v398 = vld [vmem:[#allocation2 + $0x758] sm:$0xff]
    %v399 = vld [vmem:[#allocation2 + $0x760] sm:$0xff]
    %v400 = vld [vmem:[#allocation2 + $0x768] sm:$0xff]
    %v401 = vld [vmem:[#allocation2 + $0x770] sm:$0xff]
    %v402 = vld [vmem:[#allocation2 + $0x778] sm:$0xff]
    %v403 = vld [vmem:[#allocation2 + $0x780] sm:$0xff]
    %v404 = vld [vmem:[#allocation2 + $0x788] sm:$0xff]
    %v405 = vld [vmem:[#allocation2 + $0x790] sm:$0xff]
    %v406 = vld [vmem:[#allocation2 + $0x798] sm:$0xff]
    %v407 = vld [vmem:[#allocation2 + $0x7a0] sm:$0xff]
    %v408 = vld [vmem:[#allocation2 + $0x7a8] sm:$0xff]
    %v409 = vld [vmem:[#allocation2 + $0x7b0] sm:$0xff]
    %v410 = vld [vmem:[#allocation2 + $0x7b8] sm:$0xff]
    %v411 = vld [vmem:[#allocation2 + $0x7c0] sm:$0xff]
    %v412 = vld [vmem:[#allocation2 + $0x7c8] sm:$0xff]
    %v413 = vld [vmem:[#allocation2 + $0x7d0] sm:$0xff]
    %v414 = vld [vmem:[#allocation2 + $0x7d8] sm:$0xff]
    %v415 = vld [vmem:[#allocation2 + $0x7e0] sm:$0xff]
    %v416 = vld [vmem:[#allocation2 + $0x7e8] sm:$0xff]
    %v417 = vld [vmem:[#allocation2 + $0x7f0] sm:$0xff]
    %v418 = vld [vmem:[#allocation2 + $0x7f8] sm:$0xff]
    %v419 = vld [vmem:[#allocation2 + $0x800] sm:$0xff]
    %v420 = vld [vmem:[#allocation2 + $0x808] sm:$0xff]
    %v421 = vld [vmem:[#allocation2 + $0x810] sm:$0xff]
    %v422 = vld [vmem:[#allocation2 + $0x818] sm:$0xff]
    %v423 = vld [vmem:[#allocation2 + $0x820] sm:$0xff]
    %v424 = vld [vmem:[#allocation2 + $0x828] sm:$0xff]
    %v425 = vld [vmem:[#allocation2 + $0x830] sm:$0xff]
    %v426 = vld [vmem:[#allocation2 + $0x838] sm:$0xff]
    %v427 = vld [vmem:[#allocation2 + $0x840] sm:$0xff]
    %v428 = vld [vmem:[#allocation2 + $0x848] sm:$0xff]
    %v429 = vld [vmem:[#allocation2 + $0x850] sm:$0xff]
    %v430 = vld [vmem:[#allocation2 + $0x858] sm:$0xff]
    %v431 = vld [vmem:[#allocation2 + $0x860] sm:$0xff]
    %v432 = vld [vmem:[#allocation2 + $0x868] sm:$0xff]
    %v433 = vld [vmem:[#allocation2 + $0x870] sm:$0xff]
    %v434 = vld [vmem:[#allocation2 + $0x878] sm:$0xff]
    %v435 = vld [vmem:[#allocation2 + $0x880] sm:$0xff]
    %v436 = vld [vmem:[#allocation2 + $0x888] sm:$0xff]
    %v437 = vld [vmem:[#allocation2 + $0x890] sm:$0xff]
    %v438 = vld [vmem:[#allocation2 + $0x898] sm:$0xff]
    %v439 = vld [vmem:[#allocation2 + $0x8a0] sm:$0xff]
    %v440 = vld [vmem:[#allocation2 + $0x8a8] sm:$0xff]
    %v441 = vld [vmem:[#allocation2 + $0x8b0] sm:$0xff]
    %v442 = vld [vmem:[#allocation2 + $0x8b8] sm:$0xff]
    %v443 = vld [vmem:[#allocation2 + $0x8c0] sm:$0xff]
    %v444 = vld [vmem:[#allocation2 + $0x8c8] sm:$0xff]
    %v445 = vld [vmem:[#allocation2 + $0x8d0] sm:$0xff]
    %v446 = vld [vmem:[#allocation2 + $0x8d8] sm:$0xff]
    %v447 = vld [vmem:[#allocation2 + $0x8e0] sm:$0xff]
    %v448 = vld [vmem:[#allocation2 + $0x8e8] sm:$0xff]
    %v449 = vld [vmem:[#allocation2 + $0x8f0] sm:$0xff]
    %v450 = vld [vmem:[#allocation2 + $0x8f8] sm:$0xff]
    %v451 = vld [vmem:[#allocation2 + $0x900] sm:$0xff]
    %v452 = vld [vmem:[#allocation2 + $0x908] sm:$0xff]
    %v453 = vld [vmem:[#allocation2 + $0x910] sm:$0xff]
    %v454 = vld [vmem:[#allocation2 + $0x918] sm:$0xff]
    %v455 = vld [vmem:[#allocation2 + $0x920] sm:$0xff]
    %v456 = vld [vmem:[#allocation2 + $0x928] sm:$0xff]
    %v457 = vld [vmem:[#allocation2 + $0x930] sm:$0xff]
    %v458 = vld [vmem:[#allocation2 + $0x938] sm:$0xff]
    %v459 = vld [vmem:[#allocation2 + $0x940] sm:$0xff]
    %v460 = vld [vmem:[#allocation2 + $0x948] sm:$0xff]
    %v461 = vld [vmem:[#allocation2 + $0x950] sm:$0xff]
    %v462 = vld [vmem:[#allocation2 + $0x958] sm:$0xff]
    %v463 = vld [vmem:[#allocation2 + $0x960] sm:$0xff]
    %v464 = vld [vmem:[#allocation2 + $0x968] sm:$0xff]
    %v465 = vld [vmem:[#allocation2 + $0x970] sm:$0xff]
    %v466 = vld [vmem:[#allocation2 + $0x978] sm:$0xff]
    %v467 = vld [vmem:[#allocation2 + $0x980] sm:$0xff]
    %v468 = vld [vmem:[#allocation2 + $0x988] sm:$0xff]
    %v469 = vld [vmem:[#allocation2 + $0x990] sm:$0xff]
    %v470 = vld [vmem:[#allocation2 + $0x998] sm:$0xff]
    %v471 = vld [vmem:[#allocation2 + $0x9a0] sm:$0xff]
    %v472 = vld [vmem:[#allocation2 + $0x9a8] sm:$0xff]
    %v473 = vld [vmem:[#allocation2 + $0x9b0] sm:$0xff]
    %v474 = vld [vmem:[#allocation2 + $0x9b8] sm:$0xff]
    %v475 = vld [vmem:[#allocation2 + $0x9c0] sm:$0xff]
    %v476 = vld [vmem:[#allocation2 + $0x9c8] sm:$0xff]
    %v477 = vld [vmem:[#allocation2 + $0x9d0] sm:$0xff]
    %v478 = vld [vmem:[#allocation2 + $0x9d8] sm:$0xff]
    %v479 = vld [vmem:[#allocation2 + $0x9e0] sm:$0xff]
    %v480 = vld [vmem:[#allocation2 + $0x9e8] sm:$0xff]
    %v481 = vld [vmem:[#allocation2 + $0x9f0] sm:$0xff]
    %v482 = vld [vmem:[#allocation2 + $0x9f8] sm:$0xff]
    %v483 = vld [vmem:[#allocation2 + $0xa00] sm:$0xff]
    %v484 = vld [vmem:[#allocation2 + $0xa08] sm:$0xff]
    %v485 = vld [vmem:[#allocation2 + $0xa10] sm:$0xff]
    %v486 = vld [vmem:[#allocation2 + $0xa18] sm:$0xff]
    %v487 = vld [vmem:[#allocation2 + $0xa20] sm:$0xff]
    %v488 = vld [vmem:[#allocation2 + $0xa28] sm:$0xff]
    %v489 = vld [vmem:[#allocation2 + $0xa30] sm:$0xff]
    %v490 = vld [vmem:[#allocation2 + $0xa38] sm:$0xff]
    %v491 = vld [vmem:[#allocation2 + $0xa40] sm:$0xff]
    %v492 = vld [vmem:[#allocation2 + $0xa48] sm:$0xff]
    %v493 = vld [vmem:[#allocation2 + $0xa50] sm:$0xff]
    %v494 = vld [vmem:[#allocation2 + $0xa58] sm:$0xff]
    %v495 = vld [vmem:[#allocation2 + $0xa60] sm:$0xff]
    %v496 = vld [vmem:[#allocation2 + $0xa68] sm:$0xff]
    %v497 = vld [vmem:[#allocation2 + $0xa70] sm:$0xff]
    %v498 = vld [vmem:[#allocation2 + $0xa78] sm:$0xff]
    %v499 = vld [vmem:[#allocation2 + $0xa80] sm:$0xff]
    %v500 = vld [vmem:[#allocation2 + $0xa88] sm:$0xff]
    %v501 = vld [vmem:[#allocation2 + $0xa90] sm:$0xff]
    %v502 = vld [vmem:[#allocation2 + $0xa98] sm:$0xff]
    %v503 = vld [vmem:[#allocation2 + $0xaa0] sm:$0xff]
    %v504 = vld [vmem:[#allocation2 + $0xaa8] sm:$0xff]
    %v505 = vld [vmem:[#allocation2 + $0xab0] sm:$0xff]
    %v506 = vld [vmem:[#allocation2 + $0xab8] sm:$0xff]
    %v507 = vld [vmem:[#allocation2 + $0xac0] sm:$0xff]
    %v508 = vld [vmem:[#allocation2 + $0xac8] sm:$0xff]
    %v509 = vld [vmem:[#allocation2 + $0xad0] sm:$0xff]
    %v510 = vld [vmem:[#allocation2 + $0xad8] sm:$0xff]
    %v511 = vld [vmem:[#allocation2 + $0xae0] sm:$0xff]
    %v512 = vld [vmem:[#allocation2 + $0xae8] sm:$0xff]
    %v513 = vld [vmem:[#allocation2 + $0xaf0] sm:$0xff]
    %v514 = vld [vmem:[#allocation2 + $0xaf8] sm:$0xff]
    %v515 = vld [vmem:[#allocation2 + $0xb00] sm:$0xff]
    %v516 = vld [vmem:[#allocation2 + $0xb08] sm:$0xff]
    %v517 = vld [vmem:[#allocation2 + $0xb10] sm:$0xff]
    %v518 = vld [vmem:[#allocation2 + $0xb18] sm:$0xff]
    %v519 = vld [vmem:[#allocation2 + $0xb20] sm:$0xff]
    %v520 = vld [vmem:[#allocation2 + $0xb28] sm:$0xff]
    %v521 = vld [vmem:[#allocation2 + $0xb30] sm:$0xff]
    %v522 = vld [vmem:[#allocation2 + $0xb38] sm:$0xff]
    %v523 = vld [vmem:[#allocation2 + $0xb40] sm:$0xff]
    %v524 = vld [vmem:[#allocation2 + $0xb48] sm:$0xff]
    %v525 = vld [vmem:[#allocation2 + $0xb50] sm:$0xff]
    %v526 = vld [vmem:[#allocation2 + $0xb58] sm:$0xff]
    %v527 = vld [vmem:[#allocation2 + $0xb60] sm:$0xff]
    %v528 = vld [vmem:[#allocation2 + $0xb68] sm:$0xff]
    %v529 = vld [vmem:[#allocation2 + $0xb70] sm:$0xff]
    %v530 = vld [vmem:[#allocation2 + $0xb78] sm:$0xff]
    %v531 = vld [vmem:[#allocation2 + $0xb80] sm:$0xff]
    %v532 = vld [vmem:[#allocation2 + $0xb88] sm:$0xff]
    %v533 = vld [vmem:[#allocation2 + $0xb90] sm:$0xff]
    %v534 = vld [vmem:[#allocation2 + $0xb98] sm:$0xff]
    %v535 = vld [vmem:[#allocation2 + $0xba0] sm:$0xff]
    %v536 = vld [vmem:[#allocation2 + $0xba8] sm:$0xff]
    %v537 = vld [vmem:[#allocation2 + $0xbb0] sm:$0xff]
    %v538 = vld [vmem:[#allocation2 + $0xbb8] sm:$0xff]
    %v539 = vld [vmem:[#allocation2 + $0xbc0] sm:$0xff]
    %v540 = vld [vmem:[#allocation2 + $0xbc8] sm:$0xff]
    %v541 = vld [vmem:[#allocation2 + $0xbd0] sm:$0xff]
    %v542 = vld [vmem:[#allocation2 + $0xbd8] sm:$0xff]
    %v543 = vld [vmem:[#allocation2 + $0xbe0] sm:$0xff]
    %v544 = vld [vmem:[#allocation2 + $0xbe8] sm:$0xff]
    %v545 = vld [vmem:[#allocation2 + $0xbf0] sm:$0xff]
    %v546 = vld [vmem:[#allocation2 + $0xbf8] sm:$0xff]
    %v547 = vld [vmem:[#allocation2 + $0xc00] sm:$0xff]
    %v548 = vld [vmem:[#allocation2 + $0xc08] sm:$0xff]
    %v549 = vld [vmem:[#allocation2 + $0xc10] sm:$0xff]
    %v550 = vld [vmem:[#allocation2 + $0xc18] sm:$0xff]
    %v551 = vld [vmem:[#allocation2 + $0xc20] sm:$0xff]
    %v552 = vld [vmem:[#allocation2 + $0xc28] sm:$0xff]
    %v553 = vld [vmem:[#allocation2 + $0xc30] sm:$0xff]
    %v554 = vld [vmem:[#allocation2 + $0xc38] sm:$0xff]
    %v555 = vld [vmem:[#allocation2 + $0xc40] sm:$0xff]
    %v556 = vld [vmem:[#allocation2 + $0xc48] sm:$0xff]
    %v557 = vld [vmem:[#allocation2 + $0xc50] sm:$0xff]
    %v558 = vld [vmem:[#allocation2 + $0xc58] sm:$0xff]
    %v559 = vld [vmem:[#allocation2 + $0xc60] sm:$0xff]
    %v560 = vld [vmem:[#allocation2 + $0xc68] sm:$0xff]
    %v561 = vld [vmem:[#allocation2 + $0xc70] sm:$0xff]
    %v562 = vld [vmem:[#allocation2 + $0xc78] sm:$0xff]
    %v563 = vld [vmem:[#allocation2 + $0xc80] sm:$0xff]
    %v564 = vld [vmem:[#allocation2 + $0xc88] sm:$0xff]
    %v565 = vld [vmem:[#allocation2 + $0xc90] sm:$0xff]
    %v566 = vld [vmem:[#allocation2 + $0xc98] sm:$0xff]
    %v567 = vld [vmem:[#allocation2 + $0xca0] sm:$0xff]
    %v568 = vld [vmem:[#allocation2 + $0xca8] sm:$0xff]
    %v569 = vld [vmem:[#allocation2 + $0xcb0] sm:$0xff]
    %v570 = vld [vmem:[#allocation2 + $0xcb8] sm:$0xff]
    %v571 = vld [vmem:[#allocation2 + $0xcc0] sm:$0xff]
    %v572 = vld [vmem:[#allocation2 + $0xcc8] sm:$0xff]
    %v573 = vld [vmem:[#allocation2 + $0xcd0] sm:$0xff]
    %v574 = vld [vmem:[#allocation2 + $0xcd8] sm:$0xff]
    %v575 = vld [vmem:[#allocation2 + $0xce0] sm:$0xff]
    %v576 = vld [vmem:[#allocation2 + $0xce8] sm:$0xff]
    %v577 = vld [vmem:[#allocation2 + $0xcf0] sm:$0xff]
    %v578 = vld [vmem:[#allocation2 + $0xcf8] sm:$0xff]
    %v579 = vld [vmem:[#allocation2 + $0xd00] sm:$0xff]
    %v580 = vld [vmem:[#allocation2 + $0xd08] sm:$0xff]
    %v581 = vld [vmem:[#allocation2 + $0xd10] sm:$0xff]
    %v582 = vld [vmem:[#allocation2 + $0xd18] sm:$0xff]
    %v583 = vld [vmem:[#allocation2 + $0xd20] sm:$0xff]
    %v584 = vld [vmem:[#allocation2 + $0xd28] sm:$0xff]
    %v585 = vld [vmem:[#allocation2 + $0xd30] sm:$0xff]
    %v586 = vld [vmem:[#allocation2 + $0xd38] sm:$0xff]
    %v587 = vld [vmem:[#allocation2 + $0xd40] sm:$0xff]
    %v588 = vld [vmem:[#allocation2 + $0xd48] sm:$0xff]
    %v589 = vld [vmem:[#allocation2 + $0xd50] sm:$0xff]
    %v590 = vld [vmem:[#allocation2 + $0xd58] sm:$0xff]
    %v591 = vld [vmem:[#allocation2 + $0xd60] sm:$0xff]
    %v592 = vld [vmem:[#allocation2 + $0xd68] sm:$0xff]
    %v593 = vld [vmem:[#allocation2 + $0xd70] sm:$0xff]
    %v594 = vld [vmem:[#allocation2 + $0xd78] sm:$0xff]
    %v595 = vld [vmem:[#allocation2 + $0xd80] sm:$0xff]
    %v596 = vld [vmem:[#allocation2 + $0xd88] sm:$0xff]
    %v597 = vld [vmem:[#allocation2 + $0xd90] sm:$0xff]
    %v598 = vld [vmem:[#allocation2 + $0xd98] sm:$0xff]
    %v599 = vld [vmem:[#allocation2 + $0xda0] sm:$0xff]
    %v600 = vld [vmem:[#allocation2 + $0xda8] sm:$0xff]
    %v601 = vld [vmem:[#allocation2 + $0xdb0] sm:$0xff]
    %v602 = vld [vmem:[#allocation2 + $0xdb8] sm:$0xff]
    %v603 = vld [vmem:[#allocation2 + $0xdc0] sm:$0xff]
    %v604 = vld [vmem:[#allocation2 + $0xdc8] sm:$0xff]
    %v605 = vld [vmem:[#allocation2 + $0xdd0] sm:$0xff]
    %v606 = vld [vmem:[#allocation2 + $0xdd8] sm:$0xff]
    %v607 = vld [vmem:[#allocation2 + $0xde0] sm:$0xff]
    %v608 = vld [vmem:[#allocation2 + $0xde8] sm:$0xff]
    %v609 = vld [vmem:[#allocation2 + $0xdf0] sm:$0xff]
    %v610 = vld [vmem:[#allocation2 + $0xdf8] sm:$0xff]
    %v611 = vld [vmem:[#allocation2 + $0xe00] sm:$0xff]
    %v612 = vld [vmem:[#allocation2 + $0xe08] sm:$0xff]
    %v613 = vld [vmem:[#allocation2 + $0xe10] sm:$0xff]
    %v614 = vld [vmem:[#allocation2 + $0xe18] sm:$0xff]
    %v615 = vld [vmem:[#allocation2 + $0xe20] sm:$0xff]
    %v616 = vld [vmem:[#allocation2 + $0xe28] sm:$0xff]
    %v617 = vld [vmem:[#allocation2 + $0xe30] sm:$0xff]
    %v618 = vld [vmem:[#allocation2 + $0xe38] sm:$0xff]
    %v619 = vld [vmem:[#allocation2 + $0xe40] sm:$0xff]
    %v620 = vld [vmem:[#allocation2 + $0xe48] sm:$0xff]
    %v621 = vld [vmem:[#allocation2 + $0xe50] sm:$0xff]
    %v622 = vld [vmem:[#allocation2 + $0xe58] sm:$0xff]
    %v623 = vld [vmem:[#allocation2 + $0xe60] sm:$0xff]
    %v624 = vld [vmem:[#allocation2 + $0xe68] sm:$0xff]
    %v625 = vld [vmem:[#allocation2 + $0xe70] sm:$0xff]
    %v626 = vld [vmem:[#allocation2 + $0xe78] sm:$0xff]
    %v627 = vld [vmem:[#allocation2 + $0xe80] sm:$0xff]
    %v628 = vld [vmem:[#allocation2 + $0xe88] sm:$0xff]
    %v629 = vld [vmem:[#allocation2 + $0xe90] sm:$0xff]
    %v630 = vld [vmem:[#allocation2 + $0xe98] sm:$0xff]
    %v631 = vld [vmem:[#allocation2 + $0xea0] sm:$0xff]
    %v632 = vld [vmem:[#allocation2 + $0xea8] sm:$0xff]
    %v633 = vld [vmem:[#allocation2 + $0xeb0] sm:$0xff]
    %v634 = vld [vmem:[#allocation2 + $0xeb8] sm:$0xff]
    %v635 = vld [vmem:[#allocation2 + $0xec0] sm:$0xff]
    %v636 = vld [vmem:[#allocation2 + $0xec8] sm:$0xff]
    %v637 = vld [vmem:[#allocation2 + $0xed0] sm:$0xff]
    %v638 = vld [vmem:[#allocation2 + $0xed8] sm:$0xff]
    %v639 = vld [vmem:[#allocation2 + $0xee0] sm:$0xff]
    %v640 = vld [vmem:[#allocation2 + $0xee8] sm:$0xff]
    %v641 = vld [vmem:[#allocation2 + $0xef0] sm:$0xff]
    %v642 = vld [vmem:[#allocation2 + $0xef8] sm:$0xff]
    %v643 = vld [vmem:[#allocation2 + $0xf00] sm:$0xff]
    %v644 = vld [vmem:[#allocation2 + $0xf08] sm:$0xff]
    %v645 = vld [vmem:[#allocation2 + $0xf10] sm:$0xff]
    %v646 = vld [vmem:[#allocation2 + $0xf18] sm:$0xff]
    %v647 = vld [vmem:[#allocation2 + $0xf20] sm:$0xff]
    %v648 = vld [vmem:[#allocation2 + $0xf28] sm:$0xff]
    %v649 = vld [vmem:[#allocation2 + $0xf30] sm:$0xff]
    %v650 = vld [vmem:[#allocation2 + $0xf38] sm:$0xff]
    %v651 = vld [vmem:[#allocation2 + $0xf40] sm:$0xff]
    %v652 = vld [vmem:[#allocation2 + $0xf48] sm:$0xff]
    %v653 = vld [vmem:[#allocation2 + $0xf50] sm:$0xff]
    %v654 = vld [vmem:[#allocation2 + $0xf58] sm:$0xff]
    %v655 = vld [vmem:[#allocation2 + $0xf60] sm:$0xff]
    %v656 = vld [vmem:[#allocation2 + $0xf68] sm:$0xff]
    %v657 = vld [vmem:[#allocation2 + $0xf70] sm:$0xff]
    %v658 = vld [vmem:[#allocation2 + $0xf78] sm:$0xff]
    %v659 = vld [vmem:[#allocation2 + $0xf80] sm:$0xff]
    %v660 = vld [vmem:[#allocation2 + $0xf88] sm:$0xff]
    %v661 = vld [vmem:[#allocation2 + $0xf90] sm:$0xff]
    %v662 = vld [vmem:[#allocation2 + $0xf98] sm:$0xff]
    %v663 = vld [vmem:[#allocation2 + $0xfa0] sm:$0xff]
    %v664 = vld [vmem:[#allocation2 + $0xfa8] sm:$0xff]
    %v665 = vld [vmem:[#allocation2 + $0xfb0] sm:$0xff]
    %v666 = vld [vmem:[#allocation2 + $0xfb8] sm:$0xff]
    %v667 = vld [vmem:[#allocation2 + $0xfc0] sm:$0xff]
    %v668 = vld [vmem:[#allocation2 + $0xfc8] sm:$0xff]
    %v669 = vld [vmem:[#allocation2 + $0xfd0] sm:$0xff]
    %v670 = vld [vmem:[#allocation2 + $0xfd8] sm:$0xff]
    %v671 = vld [vmem:[#allocation2 + $0xfe0] sm:$0xff]
    %v672 = vld [vmem:[#allocation2 + $0xfe8] sm:$0xff]
    %v673 = vld [vmem:[#allocation2 + $0xff0] sm:$0xff]
    %v674 = vld [vmem:[#allocation2 + $0xff8] sm:$0xff]
    %v675 = vld [vmem:[#allocation2 + $0x1000] sm:$0xff]
    %v676 = vld [vmem:[#allocation2 + $0x1008] sm:$0xff]
    %v677 = vld [vmem:[#allocation2 + $0x1010] sm:$0xff]
    %v678 = vld [vmem:[#allocation2 + $0x1018] sm:$0xff]
    %v679 = vld [vmem:[#allocation2 + $0x1020] sm:$0xff]
    %v680 = vld [vmem:[#allocation2 + $0x1028] sm:$0xff]
    %v681 = vld [vmem:[#allocation2 + $0x1030] sm:$0xff]
    %v682 = vld [vmem:[#allocation2 + $0x1038] sm:$0xff]
    %v683 = vld [vmem:[#allocation2 + $0x1040] sm:$0xff]
    %v684 = vld [vmem:[#allocation2 + $0x1048] sm:$0xff]
    %v685 = vld [vmem:[#allocation2 + $0x1050] sm:$0xff]
    %v686 = vld [vmem:[#allocation2 + $0x1058] sm:$0xff]
    %v687 = vld [vmem:[#allocation2 + $0x1060] sm:$0xff]
    %v688 = vld [vmem:[#allocation2 + $0x1068] sm:$0xff]
    %v689 = vld [vmem:[#allocation2 + $0x1070] sm:$0xff]
    %v690 = vld [vmem:[#allocation2 + $0x1078] sm:$0xff]
    %v691 = vld [vmem:[#allocation2 + $0x1080] sm:$0xff]
    %v692 = vld [vmem:[#allocation2 + $0x1088] sm:$0xff]
    %v693 = vld [vmem:[#allocation2 + $0x1090] sm:$0xff]
    %v694 = vld [vmem:[#allocation2 + $0x1098] sm:$0xff]
    %v695 = vld [vmem:[#allocation2 + $0x10a0] sm:$0xff]
    %v696 = vld [vmem:[#allocation2 + $0x10a8] sm:$0xff]
    %v697 = vld [vmem:[#allocation2 + $0x10b0] sm:$0xff]
    %v698 = vld [vmem:[#allocation2 + $0x10b8] sm:$0xff]
    %v699 = vld [vmem:[#allocation2 + $0x10c0] sm:$0xff]
    %v700 = vld [vmem:[#allocation2 + $0x10c8] sm:$0xff]
    %v701 = vld [vmem:[#allocation2 + $0x10d0] sm:$0xff]
    %v702 = vld [vmem:[#allocation2 + $0x10d8] sm:$0xff]
    %v703 = vld [vmem:[#allocation2 + $0x10e0] sm:$0xff]
    %v704 = vld [vmem:[#allocation2 + $0x10e8] sm:$0xff]
    %v705 = vld [vmem:[#allocation2 + $0x10f0] sm:$0xff]
    %v706 = vld [vmem:[#allocation2 + $0x10f8] sm:$0xff]
    %v707 = vld [vmem:[#allocation4] sm:$0xf]
    %v709 = vperm.slane %v707, 0
    %v710 = vperm.slane %v707, 1
    %v711 = vperm.slane %v707, 2
    %v712 = vperm.slane %v707, 3
    %v726 = vunpack.c.l.b16 %v154
    %v727 = vunpack.c.h.b16 %v154
    %v728 = vunpack.c.l.b16 %v155
    %v729 = vunpack.c.h.b16 %v155
    %v730 = vunpack.c.l.b16 %v156
    %v731 = vunpack.c.h.b16 %v156
    %v732 = vunpack.c.l.b16 %v157
    %v733 = vunpack.c.h.b16 %v157
    %v734 = vunpack.c.l.b16 %v158
    %v735 = vunpack.c.h.b16 %v158
    %v736 = vunpack.c.l.b16 %v159
    %v737 = vunpack.c.h.b16 %v159
    %v738 = vunpack.c.l.b16 %v160
    %v739 = vunpack.c.h.b16 %v160
    %v740 = vunpack.c.l.b16 %v161
    %v741 = vunpack.c.h.b16 %v161
    %v742 = vunpack.c.l.b16 %v162
    %v743 = vpack.c.b16 %v726, %v726
    %v744 = vpack.c.b16 %v727, %v727
    %v745 = vpack.c.b16 %v728, %v728
    %v746 = vpack.c.b16 %v729, %v729
    %v747 = vpack.c.b16 %v730, %v730
    %v748 = vpack.c.b16 %v731, %v731
    %v749 = vpack.c.b16 %v732, %v732
    %v750 = vpack.c.b16 %v733, %v733
    %v751 = vpack.c.b16 %v734, %v734
    %v752 = vpack.c.b16 %v735, %v735
    %v753 = vpack.c.b16 %v736, %v736
    %v754 = vpack.c.b16 %v737, %v737
    %v755 = vpack.c.b16 %v738, %v738
    %v756 = vpack.c.b16 %v739, %v739
    %v757 = vpack.c.b16 %v740, %v740
    %v758 = vpack.c.b16 %v741, %v741
    %v759 = vpack.c.b16 %v742, %v742
    %v1321 = vunpack.c.l.b16 %v163
    %v1322 = vunpack.c.h.b16 %v163
    %v1323 = vunpack.c.l.b16 %v164
    %v1324 = vunpack.c.h.b16 %v164
    %v1325 = vunpack.c.l.b16 %v165
    %v1326 = vunpack.c.h.b16 %v165
    %v1327 = vunpack.c.l.b16 %v166
    %v1328 = vunpack.c.h.b16 %v166
    %v1329 = vunpack.c.l.b16 %v167
    %v1330 = vunpack.c.h.b16 %v167
    %v1331 = vunpack.c.l.b16 %v168
    %v1332 = vunpack.c.h.b16 %v168
    %v1333 = vunpack.c.l.b16 %v169
    %v1334 = vunpack.c.h.b16 %v169
    %v1335 = vunpack.c.l.b16 %v170
    %v1336 = vunpack.c.h.b16 %v170
    %v1337 = vunpack.c.l.b16 %v171
    %v1338 = vunpack.c.h.b16 %v171
    %v1339 = vunpack.c.l.b16 %v172
    %v1340 = vunpack.c.h.b16 %v172
    %v1341 = vunpack.c.l.b16 %v173
    %v1342 = vunpack.c.h.b16 %v173
    %v1343 = vunpack.c.l.b16 %v174
    %v1344 = vunpack.c.h.b16 %v174
    %v1345 = vunpack.c.l.b16 %v175
    %v1346 = vunpack.c.h.b16 %v175
    %v1347 = vunpack.c.l.b16 %v176
    %v1348 = vunpack.c.h.b16 %v176
    %v1349 = vunpack.c.l.b16 %v177
    %v1350 = vunpack.c.h.b16 %v177
    %v1351 = vunpack.c.l.b16 %v178
    %v1352 = vunpack.c.h.b16 %v178
    %v1353 = vunpack.c.l.b16 %v179
    %v1354 = vunpack.c.h.b16 %v179
    %v1355 = vunpack.c.l.b16 %v180
    %v1356 = vunpack.c.h.b16 %v180
    %v1357 = vunpack.c.l.b16 %v181
    %v1358 = vunpack.c.h.b16 %v181
    %v1359 = vunpack.c.l.b16 %v182
    %v1360 = vunpack.c.h.b16 %v182
    %v1361 = vunpack.c.l.b16 %v183
    %v1362 = vunpack.c.h.b16 %v183
    %v1363 = vunpack.c.l.b16 %v184
    %v1364 = vunpack.c.h.b16 %v184
    %v1365 = vunpack.c.l.b16 %v185
    %v1366 = vunpack.c.h.b16 %v185
    %v1367 = vunpack.c.l.b16 %v186
    %v1368 = vunpack.c.h.b16 %v186
    %v1369 = vunpack.c.l.b16 %v187
    %v1370 = vunpack.c.h.b16 %v187
    %v1371 = vunpack.c.l.b16 %v188
    %v1372 = vunpack.c.h.b16 %v188
    %v1373 = vunpack.c.l.b16 %v189
    %v1374 = vunpack.c.h.b16 %v189
    %v1375 = vunpack.c.l.b16 %v190
    %v1376 = vunpack.c.h.b16 %v190
    %v1377 = vunpack.c.l.b16 %v191
    %v1378 = vunpack.c.h.b16 %v191
    %v1379 = vunpack.c.l.b16 %v192
    %v1380 = vunpack.c.h.b16 %v192
    %v1381 = vunpack.c.l.b16 %v193
    %v1382 = vunpack.c.h.b16 %v193
    %v1383 = vunpack.c.l.b16 %v194
    %v1384 = vunpack.c.h.b16 %v194
    %v1385 = vunpack.c.l.b16 %v195
    %v1386 = vunpack.c.h.b16 %v195
    %v1387 = vunpack.c.l.b16 %v196
    %v1388 = vunpack.c.h.b16 %v196
    %v1389 = vunpack.c.l.b16 %v197
    %v1390 = vunpack.c.h.b16 %v197
    %v1391 = vunpack.c.l.b16 %v198
    %v1392 = vunpack.c.h.b16 %v198
    %v1393 = vunpack.c.l.b16 %v199
    %v1394 = vunpack.c.h.b16 %v199
    %v1395 = vunpack.c.l.b16 %v200
    %v1396 = vunpack.c.h.b16 %v200
    %v1397 = vunpack.c.l.b16 %v201
    %v1398 = vunpack.c.h.b16 %v201
    %v1399 = vunpack.c.l.b16 %v202
    %v1400 = vunpack.c.h.b16 %v202
    %v1401 = vunpack.c.l.b16 %v203
    %v1402 = vunpack.c.h.b16 %v203
    %v1403 = vunpack.c.l.b16 %v204
    %v1404 = vunpack.c.h.b16 %v204
    %v1405 = vunpack.c.l.b16 %v205
    %v1406 = vunpack.c.h.b16 %v205
    %v1407 = vunpack.c.l.b16 %v206
    %v1408 = vunpack.c.h.b16 %v206
    %v1409 = vunpack.c.l.b16 %v207
    %v1410 = vunpack.c.h.b16 %v207
    %v1411 = vunpack.c.l.b16 %v208
    %v1412 = vunpack.c.h.b16 %v208
    %v1413 = vunpack.c.l.b16 %v209
    %v1414 = vunpack.c.h.b16 %v209
    %v1415 = vunpack.c.l.b16 %v210
    %v1416 = vunpack.c.h.b16 %v210
    %v1417 = vunpack.c.l.b16 %v211
    %v1418 = vunpack.c.h.b16 %v211
    %v1419 = vunpack.c.l.b16 %v212
    %v1420 = vunpack.c.h.b16 %v212
    %v1421 = vunpack.c.l.b16 %v213
    %v1422 = vunpack.c.h.b16 %v213
    %v1423 = vunpack.c.l.b16 %v214
    %v1424 = vunpack.c.h.b16 %v214
    %v1425 = vunpack.c.l.b16 %v215
    %v1426 = vunpack.c.h.b16 %v215
    %v1427 = vunpack.c.l.b16 %v216
    %v1428 = vunpack.c.h.b16 %v216
    %v1429 = vunpack.c.l.b16 %v217
    %v1430 = vunpack.c.h.b16 %v217
    %v1431 = vunpack.c.l.b16 %v218
    %v1432 = vunpack.c.h.b16 %v218
    %v1433 = vunpack.c.l.b16 %v219
    %v1434 = vunpack.c.h.b16 %v219
    %v1435 = vunpack.c.l.b16 %v220
    %v1436 = vunpack.c.h.b16 %v220
    %v1437 = vunpack.c.l.b16 %v221
    %v1438 = vunpack.c.h.b16 %v221
    %v1439 = vunpack.c.l.b16 %v222
    %v1440 = vunpack.c.h.b16 %v222
    %v1441 = vunpack.c.l.b16 %v223
    %v1442 = vunpack.c.h.b16 %v223
    %v1443 = vunpack.c.l.b16 %v224
    %v1444 = vunpack.c.h.b16 %v224
    %v1445 = vunpack.c.l.b16 %v225
    %v1446 = vunpack.c.h.b16 %v225
    %v1447 = vunpack.c.l.b16 %v226
    %v1448 = vunpack.c.h.b16 %v226
    %v1449 = vunpack.c.l.b16 %v227
    %v1450 = vunpack.c.h.b16 %v227
    %v1451 = vunpack.c.l.b16 %v228
    %v1452 = vunpack.c.h.b16 %v228
    %v1453 = vunpack.c.l.b16 %v229
    %v1454 = vunpack.c.h.b16 %v229
    %v1455 = vunpack.c.l.b16 %v230
    %v1456 = vunpack.c.h.b16 %v230
    %v1457 = vunpack.c.l.b16 %v231
    %v1458 = vunpack.c.h.b16 %v231
    %v1459 = vunpack.c.l.b16 %v232
    %v1460 = vunpack.c.h.b16 %v232
    %v1461 = vunpack.c.l.b16 %v233
    %v1462 = vunpack.c.h.b16 %v233
    %v1463 = vunpack.c.l.b16 %v234
    %v1464 = vunpack.c.h.b16 %v234
    %v1465 = vunpack.c.l.b16 %v235
    %v1466 = vunpack.c.h.b16 %v235
    %v1467 = vunpack.c.l.b16 %v236
    %v1468 = vunpack.c.h.b16 %v236
    %v1469 = vunpack.c.l.b16 %v237
    %v1470 = vunpack.c.h.b16 %v237
    %v1471 = vunpack.c.l.b16 %v238
    %v1472 = vunpack.c.h.b16 %v238
    %v1473 = vunpack.c.l.b16 %v239
    %v1474 = vunpack.c.h.b16 %v239
    %v1475 = vunpack.c.l.b16 %v240
    %v1476 = vunpack.c.h.b16 %v240
    %v1477 = vunpack.c.l.b16 %v241
    %v1478 = vunpack.c.h.b16 %v241
    %v1479 = vunpack.c.l.b16 %v242
    %v1480 = vunpack.c.h.b16 %v242
    %v1481 = vunpack.c.l.b16 %v243
    %v1482 = vunpack.c.h.b16 %v243
    %v1483 = vunpack.c.l.b16 %v244
    %v1484 = vunpack.c.h.b16 %v244
    %v1485 = vunpack.c.l.b16 %v245
    %v1486 = vunpack.c.h.b16 %v245
    %v1487 = vunpack.c.l.b16 %v246
    %v1488 = vunpack.c.h.b16 %v246
    %v1489 = vunpack.c.l.b16 %v247
    %v1490 = vunpack.c.h.b16 %v247
    %v1491 = vunpack.c.l.b16 %v248
    %v1492 = vunpack.c.h.b16 %v248
    %v1493 = vunpack.c.l.b16 %v249
    %v1494 = vunpack.c.h.b16 %v249
    %v1495 = vunpack.c.l.b16 %v250
    %v1496 = vunpack.c.h.b16 %v250
    %v1497 = vunpack.c.l.b16 %v251
    %v1498 = vunpack.c.h.b16 %v251
    %v1499 = vunpack.c.l.b16 %v252
    %v1500 = vunpack.c.h.b16 %v252
    %v1501 = vunpack.c.l.b16 %v253
    %v1502 = vunpack.c.h.b16 %v253
    %v1503 = vunpack.c.l.b16 %v254
    %v1504 = vunpack.c.h.b16 %v254
    %v1505 = vunpack.c.l.b16 %v255
    %v1506 = vunpack.c.h.b16 %v255
    %v1507 = vunpack.c.l.b16 %v256
    %v1508 = vunpack.c.h.b16 %v256
    %v1509 = vunpack.c.l.b16 %v257
    %v1510 = vunpack.c.h.b16 %v257
    %v1511 = vunpack.c.l.b16 %v258
    %v1512 = vunpack.c.h.b16 %v258
    %v1513 = vunpack.c.l.b16 %v259
    %v1514 = vunpack.c.h.b16 %v259
    %v1515 = vunpack.c.l.b16 %v260
    %v1516 = vunpack.c.h.b16 %v260
    %v1517 = vunpack.c.l.b16 %v261
    %v1518 = vunpack.c.h.b16 %v261
    %v1519 = vunpack.c.l.b16 %v262
    %v1520 = vunpack.c.h.b16 %v262
    %v1521 = vunpack.c.l.b16 %v263
    %v1522 = vunpack.c.h.b16 %v263
    %v1523 = vunpack.c.l.b16 %v264
    %v1524 = vunpack.c.h.b16 %v264
    %v1525 = vunpack.c.l.b16 %v265
    %v1526 = vunpack.c.h.b16 %v265
    %v1527 = vunpack.c.l.b16 %v266
    %v1528 = vunpack.c.h.b16 %v266
    %v1529 = vunpack.c.l.b16 %v267
    %v1530 = vunpack.c.h.b16 %v267
    %v1531 = vunpack.c.l.b16 %v268
    %v1532 = vunpack.c.h.b16 %v268
    %v1533 = vunpack.c.l.b16 %v269
    %v1534 = vunpack.c.h.b16 %v269
    %v1535 = vunpack.c.l.b16 %v270
    %v1536 = vunpack.c.h.b16 %v270
    %v1537 = vunpack.c.l.b16 %v271
    %v1538 = vunpack.c.h.b16 %v271
    %v1539 = vunpack.c.l.b16 %v272
    %v1540 = vunpack.c.h.b16 %v272
    %v1541 = vunpack.c.l.b16 %v273
    %v1542 = vunpack.c.h.b16 %v273
    %v1543 = vunpack.c.l.b16 %v274
    %v1544 = vunpack.c.h.b16 %v274
    %v1545 = vunpack.c.l.b16 %v275
    %v1546 = vunpack.c.h.b16 %v275
    %v1547 = vunpack.c.l.b16 %v276
    %v1548 = vunpack.c.h.b16 %v276
    %v1549 = vunpack.c.l.b16 %v277
    %v1550 = vunpack.c.h.b16 %v277
    %v1551 = vunpack.c.l.b16 %v278
    %v1552 = vunpack.c.h.b16 %v278
    %v1553 = vunpack.c.l.b16 %v279
    %v1554 = vunpack.c.h.b16 %v279
    %v1555 = vunpack.c.l.b16 %v280
    %v1556 = vunpack.c.h.b16 %v280
    %v1557 = vunpack.c.l.b16 %v281
    %v1558 = vunpack.c.h.b16 %v281
    %v1559 = vunpack.c.l.b16 %v282
    %v1560 = vunpack.c.h.b16 %v282
    %v1561 = vunpack.c.l.b16 %v283
    %v1562 = vunpack.c.h.b16 %v283
    %v1563 = vunpack.c.l.b16 %v284
    %v1564 = vunpack.c.h.b16 %v284
    %v1565 = vunpack.c.l.b16 %v285
    %v1566 = vunpack.c.h.b16 %v285
    %v1567 = vunpack.c.l.b16 %v286
    %v1568 = vunpack.c.h.b16 %v286
    %v1569 = vunpack.c.l.b16 %v287
    %v1570 = vunpack.c.h.b16 %v287
    %v1571 = vunpack.c.l.b16 %v288
    %v1572 = vunpack.c.h.b16 %v288
    %v1573 = vunpack.c.l.b16 %v289
    %v1574 = vunpack.c.h.b16 %v289
    %v1575 = vunpack.c.l.b16 %v290
    %v1576 = vunpack.c.h.b16 %v290
    %v1577 = vunpack.c.l.b16 %v291
    %v1578 = vunpack.c.h.b16 %v291
    %v1579 = vunpack.c.l.b16 %v292
    %v1580 = vunpack.c.h.b16 %v292
    %v1581 = vunpack.c.l.b16 %v293
    %v1582 = vunpack.c.h.b16 %v293
    %v1583 = vunpack.c.l.b16 %v294
    %v1584 = vunpack.c.h.b16 %v294
    %v1585 = vunpack.c.l.b16 %v295
    %v1586 = vunpack.c.h.b16 %v295
    %v1587 = vunpack.c.l.b16 %v296
    %v1588 = vunpack.c.h.b16 %v296
    %v1589 = vunpack.c.l.b16 %v297
    %v1590 = vunpack.c.h.b16 %v297
    %v1591 = vunpack.c.l.b16 %v298
    %v1592 = vunpack.c.h.b16 %v298
    %v1593 = vunpack.c.l.b16 %v299
    %v1594 = vunpack.c.h.b16 %v299
    %v1595 = vunpack.c.l.b16 %v300
    %v1596 = vunpack.c.h.b16 %v300
    %v1597 = vunpack.c.l.b16 %v301
    %v1598 = vunpack.c.h.b16 %v301
    %v1599 = vunpack.c.l.b16 %v302
    %v1600 = vunpack.c.h.b16 %v302
    %v1601 = vunpack.c.l.b16 %v303
    %v1602 = vunpack.c.h.b16 %v303
    %v1603 = vunpack.c.l.b16 %v304
    %v1604 = vunpack.c.h.b16 %v304
    %v1605 = vunpack.c.l.b16 %v305
    %v1606 = vunpack.c.h.b16 %v305
    %v1607 = vunpack.c.l.b16 %v306
    %v1608 = vunpack.c.h.b16 %v306
    %v1609 = vunpack.c.l.b16 %v307
    %v1610 = vunpack.c.h.b16 %v307
    %v1611 = vunpack.c.l.b16 %v308
    %v1612 = vunpack.c.h.b16 %v308
    %v1613 = vunpack.c.l.b16 %v309
    %v1614 = vunpack.c.h.b16 %v309
    %v1615 = vunpack.c.l.b16 %v310
    %v1616 = vunpack.c.h.b16 %v310
    %v1617 = vunpack.c.l.b16 %v311
    %v1618 = vunpack.c.h.b16 %v311
    %v1619 = vunpack.c.l.b16 %v312
    %v1620 = vunpack.c.h.b16 %v312
    %v1621 = vunpack.c.l.b16 %v313
    %v1622 = vunpack.c.h.b16 %v313
    %v1623 = vunpack.c.l.b16 %v314
    %v1624 = vunpack.c.h.b16 %v314
    %v1625 = vunpack.c.l.b16 %v315
    %v1626 = vunpack.c.h.b16 %v315
    %v1627 = vunpack.c.l.b16 %v316
    %v1628 = vunpack.c.h.b16 %v316
    %v1629 = vunpack.c.l.b16 %v317
    %v1630 = vunpack.c.h.b16 %v317
    %v1631 = vunpack.c.l.b16 %v318
    %v1632 = vunpack.c.h.b16 %v318
    %v1633 = vunpack.c.l.b16 %v319
    %v1634 = vunpack.c.h.b16 %v319
    %v1635 = vunpack.c.l.b16 %v320
    %v1636 = vunpack.c.h.b16 %v320
    %v1637 = vunpack.c.l.b16 %v321
    %v1638 = vunpack.c.h.b16 %v321
    %v1639 = vunpack.c.l.b16 %v322
    %v1640 = vunpack.c.h.b16 %v322
    %v1641 = vunpack.c.l.b16 %v323
    %v1642 = vunpack.c.h.b16 %v323
    %v1643 = vunpack.c.l.b16 %v324
    %v1644 = vunpack.c.h.b16 %v324
    %v1645 = vunpack.c.l.b16 %v325
    %v1646 = vunpack.c.h.b16 %v325
    %v1647 = vunpack.c.l.b16 %v326
    %v1648 = vunpack.c.h.b16 %v326
    %v1649 = vunpack.c.l.b16 %v327
    %v1650 = vunpack.c.h.b16 %v327
    %v1651 = vunpack.c.l.b16 %v328
    %v1652 = vunpack.c.h.b16 %v328
    %v1653 = vunpack.c.l.b16 %v329
    %v1654 = vunpack.c.h.b16 %v329
    %v1655 = vunpack.c.l.b16 %v330
    %v1656 = vunpack.c.h.b16 %v330
    %v1657 = vunpack.c.l.b16 %v331
    %v1658 = vunpack.c.h.b16 %v331
    %v1659 = vunpack.c.l.b16 %v332
    %v1660 = vunpack.c.h.b16 %v332
    %v1661 = vunpack.c.l.b16 %v333
    %v1662 = vunpack.c.h.b16 %v333
    %v1663 = vunpack.c.l.b16 %v334
    %v1664 = vunpack.c.h.b16 %v334
    %v1665 = vunpack.c.l.b16 %v335
    %v1666 = vunpack.c.h.b16 %v335
    %v1667 = vunpack.c.l.b16 %v336
    %v1668 = vunpack.c.h.b16 %v336
    %v1669 = vunpack.c.l.b16 %v337
    %v1670 = vunpack.c.h.b16 %v337
    %v1671 = vunpack.c.l.b16 %v338
    %v1672 = vunpack.c.h.b16 %v338
    %v1673 = vunpack.c.l.b16 %v339
    %v1674 = vunpack.c.h.b16 %v339
    %v1675 = vunpack.c.l.b16 %v340
    %v1676 = vunpack.c.h.b16 %v340
    %v1677 = vunpack.c.l.b16 %v341
    %v1678 = vunpack.c.h.b16 %v341
    %v1679 = vunpack.c.l.b16 %v342
    %v1680 = vunpack.c.h.b16 %v342
    %v1681 = vunpack.c.l.b16 %v343
    %v1682 = vunpack.c.h.b16 %v343
    %v1683 = vunpack.c.l.b16 %v344
    %v1684 = vunpack.c.h.b16 %v344
    %v1685 = vunpack.c.l.b16 %v345
    %v1686 = vunpack.c.h.b16 %v345
    %v1687 = vunpack.c.l.b16 %v346
    %v1688 = vunpack.c.h.b16 %v346
    %v1689 = vunpack.c.l.b16 %v347
    %v1690 = vunpack.c.h.b16 %v347
    %v1691 = vunpack.c.l.b16 %v348
    %v1692 = vunpack.c.h.b16 %v348
    %v1693 = vunpack.c.l.b16 %v349
    %v1694 = vunpack.c.h.b16 %v349
    %v1695 = vunpack.c.l.b16 %v350
    %v1696 = vunpack.c.h.b16 %v350
    %v1697 = vunpack.c.l.b16 %v351
    %v1698 = vunpack.c.h.b16 %v351
    %v1699 = vunpack.c.l.b16 %v352
    %v1700 = vunpack.c.h.b16 %v352
    %v1701 = vunpack.c.l.b16 %v353
    %v1702 = vunpack.c.h.b16 %v353
    %v1703 = vunpack.c.l.b16 %v354
    %v1704 = vunpack.c.h.b16 %v354
    %v1705 = vunpack.c.l.b16 %v355
    %v1706 = vunpack.c.h.b16 %v355
    %v1707 = vunpack.c.l.b16 %v356
    %v1708 = vunpack.c.h.b16 %v356
    %v1709 = vunpack.c.l.b16 %v357
    %v1710 = vunpack.c.h.b16 %v357
    %v1711 = vunpack.c.l.b16 %v358
    %v1712 = vunpack.c.h.b16 %v358
    %v1713 = vunpack.c.l.b16 %v359
    %v1714 = vunpack.c.h.b16 %v359
    %v1715 = vunpack.c.l.b16 %v360
    %v1716 = vunpack.c.h.b16 %v360
    %v1717 = vunpack.c.l.b16 %v361
    %v1718 = vunpack.c.h.b16 %v361
    %v1719 = vunpack.c.l.b16 %v362
    %v1720 = vunpack.c.h.b16 %v362
    %v1721 = vunpack.c.l.b16 %v363
    %v1722 = vunpack.c.h.b16 %v363
    %v1723 = vunpack.c.l.b16 %v364
    %v1724 = vunpack.c.h.b16 %v364
    %v1725 = vunpack.c.l.b16 %v365
    %v1726 = vunpack.c.h.b16 %v365
    %v1727 = vunpack.c.l.b16 %v366
    %v1728 = vunpack.c.h.b16 %v366
    %v1729 = vunpack.c.l.b16 %v367
    %v1730 = vunpack.c.h.b16 %v367
    %v1731 = vunpack.c.l.b16 %v368
    %v1732 = vunpack.c.h.b16 %v368
    %v1733 = vunpack.c.l.b16 %v369
    %v1734 = vunpack.c.h.b16 %v369
    %v1735 = vunpack.c.l.b16 %v370
    %v1736 = vunpack.c.h.b16 %v370
    %v1737 = vunpack.c.l.b16 %v371
    %v1738 = vunpack.c.h.b16 %v371
    %v1739 = vunpack.c.l.b16 %v372
    %v1740 = vunpack.c.h.b16 %v372
    %v1741 = vunpack.c.l.b16 %v373
    %v1742 = vunpack.c.h.b16 %v373
    %v1743 = vunpack.c.l.b16 %v374
    %v1744 = vunpack.c.h.b16 %v374
    %v1745 = vunpack.c.l.b16 %v375
    %v1746 = vunpack.c.h.b16 %v375
    %v1747 = vunpack.c.l.b16 %v376
    %v1748 = vunpack.c.h.b16 %v376
    %v1749 = vunpack.c.l.b16 %v377
    %v1750 = vunpack.c.h.b16 %v377
    %v1751 = vunpack.c.l.b16 %v378
    %v1752 = vunpack.c.h.b16 %v378
    %v1753 = vunpack.c.l.b16 %v379
    %v1754 = vunpack.c.h.b16 %v379
    %v1755 = vunpack.c.l.b16 %v380
    %v1756 = vunpack.c.h.b16 %v380
    %v1757 = vunpack.c.l.b16 %v381
    %v1758 = vunpack.c.h.b16 %v381
    %v1759 = vunpack.c.l.b16 %v382
    %v1760 = vunpack.c.h.b16 %v382
    %v1761 = vunpack.c.l.b16 %v383
    %v1762 = vunpack.c.h.b16 %v383
    %v1763 = vunpack.c.l.b16 %v384
    %v1764 = vunpack.c.h.b16 %v384
    %v1765 = vunpack.c.l.b16 %v385
    %v1766 = vunpack.c.h.b16 %v385
    %v1767 = vunpack.c.l.b16 %v386
    %v1768 = vunpack.c.h.b16 %v386
    %v1769 = vunpack.c.l.b16 %v387
    %v1770 = vunpack.c.h.b16 %v387
    %v1771 = vunpack.c.l.b16 %v388
    %v1772 = vunpack.c.h.b16 %v388
    %v1773 = vunpack.c.l.b16 %v389
    %v1774 = vunpack.c.h.b16 %v389
    %v1775 = vunpack.c.l.b16 %v390
    %v1776 = vunpack.c.h.b16 %v390
    %v1777 = vunpack.c.l.b16 %v391
    %v1778 = vunpack.c.h.b16 %v391
    %v1779 = vunpack.c.l.b16 %v392
    %v1780 = vunpack.c.h.b16 %v392
    %v1781 = vunpack.c.l.b16 %v393
    %v1782 = vunpack.c.h.b16 %v393
    %v1783 = vunpack.c.l.b16 %v394
    %v1784 = vunpack.c.h.b16 %v394
    %v1785 = vunpack.c.l.b16 %v395
    %v1786 = vunpack.c.h.b16 %v395
    %v1787 = vunpack.c.l.b16 %v396
    %v1788 = vunpack.c.h.b16 %v396
    %v1789 = vunpack.c.l.b16 %v397
    %v1790 = vunpack.c.h.b16 %v397
    %v1791 = vunpack.c.l.b16 %v398
    %v1792 = vunpack.c.h.b16 %v398
    %v1793 = vunpack.c.l.b16 %v399
    %v1794 = vunpack.c.h.b16 %v399
    %v1795 = vunpack.c.l.b16 %v400
    %v1796 = vunpack.c.h.b16 %v400
    %v1797 = vunpack.c.l.b16 %v401
    %v1798 = vunpack.c.h.b16 %v401
    %v1799 = vunpack.c.l.b16 %v402
    %v1800 = vunpack.c.h.b16 %v402
    %v1801 = vunpack.c.l.b16 %v403
    %v1802 = vunpack.c.h.b16 %v403
    %v1803 = vunpack.c.l.b16 %v404
    %v1804 = vunpack.c.h.b16 %v404
    %v1805 = vunpack.c.l.b16 %v405
    %v1806 = vunpack.c.h.b16 %v405
    %v1807 = vunpack.c.l.b16 %v406
    %v1808 = vunpack.c.h.b16 %v406
    %v1809 = vunpack.c.l.b16 %v407
    %v1810 = vunpack.c.h.b16 %v407
    %v1811 = vunpack.c.l.b16 %v408
    %v1812 = vunpack.c.h.b16 %v408
    %v1813 = vunpack.c.l.b16 %v409
    %v1814 = vunpack.c.h.b16 %v409
    %v1815 = vunpack.c.l.b16 %v410
    %v1816 = vunpack.c.h.b16 %v410
    %v1817 = vunpack.c.l.b16 %v411
    %v1818 = vunpack.c.h.b16 %v411
    %v1819 = vunpack.c.l.b16 %v412
    %v1820 = vunpack.c.h.b16 %v412
    %v1821 = vunpack.c.l.b16 %v413
    %v1822 = vunpack.c.h.b16 %v413
    %v1823 = vunpack.c.l.b16 %v414
    %v1824 = vunpack.c.h.b16 %v414
    %v1825 = vunpack.c.l.b16 %v415
    %v1826 = vunpack.c.h.b16 %v415
    %v1827 = vunpack.c.l.b16 %v416
    %v1828 = vunpack.c.h.b16 %v416
    %v1829 = vunpack.c.l.b16 %v417
    %v1830 = vunpack.c.h.b16 %v417
    %v1831 = vunpack.c.l.b16 %v418
    %v1832 = vunpack.c.h.b16 %v418
    %v1833 = vunpack.c.l.b16 %v419
    %v1834 = vunpack.c.h.b16 %v419
    %v1835 = vunpack.c.l.b16 %v420
    %v1836 = vunpack.c.h.b16 %v420
    %v1837 = vunpack.c.l.b16 %v421
    %v1838 = vunpack.c.h.b16 %v421
    %v1839 = vunpack.c.l.b16 %v422
    %v1840 = vunpack.c.h.b16 %v422
    %v1841 = vunpack.c.l.b16 %v423
    %v1842 = vunpack.c.h.b16 %v423
    %v1843 = vunpack.c.l.b16 %v424
    %v1844 = vunpack.c.h.b16 %v424
    %v1845 = vunpack.c.l.b16 %v425
    %v1846 = vunpack.c.h.b16 %v425
    %v1847 = vunpack.c.l.b16 %v426
    %v1848 = vunpack.c.h.b16 %v426
    %v1849 = vunpack.c.l.b16 %v427
    %v1850 = vunpack.c.h.b16 %v427
    %v1851 = vunpack.c.l.b16 %v428
    %v1852 = vunpack.c.h.b16 %v428
    %v1853 = vunpack.c.l.b16 %v429
    %v1854 = vunpack.c.h.b16 %v429
    %v1855 = vunpack.c.l.b16 %v430
    %v1856 = vunpack.c.h.b16 %v430
    %v1857 = vunpack.c.l.b16 %v431
    %v1858 = vunpack.c.h.b16 %v431
    %v1859 = vunpack.c.l.b16 %v432
    %v1860 = vunpack.c.h.b16 %v432
    %v1861 = vunpack.c.l.b16 %v433
    %v1862 = vunpack.c.h.b16 %v433
    %v1863 = vunpack.c.l.b16 %v434
    %v1864 = vunpack.c.h.b16 %v434
    %v1865 = vunpack.c.l.b16 %v435
    %v1866 = vunpack.c.h.b16 %v435
    %v1867 = vunpack.c.l.b16 %v436
    %v1868 = vunpack.c.h.b16 %v436
    %v1869 = vunpack.c.l.b16 %v437
    %v1870 = vunpack.c.h.b16 %v437
    %v1871 = vunpack.c.l.b16 %v438
    %v1872 = vunpack.c.h.b16 %v438
    %v1873 = vunpack.c.l.b16 %v439
    %v1874 = vunpack.c.h.b16 %v439
    %v1875 = vunpack.c.l.b16 %v440
    %v1876 = vunpack.c.h.b16 %v440
    %v1877 = vunpack.c.l.b16 %v441
    %v1878 = vunpack.c.h.b16 %v441
    %v1879 = vunpack.c.l.b16 %v442
    %v1880 = vunpack.c.h.b16 %v442
    %v1881 = vunpack.c.l.b16 %v443
    %v1882 = vunpack.c.h.b16 %v443
    %v1883 = vunpack.c.l.b16 %v444
    %v1884 = vunpack.c.h.b16 %v444
    %v1885 = vunpack.c.l.b16 %v445
    %v1886 = vunpack.c.h.b16 %v445
    %v1887 = vunpack.c.l.b16 %v446
    %v1888 = vunpack.c.h.b16 %v446
    %v1889 = vunpack.c.l.b16 %v447
    %v1890 = vunpack.c.h.b16 %v447
    %v1891 = vunpack.c.l.b16 %v448
    %v1892 = vunpack.c.h.b16 %v448
    %v1893 = vunpack.c.l.b16 %v449
    %v1894 = vunpack.c.h.b16 %v449
    %v1895 = vunpack.c.l.b16 %v450
    %v1896 = vunpack.c.h.b16 %v450
    %v1897 = vunpack.c.l.b16 %v451
    %v1898 = vunpack.c.h.b16 %v451
    %v1899 = vunpack.c.l.b16 %v452
    %v1900 = vunpack.c.h.b16 %v452
    %v1901 = vunpack.c.l.b16 %v453
    %v1902 = vunpack.c.h.b16 %v453
    %v1903 = vunpack.c.l.b16 %v454
    %v1904 = vunpack.c.h.b16 %v454
    %v1905 = vunpack.c.l.b16 %v455
    %v1906 = vunpack.c.h.b16 %v455
    %v1907 = vunpack.c.l.b16 %v456
    %v1908 = vunpack.c.h.b16 %v456
    %v1909 = vunpack.c.l.b16 %v457
    %v1910 = vunpack.c.h.b16 %v457
    %v1911 = vunpack.c.l.b16 %v458
    %v1912 = vunpack.c.h.b16 %v458
    %v1913 = vunpack.c.l.b16 %v459
    %v1914 = vunpack.c.h.b16 %v459
    %v1915 = vunpack.c.l.b16 %v460
    %v1916 = vunpack.c.h.b16 %v460
    %v1917 = vunpack.c.l.b16 %v461
    %v1918 = vunpack.c.h.b16 %v461
    %v1919 = vunpack.c.l.b16 %v462
    %v1920 = vunpack.c.h.b16 %v462
    %v1921 = vunpack.c.l.b16 %v463
    %v1922 = vunpack.c.h.b16 %v463
    %v1923 = vunpack.c.l.b16 %v464
    %v1924 = vunpack.c.h.b16 %v464
    %v1925 = vunpack.c.l.b16 %v465
    %v1926 = vunpack.c.h.b16 %v465
    %v1927 = vunpack.c.l.b16 %v466
    %v1928 = vunpack.c.h.b16 %v466
    %v1929 = vunpack.c.l.b16 %v467
    %v1930 = vunpack.c.h.b16 %v467
    %v1931 = vunpack.c.l.b16 %v468
    %v1932 = vunpack.c.h.b16 %v468
    %v1933 = vunpack.c.l.b16 %v469
    %v1934 = vunpack.c.h.b16 %v469
    %v1935 = vunpack.c.l.b16 %v470
    %v1936 = vunpack.c.h.b16 %v470
    %v1937 = vunpack.c.l.b16 %v471
    %v1938 = vunpack.c.h.b16 %v471
    %v1939 = vunpack.c.l.b16 %v472
    %v1940 = vunpack.c.h.b16 %v472
    %v1941 = vunpack.c.l.b16 %v473
    %v1942 = vunpack.c.h.b16 %v473
    %v1943 = vunpack.c.l.b16 %v474
    %v1944 = vunpack.c.h.b16 %v474
    %v1945 = vunpack.c.l.b16 %v475
    %v1946 = vunpack.c.h.b16 %v475
    %v1947 = vunpack.c.l.b16 %v476
    %v1948 = vunpack.c.h.b16 %v476
    %v1949 = vunpack.c.l.b16 %v477
    %v1950 = vunpack.c.h.b16 %v477
    %v1951 = vunpack.c.l.b16 %v478
    %v1952 = vunpack.c.h.b16 %v478
    %v1953 = vunpack.c.l.b16 %v479
    %v1954 = vunpack.c.h.b16 %v479
    %v1955 = vunpack.c.l.b16 %v480
    %v1956 = vunpack.c.h.b16 %v480
    %v1957 = vunpack.c.l.b16 %v481
    %v1958 = vunpack.c.h.b16 %v481
    %v1959 = vunpack.c.l.b16 %v482
    %v1960 = vunpack.c.h.b16 %v482
    %v1961 = vunpack.c.l.b16 %v483
    %v1962 = vunpack.c.h.b16 %v483
    %v1963 = vunpack.c.l.b16 %v484
    %v1964 = vunpack.c.h.b16 %v484
    %v1965 = vunpack.c.l.b16 %v485
    %v1966 = vunpack.c.h.b16 %v485
    %v1967 = vunpack.c.l.b16 %v486
    %v1968 = vunpack.c.h.b16 %v486
    %v1969 = vunpack.c.l.b16 %v487
    %v1970 = vunpack.c.h.b16 %v487
    %v1971 = vunpack.c.l.b16 %v488
    %v1972 = vunpack.c.h.b16 %v488
    %v1973 = vunpack.c.l.b16 %v489
    %v1974 = vunpack.c.h.b16 %v489
    %v1975 = vunpack.c.l.b16 %v490
    %v1976 = vunpack.c.h.b16 %v490
    %v1977 = vunpack.c.l.b16 %v491
    %v1978 = vunpack.c.h.b16 %v491
    %v1979 = vunpack.c.l.b16 %v492
    %v1980 = vunpack.c.h.b16 %v492
    %v1981 = vunpack.c.l.b16 %v493
    %v1982 = vunpack.c.h.b16 %v493
    %v1983 = vunpack.c.l.b16 %v494
    %v1984 = vunpack.c.h.b16 %v494
    %v1985 = vunpack.c.l.b16 %v495
    %v1986 = vunpack.c.h.b16 %v495
    %v1987 = vunpack.c.l.b16 %v496
    %v1988 = vunpack.c.h.b16 %v496
    %v1989 = vunpack.c.l.b16 %v497
    %v1990 = vunpack.c.h.b16 %v497
    %v1991 = vunpack.c.l.b16 %v498
    %v1992 = vunpack.c.h.b16 %v498
    %v1993 = vunpack.c.l.b16 %v499
    %v1994 = vunpack.c.h.b16 %v499
    %v1995 = vunpack.c.l.b16 %v500
    %v1996 = vunpack.c.h.b16 %v500
    %v1997 = vunpack.c.l.b16 %v501
    %v1998 = vunpack.c.h.b16 %v501
    %v1999 = vunpack.c.l.b16 %v502
    %v2000 = vunpack.c.h.b16 %v502
    %v2001 = vunpack.c.l.b16 %v503
    %v2002 = vunpack.c.h.b16 %v503
    %v2003 = vunpack.c.l.b16 %v504
    %v2004 = vunpack.c.h.b16 %v504
    %v2005 = vunpack.c.l.b16 %v505
    %v2006 = vunpack.c.h.b16 %v505
    %v2007 = vunpack.c.l.b16 %v506
    %v2008 = vunpack.c.h.b16 %v506
    %v2009 = vunpack.c.l.b16 %v507
    %v2010 = vunpack.c.h.b16 %v507
    %v2011 = vunpack.c.l.b16 %v508
    %v2012 = vunpack.c.h.b16 %v508
    %v2013 = vunpack.c.l.b16 %v509
    %v2014 = vunpack.c.h.b16 %v509
    %v2015 = vunpack.c.l.b16 %v510
    %v2016 = vunpack.c.h.b16 %v510
    %v2017 = vunpack.c.l.b16 %v511
    %v2018 = vunpack.c.h.b16 %v511
    %v2019 = vunpack.c.l.b16 %v512
    %v2020 = vunpack.c.h.b16 %v512
    %v2021 = vunpack.c.l.b16 %v513
    %v2022 = vunpack.c.h.b16 %v513
    %v2023 = vunpack.c.l.b16 %v514
    %v2024 = vunpack.c.h.b16 %v514
    %v2025 = vunpack.c.l.b16 %v515
    %v2026 = vunpack.c.h.b16 %v515
    %v2027 = vunpack.c.l.b16 %v516
    %v2028 = vunpack.c.h.b16 %v516
    %v2029 = vunpack.c.l.b16 %v517
    %v2030 = vunpack.c.h.b16 %v517
    %v2031 = vunpack.c.l.b16 %v518
    %v2032 = vunpack.c.h.b16 %v518
    %v2033 = vunpack.c.l.b16 %v519
    %v2034 = vunpack.c.h.b16 %v519
    %v2035 = vunpack.c.l.b16 %v520
    %v2036 = vunpack.c.h.b16 %v520
    %v2037 = vunpack.c.l.b16 %v521
    %v2038 = vunpack.c.h.b16 %v521
    %v2039 = vunpack.c.l.b16 %v522
    %v2040 = vunpack.c.h.b16 %v522
    %v2041 = vunpack.c.l.b16 %v523
    %v2042 = vunpack.c.h.b16 %v523
    %v2043 = vunpack.c.l.b16 %v524
    %v2044 = vunpack.c.h.b16 %v524
    %v2045 = vunpack.c.l.b16 %v525
    %v2046 = vunpack.c.h.b16 %v525
    %v2047 = vunpack.c.l.b16 %v526
    %v2048 = vunpack.c.h.b16 %v526
    %v2049 = vunpack.c.l.b16 %v527
    %v2050 = vunpack.c.h.b16 %v527
    %v2051 = vunpack.c.l.b16 %v528
    %v2052 = vunpack.c.h.b16 %v528
    %v2053 = vunpack.c.l.b16 %v529
    %v2054 = vunpack.c.h.b16 %v529
    %v2055 = vunpack.c.l.b16 %v530
    %v2056 = vunpack.c.h.b16 %v530
    %v2057 = vunpack.c.l.b16 %v531
    %v2058 = vunpack.c.h.b16 %v531
    %v2059 = vunpack.c.l.b16 %v532
    %v2060 = vunpack.c.h.b16 %v532
    %v2061 = vunpack.c.l.b16 %v533
    %v2062 = vunpack.c.h.b16 %v533
    %v2063 = vunpack.c.l.b16 %v534
    %v2064 = vunpack.c.h.b16 %v534
    %v2065 = vunpack.c.l.b16 %v535
    %v2066 = vunpack.c.h.b16 %v535
    %v2067 = vunpack.c.l.b16 %v536
    %v2068 = vunpack.c.h.b16 %v536
    %v2069 = vunpack.c.l.b16 %v537
    %v2070 = vunpack.c.h.b16 %v537
    %v2071 = vunpack.c.l.b16 %v538
    %v2072 = vunpack.c.h.b16 %v538
    %v2073 = vunpack.c.l.b16 %v539
    %v2074 = vunpack.c.h.b16 %v539
    %v2075 = vunpack.c.l.b16 %v540
    %v2076 = vunpack.c.h.b16 %v540
    %v2077 = vunpack.c.l.b16 %v541
    %v2078 = vunpack.c.h.b16 %v541
    %v2079 = vunpack.c.l.b16 %v542
    %v2080 = vunpack.c.h.b16 %v542
    %v2081 = vunpack.c.l.b16 %v543
    %v2082 = vunpack.c.h.b16 %v543
    %v2083 = vunpack.c.l.b16 %v544
    %v2084 = vunpack.c.h.b16 %v544
    %v2085 = vunpack.c.l.b16 %v545
    %v2086 = vunpack.c.h.b16 %v545
    %v2087 = vunpack.c.l.b16 %v546
    %v2088 = vunpack.c.h.b16 %v546
    %v2089 = vunpack.c.l.b16 %v547
    %v2090 = vunpack.c.h.b16 %v547
    %v2091 = vunpack.c.l.b16 %v548
    %v2092 = vunpack.c.h.b16 %v548
    %v2093 = vunpack.c.l.b16 %v549
    %v2094 = vunpack.c.h.b16 %v549
    %v2095 = vunpack.c.l.b16 %v550
    %v2096 = vunpack.c.h.b16 %v550
    %v2097 = vunpack.c.l.b16 %v551
    %v2098 = vunpack.c.h.b16 %v551
    %v2099 = vunpack.c.l.b16 %v552
    %v2100 = vunpack.c.h.b16 %v552
    %v2101 = vunpack.c.l.b16 %v553
    %v2102 = vunpack.c.h.b16 %v553
    %v2103 = vunpack.c.l.b16 %v554
    %v2104 = vunpack.c.h.b16 %v554
    %v2105 = vunpack.c.l.b16 %v555
    %v2106 = vunpack.c.h.b16 %v555
    %v2107 = vunpack.c.l.b16 %v556
    %v2108 = vunpack.c.h.b16 %v556
    %v2109 = vunpack.c.l.b16 %v557
    %v2110 = vunpack.c.h.b16 %v557
    %v2111 = vunpack.c.l.b16 %v558
    %v2112 = vunpack.c.h.b16 %v558
    %v2113 = vunpack.c.l.b16 %v559
    %v2114 = vunpack.c.h.b16 %v559
    %v2115 = vunpack.c.l.b16 %v560
    %v2116 = vunpack.c.h.b16 %v560
    %v2117 = vunpack.c.l.b16 %v561
    %v2118 = vunpack.c.h.b16 %v561
    %v2119 = vunpack.c.l.b16 %v562
    %v2120 = vunpack.c.h.b16 %v562
    %v2121 = vunpack.c.l.b16 %v563
    %v2122 = vunpack.c.h.b16 %v563
    %v2123 = vunpack.c.l.b16 %v564
    %v2124 = vunpack.c.h.b16 %v564
    %v2125 = vunpack.c.l.b16 %v565
    %v2126 = vunpack.c.h.b16 %v565
    %v2127 = vunpack.c.l.b16 %v566
    %v2128 = vunpack.c.h.b16 %v566
    %v2129 = vunpack.c.l.b16 %v567
    %v2130 = vunpack.c.h.b16 %v567
    %v2131 = vunpack.c.l.b16 %v568
    %v2132 = vunpack.c.h.b16 %v568
    %v2133 = vunpack.c.l.b16 %v569
    %v2134 = vunpack.c.h.b16 %v569
    %v2135 = vunpack.c.l.b16 %v570
    %v2136 = vunpack.c.h.b16 %v570
    %v2137 = vunpack.c.l.b16 %v571
    %v2138 = vunpack.c.h.b16 %v571
    %v2139 = vunpack.c.l.b16 %v572
    %v2140 = vunpack.c.h.b16 %v572
    %v2141 = vunpack.c.l.b16 %v573
    %v2142 = vunpack.c.h.b16 %v573
    %v2143 = vunpack.c.l.b16 %v574
    %v2144 = vunpack.c.h.b16 %v574
    %v2145 = vunpack.c.l.b16 %v575
    %v2146 = vunpack.c.h.b16 %v575
    %v2147 = vunpack.c.l.b16 %v576
    %v2148 = vunpack.c.h.b16 %v576
    %v2149 = vunpack.c.l.b16 %v577
    %v2150 = vunpack.c.h.b16 %v577
    %v2151 = vunpack.c.l.b16 %v578
    %v2152 = vunpack.c.h.b16 %v578
    %v2153 = vunpack.c.l.b16 %v579
    %v2154 = vunpack.c.h.b16 %v579
    %v2155 = vunpack.c.l.b16 %v580
    %v2156 = vunpack.c.h.b16 %v580
    %v2157 = vunpack.c.l.b16 %v581
    %v2158 = vunpack.c.h.b16 %v581
    %v2159 = vunpack.c.l.b16 %v582
    %v2160 = vunpack.c.h.b16 %v582
    %v2161 = vunpack.c.l.b16 %v583
    %v2162 = vunpack.c.h.b16 %v583
    %v2163 = vunpack.c.l.b16 %v584
    %v2164 = vunpack.c.h.b16 %v584
    %v2165 = vunpack.c.l.b16 %v585
    %v2166 = vunpack.c.h.b16 %v585
    %v2167 = vunpack.c.l.b16 %v586
    %v2168 = vunpack.c.h.b16 %v586
    %v2169 = vunpack.c.l.b16 %v587
    %v2170 = vunpack.c.h.b16 %v587
    %v2171 = vunpack.c.l.b16 %v588
    %v2172 = vunpack.c.h.b16 %v588
    %v2173 = vunpack.c.l.b16 %v589
    %v2174 = vunpack.c.h.b16 %v589
    %v2175 = vunpack.c.l.b16 %v590
    %v2176 = vunpack.c.h.b16 %v590
    %v2177 = vunpack.c.l.b16 %v591
    %v2178 = vunpack.c.h.b16 %v591
    %v2179 = vunpack.c.l.b16 %v592
    %v2180 = vunpack.c.h.b16 %v592
    %v2181 = vunpack.c.l.b16 %v593
    %v2182 = vunpack.c.h.b16 %v593
    %v2183 = vunpack.c.l.b16 %v594
    %v2184 = vunpack.c.h.b16 %v594
    %v2185 = vunpack.c.l.b16 %v595
    %v2186 = vunpack.c.h.b16 %v595
    %v2187 = vunpack.c.l.b16 %v596
    %v2188 = vunpack.c.h.b16 %v596
    %v2189 = vunpack.c.l.b16 %v597
    %v2190 = vunpack.c.h.b16 %v597
    %v2191 = vunpack.c.l.b16 %v598
    %v2192 = vunpack.c.h.b16 %v598
    %v2193 = vunpack.c.l.b16 %v599
    %v2194 = vunpack.c.h.b16 %v599
    %v2195 = vunpack.c.l.b16 %v600
    %v2196 = vunpack.c.h.b16 %v600
    %v2197 = vunpack.c.l.b16 %v601
    %v2198 = vunpack.c.h.b16 %v601
    %v2199 = vunpack.c.l.b16 %v602
    %v2200 = vunpack.c.h.b16 %v602
    %v2201 = vunpack.c.l.b16 %v603
    %v2202 = vunpack.c.h.b16 %v603
    %v2203 = vunpack.c.l.b16 %v604
    %v2204 = vunpack.c.h.b16 %v604
    %v2205 = vunpack.c.l.b16 %v605
    %v2206 = vunpack.c.h.b16 %v605
    %v2207 = vunpack.c.l.b16 %v606
    %v2208 = vunpack.c.h.b16 %v606
    %v2209 = vunpack.c.l.b16 %v607
    %v2210 = vunpack.c.h.b16 %v607
    %v2211 = vunpack.c.l.b16 %v608
    %v2212 = vunpack.c.h.b16 %v608
    %v2213 = vunpack.c.l.b16 %v609
    %v2214 = vunpack.c.h.b16 %v609
    %v2215 = vunpack.c.l.b16 %v610
    %v2216 = vunpack.c.h.b16 %v610
    %v2217 = vunpack.c.l.b16 %v611
    %v2218 = vunpack.c.h.b16 %v611
    %v2219 = vunpack.c.l.b16 %v612
    %v2220 = vunpack.c.h.b16 %v612
    %v2221 = vunpack.c.l.b16 %v613
    %v2222 = vunpack.c.h.b16 %v613
    %v2223 = vunpack.c.l.b16 %v614
    %v2224 = vunpack.c.h.b16 %v614
    %v2225 = vunpack.c.l.b16 %v615
    %v2226 = vunpack.c.h.b16 %v615
    %v2227 = vunpack.c.l.b16 %v616
    %v2228 = vunpack.c.h.b16 %v616
    %v2229 = vunpack.c.l.b16 %v617
    %v2230 = vunpack.c.h.b16 %v617
    %v2231 = vunpack.c.l.b16 %v618
    %v2232 = vunpack.c.h.b16 %v618
    %v2233 = vunpack.c.l.b16 %v619
    %v2234 = vunpack.c.h.b16 %v619
    %v2235 = vunpack.c.l.b16 %v620
    %v2236 = vunpack.c.h.b16 %v620
    %v2237 = vunpack.c.l.b16 %v621
    %v2238 = vunpack.c.h.b16 %v621
    %v2239 = vunpack.c.l.b16 %v622
    %v2240 = vunpack.c.h.b16 %v622
    %v2241 = vunpack.c.l.b16 %v623
    %v2242 = vunpack.c.h.b16 %v623
    %v2243 = vunpack.c.l.b16 %v624
    %v2244 = vunpack.c.h.b16 %v624
    %v2245 = vunpack.c.l.b16 %v625
    %v2246 = vunpack.c.h.b16 %v625
    %v2247 = vunpack.c.l.b16 %v626
    %v2248 = vunpack.c.h.b16 %v626
    %v2249 = vunpack.c.l.b16 %v627
    %v2250 = vunpack.c.h.b16 %v627
    %v2251 = vunpack.c.l.b16 %v628
    %v2252 = vunpack.c.h.b16 %v628
    %v2253 = vunpack.c.l.b16 %v629
    %v2254 = vunpack.c.h.b16 %v629
    %v2255 = vunpack.c.l.b16 %v630
    %v2256 = vunpack.c.h.b16 %v630
    %v2257 = vunpack.c.l.b16 %v631
    %v2258 = vunpack.c.h.b16 %v631
    %v2259 = vunpack.c.l.b16 %v632
    %v2260 = vunpack.c.h.b16 %v632
    %v2261 = vunpack.c.l.b16 %v633
    %v2262 = vunpack.c.h.b16 %v633
    %v2263 = vunpack.c.l.b16 %v634
    %v2264 = vunpack.c.h.b16 %v634
    %v2265 = vunpack.c.l.b16 %v635
    %v2266 = vunpack.c.h.b16 %v635
    %v2267 = vunpack.c.l.b16 %v636
    %v2268 = vunpack.c.h.b16 %v636
    %v2269 = vunpack.c.l.b16 %v637
    %v2270 = vunpack.c.h.b16 %v637
    %v2271 = vunpack.c.l.b16 %v638
    %v2272 = vunpack.c.h.b16 %v638
    %v2273 = vunpack.c.l.b16 %v639
    %v2274 = vunpack.c.h.b16 %v639
    %v2275 = vunpack.c.l.b16 %v640
    %v2276 = vunpack.c.h.b16 %v640
    %v2277 = vunpack.c.l.b16 %v641
    %v2278 = vunpack.c.h.b16 %v641
    %v2279 = vunpack.c.l.b16 %v642
    %v2280 = vunpack.c.h.b16 %v642
    %v2281 = vunpack.c.l.b16 %v643
    %v2282 = vunpack.c.h.b16 %v643
    %v2283 = vunpack.c.l.b16 %v644
    %v2284 = vunpack.c.h.b16 %v644
    %v2285 = vunpack.c.l.b16 %v645
    %v2286 = vunpack.c.h.b16 %v645
    %v2287 = vunpack.c.l.b16 %v646
    %v2288 = vunpack.c.h.b16 %v646
    %v2289 = vunpack.c.l.b16 %v647
    %v2290 = vunpack.c.h.b16 %v647
    %v2291 = vunpack.c.l.b16 %v648
    %v2292 = vunpack.c.h.b16 %v648
    %v2293 = vunpack.c.l.b16 %v649
    %v2294 = vunpack.c.h.b16 %v649
    %v2295 = vunpack.c.l.b16 %v650
    %v2296 = vunpack.c.h.b16 %v650
    %v2297 = vunpack.c.l.b16 %v651
    %v2298 = vunpack.c.h.b16 %v651
    %v2299 = vunpack.c.l.b16 %v652
    %v2300 = vunpack.c.h.b16 %v652
    %v2301 = vunpack.c.l.b16 %v653
    %v2302 = vunpack.c.h.b16 %v653
    %v2303 = vunpack.c.l.b16 %v654
    %v2304 = vunpack.c.h.b16 %v654
    %v2305 = vunpack.c.l.b16 %v655
    %v2306 = vunpack.c.h.b16 %v655
    %v2307 = vunpack.c.l.b16 %v656
    %v2308 = vunpack.c.h.b16 %v656
    %v2309 = vunpack.c.l.b16 %v657
    %v2310 = vunpack.c.h.b16 %v657
    %v2311 = vunpack.c.l.b16 %v658
    %v2312 = vunpack.c.h.b16 %v658
    %v2313 = vunpack.c.l.b16 %v659
    %v2314 = vunpack.c.h.b16 %v659
    %v2315 = vunpack.c.l.b16 %v660
    %v2316 = vunpack.c.h.b16 %v660
    %v2317 = vunpack.c.l.b16 %v661
    %v2318 = vunpack.c.h.b16 %v661
    %v2319 = vunpack.c.l.b16 %v662
    %v2320 = vunpack.c.h.b16 %v662
    %v2321 = vunpack.c.l.b16 %v663
    %v2322 = vunpack.c.h.b16 %v663
    %v2323 = vunpack.c.l.b16 %v664
    %v2324 = vunpack.c.h.b16 %v664
    %v2325 = vunpack.c.l.b16 %v665
    %v2326 = vunpack.c.h.b16 %v665
    %v2327 = vunpack.c.l.b16 %v666
    %v2328 = vunpack.c.h.b16 %v666
    %v2329 = vunpack.c.l.b16 %v667
    %v2330 = vunpack.c.h.b16 %v667
    %v2331 = vunpack.c.l.b16 %v668
    %v2332 = vunpack.c.h.b16 %v668
    %v2333 = vunpack.c.l.b16 %v669
    %v2334 = vunpack.c.h.b16 %v669
    %v2335 = vunpack.c.l.b16 %v670
    %v2336 = vunpack.c.h.b16 %v670
    %v2337 = vunpack.c.l.b16 %v671
    %v2338 = vunpack.c.h.b16 %v671
    %v2339 = vunpack.c.l.b16 %v672
    %v2340 = vunpack.c.h.b16 %v672
    %v2341 = vunpack.c.l.b16 %v673
    %v2342 = vunpack.c.h.b16 %v673
    %v2343 = vunpack.c.l.b16 %v674
    %v2344 = vunpack.c.h.b16 %v674
    %v2345 = vunpack.c.l.b16 %v675
    %v2346 = vunpack.c.h.b16 %v675
    %v2347 = vunpack.c.l.b16 %v676
    %v2348 = vunpack.c.h.b16 %v676
    %v2349 = vunpack.c.l.b16 %v677
    %v2350 = vunpack.c.h.b16 %v677
    %v2351 = vunpack.c.l.b16 %v678
    %v2352 = vunpack.c.h.b16 %v678
    %v2353 = vunpack.c.l.b16 %v679
    %v2354 = vunpack.c.h.b16 %v679
    %v2355 = vunpack.c.l.b16 %v680
    %v2356 = vunpack.c.h.b16 %v680
    %v2357 = vunpack.c.l.b16 %v681
    %v2358 = vunpack.c.h.b16 %v681
    %v2359 = vunpack.c.l.b16 %v682
    %v2360 = vunpack.c.h.b16 %v682
    %v2361 = vunpack.c.l.b16 %v683
    %v2362 = vunpack.c.h.b16 %v683
    %v2363 = vunpack.c.l.b16 %v684
    %v2364 = vunpack.c.h.b16 %v684
    %v2365 = vunpack.c.l.b16 %v685
    %v2366 = vunpack.c.h.b16 %v685
    %v2367 = vunpack.c.l.b16 %v686
    %v2368 = vunpack.c.h.b16 %v686
    %v2369 = vunpack.c.l.b16 %v687
    %v2370 = vunpack.c.h.b16 %v687
    %v2371 = vunpack.c.l.b16 %v688
    %v2372 = vunpack.c.h.b16 %v688
    %v2373 = vunpack.c.l.b16 %v689
    %v2374 = vunpack.c.h.b16 %v689
    %v2375 = vunpack.c.l.b16 %v690
    %v2376 = vunpack.c.h.b16 %v690
    %v2377 = vunpack.c.l.b16 %v691
    %v2378 = vunpack.c.h.b16 %v691
    %v2379 = vunpack.c.l.b16 %v692
    %v2380 = vunpack.c.h.b16 %v692
    %v2381 = vunpack.c.l.b16 %v693
    %v2382 = vunpack.c.h.b16 %v693
    %v2383 = vunpack.c.l.b16 %v694
    %v2384 = vunpack.c.h.b16 %v694
    %v2385 = vunpack.c.l.b16 %v695
    %v2386 = vunpack.c.h.b16 %v695
    %v2387 = vunpack.c.l.b16 %v696
    %v2388 = vunpack.c.h.b16 %v696
    %v2389 = vunpack.c.l.b16 %v697
    %v2390 = vunpack.c.h.b16 %v697
    %v2391 = vunpack.c.l.b16 %v698
    %v2392 = vunpack.c.h.b16 %v698
    %v2393 = vunpack.c.l.b16 %v699
    %v2394 = vunpack.c.h.b16 %v699
    %v2395 = vunpack.c.l.b16 %v700
    %v2396 = vunpack.c.h.b16 %v700
    %v2397 = vunpack.c.l.b16 %v701
    %v2398 = vunpack.c.h.b16 %v701
    %v2399 = vunpack.c.l.b16 %v702
    %v2400 = vunpack.c.h.b16 %v702
    %v2401 = vunpack.c.l.b16 %v703
    %v2402 = vunpack.c.h.b16 %v703
    %v2403 = vunpack.c.l.b16 %v704
    %v2404 = vunpack.c.h.b16 %v704
    %v2405 = vunpack.c.l.b16 %v705
    %v2406 = vunpack.c.h.b16 %v705
    %v2407 = vunpack.c.l.b16 %v706
    %v2408 = vunpack.c.h.b16 %v706
    %v2409 = vpack.c.b16 %v1325, %v1321
    %v2410 = vpack.c.b16 %v1326, %v1322
    %v2411 = vpack.c.b16 %v1327, %v1323
    %v2412 = vpack.c.b16 %v1328, %v1324
    %v2413 = vpack.c.b16 %v1333, %v1329
    %v2414 = vpack.c.b16 %v1334, %v1330
    %v2415 = vpack.c.b16 %v1335, %v1331
    %v2416 = vpack.c.b16 %v1336, %v1332
    %v2417 = vpack.c.b16 %v1341, %v1337
    %v2418 = vpack.c.b16 %v1342, %v1338
    %v2419 = vpack.c.b16 %v1343, %v1339
    %v2420 = vpack.c.b16 %v1344, %v1340
    %v2421 = vpack.c.b16 %v1349, %v1345
    %v2422 = vpack.c.b16 %v1350, %v1346
    %v2423 = vpack.c.b16 %v1351, %v1347
    %v2424 = vpack.c.b16 %v1352, %v1348
    %v2425 = vpack.c.b16 %v1357, %v1353
    %v2426 = vpack.c.b16 %v1358, %v1354
    %v2427 = vpack.c.b16 %v1359, %v1355
    %v2428 = vpack.c.b16 %v1360, %v1356
    %v2429 = vpack.c.b16 %v1365, %v1361
    %v2430 = vpack.c.b16 %v1366, %v1362
    %v2431 = vpack.c.b16 %v1367, %v1363
    %v2432 = vpack.c.b16 %v1368, %v1364
    %v2433 = vpack.c.b16 %v1373, %v1369
    %v2434 = vpack.c.b16 %v1374, %v1370
    %v2435 = vpack.c.b16 %v1375, %v1371
    %v2436 = vpack.c.b16 %v1376, %v1372
    %v2437 = vpack.c.b16 %v1381, %v1377
    %v2438 = vpack.c.b16 %v1382, %v1378
    %v2439 = vpack.c.b16 %v1383, %v1379
    %v2440 = vpack.c.b16 %v1384, %v1380
    %v2441 = vpack.c.b16 %v1389, %v1385
    %v2442 = vpack.c.b16 %v1390, %v1386
    %v2443 = vpack.c.b16 %v1391, %v1387
    %v2444 = vpack.c.b16 %v1392, %v1388
    %v2445 = vpack.c.b16 %v1397, %v1393
    %v2446 = vpack.c.b16 %v1398, %v1394
    %v2447 = vpack.c.b16 %v1399, %v1395
    %v2448 = vpack.c.b16 %v1400, %v1396
    %v2449 = vpack.c.b16 %v1405, %v1401
    %v2450 = vpack.c.b16 %v1406, %v1402
    %v2451 = vpack.c.b16 %v1407, %v1403
    %v2452 = vpack.c.b16 %v1408, %v1404
    %v2453 = vpack.c.b16 %v1413, %v1409
    %v2454 = vpack.c.b16 %v1414, %v1410
    %v2455 = vpack.c.b16 %v1415, %v1411
    %v2456 = vpack.c.b16 %v1416, %v1412
    %v2457 = vpack.c.b16 %v1421, %v1417
    %v2458 = vpack.c.b16 %v1422, %v1418
    %v2459 = vpack.c.b16 %v1423, %v1419
    %v2460 = vpack.c.b16 %v1424, %v1420
    %v2461 = vpack.c.b16 %v1429, %v1425
    %v2462 = vpack.c.b16 %v1430, %v1426
    %v2463 = vpack.c.b16 %v1431, %v1427
    %v2464 = vpack.c.b16 %v1432, %v1428
    %v2465 = vpack.c.b16 %v1437, %v1433
    %v2466 = vpack.c.b16 %v1438, %v1434
    %v2467 = vpack.c.b16 %v1439, %v1435
    %v2468 = vpack.c.b16 %v1440, %v1436
    %v2469 = vpack.c.b16 %v1445, %v1441
    %v2470 = vpack.c.b16 %v1446, %v1442
    %v2471 = vpack.c.b16 %v1447, %v1443
    %v2472 = vpack.c.b16 %v1448, %v1444
    %v2473 = vpack.c.b16 %v1453, %v1449
    %v2474 = vpack.c.b16 %v1454, %v1450
    %v2475 = vpack.c.b16 %v1455, %v1451
    %v2476 = vpack.c.b16 %v1456, %v1452
    %v2477 = vpack.c.b16 %v1461, %v1457
    %v2478 = vpack.c.b16 %v1462, %v1458
    %v2479 = vpack.c.b16 %v1463, %v1459
    %v2480 = vpack.c.b16 %v1464, %v1460
    %v2481 = vpack.c.b16 %v1469, %v1465
    %v2482 = vpack.c.b16 %v1470, %v1466
    %v2483 = vpack.c.b16 %v1471, %v1467
    %v2484 = vpack.c.b16 %v1472, %v1468
    %v2485 = vpack.c.b16 %v1477, %v1473
    %v2486 = vpack.c.b16 %v1478, %v1474
    %v2487 = vpack.c.b16 %v1479, %v1475
    %v2488 = vpack.c.b16 %v1480, %v1476
    %v2489 = vpack.c.b16 %v1485, %v1481
    %v2490 = vpack.c.b16 %v1486, %v1482
    %v2491 = vpack.c.b16 %v1487, %v1483
    %v2492 = vpack.c.b16 %v1488, %v1484
    %v2493 = vpack.c.b16 %v1493, %v1489
    %v2494 = vpack.c.b16 %v1494, %v1490
    %v2495 = vpack.c.b16 %v1495, %v1491
    %v2496 = vpack.c.b16 %v1496, %v1492
    %v2497 = vpack.c.b16 %v1501, %v1497
    %v2498 = vpack.c.b16 %v1502, %v1498
    %v2499 = vpack.c.b16 %v1503, %v1499
    %v2500 = vpack.c.b16 %v1504, %v1500
    %v2501 = vpack.c.b16 %v1509, %v1505
    %v2502 = vpack.c.b16 %v1510, %v1506
    %v2503 = vpack.c.b16 %v1511, %v1507
    %v2504 = vpack.c.b16 %v1512, %v1508
    %v2505 = vpack.c.b16 %v1517, %v1513
    %v2506 = vpack.c.b16 %v1518, %v1514
    %v2507 = vpack.c.b16 %v1519, %v1515
    %v2508 = vpack.c.b16 %v1520, %v1516
    %v2509 = vpack.c.b16 %v1525, %v1521
    %v2510 = vpack.c.b16 %v1526, %v1522
    %v2511 = vpack.c.b16 %v1527, %v1523
    %v2512 = vpack.c.b16 %v1528, %v1524
    %v2513 = vpack.c.b16 %v1533, %v1529
    %v2514 = vpack.c.b16 %v1534, %v1530
    %v2515 = vpack.c.b16 %v1535, %v1531
    %v2516 = vpack.c.b16 %v1536, %v1532
    %v2517 = vpack.c.b16 %v1541, %v1537
    %v2518 = vpack.c.b16 %v1542, %v1538
    %v2519 = vpack.c.b16 %v1543, %v1539
    %v2520 = vpack.c.b16 %v1544, %v1540
    %v2521 = vpack.c.b16 %v1549, %v1545
    %v2522 = vpack.c.b16 %v1550, %v1546
    %v2523 = vpack.c.b16 %v1551, %v1547
    %v2524 = vpack.c.b16 %v1552, %v1548
    %v2525 = vpack.c.b16 %v1557, %v1553
    %v2526 = vpack.c.b16 %v1558, %v1554
    %v2527 = vpack.c.b16 %v1559, %v1555
    %v2528 = vpack.c.b16 %v1560, %v1556
    %v2529 = vpack.c.b16 %v1565, %v1561
    %v2530 = vpack.c.b16 %v1566, %v1562
    %v2531 = vpack.c.b16 %v1567, %v1563
    %v2532 = vpack.c.b16 %v1568, %v1564
    %v2533 = vpack.c.b16 %v1573, %v1569
    %v2534 = vpack.c.b16 %v1574, %v1570
    %v2535 = vpack.c.b16 %v1575, %v1571
    %v2536 = vpack.c.b16 %v1576, %v1572
    %v2537 = vpack.c.b16 %v1581, %v1577
    %v2538 = vpack.c.b16 %v1582, %v1578
    %v2539 = vpack.c.b16 %v1583, %v1579
    %v2540 = vpack.c.b16 %v1584, %v1580
    %v2541 = vpack.c.b16 %v1589, %v1585
    %v2542 = vpack.c.b16 %v1590, %v1586
    %v2543 = vpack.c.b16 %v1591, %v1587
    %v2544 = vpack.c.b16 %v1592, %v1588
    %v2545 = vpack.c.b16 %v1597, %v1593
    %v2546 = vpack.c.b16 %v1598, %v1594
    %v2547 = vpack.c.b16 %v1599, %v1595
    %v2548 = vpack.c.b16 %v1600, %v1596
    %v2549 = vpack.c.b16 %v1605, %v1601
    %v2550 = vpack.c.b16 %v1606, %v1602
    %v2551 = vpack.c.b16 %v1607, %v1603
    %v2552 = vpack.c.b16 %v1608, %v1604
    %v2553 = vpack.c.b16 %v1613, %v1609
    %v2554 = vpack.c.b16 %v1614, %v1610
    %v2555 = vpack.c.b16 %v1615, %v1611
    %v2556 = vpack.c.b16 %v1616, %v1612
    %v2557 = vpack.c.b16 %v1621, %v1617
    %v2558 = vpack.c.b16 %v1622, %v1618
    %v2559 = vpack.c.b16 %v1623, %v1619
    %v2560 = vpack.c.b16 %v1624, %v1620
    %v2561 = vpack.c.b16 %v1629, %v1625
    %v2562 = vpack.c.b16 %v1630, %v1626
    %v2563 = vpack.c.b16 %v1631, %v1627
    %v2564 = vpack.c.b16 %v1632, %v1628
    %v2565 = vpack.c.b16 %v1637, %v1633
    %v2566 = vpack.c.b16 %v1638, %v1634
    %v2567 = vpack.c.b16 %v1639, %v1635
    %v2568 = vpack.c.b16 %v1640, %v1636
    %v2569 = vpack.c.b16 %v1645, %v1641
    %v2570 = vpack.c.b16 %v1646, %v1642
    %v2571 = vpack.c.b16 %v1647, %v1643
    %v2572 = vpack.c.b16 %v1648, %v1644
    %v2573 = vpack.c.b16 %v1653, %v1649
    %v2574 = vpack.c.b16 %v1654, %v1650
    %v2575 = vpack.c.b16 %v1655, %v1651
    %v2576 = vpack.c.b16 %v1656, %v1652
    %v2577 = vpack.c.b16 %v1661, %v1657
    %v2578 = vpack.c.b16 %v1662, %v1658
    %v2579 = vpack.c.b16 %v1663, %v1659
    %v2580 = vpack.c.b16 %v1664, %v1660
    %v2581 = vpack.c.b16 %v1669, %v1665
    %v2582 = vpack.c.b16 %v1670, %v1666
    %v2583 = vpack.c.b16 %v1671, %v1667
    %v2584 = vpack.c.b16 %v1672, %v1668
    %v2585 = vpack.c.b16 %v1677, %v1673
    %v2586 = vpack.c.b16 %v1678, %v1674
    %v2587 = vpack.c.b16 %v1679, %v1675
    %v2588 = vpack.c.b16 %v1680, %v1676
    %v2589 = vpack.c.b16 %v1685, %v1681
    %v2590 = vpack.c.b16 %v1686, %v1682
    %v2591 = vpack.c.b16 %v1687, %v1683
    %v2592 = vpack.c.b16 %v1688, %v1684
    %v2593 = vpack.c.b16 %v1693, %v1689
    %v2594 = vpack.c.b16 %v1694, %v1690
    %v2595 = vpack.c.b16 %v1695, %v1691
    %v2596 = vpack.c.b16 %v1696, %v1692
    %v2597 = vpack.c.b16 %v1701, %v1697
    %v2598 = vpack.c.b16 %v1702, %v1698
    %v2599 = vpack.c.b16 %v1703, %v1699
    %v2600 = vpack.c.b16 %v1704, %v1700
    %v2601 = vpack.c.b16 %v1709, %v1705
    %v2602 = vpack.c.b16 %v1710, %v1706
    %v2603 = vpack.c.b16 %v1711, %v1707
    %v2604 = vpack.c.b16 %v1712, %v1708
    %v2605 = vpack.c.b16 %v1717, %v1713
    %v2606 = vpack.c.b16 %v1718, %v1714
    %v2607 = vpack.c.b16 %v1719, %v1715
    %v2608 = vpack.c.b16 %v1720, %v1716
    %v2609 = vpack.c.b16 %v1725, %v1721
    %v2610 = vpack.c.b16 %v1726, %v1722
    %v2611 = vpack.c.b16 %v1727, %v1723
    %v2612 = vpack.c.b16 %v1728, %v1724
    %v2613 = vpack.c.b16 %v1733, %v1729
    %v2614 = vpack.c.b16 %v1734, %v1730
    %v2615 = vpack.c.b16 %v1735, %v1731
    %v2616 = vpack.c.b16 %v1736, %v1732
    %v2617 = vpack.c.b16 %v1741, %v1737
    %v2618 = vpack.c.b16 %v1742, %v1738
    %v2619 = vpack.c.b16 %v1743, %v1739
    %v2620 = vpack.c.b16 %v1744, %v1740
    %v2621 = vpack.c.b16 %v1749, %v1745
    %v2622 = vpack.c.b16 %v1750, %v1746
    %v2623 = vpack.c.b16 %v1751, %v1747
    %v2624 = vpack.c.b16 %v1752, %v1748
    %v2625 = vpack.c.b16 %v1757, %v1753
    %v2626 = vpack.c.b16 %v1758, %v1754
    %v2627 = vpack.c.b16 %v1759, %v1755
    %v2628 = vpack.c.b16 %v1760, %v1756
    %v2629 = vpack.c.b16 %v1765, %v1761
    %v2630 = vpack.c.b16 %v1766, %v1762
    %v2631 = vpack.c.b16 %v1767, %v1763
    %v2632 = vpack.c.b16 %v1768, %v1764
    %v2633 = vpack.c.b16 %v1773, %v1769
    %v2634 = vpack.c.b16 %v1774, %v1770
    %v2635 = vpack.c.b16 %v1775, %v1771
    %v2636 = vpack.c.b16 %v1776, %v1772
    %v2637 = vpack.c.b16 %v1781, %v1777
    %v2638 = vpack.c.b16 %v1782, %v1778
    %v2639 = vpack.c.b16 %v1783, %v1779
    %v2640 = vpack.c.b16 %v1784, %v1780
    %v2641 = vpack.c.b16 %v1789, %v1785
    %v2642 = vpack.c.b16 %v1790, %v1786
    %v2643 = vpack.c.b16 %v1791, %v1787
    %v2644 = vpack.c.b16 %v1792, %v1788
    %v2645 = vpack.c.b16 %v1797, %v1793
    %v2646 = vpack.c.b16 %v1798, %v1794
    %v2647 = vpack.c.b16 %v1799, %v1795
    %v2648 = vpack.c.b16 %v1800, %v1796
    %v2649 = vpack.c.b16 %v1805, %v1801
    %v2650 = vpack.c.b16 %v1806, %v1802
    %v2651 = vpack.c.b16 %v1807, %v1803
    %v2652 = vpack.c.b16 %v1808, %v1804
    %v2653 = vpack.c.b16 %v1813, %v1809
    %v2654 = vpack.c.b16 %v1814, %v1810
    %v2655 = vpack.c.b16 %v1815, %v1811
    %v2656 = vpack.c.b16 %v1816, %v1812
    %v2657 = vpack.c.b16 %v1821, %v1817
    %v2658 = vpack.c.b16 %v1822, %v1818
    %v2659 = vpack.c.b16 %v1823, %v1819
    %v2660 = vpack.c.b16 %v1824, %v1820
    %v2661 = vpack.c.b16 %v1829, %v1825
    %v2662 = vpack.c.b16 %v1830, %v1826
    %v2663 = vpack.c.b16 %v1831, %v1827
    %v2664 = vpack.c.b16 %v1832, %v1828
    %v2665 = vpack.c.b16 %v1837, %v1833
    %v2666 = vpack.c.b16 %v1838, %v1834
    %v2667 = vpack.c.b16 %v1839, %v1835
    %v2668 = vpack.c.b16 %v1840, %v1836
    %v2669 = vpack.c.b16 %v1845, %v1841
    %v2670 = vpack.c.b16 %v1846, %v1842
    %v2671 = vpack.c.b16 %v1847, %v1843
    %v2672 = vpack.c.b16 %v1848, %v1844
    %v2673 = vpack.c.b16 %v1853, %v1849
    %v2674 = vpack.c.b16 %v1854, %v1850
    %v2675 = vpack.c.b16 %v1855, %v1851
    %v2676 = vpack.c.b16 %v1856, %v1852
    %v2677 = vpack.c.b16 %v1861, %v1857
    %v2678 = vpack.c.b16 %v1862, %v1858
    %v2679 = vpack.c.b16 %v1863, %v1859
    %v2680 = vpack.c.b16 %v1864, %v1860
    %v2681 = vpack.c.b16 %v1869, %v1865
    %v2682 = vpack.c.b16 %v1870, %v1866
    %v2683 = vpack.c.b16 %v1871, %v1867
    %v2684 = vpack.c.b16 %v1872, %v1868
    %v2685 = vpack.c.b16 %v1877, %v1873
    %v2686 = vpack.c.b16 %v1878, %v1874
    %v2687 = vpack.c.b16 %v1879, %v1875
    %v2688 = vpack.c.b16 %v1880, %v1876
    %v2689 = vpack.c.b16 %v1885, %v1881
    %v2690 = vpack.c.b16 %v1886, %v1882
    %v2691 = vpack.c.b16 %v1887, %v1883
    %v2692 = vpack.c.b16 %v1888, %v1884
    %v2693 = vpack.c.b16 %v1893, %v1889
    %v2694 = vpack.c.b16 %v1894, %v1890
    %v2695 = vpack.c.b16 %v1895, %v1891
    %v2696 = vpack.c.b16 %v1896, %v1892
    %v2697 = vpack.c.b16 %v1901, %v1897
    %v2698 = vpack.c.b16 %v1902, %v1898
    %v2699 = vpack.c.b16 %v1903, %v1899
    %v2700 = vpack.c.b16 %v1904, %v1900
    %v2701 = vpack.c.b16 %v1909, %v1905
    %v2702 = vpack.c.b16 %v1910, %v1906
    %v2703 = vpack.c.b16 %v1911, %v1907
    %v2704 = vpack.c.b16 %v1912, %v1908
    %v2705 = vpack.c.b16 %v1917, %v1913
    %v2706 = vpack.c.b16 %v1918, %v1914
    %v2707 = vpack.c.b16 %v1919, %v1915
    %v2708 = vpack.c.b16 %v1920, %v1916
    %v2709 = vpack.c.b16 %v1925, %v1921
    %v2710 = vpack.c.b16 %v1926, %v1922
    %v2711 = vpack.c.b16 %v1927, %v1923
    %v2712 = vpack.c.b16 %v1928, %v1924
    %v2713 = vpack.c.b16 %v1933, %v1929
    %v2714 = vpack.c.b16 %v1934, %v1930
    %v2715 = vpack.c.b16 %v1935, %v1931
    %v2716 = vpack.c.b16 %v1936, %v1932
    %v2717 = vpack.c.b16 %v1941, %v1937
    %v2718 = vpack.c.b16 %v1942, %v1938
    %v2719 = vpack.c.b16 %v1943, %v1939
    %v2720 = vpack.c.b16 %v1944, %v1940
    %v2721 = vpack.c.b16 %v1949, %v1945
    %v2722 = vpack.c.b16 %v1950, %v1946
    %v2723 = vpack.c.b16 %v1951, %v1947
    %v2724 = vpack.c.b16 %v1952, %v1948
    %v2725 = vpack.c.b16 %v1957, %v1953
    %v2726 = vpack.c.b16 %v1958, %v1954
    %v2727 = vpack.c.b16 %v1959, %v1955
    %v2728 = vpack.c.b16 %v1960, %v1956
    %v2729 = vpack.c.b16 %v1965, %v1961
    %v2730 = vpack.c.b16 %v1966, %v1962
    %v2731 = vpack.c.b16 %v1967, %v1963
    %v2732 = vpack.c.b16 %v1968, %v1964
    %v2733 = vpack.c.b16 %v1973, %v1969
    %v2734 = vpack.c.b16 %v1974, %v1970
    %v2735 = vpack.c.b16 %v1975, %v1971
    %v2736 = vpack.c.b16 %v1976, %v1972
    %v2737 = vpack.c.b16 %v1981, %v1977
    %v2738 = vpack.c.b16 %v1982, %v1978
    %v2739 = vpack.c.b16 %v1983, %v1979
    %v2740 = vpack.c.b16 %v1984, %v1980
    %v2741 = vpack.c.b16 %v1989, %v1985
    %v2742 = vpack.c.b16 %v1990, %v1986
    %v2743 = vpack.c.b16 %v1991, %v1987
    %v2744 = vpack.c.b16 %v1992, %v1988
    %v2745 = vpack.c.b16 %v1997, %v1993
    %v2746 = vpack.c.b16 %v1998, %v1994
    %v2747 = vpack.c.b16 %v1999, %v1995
    %v2748 = vpack.c.b16 %v2000, %v1996
    %v2749 = vpack.c.b16 %v2005, %v2001
    %v2750 = vpack.c.b16 %v2006, %v2002
    %v2751 = vpack.c.b16 %v2007, %v2003
    %v2752 = vpack.c.b16 %v2008, %v2004
    %v2753 = vpack.c.b16 %v2013, %v2009
    %v2754 = vpack.c.b16 %v2014, %v2010
    %v2755 = vpack.c.b16 %v2015, %v2011
    %v2756 = vpack.c.b16 %v2016, %v2012
    %v2757 = vpack.c.b16 %v2021, %v2017
    %v2758 = vpack.c.b16 %v2022, %v2018
    %v2759 = vpack.c.b16 %v2023, %v2019
    %v2760 = vpack.c.b16 %v2024, %v2020
    %v2761 = vpack.c.b16 %v2029, %v2025
    %v2762 = vpack.c.b16 %v2030, %v2026
    %v2763 = vpack.c.b16 %v2031, %v2027
    %v2764 = vpack.c.b16 %v2032, %v2028
    %v2765 = vpack.c.b16 %v2037, %v2033
    %v2766 = vpack.c.b16 %v2038, %v2034
    %v2767 = vpack.c.b16 %v2039, %v2035
    %v2768 = vpack.c.b16 %v2040, %v2036
    %v2769 = vpack.c.b16 %v2045, %v2041
    %v2770 = vpack.c.b16 %v2046, %v2042
    %v2771 = vpack.c.b16 %v2047, %v2043
    %v2772 = vpack.c.b16 %v2048, %v2044
    %v2773 = vpack.c.b16 %v2053, %v2049
    %v2774 = vpack.c.b16 %v2054, %v2050
    %v2775 = vpack.c.b16 %v2055, %v2051
    %v2776 = vpack.c.b16 %v2056, %v2052
    %v2777 = vpack.c.b16 %v2061, %v2057
    %v2778 = vpack.c.b16 %v2062, %v2058
    %v2779 = vpack.c.b16 %v2063, %v2059
    %v2780 = vpack.c.b16 %v2064, %v2060
    %v2781 = vpack.c.b16 %v2069, %v2065
    %v2782 = vpack.c.b16 %v2070, %v2066
    %v2783 = vpack.c.b16 %v2071, %v2067
    %v2784 = vpack.c.b16 %v2072, %v2068
    %v2785 = vpack.c.b16 %v2077, %v2073
    %v2786 = vpack.c.b16 %v2078, %v2074
    %v2787 = vpack.c.b16 %v2079, %v2075
    %v2788 = vpack.c.b16 %v2080, %v2076
    %v2789 = vpack.c.b16 %v2085, %v2081
    %v2790 = vpack.c.b16 %v2086, %v2082
    %v2791 = vpack.c.b16 %v2087, %v2083
    %v2792 = vpack.c.b16 %v2088, %v2084
    %v2793 = vpack.c.b16 %v2093, %v2089
    %v2794 = vpack.c.b16 %v2094, %v2090
    %v2795 = vpack.c.b16 %v2095, %v2091
    %v2796 = vpack.c.b16 %v2096, %v2092
    %v2797 = vpack.c.b16 %v2101, %v2097
    %v2798 = vpack.c.b16 %v2102, %v2098
    %v2799 = vpack.c.b16 %v2103, %v2099
    %v2800 = vpack.c.b16 %v2104, %v2100
    %v2801 = vpack.c.b16 %v2109, %v2105
    %v2802 = vpack.c.b16 %v2110, %v2106
    %v2803 = vpack.c.b16 %v2111, %v2107
    %v2804 = vpack.c.b16 %v2112, %v2108
    %v2805 = vpack.c.b16 %v2117, %v2113
    %v2806 = vpack.c.b16 %v2118, %v2114
    %v2807 = vpack.c.b16 %v2119, %v2115
    %v2808 = vpack.c.b16 %v2120, %v2116
    %v2809 = vpack.c.b16 %v2125, %v2121
    %v2810 = vpack.c.b16 %v2126, %v2122
    %v2811 = vpack.c.b16 %v2127, %v2123
    %v2812 = vpack.c.b16 %v2128, %v2124
    %v2813 = vpack.c.b16 %v2133, %v2129
    %v2814 = vpack.c.b16 %v2134, %v2130
    %v2815 = vpack.c.b16 %v2135, %v2131
    %v2816 = vpack.c.b16 %v2136, %v2132
    %v2817 = vpack.c.b16 %v2141, %v2137
    %v2818 = vpack.c.b16 %v2142, %v2138
    %v2819 = vpack.c.b16 %v2143, %v2139
    %v2820 = vpack.c.b16 %v2144, %v2140
    %v2821 = vpack.c.b16 %v2149, %v2145
    %v2822 = vpack.c.b16 %v2150, %v2146
    %v2823 = vpack.c.b16 %v2151, %v2147
    %v2824 = vpack.c.b16 %v2152, %v2148
    %v2825 = vpack.c.b16 %v2157, %v2153
    %v2826 = vpack.c.b16 %v2158, %v2154
    %v2827 = vpack.c.b16 %v2159, %v2155
    %v2828 = vpack.c.b16 %v2160, %v2156
    %v2829 = vpack.c.b16 %v2165, %v2161
    %v2830 = vpack.c.b16 %v2166, %v2162
    %v2831 = vpack.c.b16 %v2167, %v2163
    %v2832 = vpack.c.b16 %v2168, %v2164
    %v2833 = vpack.c.b16 %v2173, %v2169
    %v2834 = vpack.c.b16 %v2174, %v2170
    %v2835 = vpack.c.b16 %v2175, %v2171
    %v2836 = vpack.c.b16 %v2176, %v2172
    %v2837 = vpack.c.b16 %v2181, %v2177
    %v2838 = vpack.c.b16 %v2182, %v2178
    %v2839 = vpack.c.b16 %v2183, %v2179
    %v2840 = vpack.c.b16 %v2184, %v2180
    %v2841 = vpack.c.b16 %v2189, %v2185
    %v2842 = vpack.c.b16 %v2190, %v2186
    %v2843 = vpack.c.b16 %v2191, %v2187
    %v2844 = vpack.c.b16 %v2192, %v2188
    %v2845 = vpack.c.b16 %v2197, %v2193
    %v2846 = vpack.c.b16 %v2198, %v2194
    %v2847 = vpack.c.b16 %v2199, %v2195
    %v2848 = vpack.c.b16 %v2200, %v2196
    %v2849 = vpack.c.b16 %v2205, %v2201
    %v2850 = vpack.c.b16 %v2206, %v2202
    %v2851 = vpack.c.b16 %v2207, %v2203
    %v2852 = vpack.c.b16 %v2208, %v2204
    %v2853 = vpack.c.b16 %v2213, %v2209
    %v2854 = vpack.c.b16 %v2214, %v2210
    %v2855 = vpack.c.b16 %v2215, %v2211
    %v2856 = vpack.c.b16 %v2216, %v2212
    %v2857 = vpack.c.b16 %v2221, %v2217
    %v2858 = vpack.c.b16 %v2222, %v2218
    %v2859 = vpack.c.b16 %v2223, %v2219
    %v2860 = vpack.c.b16 %v2224, %v2220
    %v2861 = vpack.c.b16 %v2229, %v2225
    %v2862 = vpack.c.b16 %v2230, %v2226
    %v2863 = vpack.c.b16 %v2231, %v2227
    %v2864 = vpack.c.b16 %v2232, %v2228
    %v2865 = vpack.c.b16 %v2237, %v2233
    %v2866 = vpack.c.b16 %v2238, %v2234
    %v2867 = vpack.c.b16 %v2239, %v2235
    %v2868 = vpack.c.b16 %v2240, %v2236
    %v2869 = vpack.c.b16 %v2245, %v2241
    %v2870 = vpack.c.b16 %v2246, %v2242
    %v2871 = vpack.c.b16 %v2247, %v2243
    %v2872 = vpack.c.b16 %v2248, %v2244
    %v2873 = vpack.c.b16 %v2253, %v2249
    %v2874 = vpack.c.b16 %v2254, %v2250
    %v2875 = vpack.c.b16 %v2255, %v2251
    %v2876 = vpack.c.b16 %v2256, %v2252
    %v2877 = vpack.c.b16 %v2261, %v2257
    %v2878 = vpack.c.b16 %v2262, %v2258
    %v2879 = vpack.c.b16 %v2263, %v2259
    %v2880 = vpack.c.b16 %v2264, %v2260
    %v2881 = vpack.c.b16 %v2269, %v2265
    %v2882 = vpack.c.b16 %v2270, %v2266
    %v2883 = vpack.c.b16 %v2271, %v2267
    %v2884 = vpack.c.b16 %v2272, %v2268
    %v2885 = vpack.c.b16 %v2277, %v2273
    %v2886 = vpack.c.b16 %v2278, %v2274
    %v2887 = vpack.c.b16 %v2279, %v2275
    %v2888 = vpack.c.b16 %v2280, %v2276
    %v2889 = vpack.c.b16 %v2285, %v2281
    %v2890 = vpack.c.b16 %v2286, %v2282
    %v2891 = vpack.c.b16 %v2287, %v2283
    %v2892 = vpack.c.b16 %v2288, %v2284
    %v2893 = vpack.c.b16 %v2293, %v2289
    %v2894 = vpack.c.b16 %v2294, %v2290
    %v2895 = vpack.c.b16 %v2295, %v2291
    %v2896 = vpack.c.b16 %v2296, %v2292
    %v2897 = vpack.c.b16 %v2301, %v2297
    %v2898 = vpack.c.b16 %v2302, %v2298
    %v2899 = vpack.c.b16 %v2303, %v2299
    %v2900 = vpack.c.b16 %v2304, %v2300
    %v2901 = vpack.c.b16 %v2309, %v2305
    %v2902 = vpack.c.b16 %v2310, %v2306
    %v2903 = vpack.c.b16 %v2311, %v2307
    %v2904 = vpack.c.b16 %v2312, %v2308
    %v2905 = vpack.c.b16 %v2317, %v2313
    %v2906 = vpack.c.b16 %v2318, %v2314
    %v2907 = vpack.c.b16 %v2319, %v2315
    %v2908 = vpack.c.b16 %v2320, %v2316
    %v2909 = vpack.c.b16 %v2325, %v2321
    %v2910 = vpack.c.b16 %v2326, %v2322
    %v2911 = vpack.c.b16 %v2327, %v2323
    %v2912 = vpack.c.b16 %v2328, %v2324
    %v2913 = vpack.c.b16 %v2333, %v2329
    %v2914 = vpack.c.b16 %v2334, %v2330
    %v2915 = vpack.c.b16 %v2335, %v2331
    %v2916 = vpack.c.b16 %v2336, %v2332
    %v2917 = vpack.c.b16 %v2341, %v2337
    %v2918 = vpack.c.b16 %v2342, %v2338
    %v2919 = vpack.c.b16 %v2343, %v2339
    %v2920 = vpack.c.b16 %v2344, %v2340
    %v2921 = vpack.c.b16 %v2349, %v2345
    %v2922 = vpack.c.b16 %v2350, %v2346
    %v2923 = vpack.c.b16 %v2351, %v2347
    %v2924 = vpack.c.b16 %v2352, %v2348
    %v2925 = vpack.c.b16 %v2357, %v2353
    %v2926 = vpack.c.b16 %v2358, %v2354
    %v2927 = vpack.c.b16 %v2359, %v2355
    %v2928 = vpack.c.b16 %v2360, %v2356
    %v2929 = vpack.c.b16 %v2365, %v2361
    %v2930 = vpack.c.b16 %v2366, %v2362
    %v2931 = vpack.c.b16 %v2367, %v2363
    %v2932 = vpack.c.b16 %v2368, %v2364
    %v2933 = vpack.c.b16 %v2373, %v2369
    %v2934 = vpack.c.b16 %v2374, %v2370
    %v2935 = vpack.c.b16 %v2375, %v2371
    %v2936 = vpack.c.b16 %v2376, %v2372
    %v2937 = vpack.c.b16 %v2381, %v2377
    %v2938 = vpack.c.b16 %v2382, %v2378
    %v2939 = vpack.c.b16 %v2383, %v2379
    %v2940 = vpack.c.b16 %v2384, %v2380
    %v2941 = vpack.c.b16 %v2389, %v2385
    %v2942 = vpack.c.b16 %v2390, %v2386
    %v2943 = vpack.c.b16 %v2391, %v2387
    %v2944 = vpack.c.b16 %v2392, %v2388
    %v2945 = vpack.c.b16 %v2397, %v2393
    %v2946 = vpack.c.b16 %v2398, %v2394
    %v2947 = vpack.c.b16 %v2399, %v2395
    %v2948 = vpack.c.b16 %v2400, %v2396
    %v2949 = vpack.c.b16 %v2405, %v2401
    %v2950 = vpack.c.b16 %v2406, %v2402
    %v2951 = vpack.c.b16 %v2407, %v2403
    %v2952 = vpack.c.b16 %v2408, %v2404
    %3497 = vmatpush.bf16.msra.mxu0 %v2437
    %3498 = vmatpush.bf16.msra.mxu0 %v2433
    %3499 = vmatpush.bf16.msra.mxu0 %v2429
    %3500 = vmatpush.bf16.msra.mxu0 %v2425
    %3501 = vmatpush.bf16.msra.mxu0 %v2421
    %3502 = vmatpush.bf16.msra.mxu0 %v2417
    %3503 = vmatpush.bf16.msra.mxu0 %v2413
    %3504 = vmatpush.bf16.msra.mxu0 %v2409
    %3505 = vmatmul.bf16.gmra.mxu0 %v743
    %v3506 = vpop.f32.mrf.mxu0
    %v3507 = vadd.f32 %v709, %v3506
    %v3508 = vpop.f32.mrf.mxu0
    %3509 = vdwg.mxu0
    %3510 = vmatpush.bf16.msra.mxu0 %v2469
    %3511 = vmatpush.bf16.msra.mxu0 %v2465
    %3512 = vmatpush.bf16.msra.mxu0 %v2461
    %3513 = vmatpush.bf16.msra.mxu0 %v2457
    %3514 = vmatpush.bf16.msra.mxu0 %v2453
    %3515 = vmatpush.bf16.msra.mxu0 %v2449
    %3516 = vmatpush.bf16.msra.mxu0 %v2445
    %3517 = vmatpush.bf16.msra.mxu0 %v2441
    %3518 = vmatmul.bf16.gmra.mxu0 %v744
    %v3519 = vpop.f32.mrf.mxu0
    %v3520 = vadd.f32 %v3507, %v3519
    %v3521 = vpop.f32.mrf.mxu0
    %3522 = vdwg.mxu0
    %3523 = vmatpush.bf16.msra.mxu0 %v2501
    %3524 = vmatpush.bf16.msra.mxu0 %v2497
    %3525 = vmatpush.bf16.msra.mxu0 %v2493
    %3526 = vmatpush.bf16.msra.mxu0 %v2489
    %3527 = vmatpush.bf16.msra.mxu0 %v2485
    %3528 = vmatpush.bf16.msra.mxu0 %v2481
    %3529 = vmatpush.bf16.msra.mxu0 %v2477
    %3530 = vmatpush.bf16.msra.mxu0 %v2473
    %3531 = vmatmul.bf16.gmra.mxu0 %v745
    %v3532 = vpop.f32.mrf.mxu0
    %v3533 = vadd.f32 %v3520, %v3532
    %v3534 = vpop.f32.mrf.mxu0
    %3535 = vdwg.mxu0
    %3536 = vmatpush.bf16.msra.mxu0 %v2533
    %3537 = vmatpush.bf16.msra.mxu0 %v2529
    %3538 = vmatpush.bf16.msra.mxu0 %v2525
    %3539 = vmatpush.bf16.msra.mxu0 %v2521
    %3540 = vmatpush.bf16.msra.mxu0 %v2517
    %3541 = vmatpush.bf16.msra.mxu0 %v2513
    %3542 = vmatpush.bf16.msra.mxu0 %v2509
    %3543 = vmatpush.bf16.msra.mxu0 %v2505
    %3544 = vmatmul.bf16.gmra.mxu0 %v746
    %v3545 = vpop.f32.mrf.mxu0
    %v3546 = vadd.f32 %v3533, %v3545
    %v3547 = vpop.f32.mrf.mxu0
    %3548 = vdwg.mxu0
    %3549 = vmatpush.bf16.msra.mxu0 %v2565
    %3550 = vmatpush.bf16.msra.mxu0 %v2561
    %3551 = vmatpush.bf16.msra.mxu0 %v2557
    %3552 = vmatpush.bf16.msra.mxu0 %v2553
    %3553 = vmatpush.bf16.msra.mxu0 %v2549
    %3554 = vmatpush.bf16.msra.mxu0 %v2545
    %3555 = vmatpush.bf16.msra.mxu0 %v2541
    %3556 = vmatpush.bf16.msra.mxu0 %v2537
    %3557 = vmatmul.bf16.gmra.mxu0 %v747
    %v3558 = vpop.f32.mrf.mxu0
    %v3559 = vadd.f32 %v3546, %v3558
    %v3560 = vpop.f32.mrf.mxu0
    %3561 = vdwg.mxu0
    %3562 = vmatpush.bf16.msra.mxu0 %v2597
    %3563 = vmatpush.bf16.msra.mxu0 %v2593
    %3564 = vmatpush.bf16.msra.mxu0 %v2589
    %3565 = vmatpush.bf16.msra.mxu0 %v2585
    %3566 = vmatpush.bf16.msra.mxu0 %v2581
    %3567 = vmatpush.bf16.msra.mxu0 %v2577
    %3568 = vmatpush.bf16.msra.mxu0 %v2573
    %3569 = vmatpush.bf16.msra.mxu0 %v2569
    %3570 = vmatmul.bf16.gmra.mxu0 %v748
    %v3571 = vpop.f32.mrf.mxu0
    %v3572 = vadd.f32 %v3559, %v3571
    %v3573 = vpop.f32.mrf.mxu0
    %3574 = vdwg.mxu0
    %3575 = vmatpush.bf16.msra.mxu0 %v2629
    %3576 = vmatpush.bf16.msra.mxu0 %v2625
    %3577 = vmatpush.bf16.msra.mxu0 %v2621
    %3578 = vmatpush.bf16.msra.mxu0 %v2617
    %3579 = vmatpush.bf16.msra.mxu0 %v2613
    %3580 = vmatpush.bf16.msra.mxu0 %v2609
    %3581 = vmatpush.bf16.msra.mxu0 %v2605
    %3582 = vmatpush.bf16.msra.mxu0 %v2601
    %3583 = vmatmul.bf16.gmra.mxu0 %v749
    %v3584 = vpop.f32.mrf.mxu0
    %v3585 = vadd.f32 %v3572, %v3584
    %v3586 = vpop.f32.mrf.mxu0
    %3587 = vdwg.mxu0
    %3588 = vmatpush.bf16.msra.mxu0 %v2661
    %3589 = vmatpush.bf16.msra.mxu0 %v2657
    %3590 = vmatpush.bf16.msra.mxu0 %v2653
    %3591 = vmatpush.bf16.msra.mxu0 %v2649
    %3592 = vmatpush.bf16.msra.mxu0 %v2645
    %3593 = vmatpush.bf16.msra.mxu0 %v2641
    %3594 = vmatpush.bf16.msra.mxu0 %v2637
    %3595 = vmatpush.bf16.msra.mxu0 %v2633
    %3596 = vmatmul.bf16.gmra.mxu0 %v750
    %v3597 = vpop.f32.mrf.mxu0
    %v3598 = vadd.f32 %v3585, %v3597
    %v3599 = vpop.f32.mrf.mxu0
    %3600 = vdwg.mxu0
    %3601 = vmatpush.bf16.msra.mxu0 %v2693
    %3602 = vmatpush.bf16.msra.mxu0 %v2689
    %3603 = vmatpush.bf16.msra.mxu0 %v2685
    %3604 = vmatpush.bf16.msra.mxu0 %v2681
    %3605 = vmatpush.bf16.msra.mxu0 %v2677
    %3606 = vmatpush.bf16.msra.mxu0 %v2673
    %3607 = vmatpush.bf16.msra.mxu0 %v2669
    %3608 = vmatpush.bf16.msra.mxu0 %v2665
    %3609 = vmatmul.bf16.gmra.mxu0 %v751
    %v3610 = vpop.f32.mrf.mxu0
    %v3611 = vadd.f32 %v3598, %v3610
    %v3612 = vpop.f32.mrf.mxu0
    %3613 = vdwg.mxu0
    %3614 = vmatpush.bf16.msra.mxu0 %v2725
    %3615 = vmatpush.bf16.msra.mxu0 %v2721
    %3616 = vmatpush.bf16.msra.mxu0 %v2717
    %3617 = vmatpush.bf16.msra.mxu0 %v2713
    %3618 = vmatpush.bf16.msra.mxu0 %v2709
    %3619 = vmatpush.bf16.msra.mxu0 %v2705
    %3620 = vmatpush.bf16.msra.mxu0 %v2701
    %3621 = vmatpush.bf16.msra.mxu0 %v2697
    %3622 = vmatmul.bf16.gmra.mxu0 %v752
    %v3623 = vpop.f32.mrf.mxu0
    %v3624 = vadd.f32 %v3611, %v3623
    %v3625 = vpop.f32.mrf.mxu0
    %3626 = vdwg.mxu0
    %3627 = vmatpush.bf16.msra.mxu0 %v2757
    %3628 = vmatpush.bf16.msra.mxu0 %v2753
    %3629 = vmatpush.bf16.msra.mxu0 %v2749
    %3630 = vmatpush.bf16.msra.mxu0 %v2745
    %3631 = vmatpush.bf16.msra.mxu0 %v2741
    %3632 = vmatpush.bf16.msra.mxu0 %v2737
    %3633 = vmatpush.bf16.msra.mxu0 %v2733
    %3634 = vmatpush.bf16.msra.mxu0 %v2729
    %3635 = vmatmul.bf16.gmra.mxu0 %v753
    %v3636 = vpop.f32.mrf.mxu0
    %v3637 = vadd.f32 %v3624, %v3636
    %v3638 = vpop.f32.mrf.mxu0
    %3639 = vdwg.mxu0
    %3640 = vmatpush.bf16.msra.mxu0 %v2789
    %3641 = vmatpush.bf16.msra.mxu0 %v2785
    %3642 = vmatpush.bf16.msra.mxu0 %v2781
    %3643 = vmatpush.bf16.msra.mxu0 %v2777
    %3644 = vmatpush.bf16.msra.mxu0 %v2773
    %3645 = vmatpush.bf16.msra.mxu0 %v2769
    %3646 = vmatpush.bf16.msra.mxu0 %v2765
    %3647 = vmatpush.bf16.msra.mxu0 %v2761
    %3648 = vmatmul.bf16.gmra.mxu0 %v754
    %v3649 = vpop.f32.mrf.mxu0
    %v3650 = vadd.f32 %v3637, %v3649
    %v3651 = vpop.f32.mrf.mxu0
    %3652 = vdwg.mxu0
    %3653 = vmatpush.bf16.msra.mxu0 %v2821
    %3654 = vmatpush.bf16.msra.mxu0 %v2817
    %3655 = vmatpush.bf16.msra.mxu0 %v2813
    %3656 = vmatpush.bf16.msra.mxu0 %v2809
    %3657 = vmatpush.bf16.msra.mxu0 %v2805
    %3658 = vmatpush.bf16.msra.mxu0 %v2801
    %3659 = vmatpush.bf16.msra.mxu0 %v2797
    %3660 = vmatpush.bf16.msra.mxu0 %v2793
    %3661 = vmatmul.bf16.gmra.mxu0 %v755
    %v3662 = vpop.f32.mrf.mxu0
    %v3663 = vadd.f32 %v3650, %v3662
    %v3664 = vpop.f32.mrf.mxu0
    %3665 = vdwg.mxu0
    %3666 = vmatpush.bf16.msra.mxu0 %v2853
    %3667 = vmatpush.bf16.msra.mxu0 %v2849
    %3668 = vmatpush.bf16.msra.mxu0 %v2845
    %3669 = vmatpush.bf16.msra.mxu0 %v2841
    %3670 = vmatpush.bf16.msra.mxu0 %v2837
    %3671 = vmatpush.bf16.msra.mxu0 %v2833
    %3672 = vmatpush.bf16.msra.mxu0 %v2829
    %3673 = vmatpush.bf16.msra.mxu0 %v2825
    %3674 = vmatmul.bf16.gmra.mxu0 %v756
    %v3675 = vpop.f32.mrf.mxu0
    %v3676 = vadd.f32 %v3663, %v3675
    %v3677 = vpop.f32.mrf.mxu0
    %3678 = vdwg.mxu0
    %3679 = vmatpush.bf16.msra.mxu0 %v2885
    %3680 = vmatpush.bf16.msra.mxu0 %v2881
    %3681 = vmatpush.bf16.msra.mxu0 %v2877
    %3682 = vmatpush.bf16.msra.mxu0 %v2873
    %3683 = vmatpush.bf16.msra.mxu0 %v2869
    %3684 = vmatpush.bf16.msra.mxu0 %v2865
    %3685 = vmatpush.bf16.msra.mxu0 %v2861
    %3686 = vmatpush.bf16.msra.mxu0 %v2857
    %3687 = vmatmul.bf16.gmra.mxu0 %v757
    %v3688 = vpop.f32.mrf.mxu0
    %v3689 = vadd.f32 %v3676, %v3688
    %v3690 = vpop.f32.mrf.mxu0
    %3691 = vdwg.mxu0
    %3692 = vmatpush.bf16.msra.mxu0 %v2917
    %3693 = vmatpush.bf16.msra.mxu0 %v2913
    %3694 = vmatpush.bf16.msra.mxu0 %v2909
    %3695 = vmatpush.bf16.msra.mxu0 %v2905
    %3696 = vmatpush.bf16.msra.mxu0 %v2901
    %3697 = vmatpush.bf16.msra.mxu0 %v2897
    %3698 = vmatpush.bf16.msra.mxu0 %v2893
    %3699 = vmatpush.bf16.msra.mxu0 %v2889
    %3700 = vmatmul.bf16.gmra.mxu0 %v758
    %v3701 = vpop.f32.mrf.mxu0
    %v3702 = vadd.f32 %v3689, %v3701
    %v3703 = vpop.f32.mrf.mxu0
    %3704 = vdwg.mxu0
    %3705 = vmatpush.bf16.msra.mxu0 %v2949
    %3706 = vmatpush.bf16.msra.mxu0 %v2945
    %3707 = vmatpush.bf16.msra.mxu0 %v2941
    %3708 = vmatpush.bf16.msra.mxu0 %v2937
    %3709 = vmatpush.bf16.msra.mxu0 %v2933
    %3710 = vmatpush.bf16.msra.mxu0 %v2929
    %3711 = vmatpush.bf16.msra.mxu0 %v2925
    %3712 = vmatpush.bf16.msra.mxu0 %v2921
    %3713 = vmatmul.bf16.gmra.mxu0 %v759
    %v3714 = vpop.f32.mrf.mxu0
    %v3715 = vadd.f32 %v3702, %v3714
    %v3716 = vpop.f32.mrf.mxu0
    %3717 = vdwg.mxu0
    %3718 = vmatpush.bf16.msra.mxu0 %v2438
    %3719 = vmatpush.bf16.msra.mxu0 %v2434
    %3720 = vmatpush.bf16.msra.mxu0 %v2430
    %3721 = vmatpush.bf16.msra.mxu0 %v2426
    %3722 = vmatpush.bf16.msra.mxu0 %v2422
    %3723 = vmatpush.bf16.msra.mxu0 %v2418
    %3724 = vmatpush.bf16.msra.mxu0 %v2414
    %3725 = vmatpush.bf16.msra.mxu0 %v2410
    %3726 = vmatmul.bf16.gmra.mxu0 %v743
    %v3727 = vpop.f32.mrf.mxu0
    %v3728 = vadd.f32 %v710, %v3727
    %v3729 = vpop.f32.mrf.mxu0
    %3730 = vdwg.mxu0
    %3731 = vmatpush.bf16.msra.mxu0 %v2470
    %3732 = vmatpush.bf16.msra.mxu0 %v2466
    %3733 = vmatpush.bf16.msra.mxu0 %v2462
    %3734 = vmatpush.bf16.msra.mxu0 %v2458
    %3735 = vmatpush.bf16.msra.mxu0 %v2454
    %3736 = vmatpush.bf16.msra.mxu0 %v2450
    %3737 = vmatpush.bf16.msra.mxu0 %v2446
    %3738 = vmatpush.bf16.msra.mxu0 %v2442
    %3739 = vmatmul.bf16.gmra.mxu0 %v744
    %v3740 = vpop.f32.mrf.mxu0
    %v3741 = vadd.f32 %v3728, %v3740
    %v3742 = vpop.f32.mrf.mxu0
    %3743 = vdwg.mxu0
    %3744 = vmatpush.bf16.msra.mxu0 %v2502
    %3745 = vmatpush.bf16.msra.mxu0 %v2498
    %3746 = vmatpush.bf16.msra.mxu0 %v2494
    %3747 = vmatpush.bf16.msra.mxu0 %v2490
    %3748 = vmatpush.bf16.msra.mxu0 %v2486
    %3749 = vmatpush.bf16.msra.mxu0 %v2482
    %3750 = vmatpush.bf16.msra.mxu0 %v2478
    %3751 = vmatpush.bf16.msra.mxu0 %v2474
    %3752 = vmatmul.bf16.gmra.mxu0 %v745
    %v3753 = vpop.f32.mrf.mxu0
    %v3754 = vadd.f32 %v3741, %v3753
    %v3755 = vpop.f32.mrf.mxu0
    %3756 = vdwg.mxu0
    %3757 = vmatpush.bf16.msra.mxu0 %v2534
    %3758 = vmatpush.bf16.msra.mxu0 %v2530
    %3759 = vmatpush.bf16.msra.mxu0 %v2526
    %3760 = vmatpush.bf16.msra.mxu0 %v2522
    %3761 = vmatpush.bf16.msra.mxu0 %v2518
    %3762 = vmatpush.bf16.msra.mxu0 %v2514
    %3763 = vmatpush.bf16.msra.mxu0 %v2510
    %3764 = vmatpush.bf16.msra.mxu0 %v2506
    %3765 = vmatmul.bf16.gmra.mxu0 %v746
    %v3766 = vpop.f32.mrf.mxu0
    %v3767 = vadd.f32 %v3754, %v3766
    %v3768 = vpop.f32.mrf.mxu0
    %3769 = vdwg.mxu0
    %3770 = vmatpush.bf16.msra.mxu0 %v2566
    %3771 = vmatpush.bf16.msra.mxu0 %v2562
    %3772 = vmatpush.bf16.msra.mxu0 %v2558
    %3773 = vmatpush.bf16.msra.mxu0 %v2554
    %3774 = vmatpush.bf16.msra.mxu0 %v2550
    %3775 = vmatpush.bf16.msra.mxu0 %v2546
    %3776 = vmatpush.bf16.msra.mxu0 %v2542
    %3777 = vmatpush.bf16.msra.mxu0 %v2538
    %3778 = vmatmul.bf16.gmra.mxu0 %v747
    %v3779 = vpop.f32.mrf.mxu0
    %v3780 = vadd.f32 %v3767, %v3779
    %v3781 = vpop.f32.mrf.mxu0
    %3782 = vdwg.mxu0
    %3783 = vmatpush.bf16.msra.mxu0 %v2598
    %3784 = vmatpush.bf16.msra.mxu0 %v2594
    %3785 = vmatpush.bf16.msra.mxu0 %v2590
    %3786 = vmatpush.bf16.msra.mxu0 %v2586
    %3787 = vmatpush.bf16.msra.mxu0 %v2582
    %3788 = vmatpush.bf16.msra.mxu0 %v2578
    %3789 = vmatpush.bf16.msra.mxu0 %v2574
    %3790 = vmatpush.bf16.msra.mxu0 %v2570
    %3791 = vmatmul.bf16.gmra.mxu0 %v748
    %v3792 = vpop.f32.mrf.mxu0
    %v3793 = vadd.f32 %v3780, %v3792
    %v3794 = vpop.f32.mrf.mxu0
    %3795 = vdwg.mxu0
    %3796 = vmatpush.bf16.msra.mxu0 %v2630
    %3797 = vmatpush.bf16.msra.mxu0 %v2626
    %3798 = vmatpush.bf16.msra.mxu0 %v2622
    %3799 = vmatpush.bf16.msra.mxu0 %v2618
    %3800 = vmatpush.bf16.msra.mxu0 %v2614
    %3801 = vmatpush.bf16.msra.mxu0 %v2610
    %3802 = vmatpush.bf16.msra.mxu0 %v2606
    %3803 = vmatpush.bf16.msra.mxu0 %v2602
    %3804 = vmatmul.bf16.gmra.mxu0 %v749
    %v3805 = vpop.f32.mrf.mxu0
    %v3806 = vadd.f32 %v3793, %v3805
    %v3807 = vpop.f32.mrf.mxu0
    %3808 = vdwg.mxu0
    %3809 = vmatpush.bf16.msra.mxu0 %v2662
    %3810 = vmatpush.bf16.msra.mxu0 %v2658
    %3811 = vmatpush.bf16.msra.mxu0 %v2654
    %3812 = vmatpush.bf16.msra.mxu0 %v2650
    %3813 = vmatpush.bf16.msra.mxu0 %v2646
    %3814 = vmatpush.bf16.msra.mxu0 %v2642
    %3815 = vmatpush.bf16.msra.mxu0 %v2638
    %3816 = vmatpush.bf16.msra.mxu0 %v2634
    %3817 = vmatmul.bf16.gmra.mxu0 %v750
    %v3818 = vpop.f32.mrf.mxu0
    %v3819 = vadd.f32 %v3806, %v3818
    %v3820 = vpop.f32.mrf.mxu0
    %3821 = vdwg.mxu0
    %3822 = vmatpush.bf16.msra.mxu0 %v2694
    %3823 = vmatpush.bf16.msra.mxu0 %v2690
    %3824 = vmatpush.bf16.msra.mxu0 %v2686
    %3825 = vmatpush.bf16.msra.mxu0 %v2682
    %3826 = vmatpush.bf16.msra.mxu0 %v2678
    %3827 = vmatpush.bf16.msra.mxu0 %v2674
    %3828 = vmatpush.bf16.msra.mxu0 %v2670
    %3829 = vmatpush.bf16.msra.mxu0 %v2666
    %3830 = vmatmul.bf16.gmra.mxu0 %v751
    %v3831 = vpop.f32.mrf.mxu0
    %v3832 = vadd.f32 %v3819, %v3831
    %v3833 = vpop.f32.mrf.mxu0
    %3834 = vdwg.mxu0
    %3835 = vmatpush.bf16.msra.mxu0 %v2726
    %3836 = vmatpush.bf16.msra.mxu0 %v2722
    %3837 = vmatpush.bf16.msra.mxu0 %v2718
    %3838 = vmatpush.bf16.msra.mxu0 %v2714
    %3839 = vmatpush.bf16.msra.mxu0 %v2710
    %3840 = vmatpush.bf16.msra.mxu0 %v2706
    %3841 = vmatpush.bf16.msra.mxu0 %v2702
    %3842 = vmatpush.bf16.msra.mxu0 %v2698
    %3843 = vmatmul.bf16.gmra.mxu0 %v752
    %v3844 = vpop.f32.mrf.mxu0
    %v3845 = vadd.f32 %v3832, %v3844
    %v3846 = vpop.f32.mrf.mxu0
    %3847 = vdwg.mxu0
    %3848 = vmatpush.bf16.msra.mxu0 %v2758
    %3849 = vmatpush.bf16.msra.mxu0 %v2754
    %3850 = vmatpush.bf16.msra.mxu0 %v2750
    %3851 = vmatpush.bf16.msra.mxu0 %v2746
    %3852 = vmatpush.bf16.msra.mxu0 %v2742
    %3853 = vmatpush.bf16.msra.mxu0 %v2738
    %3854 = vmatpush.bf16.msra.mxu0 %v2734
    %3855 = vmatpush.bf16.msra.mxu0 %v2730
    %3856 = vmatmul.bf16.gmra.mxu0 %v753
    %v3857 = vpop.f32.mrf.mxu0
    %v3858 = vadd.f32 %v3845, %v3857
    %v3859 = vpop.f32.mrf.mxu0
    %3860 = vdwg.mxu0
    %3861 = vmatpush.bf16.msra.mxu0 %v2790
    %3862 = vmatpush.bf16.msra.mxu0 %v2786
    %3863 = vmatpush.bf16.msra.mxu0 %v2782
    %3864 = vmatpush.bf16.msra.mxu0 %v2778
    %3865 = vmatpush.bf16.msra.mxu0 %v2774
    %3866 = vmatpush.bf16.msra.mxu0 %v2770
    %3867 = vmatpush.bf16.msra.mxu0 %v2766
    %3868 = vmatpush.bf16.msra.mxu0 %v2762
    %3869 = vmatmul.bf16.gmra.mxu0 %v754
    %v3870 = vpop.f32.mrf.mxu0
    %v3871 = vadd.f32 %v3858, %v3870
    %v3872 = vpop.f32.mrf.mxu0
    %3873 = vdwg.mxu0
    %3874 = vmatpush.bf16.msra.mxu0 %v2822
    %3875 = vmatpush.bf16.msra.mxu0 %v2818
    %3876 = vmatpush.bf16.msra.mxu0 %v2814
    %3877 = vmatpush.bf16.msra.mxu0 %v2810
    %3878 = vmatpush.bf16.msra.mxu0 %v2806
    %3879 = vmatpush.bf16.msra.mxu0 %v2802
    %3880 = vmatpush.bf16.msra.mxu0 %v2798
    %3881 = vmatpush.bf16.msra.mxu0 %v2794
    %3882 = vmatmul.bf16.gmra.mxu0 %v755
    %v3883 = vpop.f32.mrf.mxu0
    %v3884 = vadd.f32 %v3871, %v3883
    %v3885 = vpop.f32.mrf.mxu0
    %3886 = vdwg.mxu0
    %3887 = vmatpush.bf16.msra.mxu0 %v2854
    %3888 = vmatpush.bf16.msra.mxu0 %v2850
    %3889 = vmatpush.bf16.msra.mxu0 %v2846
    %3890 = vmatpush.bf16.msra.mxu0 %v2842
    %3891 = vmatpush.bf16.msra.mxu0 %v2838
    %3892 = vmatpush.bf16.msra.mxu0 %v2834
    %3893 = vmatpush.bf16.msra.mxu0 %v2830
    %3894 = vmatpush.bf16.msra.mxu0 %v2826
    %3895 = vmatmul.bf16.gmra.mxu0 %v756
    %v3896 = vpop.f32.mrf.mxu0
    %v3897 = vadd.f32 %v3884, %v3896
    %v3898 = vpop.f32.mrf.mxu0
    %3899 = vdwg.mxu0
    %3900 = vmatpush.bf16.msra.mxu0 %v2886
    %3901 = vmatpush.bf16.msra.mxu0 %v2882
    %3902 = vmatpush.bf16.msra.mxu0 %v2878
    %3903 = vmatpush.bf16.msra.mxu0 %v2874
    %3904 = vmatpush.bf16.msra.mxu0 %v2870
    %3905 = vmatpush.bf16.msra.mxu0 %v2866
    %3906 = vmatpush.bf16.msra.mxu0 %v2862
    %3907 = vmatpush.bf16.msra.mxu0 %v2858
    %3908 = vmatmul.bf16.gmra.mxu0 %v757
    %v3909 = vpop.f32.mrf.mxu0
    %v3910 = vadd.f32 %v3897, %v3909
    %v3911 = vpop.f32.mrf.mxu0
    %3912 = vdwg.mxu0
    %3913 = vmatpush.bf16.msra.mxu0 %v2918
    %3914 = vmatpush.bf16.msra.mxu0 %v2914
    %3915 = vmatpush.bf16.msra.mxu0 %v2910
    %3916 = vmatpush.bf16.msra.mxu0 %v2906
    %3917 = vmatpush.bf16.msra.mxu0 %v2902
    %3918 = vmatpush.bf16.msra.mxu0 %v2898
    %3919 = vmatpush.bf16.msra.mxu0 %v2894
    %3920 = vmatpush.bf16.msra.mxu0 %v2890
    %3921 = vmatmul.bf16.gmra.mxu0 %v758
    %v3922 = vpop.f32.mrf.mxu0
    %v3923 = vadd.f32 %v3910, %v3922
    %v3924 = vpop.f32.mrf.mxu0
    %3925 = vdwg.mxu0
    %3926 = vmatpush.bf16.msra.mxu0 %v2950
    %3927 = vmatpush.bf16.msra.mxu0 %v2946
    %3928 = vmatpush.bf16.msra.mxu0 %v2942
    %3929 = vmatpush.bf16.msra.mxu0 %v2938
    %3930 = vmatpush.bf16.msra.mxu0 %v2934
    %3931 = vmatpush.bf16.msra.mxu0 %v2930
    %3932 = vmatpush.bf16.msra.mxu0 %v2926
    %3933 = vmatpush.bf16.msra.mxu0 %v2922
    %3934 = vmatmul.bf16.gmra.mxu0 %v759
    %v3935 = vpop.f32.mrf.mxu0
    %v3936 = vadd.f32 %v3923, %v3935
    %v3937 = vpop.f32.mrf.mxu0
    %3938 = vdwg.mxu0
    %3939 = vmatpush.bf16.msra.mxu0 %v2439
    %3940 = vmatpush.bf16.msra.mxu0 %v2435
    %3941 = vmatpush.bf16.msra.mxu0 %v2431
    %3942 = vmatpush.bf16.msra.mxu0 %v2427
    %3943 = vmatpush.bf16.msra.mxu0 %v2423
    %3944 = vmatpush.bf16.msra.mxu0 %v2419
    %3945 = vmatpush.bf16.msra.mxu0 %v2415
    %3946 = vmatpush.bf16.msra.mxu0 %v2411
    %3947 = vmatmul.bf16.gmra.mxu0 %v743
    %v3948 = vpop.f32.mrf.mxu0
    %v3949 = vadd.f32 %v711, %v3948
    %v3950 = vpop.f32.mrf.mxu0
    %3951 = vdwg.mxu0
    %3952 = vmatpush.bf16.msra.mxu0 %v2471
    %3953 = vmatpush.bf16.msra.mxu0 %v2467
    %3954 = vmatpush.bf16.msra.mxu0 %v2463
    %3955 = vmatpush.bf16.msra.mxu0 %v2459
    %3956 = vmatpush.bf16.msra.mxu0 %v2455
    %3957 = vmatpush.bf16.msra.mxu0 %v2451
    %3958 = vmatpush.bf16.msra.mxu0 %v2447
    %3959 = vmatpush.bf16.msra.mxu0 %v2443
    %3960 = vmatmul.bf16.gmra.mxu0 %v744
    %v3961 = vpop.f32.mrf.mxu0
    %v3962 = vadd.f32 %v3949, %v3961
    %v3963 = vpop.f32.mrf.mxu0
    %3964 = vdwg.mxu0
    %3965 = vmatpush.bf16.msra.mxu0 %v2503
    %3966 = vmatpush.bf16.msra.mxu0 %v2499
    %3967 = vmatpush.bf16.msra.mxu0 %v2495
    %3968 = vmatpush.bf16.msra.mxu0 %v2491
    %3969 = vmatpush.bf16.msra.mxu0 %v2487
    %3970 = vmatpush.bf16.msra.mxu0 %v2483
    %3971 = vmatpush.bf16.msra.mxu0 %v2479
    %3972 = vmatpush.bf16.msra.mxu0 %v2475
    %3973 = vmatmul.bf16.gmra.mxu0 %v745
    %v3974 = vpop.f32.mrf.mxu0
    %v3975 = vadd.f32 %v3962, %v3974
    %v3976 = vpop.f32.mrf.mxu0
    %3977 = vdwg.mxu0
    %3978 = vmatpush.bf16.msra.mxu0 %v2535
    %3979 = vmatpush.bf16.msra.mxu0 %v2531
    %3980 = vmatpush.bf16.msra.mxu0 %v2527
    %3981 = vmatpush.bf16.msra.mxu0 %v2523
    %3982 = vmatpush.bf16.msra.mxu0 %v2519
    %3983 = vmatpush.bf16.msra.mxu0 %v2515
    %3984 = vmatpush.bf16.msra.mxu0 %v2511
    %3985 = vmatpush.bf16.msra.mxu0 %v2507
    %3986 = vmatmul.bf16.gmra.mxu0 %v746
    %v3987 = vpop.f32.mrf.mxu0
    %v3988 = vadd.f32 %v3975, %v3987
    %v3989 = vpop.f32.mrf.mxu0
    %3990 = vdwg.mxu0
    %3991 = vmatpush.bf16.msra.mxu0 %v2567
    %3992 = vmatpush.bf16.msra.mxu0 %v2563
    %3993 = vmatpush.bf16.msra.mxu0 %v2559
    %3994 = vmatpush.bf16.msra.mxu0 %v2555
    %3995 = vmatpush.bf16.msra.mxu0 %v2551
    %3996 = vmatpush.bf16.msra.mxu0 %v2547
    %3997 = vmatpush.bf16.msra.mxu0 %v2543
    %3998 = vmatpush.bf16.msra.mxu0 %v2539
    %3999 = vmatmul.bf16.gmra.mxu0 %v747
    %v4000 = vpop.f32.mrf.mxu0
    %v4001 = vadd.f32 %v3988, %v4000
    %v4002 = vpop.f32.mrf.mxu0
    %4003 = vdwg.mxu0
    %4004 = vmatpush.bf16.msra.mxu0 %v2599
    %4005 = vmatpush.bf16.msra.mxu0 %v2595
    %4006 = vmatpush.bf16.msra.mxu0 %v2591
    %4007 = vmatpush.bf16.msra.mxu0 %v2587
    %4008 = vmatpush.bf16.msra.mxu0 %v2583
    %4009 = vmatpush.bf16.msra.mxu0 %v2579
    %4010 = vmatpush.bf16.msra.mxu0 %v2575
    %4011 = vmatpush.bf16.msra.mxu0 %v2571
    %4012 = vmatmul.bf16.gmra.mxu0 %v748
    %v4013 = vpop.f32.mrf.mxu0
    %v4014 = vadd.f32 %v4001, %v4013
    %v4015 = vpop.f32.mrf.mxu0
    %4016 = vdwg.mxu0
    %4017 = vmatpush.bf16.msra.mxu0 %v2631
    %4018 = vmatpush.bf16.msra.mxu0 %v2627
    %4019 = vmatpush.bf16.msra.mxu0 %v2623
    %4020 = vmatpush.bf16.msra.mxu0 %v2619
    %4021 = vmatpush.bf16.msra.mxu0 %v2615
    %4022 = vmatpush.bf16.msra.mxu0 %v2611
    %4023 = vmatpush.bf16.msra.mxu0 %v2607
    %4024 = vmatpush.bf16.msra.mxu0 %v2603
    %4025 = vmatmul.bf16.gmra.mxu0 %v749
    %v4026 = vpop.f32.mrf.mxu0
    %v4027 = vadd.f32 %v4014, %v4026
    %v4028 = vpop.f32.mrf.mxu0
    %4029 = vdwg.mxu0
    %4030 = vmatpush.bf16.msra.mxu0 %v2663
    %4031 = vmatpush.bf16.msra.mxu0 %v2659
    %4032 = vmatpush.bf16.msra.mxu0 %v2655
    %4033 = vmatpush.bf16.msra.mxu0 %v2651
    %4034 = vmatpush.bf16.msra.mxu0 %v2647
    %4035 = vmatpush.bf16.msra.mxu0 %v2643
    %4036 = vmatpush.bf16.msra.mxu0 %v2639
    %4037 = vmatpush.bf16.msra.mxu0 %v2635
    %4038 = vmatmul.bf16.gmra.mxu0 %v750
    %v4039 = vpop.f32.mrf.mxu0
    %v4040 = vadd.f32 %v4027, %v4039
    %v4041 = vpop.f32.mrf.mxu0
    %4042 = vdwg.mxu0
    %4043 = vmatpush.bf16.msra.mxu0 %v2695
    %4044 = vmatpush.bf16.msra.mxu0 %v2691
    %4045 = vmatpush.bf16.msra.mxu0 %v2687
    %4046 = vmatpush.bf16.msra.mxu0 %v2683
    %4047 = vmatpush.bf16.msra.mxu0 %v2679
    %4048 = vmatpush.bf16.msra.mxu0 %v2675
    %4049 = vmatpush.bf16.msra.mxu0 %v2671
    %4050 = vmatpush.bf16.msra.mxu0 %v2667
    %4051 = vmatmul.bf16.gmra.mxu0 %v751
    %v4052 = vpop.f32.mrf.mxu0
    %v4053 = vadd.f32 %v4040, %v4052
    %v4054 = vpop.f32.mrf.mxu0
    %4055 = vdwg.mxu0
    %4056 = vmatpush.bf16.msra.mxu0 %v2727
    %4057 = vmatpush.bf16.msra.mxu0 %v2723
    %4058 = vmatpush.bf16.msra.mxu0 %v2719
    %4059 = vmatpush.bf16.msra.mxu0 %v2715
    %4060 = vmatpush.bf16.msra.mxu0 %v2711
    %4061 = vmatpush.bf16.msra.mxu0 %v2707
    %4062 = vmatpush.bf16.msra.mxu0 %v2703
    %4063 = vmatpush.bf16.msra.mxu0 %v2699
    %4064 = vmatmul.bf16.gmra.mxu0 %v752
    %v4065 = vpop.f32.mrf.mxu0
    %v4066 = vadd.f32 %v4053, %v4065
    %v4067 = vpop.f32.mrf.mxu0
    %4068 = vdwg.mxu0
    %4069 = vmatpush.bf16.msra.mxu0 %v2759
    %4070 = vmatpush.bf16.msra.mxu0 %v2755
    %4071 = vmatpush.bf16.msra.mxu0 %v2751
    %4072 = vmatpush.bf16.msra.mxu0 %v2747
    %4073 = vmatpush.bf16.msra.mxu0 %v2743
    %4074 = vmatpush.bf16.msra.mxu0 %v2739
    %4075 = vmatpush.bf16.msra.mxu0 %v2735
    %4076 = vmatpush.bf16.msra.mxu0 %v2731
    %4077 = vmatmul.bf16.gmra.mxu0 %v753
    %v4078 = vpop.f32.mrf.mxu0
    %v4079 = vadd.f32 %v4066, %v4078
    %v4080 = vpop.f32.mrf.mxu0
    %4081 = vdwg.mxu0
    %4082 = vmatpush.bf16.msra.mxu0 %v2791
    %4083 = vmatpush.bf16.msra.mxu0 %v2787
    %4084 = vmatpush.bf16.msra.mxu0 %v2783
    %4085 = vmatpush.bf16.msra.mxu0 %v2779
    %4086 = vmatpush.bf16.msra.mxu0 %v2775
    %4087 = vmatpush.bf16.msra.mxu0 %v2771
    %4088 = vmatpush.bf16.msra.mxu0 %v2767
    %4089 = vmatpush.bf16.msra.mxu0 %v2763
    %4090 = vmatmul.bf16.gmra.mxu0 %v754
    %v4091 = vpop.f32.mrf.mxu0
    %v4092 = vadd.f32 %v4079, %v4091
    %v4093 = vpop.f32.mrf.mxu0
    %4094 = vdwg.mxu0
    %4095 = vmatpush.bf16.msra.mxu0 %v2823
    %4096 = vmatpush.bf16.msra.mxu0 %v2819
    %4097 = vmatpush.bf16.msra.mxu0 %v2815
    %4098 = vmatpush.bf16.msra.mxu0 %v2811
    %4099 = vmatpush.bf16.msra.mxu0 %v2807
    %4100 = vmatpush.bf16.msra.mxu0 %v2803
    %4101 = vmatpush.bf16.msra.mxu0 %v2799
    %4102 = vmatpush.bf16.msra.mxu0 %v2795
    %4103 = vmatmul.bf16.gmra.mxu0 %v755
    %v4104 = vpop.f32.mrf.mxu0
    %v4105 = vadd.f32 %v4092, %v4104
    %v4106 = vpop.f32.mrf.mxu0
    %4107 = vdwg.mxu0
    %4108 = vmatpush.bf16.msra.mxu0 %v2855
    %4109 = vmatpush.bf16.msra.mxu0 %v2851
    %4110 = vmatpush.bf16.msra.mxu0 %v2847
    %4111 = vmatpush.bf16.msra.mxu0 %v2843
    %4112 = vmatpush.bf16.msra.mxu0 %v2839
    %4113 = vmatpush.bf16.msra.mxu0 %v2835
    %4114 = vmatpush.bf16.msra.mxu0 %v2831
    %4115 = vmatpush.bf16.msra.mxu0 %v2827
    %4116 = vmatmul.bf16.gmra.mxu0 %v756
    %v4117 = vpop.f32.mrf.mxu0
    %v4118 = vadd.f32 %v4105, %v4117
    %v4119 = vpop.f32.mrf.mxu0
    %4120 = vdwg.mxu0
    %4121 = vmatpush.bf16.msra.mxu0 %v2887
    %4122 = vmatpush.bf16.msra.mxu0 %v2883
    %4123 = vmatpush.bf16.msra.mxu0 %v2879
    %4124 = vmatpush.bf16.msra.mxu0 %v2875
    %4125 = vmatpush.bf16.msra.mxu0 %v2871
    %4126 = vmatpush.bf16.msra.mxu0 %v2867
    %4127 = vmatpush.bf16.msra.mxu0 %v2863
    %4128 = vmatpush.bf16.msra.mxu0 %v2859
    %4129 = vmatmul.bf16.gmra.mxu0 %v757
    %v4130 = vpop.f32.mrf.mxu0
    %v4131 = vadd.f32 %v4118, %v4130
    %v4132 = vpop.f32.mrf.mxu0
    %4133 = vdwg.mxu0
    %4134 = vmatpush.bf16.msra.mxu0 %v2919
    %4135 = vmatpush.bf16.msra.mxu0 %v2915
    %4136 = vmatpush.bf16.msra.mxu0 %v2911
    %4137 = vmatpush.bf16.msra.mxu0 %v2907
    %4138 = vmatpush.bf16.msra.mxu0 %v2903
    %4139 = vmatpush.bf16.msra.mxu0 %v2899
    %4140 = vmatpush.bf16.msra.mxu0 %v2895
    %4141 = vmatpush.bf16.msra.mxu0 %v2891
    %4142 = vmatmul.bf16.gmra.mxu0 %v758
    %v4143 = vpop.f32.mrf.mxu0
    %v4144 = vadd.f32 %v4131, %v4143
    %v4145 = vpop.f32.mrf.mxu0
    %4146 = vdwg.mxu0
    %4147 = vmatpush.bf16.msra.mxu0 %v2951
    %4148 = vmatpush.bf16.msra.mxu0 %v2947
    %4149 = vmatpush.bf16.msra.mxu0 %v2943
    %4150 = vmatpush.bf16.msra.mxu0 %v2939
    %4151 = vmatpush.bf16.msra.mxu0 %v2935
    %4152 = vmatpush.bf16.msra.mxu0 %v2931
    %4153 = vmatpush.bf16.msra.mxu0 %v2927
    %4154 = vmatpush.bf16.msra.mxu0 %v2923
    %4155 = vmatmul.bf16.gmra.mxu0 %v759
    %v4156 = vpop.f32.mrf.mxu0
    %v4157 = vadd.f32 %v4144, %v4156
    %v4158 = vpop.f32.mrf.mxu0
    %4159 = vdwg.mxu0
    %4160 = vmatpush.bf16.msra.mxu0 %v2440
    %4161 = vmatpush.bf16.msra.mxu0 %v2436
    %4162 = vmatpush.bf16.msra.mxu0 %v2432
    %4163 = vmatpush.bf16.msra.mxu0 %v2428
    %4164 = vmatpush.bf16.msra.mxu0 %v2424
    %4165 = vmatpush.bf16.msra.mxu0 %v2420
    %4166 = vmatpush.bf16.msra.mxu0 %v2416
    %4167 = vmatpush.bf16.msra.mxu0 %v2412
    %4168 = vmatmul.bf16.gmra.mxu0 %v743
    %v4169 = vpop.f32.mrf.mxu0
    %v4170 = vadd.f32 %v712, %v4169
    %v4171 = vpop.f32.mrf.mxu0
    %4172 = vdwg.mxu0
    %4173 = vmatpush.bf16.msra.mxu0 %v2472
    %4174 = vmatpush.bf16.msra.mxu0 %v2468
    %4175 = vmatpush.bf16.msra.mxu0 %v2464
    %4176 = vmatpush.bf16.msra.mxu0 %v2460
    %4177 = vmatpush.bf16.msra.mxu0 %v2456
    %4178 = vmatpush.bf16.msra.mxu0 %v2452
    %4179 = vmatpush.bf16.msra.mxu0 %v2448
    %4180 = vmatpush.bf16.msra.mxu0 %v2444
    %4181 = vmatmul.bf16.gmra.mxu0 %v744
    %v4182 = vpop.f32.mrf.mxu0
    %v4183 = vadd.f32 %v4170, %v4182
    %v4184 = vpop.f32.mrf.mxu0
    %4185 = vdwg.mxu0
    %4186 = vmatpush.bf16.msra.mxu0 %v2504
    %4187 = vmatpush.bf16.msra.mxu0 %v2500
    %4188 = vmatpush.bf16.msra.mxu0 %v2496
    %4189 = vmatpush.bf16.msra.mxu0 %v2492
    %4190 = vmatpush.bf16.msra.mxu0 %v2488
    %4191 = vmatpush.bf16.msra.mxu0 %v2484
    %4192 = vmatpush.bf16.msra.mxu0 %v2480
    %4193 = vmatpush.bf16.msra.mxu0 %v2476
    %4194 = vmatmul.bf16.gmra.mxu0 %v745
    %v4195 = vpop.f32.mrf.mxu0
    %v4196 = vadd.f32 %v4183, %v4195
    %v4197 = vpop.f32.mrf.mxu0
    %4198 = vdwg.mxu0
    %4199 = vmatpush.bf16.msra.mxu0 %v2536
    %4200 = vmatpush.bf16.msra.mxu0 %v2532
    %4201 = vmatpush.bf16.msra.mxu0 %v2528
    %4202 = vmatpush.bf16.msra.mxu0 %v2524
    %4203 = vmatpush.bf16.msra.mxu0 %v2520
    %4204 = vmatpush.bf16.msra.mxu0 %v2516
    %4205 = vmatpush.bf16.msra.mxu0 %v2512
    %4206 = vmatpush.bf16.msra.mxu0 %v2508
    %4207 = vmatmul.bf16.gmra.mxu0 %v746
    %v4208 = vpop.f32.mrf.mxu0
    %v4209 = vadd.f32 %v4196, %v4208
    %v4210 = vpop.f32.mrf.mxu0
    %4211 = vdwg.mxu0
    %4212 = vmatpush.bf16.msra.mxu0 %v2568
    %4213 = vmatpush.bf16.msra.mxu0 %v2564
    %4214 = vmatpush.bf16.msra.mxu0 %v2560
    %4215 = vmatpush.bf16.msra.mxu0 %v2556
    %4216 = vmatpush.bf16.msra.mxu0 %v2552
    %4217 = vmatpush.bf16.msra.mxu0 %v2548
    %4218 = vmatpush.bf16.msra.mxu0 %v2544
    %4219 = vmatpush.bf16.msra.mxu0 %v2540
    %4220 = vmatmul.bf16.gmra.mxu0 %v747
    %v4221 = vpop.f32.mrf.mxu0
    %v4222 = vadd.f32 %v4209, %v4221
    %v4223 = vpop.f32.mrf.mxu0
    %4224 = vdwg.mxu0
    %4225 = vmatpush.bf16.msra.mxu0 %v2600
    %4226 = vmatpush.bf16.msra.mxu0 %v2596
    %4227 = vmatpush.bf16.msra.mxu0 %v2592
    %4228 = vmatpush.bf16.msra.mxu0 %v2588
    %4229 = vmatpush.bf16.msra.mxu0 %v2584
    %4230 = vmatpush.bf16.msra.mxu0 %v2580
    %4231 = vmatpush.bf16.msra.mxu0 %v2576
    %4232 = vmatpush.bf16.msra.mxu0 %v2572
    %4233 = vmatmul.bf16.gmra.mxu0 %v748
    %v4234 = vpop.f32.mrf.mxu0
    %v4235 = vadd.f32 %v4222, %v4234
    %v4236 = vpop.f32.mrf.mxu0
    %4237 = vdwg.mxu0
    %4238 = vmatpush.bf16.msra.mxu0 %v2632
    %4239 = vmatpush.bf16.msra.mxu0 %v2628
    %4240 = vmatpush.bf16.msra.mxu0 %v2624
    %4241 = vmatpush.bf16.msra.mxu0 %v2620
    %4242 = vmatpush.bf16.msra.mxu0 %v2616
    %4243 = vmatpush.bf16.msra.mxu0 %v2612
    %4244 = vmatpush.bf16.msra.mxu0 %v2608
    %4245 = vmatpush.bf16.msra.mxu0 %v2604
    %4246 = vmatmul.bf16.gmra.mxu0 %v749
    %v4247 = vpop.f32.mrf.mxu0
    %v4248 = vadd.f32 %v4235, %v4247
    %v4249 = vpop.f32.mrf.mxu0
    %4250 = vdwg.mxu0
    %4251 = vmatpush.bf16.msra.mxu0 %v2664
    %4252 = vmatpush.bf16.msra.mxu0 %v2660
    %4253 = vmatpush.bf16.msra.mxu0 %v2656
    %4254 = vmatpush.bf16.msra.mxu0 %v2652
    %4255 = vmatpush.bf16.msra.mxu0 %v2648
    %4256 = vmatpush.bf16.msra.mxu0 %v2644
    %4257 = vmatpush.bf16.msra.mxu0 %v2640
    %4258 = vmatpush.bf16.msra.mxu0 %v2636
    %4259 = vmatmul.bf16.gmra.mxu0 %v750
    %v4260 = vpop.f32.mrf.mxu0
    %v4261 = vadd.f32 %v4248, %v4260
    %v4262 = vpop.f32.mrf.mxu0
    %4263 = vdwg.mxu0
    %4264 = vmatpush.bf16.msra.mxu0 %v2696
    %4265 = vmatpush.bf16.msra.mxu0 %v2692
    %4266 = vmatpush.bf16.msra.mxu0 %v2688
    %4267 = vmatpush.bf16.msra.mxu0 %v2684
    %4268 = vmatpush.bf16.msra.mxu0 %v2680
    %4269 = vmatpush.bf16.msra.mxu0 %v2676
    %4270 = vmatpush.bf16.msra.mxu0 %v2672
    %4271 = vmatpush.bf16.msra.mxu0 %v2668
    %4272 = vmatmul.bf16.gmra.mxu0 %v751
    %v4273 = vpop.f32.mrf.mxu0
    %v4274 = vadd.f32 %v4261, %v4273
    %v4275 = vpop.f32.mrf.mxu0
    %4276 = vdwg.mxu0
    %4277 = vmatpush.bf16.msra.mxu0 %v2728
    %4278 = vmatpush.bf16.msra.mxu0 %v2724
    %4279 = vmatpush.bf16.msra.mxu0 %v2720
    %4280 = vmatpush.bf16.msra.mxu0 %v2716
    %4281 = vmatpush.bf16.msra.mxu0 %v2712
    %4282 = vmatpush.bf16.msra.mxu0 %v2708
    %4283 = vmatpush.bf16.msra.mxu0 %v2704
    %4284 = vmatpush.bf16.msra.mxu0 %v2700
    %4285 = vmatmul.bf16.gmra.mxu0 %v752
    %v4286 = vpop.f32.mrf.mxu0
    %v4287 = vadd.f32 %v4274, %v4286
    %v4288 = vpop.f32.mrf.mxu0
    %4289 = vdwg.mxu0
    %4290 = vmatpush.bf16.msra.mxu0 %v2760
    %4291 = vmatpush.bf16.msra.mxu0 %v2756
    %4292 = vmatpush.bf16.msra.mxu0 %v2752
    %4293 = vmatpush.bf16.msra.mxu0 %v2748
    %4294 = vmatpush.bf16.msra.mxu0 %v2744
    %4295 = vmatpush.bf16.msra.mxu0 %v2740
    %4296 = vmatpush.bf16.msra.mxu0 %v2736
    %4297 = vmatpush.bf16.msra.mxu0 %v2732
    %4298 = vmatmul.bf16.gmra.mxu0 %v753
    %v4299 = vpop.f32.mrf.mxu0
    %v4300 = vadd.f32 %v4287, %v4299
    %v4301 = vpop.f32.mrf.mxu0
    %4302 = vdwg.mxu0
    %4303 = vmatpush.bf16.msra.mxu0 %v2792
    %4304 = vmatpush.bf16.msra.mxu0 %v2788
    %4305 = vmatpush.bf16.msra.mxu0 %v2784
    %4306 = vmatpush.bf16.msra.mxu0 %v2780
    %4307 = vmatpush.bf16.msra.mxu0 %v2776
    %4308 = vmatpush.bf16.msra.mxu0 %v2772
    %4309 = vmatpush.bf16.msra.mxu0 %v2768
    %4310 = vmatpush.bf16.msra.mxu0 %v2764
    %4311 = vmatmul.bf16.gmra.mxu0 %v754
    %v4312 = vpop.f32.mrf.mxu0
    %v4313 = vadd.f32 %v4300, %v4312
    %v4314 = vpop.f32.mrf.mxu0
    %4315 = vdwg.mxu0
    %4316 = vmatpush.bf16.msra.mxu0 %v2824
    %4317 = vmatpush.bf16.msra.mxu0 %v2820
    %4318 = vmatpush.bf16.msra.mxu0 %v2816
    %4319 = vmatpush.bf16.msra.mxu0 %v2812
    %4320 = vmatpush.bf16.msra.mxu0 %v2808
    %4321 = vmatpush.bf16.msra.mxu0 %v2804
    %4322 = vmatpush.bf16.msra.mxu0 %v2800
    %4323 = vmatpush.bf16.msra.mxu0 %v2796
    %4324 = vmatmul.bf16.gmra.mxu0 %v755
    %v4325 = vpop.f32.mrf.mxu0
    %v4326 = vadd.f32 %v4313, %v4325
    %v4327 = vpop.f32.mrf.mxu0
    %4328 = vdwg.mxu0
    %4329 = vmatpush.bf16.msra.mxu0 %v2856
    %4330 = vmatpush.bf16.msra.mxu0 %v2852
    %4331 = vmatpush.bf16.msra.mxu0 %v2848
    %4332 = vmatpush.bf16.msra.mxu0 %v2844
    %4333 = vmatpush.bf16.msra.mxu0 %v2840
    %4334 = vmatpush.bf16.msra.mxu0 %v2836
    %4335 = vmatpush.bf16.msra.mxu0 %v2832
    %4336 = vmatpush.bf16.msra.mxu0 %v2828
    %4337 = vmatmul.bf16.gmra.mxu0 %v756
    %v4338 = vpop.f32.mrf.mxu0
    %v4339 = vadd.f32 %v4326, %v4338
    %v4340 = vpop.f32.mrf.mxu0
    %4341 = vdwg.mxu0
    %4342 = vmatpush.bf16.msra.mxu0 %v2888
    %4343 = vmatpush.bf16.msra.mxu0 %v2884
    %4344 = vmatpush.bf16.msra.mxu0 %v2880
    %4345 = vmatpush.bf16.msra.mxu0 %v2876
    %4346 = vmatpush.bf16.msra.mxu0 %v2872
    %4347 = vmatpush.bf16.msra.mxu0 %v2868
    %4348 = vmatpush.bf16.msra.mxu0 %v2864
    %4349 = vmatpush.bf16.msra.mxu0 %v2860
    %4350 = vmatmul.bf16.gmra.mxu0 %v757
    %v4351 = vpop.f32.mrf.mxu0
    %v4352 = vadd.f32 %v4339, %v4351
    %v4353 = vpop.f32.mrf.mxu0
    %4354 = vdwg.mxu0
    %4355 = vmatpush.bf16.msra.mxu0 %v2920
    %4356 = vmatpush.bf16.msra.mxu0 %v2916
    %4357 = vmatpush.bf16.msra.mxu0 %v2912
    %4358 = vmatpush.bf16.msra.mxu0 %v2908
    %4359 = vmatpush.bf16.msra.mxu0 %v2904
    %4360 = vmatpush.bf16.msra.mxu0 %v2900
    %4361 = vmatpush.bf16.msra.mxu0 %v2896
    %4362 = vmatpush.bf16.msra.mxu0 %v2892
    %4363 = vmatmul.bf16.gmra.mxu0 %v758
    %v4364 = vpop.f32.mrf.mxu0
    %v4365 = vadd.f32 %v4352, %v4364
    %v4366 = vpop.f32.mrf.mxu0
    %4367 = vdwg.mxu0
    %4368 = vmatpush.bf16.msra.mxu0 %v2952
    %4369 = vmatpush.bf16.msra.mxu0 %v2948
    %4370 = vmatpush.bf16.msra.mxu0 %v2944
    %4371 = vmatpush.bf16.msra.mxu0 %v2940
    %4372 = vmatpush.bf16.msra.mxu0 %v2936
    %4373 = vmatpush.bf16.msra.mxu0 %v2932
    %4374 = vmatpush.bf16.msra.mxu0 %v2928
    %4375 = vmatpush.bf16.msra.mxu0 %v2924
    %4376 = vmatmul.bf16.gmra.mxu0 %v759
    %v4377 = vpop.f32.mrf.mxu0
    %v4378 = vadd.f32 %v4365, %v4377
    %v4379 = vpop.f32.mrf.mxu0
    %4380 = vdwg.mxu0
    %v4381 = vmax.f32 %v3715, 0.0
    %v4382 = vmax.f32 %v3936, 0.0
    %v4383 = vmax.f32 %v4157, 0.0
    %v4384 = vmax.f32 %v4378, 0.0
    %v4385 = vld [vmem:[#allocation6] sm:$0xff]
    %v4386 = vld [vmem:[#allocation6 + $0x8] sm:$0xff]
    %v4387 = vld [vmem:[#allocation6 + $0x10] sm:$0xff]
    %v4388 = vld [vmem:[#allocation6 + $0x18] sm:$0xff]
    %v4389 = vld [vmem:[#allocation6 + $0x20] sm:$0xff]
    %v4390 = vld [vmem:[#allocation6 + $0x28] sm:$0xff]
    %v4391 = vld [vmem:[#allocation6 + $0x30] sm:$0xff]
    %v4392 = vld [vmem:[#allocation6 + $0x38] sm:$0xff]
    %v4393 = vld [vmem:[#allocation6 + $0x40] sm:$0xff]
    %v4394 = vld [vmem:[#allocation6 + $0x48] sm:$0xff]
    %v4395 = vld [vmem:[#allocation6 + $0x50] sm:$0xff]
    %v4396 = vld [vmem:[#allocation6 + $0x58] sm:$0xff]
    %v4397 = vld [vmem:[#allocation6 + $0x60] sm:$0xff]
    %v4398 = vld [vmem:[#allocation6 + $0x68] sm:$0xff]
    %v4399 = vld [vmem:[#allocation6 + $0x70] sm:$0xff]
    %v4400 = vld [vmem:[#allocation6 + $0x78] sm:$0xff]
    %v4401 = vld [vmem:[#allocation6 + $0x80] sm:$0xff]
    %v4402 = vld [vmem:[#allocation6 + $0x88] sm:$0xff]
    %v4403 = vld [vmem:[#allocation6 + $0x90] sm:$0xff]
    %v4404 = vld [vmem:[#allocation6 + $0x98] sm:$0xff]
    %v4405 = vld [vmem:[#allocation6 + $0xa0] sm:$0xff]
    %v4406 = vld [vmem:[#allocation6 + $0xa8] sm:$0xff]
    %v4407 = vld [vmem:[#allocation6 + $0xb0] sm:$0xff]
    %v4408 = vld [vmem:[#allocation6 + $0xb8] sm:$0xff]
    %v4409 = vld [vmem:[#allocation6 + $0xc0] sm:$0xff]
    %v4410 = vld [vmem:[#allocation6 + $0xc8] sm:$0xff]
    %v4411 = vld [vmem:[#allocation6 + $0xd0] sm:$0xff]
    %v4412 = vld [vmem:[#allocation6 + $0xd8] sm:$0xff]
    %v4413 = vld [vmem:[#allocation6 + $0xe0] sm:$0xff]
    %v4414 = vld [vmem:[#allocation6 + $0xe8] sm:$0xff]
    %v4415 = vld [vmem:[#allocation6 + $0xf0] sm:$0xff]
    %v4416 = vld [vmem:[#allocation6 + $0xf8] sm:$0xff]
    %v4417 = vld [vmem:[#allocation6 + $0x100] sm:$0xff]
    %v4418 = vld [vmem:[#allocation6 + $0x108] sm:$0xff]
    %v4419 = vld [vmem:[#allocation6 + $0x110] sm:$0xff]
    %v4420 = vld [vmem:[#allocation6 + $0x118] sm:$0xff]
    %v4421 = vld [vmem:[#allocation6 + $0x120] sm:$0xff]
    %v4422 = vld [vmem:[#allocation6 + $0x128] sm:$0xff]
    %v4423 = vld [vmem:[#allocation6 + $0x130] sm:$0xff]
    %v4424 = vld [vmem:[#allocation6 + $0x138] sm:$0xff]
    %v4425 = vld [vmem:[#allocation6 + $0x140] sm:$0xff]
    %v4426 = vld [vmem:[#allocation6 + $0x148] sm:$0xff]
    %v4427 = vld [vmem:[#allocation6 + $0x150] sm:$0xff]
    %v4428 = vld [vmem:[#allocation6 + $0x158] sm:$0xff]
    %v4429 = vld [vmem:[#allocation6 + $0x160] sm:$0xff]
    %v4430 = vld [vmem:[#allocation6 + $0x168] sm:$0xff]
    %v4431 = vld [vmem:[#allocation6 + $0x170] sm:$0xff]
    %v4432 = vld [vmem:[#allocation6 + $0x178] sm:$0xff]
    %v4433 = vld [vmem:[#allocation6 + $0x180] sm:$0xff]
    %v4434 = vld [vmem:[#allocation6 + $0x188] sm:$0xff]
    %v4435 = vld [vmem:[#allocation6 + $0x190] sm:$0xff]
    %v4436 = vld [vmem:[#allocation6 + $0x198] sm:$0xff]
    %v4437 = vld [vmem:[#allocation6 + $0x1a0] sm:$0xff]
    %v4438 = vld [vmem:[#allocation6 + $0x1a8] sm:$0xff]
    %v4439 = vld [vmem:[#allocation6 + $0x1b0] sm:$0xff]
    %v4440 = vld [vmem:[#allocation6 + $0x1b8] sm:$0xff]
    %v4441 = vld [vmem:[#allocation6 + $0x1c0] sm:$0xff]
    %v4442 = vld [vmem:[#allocation6 + $0x1c8] sm:$0xff]
    %v4443 = vld [vmem:[#allocation6 + $0x1d0] sm:$0xff]
    %v4444 = vld [vmem:[#allocation6 + $0x1d8] sm:$0xff]
    %v4445 = vld [vmem:[#allocation6 + $0x1e0] sm:$0xff]
    %v4446 = vld [vmem:[#allocation6 + $0x1e8] sm:$0xff]
    %v4447 = vld [vmem:[#allocation6 + $0x1f0] sm:$0xff]
    %v4448 = vld [vmem:[#allocation6 + $0x1f8] sm:$0xff]
    %v4449 = vld [vmem:[#allocation7] sm:$0x1]
    %v4451 = vperm.slane %v4449, 0
    %4453 = vmatpush.msra.mxu0 %v4400
    %4454 = vmatpush.msra.mxu0 %v4399
    %4455 = vmatpush.msra.mxu0 %v4398
    %4456 = vmatpush.msra.mxu0 %v4397
    %4457 = vmatpush.msra.mxu0 %v4396
    %4458 = vmatpush.msra.mxu0 %v4395
    %4459 = vmatpush.msra.mxu0 %v4394
    %4460 = vmatpush.msra.mxu0 %v4393
    %4461 = vmatpush.msra.mxu0 %v4392
    %4462 = vmatpush.msra.mxu0 %v4391
    %4463 = vmatpush.msra.mxu0 %v4390
    %4464 = vmatpush.msra.mxu0 %v4389
    %4465 = vmatpush.msra.mxu0 %v4388
    %4466 = vmatpush.msra.mxu0 %v4387
    %4467 = vmatpush.msra.mxu0 %v4386
    %4468 = vmatpush.msra.mxu0 %v4385
    %4469 = vmatmul.f32.gmra.mxu0 %v4381
    %v4470 = vpop.f32.mrf.mxu0
    %v4471 = vadd.f32 %v4451, %v4470
    %4472 = vdwg.mxu0
    %4473 = vmatpush.msra.mxu0 %v4416
    %4474 = vmatpush.msra.mxu0 %v4415
    %4475 = vmatpush.msra.mxu0 %v4414
    %4476 = vmatpush.msra.mxu0 %v4413
    %4477 = vmatpush.msra.mxu0 %v4412
    %4478 = vmatpush.msra.mxu0 %v4411
    %4479 = vmatpush.msra.mxu0 %v4410
    %4480 = vmatpush.msra.mxu0 %v4409
    %4481 = vmatpush.msra.mxu0 %v4408
    %4482 = vmatpush.msra.mxu0 %v4407
    %4483 = vmatpush.msra.mxu0 %v4406
    %4484 = vmatpush.msra.mxu0 %v4405
    %4485 = vmatpush.msra.mxu0 %v4404
    %4486 = vmatpush.msra.mxu0 %v4403
    %4487 = vmatpush.msra.mxu0 %v4402
    %4488 = vmatpush.msra.mxu0 %v4401
    %4489 = vmatmul.f32.gmra.mxu0 %v4382
    %v4490 = vpop.f32.mrf.mxu0
    %v4491 = vadd.f32 %v4471, %v4490
    %4492 = vdwg.mxu0
    %4493 = vmatpush.msra.mxu0 %v4432
    %4494 = vmatpush.msra.mxu0 %v4431
    %4495 = vmatpush.msra.mxu0 %v4430
    %4496 = vmatpush.msra.mxu0 %v4429
    %4497 = vmatpush.msra.mxu0 %v4428
    %4498 = vmatpush.msra.mxu0 %v4427
    %4499 = vmatpush.msra.mxu0 %v4426
    %4500 = vmatpush.msra.mxu0 %v4425
    %4501 = vmatpush.msra.mxu0 %v4424
    %4502 = vmatpush.msra.mxu0 %v4423
    %4503 = vmatpush.msra.mxu0 %v4422
    %4504 = vmatpush.msra.mxu0 %v4421
    %4505 = vmatpush.msra.mxu0 %v4420
    %4506 = vmatpush.msra.mxu0 %v4419
    %4507 = vmatpush.msra.mxu0 %v4418
    %4508 = vmatpush.msra.mxu0 %v4417
    %4509 = vmatmul.f32.gmra.mxu0 %v4383
    %v4510 = vpop.f32.mrf.mxu0
    %v4511 = vadd.f32 %v4491, %v4510
    %4512 = vdwg.mxu0
    %4513 = vmatpush.msra.mxu0 %v4448
    %4514 = vmatpush.msra.mxu0 %v4447
    %4515 = vmatpush.msra.mxu0 %v4446
    %4516 = vmatpush.msra.mxu0 %v4445
    %4517 = vmatpush.msra.mxu0 %v4444
    %4518 = vmatpush.msra.mxu0 %v4443
    %4519 = vmatpush.msra.mxu0 %v4442
    %4520 = vmatpush.msra.mxu0 %v4441
    %4521 = vmatpush.msra.mxu0 %v4440
    %4522 = vmatpush.msra.mxu0 %v4439
    %4523 = vmatpush.msra.mxu0 %v4438
    %4524 = vmatpush.msra.mxu0 %v4437
    %4525 = vmatpush.msra.mxu0 %v4436
    %4526 = vmatpush.msra.mxu0 %v4435
    %4527 = vmatpush.msra.mxu0 %v4434
    %4528 = vmatpush.msra.mxu0 %v4433
    %4529 = vmatmul.f32.gmra.mxu0 %v4384
    %v4530 = vpop.f32.mrf.mxu0
    %v4531 = vadd.f32 %v4511, %v4530
    %4532 = vdwg.mxu0
    %v4533 = vlaneseq
    %v4534 = vand.u32 %v4533, 127
    %vm4535 = vcmp.ge.s32.totalorder %v4534, 8
    %v4536 = vmul.f32 %v4531, 1.442695
    %v4537 = vpow.pop %v4536
    %v4538 = vsel %vm4535, %v4537, %v4531
    %4539 = vst [vmem:[%s11] sm:$0xff] %v4538
    %v4540 = vld [vmem:[%s5] sm:$0xff]
    %v4541 = vmul.f32 %v4538, %v4540
    %v4542 = vld [vmem:[#allocation9] sm:$0xff]
    %v4543 = vld [vmem:[#allocation9 + $0x8] sm:$0xff]
    %v4544 = vld [vmem:[#allocation9 + $0x10] sm:$0xff]
    %v4545 = vld [vmem:[#allocation9 + $0x18] sm:$0xff]
    %v4546 = vld [vmem:[#allocation9 + $0x20] sm:$0xff]
    %v4547 = vld [vmem:[#allocation9 + $0x28] sm:$0xff]
    %v4548 = vld [vmem:[#allocation9 + $0x30] sm:$0xff]
    %v4549 = vld [vmem:[#allocation9 + $0x38] sm:$0xff]
    %v4550 = vld [vmem:[#allocation9 + $0x40] sm:$0xff]
    %v4551 = vld [vmem:[#allocation9 + $0x48] sm:$0xff]
    %v4552 = vld [vmem:[#allocation9 + $0x50] sm:$0xff]
    %v4553 = vld [vmem:[#allocation9 + $0x58] sm:$0xff]
    %v4554 = vld [vmem:[#allocation9 + $0x60] sm:$0xff]
    %v4555 = vld [vmem:[#allocation9 + $0x68] sm:$0xff]
    %v4556 = vld [vmem:[#allocation9 + $0x70] sm:$0xff]
    %v4557 = vld [vmem:[#allocation9 + $0x78] sm:$0xff]
    %v4558 = vld [vmem:[#allocation9 + $0x80] sm:$0xff]
    %v4559 = vld [vmem:[#allocation9 + $0x88] sm:$0xff]
    %v4560 = vld [vmem:[#allocation9 + $0x90] sm:$0xff]
    %v4561 = vld [vmem:[#allocation9 + $0x98] sm:$0xff]
    %v4562 = vld [vmem:[#allocation9 + $0xa0] sm:$0xff]
    %v4563 = vld [vmem:[#allocation9 + $0xa8] sm:$0xff]
    %v4564 = vld [vmem:[#allocation9 + $0xb0] sm:$0xff]
    %v4565 = vld [vmem:[#allocation9 + $0xb8] sm:$0xff]
    %v4566 = vld [vmem:[#allocation9 + $0xc0] sm:$0xff]
    %v4567 = vld [vmem:[#allocation9 + $0xc8] sm:$0xff]
    %v4568 = vld [vmem:[#allocation9 + $0xd0] sm:$0xff]
    %v4569 = vld [vmem:[#allocation9 + $0xd8] sm:$0xff]
    %v4570 = vld [vmem:[#allocation9 + $0xe0] sm:$0xff]
    %v4571 = vld [vmem:[#allocation9 + $0xe8] sm:$0xff]
    %v4572 = vld [vmem:[#allocation9 + $0xf0] sm:$0xff]
    %v4573 = vld [vmem:[#allocation9 + $0xf8] sm:$0xff]
    %v4574 = vld [vmem:[#allocation9 + $0x100] sm:$0xff]
    %v4575 = vld [vmem:[#allocation9 + $0x108] sm:$0xff]
    %v4576 = vld [vmem:[#allocation9 + $0x110] sm:$0xff]
    %v4577 = vld [vmem:[#allocation9 + $0x118] sm:$0xff]
    %v4578 = vld [vmem:[#allocation9 + $0x120] sm:$0xff]
    %v4579 = vld [vmem:[#allocation9 + $0x128] sm:$0xff]
    %v4580 = vld [vmem:[#allocation9 + $0x130] sm:$0xff]
    %v4581 = vld [vmem:[#allocation9 + $0x138] sm:$0xff]
    %v4582 = vld [vmem:[#allocation9 + $0x140] sm:$0xff]
    %v4583 = vld [vmem:[#allocation9 + $0x148] sm:$0xff]
    %v4584 = vld [vmem:[#allocation9 + $0x150] sm:$0xff]
    %v4585 = vld [vmem:[#allocation9 + $0x158] sm:$0xff]
    %v4586 = vld [vmem:[#allocation9 + $0x160] sm:$0xff]
    %v4587 = vld [vmem:[#allocation9 + $0x168] sm:$0xff]
    %v4588 = vld [vmem:[#allocation9 + $0x170] sm:$0xff]
    %v4589 = vld [vmem:[#allocation9 + $0x178] sm:$0xff]
    %v4590 = vld [vmem:[#allocation9 + $0x180] sm:$0xff]
    %v4591 = vld [vmem:[#allocation9 + $0x188] sm:$0xff]
    %v4592 = vld [vmem:[#allocation9 + $0x190] sm:$0xff]
    %v4593 = vld [vmem:[#allocation9 + $0x198] sm:$0xff]
    %v4594 = vld [vmem:[#allocation9 + $0x1a0] sm:$0xff]
    %v4595 = vld [vmem:[#allocation9 + $0x1a8] sm:$0xff]
    %v4596 = vld [vmem:[#allocation9 + $0x1b0] sm:$0xff]
    %v4597 = vld [vmem:[#allocation9 + $0x1b8] sm:$0xff]
    %v4598 = vld [vmem:[#allocation9 + $0x1c0] sm:$0xff]
    %v4599 = vld [vmem:[#allocation9 + $0x1c8] sm:$0xff]
    %v4600 = vld [vmem:[#allocation9 + $0x1d0] sm:$0xff]
    %v4601 = vld [vmem:[#allocation9 + $0x1d8] sm:$0xff]
    %v4602 = vld [vmem:[#allocation9 + $0x1e0] sm:$0xff]
    %v4603 = vld [vmem:[#allocation9 + $0x1e8] sm:$0xff]
    %v4604 = vld [vmem:[#allocation9 + $0x1f0] sm:$0xff]
    %v4605 = vld [vmem:[#allocation9 + $0x1f8] sm:$0xff]
    %v4606 = vld [vmem:[#allocation10] sm:$0xf]
    %v4608 = vperm.slane %v4606, 0
    %v4609 = vperm.slane %v4606, 1
    %v4610 = vperm.slane %v4606, 2
    %v4611 = vperm.slane %v4606, 3
    %4616 = vmatpush.msra.mxu0 %v4602
    %4617 = vmatpush.msra.mxu0 %v4598
    %4618 = vmatpush.msra.mxu0 %v4594
    %4619 = vmatpush.msra.mxu0 %v4590
    %4620 = vmatpush.msra.mxu0 %v4586
    %4621 = vmatpush.msra.mxu0 %v4582
    %4622 = vmatpush.msra.mxu0 %v4578
    %4623 = vmatpush.msra.mxu0 %v4574
    %4624 = vmatpush.msra.mxu0 %v4570
    %4625 = vmatpush.msra.mxu0 %v4566
    %4626 = vmatpush.msra.mxu0 %v4562
    %4627 = vmatpush.msra.mxu0 %v4558
    %4628 = vmatpush.msra.mxu0 %v4554
    %4629 = vmatpush.msra.mxu0 %v4550
    %4630 = vmatpush.msra.mxu0 %v4546
    %4631 = vmatpush.msra.mxu0 %v4542
    %4632 = vmatmul.f32.gmra.mxu0 %v4541
    %v4633 = vpop.f32.mrf.mxu0
    %v4634 = vadd.f32 %v4608, %v4633
    %4635 = vdwg.mxu0
    %4636 = vmatpush.msra.mxu0 %v4603
    %4637 = vmatpush.msra.mxu0 %v4599
    %4638 = vmatpush.msra.mxu0 %v4595
    %4639 = vmatpush.msra.mxu0 %v4591
    %4640 = vmatpush.msra.mxu0 %v4587
    %4641 = vmatpush.msra.mxu0 %v4583
    %4642 = vmatpush.msra.mxu0 %v4579
    %4643 = vmatpush.msra.mxu0 %v4575
    %4644 = vmatpush.msra.mxu0 %v4571
    %4645 = vmatpush.msra.mxu0 %v4567
    %4646 = vmatpush.msra.mxu0 %v4563
    %4647 = vmatpush.msra.mxu0 %v4559
    %4648 = vmatpush.msra.mxu0 %v4555
    %4649 = vmatpush.msra.mxu0 %v4551
    %4650 = vmatpush.msra.mxu0 %v4547
    %4651 = vmatpush.msra.mxu0 %v4543
    %4652 = vmatmul.f32.gmra.mxu0 %v4541
    %v4653 = vpop.f32.mrf.mxu0
    %v4654 = vadd.f32 %v4609, %v4653
    %4655 = vdwg.mxu0
    %4656 = vmatpush.msra.mxu0 %v4604
    %4657 = vmatpush.msra.mxu0 %v4600
    %4658 = vmatpush.msra.mxu0 %v4596
    %4659 = vmatpush.msra.mxu0 %v4592
    %4660 = vmatpush.msra.mxu0 %v4588
    %4661 = vmatpush.msra.mxu0 %v4584
    %4662 = vmatpush.msra.mxu0 %v4580
    %4663 = vmatpush.msra.mxu0 %v4576
    %4664 = vmatpush.msra.mxu0 %v4572
    %4665 = vmatpush.msra.mxu0 %v4568
    %4666 = vmatpush.msra.mxu0 %v4564
    %4667 = vmatpush.msra.mxu0 %v4560
    %4668 = vmatpush.msra.mxu0 %v4556
    %4669 = vmatpush.msra.mxu0 %v4552
    %4670 = vmatpush.msra.mxu0 %v4548
    %4671 = vmatpush.msra.mxu0 %v4544
    %4672 = vmatmul.f32.gmra.mxu0 %v4541
    %v4673 = vpop.f32.mrf.mxu0
    %v4674 = vadd.f32 %v4610, %v4673
    %4675 = vdwg.mxu0
    %4676 = vmatpush.msra.mxu0 %v4605
    %4677 = vmatpush.msra.mxu0 %v4601
    %4678 = vmatpush.msra.mxu0 %v4597
    %4679 = vmatpush.msra.mxu0 %v4593
    %4680 = vmatpush.msra.mxu0 %v4589
    %4681 = vmatpush.msra.mxu0 %v4585
    %4682 = vmatpush.msra.mxu0 %v4581
    %4683 = vmatpush.msra.mxu0 %v4577
    %4684 = vmatpush.msra.mxu0 %v4573
    %4685 = vmatpush.msra.mxu0 %v4569
    %4686 = vmatpush.msra.mxu0 %v4565
    %4687 = vmatpush.msra.mxu0 %v4561
    %4688 = vmatpush.msra.mxu0 %v4557
    %4689 = vmatpush.msra.mxu0 %v4553
    %4690 = vmatpush.msra.mxu0 %v4549
    %4691 = vmatpush.msra.mxu0 %v4545
    %4692 = vmatmul.f32.gmra.mxu0 %v4541
    %v4693 = vpop.f32.mrf.mxu0
    %v4694 = vadd.f32 %v4611, %v4693
    %4695 = vdwg.mxu0
    %v4696 = vmax.f32 %v4634, 0.0
    %v4697 = vmax.f32 %v4654, 0.0
    %v4698 = vmax.f32 %v4674, 0.0
    %v4699 = vmax.f32 %v4694, 0.0
    %v4700 = vpack.c.bf16 %v4696, %v4696
    %v4701 = vpack.c.bf16 %v4697, %v4697
    %v4702 = vpack.c.bf16 %v4698, %v4698
    %v4703 = vpack.c.bf16 %v4699, %v4699
    %v4704 = vld [vmem:[#allocation12] sm:$0xff]
    %v4705 = vld [vmem:[#allocation12 + $0x8] sm:$0xff]
    %v4706 = vld [vmem:[#allocation12 + $0x10] sm:$0xff]
    %v4707 = vld [vmem:[#allocation12 + $0x18] sm:$0xff]
    %v4708 = vld [vmem:[#allocation12 + $0x20] sm:$0xff]
    %v4709 = vld [vmem:[#allocation12 + $0x28] sm:$0xff]
    %v4710 = vld [vmem:[#allocation12 + $0x30] sm:$0xff]
    %v4711 = vld [vmem:[#allocation12 + $0x38] sm:$0xff]
    %v4712 = vld [vmem:[#allocation12 + $0x40] sm:$0xf]
    %v4713 = vld [vmem:[#allocation12 + $0x44] sm:$0xff]
    %v4714 = vld [vmem:[#allocation12 + $0x4c] sm:$0xff]
    %v4715 = vld [vmem:[#allocation12 + $0x54] sm:$0xff]
    %v4716 = vld [vmem:[#allocation12 + $0x5c] sm:$0xff]
    %v4717 = vld [vmem:[#allocation12 + $0x64] sm:$0xff]
    %v4718 = vld [vmem:[#allocation12 + $0x6c] sm:$0xff]
    %v4719 = vld [vmem:[#allocation12 + $0x74] sm:$0xff]
    %v4720 = vld [vmem:[#allocation12 + $0x7c] sm:$0xff]
    %v4721 = vld [vmem:[#allocation12 + $0x84] sm:$0xf]
    %v4722 = vld [vmem:[#allocation12 + $0x88] sm:$0xff]
    %v4723 = vld [vmem:[#allocation12 + $0x90] sm:$0xff]
    %v4724 = vld [vmem:[#allocation12 + $0x98] sm:$0xff]
    %v4725 = vld [vmem:[#allocation12 + $0xa0] sm:$0xff]
    %v4726 = vld [vmem:[#allocation12 + $0xa8] sm:$0xff]
    %v4727 = vld [vmem:[#allocation12 + $0xb0] sm:$0xff]
    %v4728 = vld [vmem:[#allocation12 + $0xb8] sm:$0xff]
    %v4729 = vld [vmem:[#allocation12 + $0xc0] sm:$0xff]
    %v4730 = vld [vmem:[#allocation12 + $0xc8] sm:$0xf]
    %v4731 = vld [vmem:[#allocation12 + $0xcc] sm:$0xff]
    %v4732 = vld [vmem:[#allocation12 + $0xd4] sm:$0xff]
    %v4733 = vld [vmem:[#allocation12 + $0xdc] sm:$0xff]
    %v4734 = vld [vmem:[#allocation12 + $0xe4] sm:$0xff]
    %v4735 = vld [vmem:[#allocation12 + $0xec] sm:$0xff]
    %v4736 = vld [vmem:[#allocation12 + $0xf4] sm:$0xff]
    %v4737 = vld [vmem:[#allocation12 + $0xfc] sm:$0xff]
    %v4738 = vld [vmem:[#allocation12 + $0x104] sm:$0xff]
    %v4739 = vld [vmem:[#allocation12 + $0x10c] sm:$0xf]
    %v4740 = vld [vmem:[#allocation12 + $0x110] sm:$0xff]
    %v4741 = vld [vmem:[#allocation12 + $0x118] sm:$0xff]
    %v4742 = vld [vmem:[#allocation12 + $0x120] sm:$0xff]
    %v4743 = vld [vmem:[#allocation12 + $0x128] sm:$0xff]
    %v4744 = vld [vmem:[#allocation12 + $0x130] sm:$0xff]
    %v4745 = vld [vmem:[#allocation12 + $0x138] sm:$0xff]
    %v4746 = vld [vmem:[#allocation12 + $0x140] sm:$0xff]
    %v4747 = vld [vmem:[#allocation12 + $0x148] sm:$0xff]
    %v4748 = vld [vmem:[#allocation12 + $0x150] sm:$0xf]
    %v4749 = vld [vmem:[#allocation12 + $0x154] sm:$0xff]
    %v4750 = vld [vmem:[#allocation12 + $0x15c] sm:$0xff]
    %v4751 = vld [vmem:[#allocation12 + $0x164] sm:$0xff]
    %v4752 = vld [vmem:[#allocation12 + $0x16c] sm:$0xff]
    %v4753 = vld [vmem:[#allocation12 + $0x174] sm:$0xff]
    %v4754 = vld [vmem:[#allocation12 + $0x17c] sm:$0xff]
    %v4755 = vld [vmem:[#allocation12 + $0x184] sm:$0xff]
    %v4756 = vld [vmem:[#allocation12 + $0x18c] sm:$0xff]
    %v4757 = vld [vmem:[#allocation12 + $0x194] sm:$0xf]
    %v4758 = vld [vmem:[#allocation12 + $0x198] sm:$0xff]
    %v4759 = vld [vmem:[#allocation12 + $0x1a0] sm:$0xff]
    %v4760 = vld [vmem:[#allocation12 + $0x1a8] sm:$0xff]
    %v4761 = vld [vmem:[#allocation12 + $0x1b0] sm:$0xff]
    %v4762 = vld [vmem:[#allocation12 + $0x1b8] sm:$0xff]
    %v4763 = vld [vmem:[#allocation12 + $0x1c0] sm:$0xff]
    %v4764 = vld [vmem:[#allocation12 + $0x1c8] sm:$0xff]
    %v4765 = vld [vmem:[#allocation12 + $0x1d0] sm:$0xff]
    %v4766 = vld [vmem:[#allocation12 + $0x1d8] sm:$0xf]
    %v4767 = vld [vmem:[#allocation12 + $0x1dc] sm:$0xff]
    %v4768 = vld [vmem:[#allocation12 + $0x1e4] sm:$0xff]
    %v4769 = vld [vmem:[#allocation12 + $0x1ec] sm:$0xff]
    %v4770 = vld [vmem:[#allocation12 + $0x1f4] sm:$0xff]
    %v4771 = vld [vmem:[#allocation12 + $0x1fc] sm:$0xff]
    %v4772 = vld [vmem:[#allocation12 + $0x204] sm:$0xff]
    %v4773 = vld [vmem:[#allocation12 + $0x20c] sm:$0xff]
    %v4774 = vld [vmem:[#allocation12 + $0x214] sm:$0xff]
    %v4775 = vld [vmem:[#allocation12 + $0x21c] sm:$0xf]
    %v4776 = vld [vmem:[#allocation12 + $0x220] sm:$0xff]
    %v4777 = vld [vmem:[#allocation12 + $0x228] sm:$0xff]
    %v4778 = vld [vmem:[#allocation12 + $0x230] sm:$0xff]
    %v4779 = vld [vmem:[#allocation12 + $0x238] sm:$0xff]
    %v4780 = vld [vmem:[#allocation12 + $0x240] sm:$0xff]
    %v4781 = vld [vmem:[#allocation12 + $0x248] sm:$0xff]
    %v4782 = vld [vmem:[#allocation12 + $0x250] sm:$0xff]
    %v4783 = vld [vmem:[#allocation12 + $0x258] sm:$0xff]
    %v4784 = vld [vmem:[#allocation12 + $0x260] sm:$0xf]
    %v4785 = vld [vmem:[#allocation12 + $0x264] sm:$0xff]
    %v4786 = vld [vmem:[#allocation12 + $0x26c] sm:$0xff]
    %v4787 = vld [vmem:[#allocation12 + $0x274] sm:$0xff]
    %v4788 = vld [vmem:[#allocation12 + $0x27c] sm:$0xff]
    %v4789 = vld [vmem:[#allocation12 + $0x284] sm:$0xff]
    %v4790 = vld [vmem:[#allocation12 + $0x28c] sm:$0xff]
    %v4791 = vld [vmem:[#allocation12 + $0x294] sm:$0xff]
    %v4792 = vld [vmem:[#allocation12 + $0x29c] sm:$0xff]
    %v4793 = vld [vmem:[#allocation12 + $0x2a4] sm:$0xf]
    %v4794 = vld [vmem:[#allocation12 + $0x2a8] sm:$0xff]
    %v4795 = vld [vmem:[#allocation12 + $0x2b0] sm:$0xff]
    %v4796 = vld [vmem:[#allocation12 + $0x2b8] sm:$0xff]
    %v4797 = vld [vmem:[#allocation12 + $0x2c0] sm:$0xff]
    %v4798 = vld [vmem:[#allocation12 + $0x2c8] sm:$0xff]
    %v4799 = vld [vmem:[#allocation12 + $0x2d0] sm:$0xff]
    %v4800 = vld [vmem:[#allocation12 + $0x2d8] sm:$0xff]
    %v4801 = vld [vmem:[#allocation12 + $0x2e0] sm:$0xff]
    %v4802 = vld [vmem:[#allocation12 + $0x2e8] sm:$0xf]
    %v4803 = vld [vmem:[#allocation12 + $0x2ec] sm:$0xff]
    %v4804 = vld [vmem:[#allocation12 + $0x2f4] sm:$0xff]
    %v4805 = vld [vmem:[#allocation12 + $0x2fc] sm:$0xff]
    %v4806 = vld [vmem:[#allocation12 + $0x304] sm:$0xff]
    %v4807 = vld [vmem:[#allocation12 + $0x30c] sm:$0xff]
    %v4808 = vld [vmem:[#allocation12 + $0x314] sm:$0xff]
    %v4809 = vld [vmem:[#allocation12 + $0x31c] sm:$0xff]
    %v4810 = vld [vmem:[#allocation12 + $0x324] sm:$0xff]
    %v4811 = vld [vmem:[#allocation12 + $0x32c] sm:$0xf]
    %v4812 = vld [vmem:[#allocation12 + $0x330] sm:$0xff]
    %v4813 = vld [vmem:[#allocation12 + $0x338] sm:$0xff]
    %v4814 = vld [vmem:[#allocation12 + $0x340] sm:$0xff]
    %v4815 = vld [vmem:[#allocation12 + $0x348] sm:$0xff]
    %v4816 = vld [vmem:[#allocation12 + $0x350] sm:$0xff]
    %v4817 = vld [vmem:[#allocation12 + $0x358] sm:$0xff]
    %v4818 = vld [vmem:[#allocation12 + $0x360] sm:$0xff]
    %v4819 = vld [vmem:[#allocation12 + $0x368] sm:$0xff]
    %v4820 = vld [vmem:[#allocation12 + $0x370] sm:$0xf]
    %v4821 = vld [vmem:[#allocation12 + $0x374] sm:$0xff]
    %v4822 = vld [vmem:[#allocation12 + $0x37c] sm:$0xff]
    %v4823 = vld [vmem:[#allocation12 + $0x384] sm:$0xff]
    %v4824 = vld [vmem:[#allocation12 + $0x38c] sm:$0xff]
    %v4825 = vld [vmem:[#allocation12 + $0x394] sm:$0xff]
    %v4826 = vld [vmem:[#allocation12 + $0x39c] sm:$0xff]
    %v4827 = vld [vmem:[#allocation12 + $0x3a4] sm:$0xff]
    %v4828 = vld [vmem:[#allocation12 + $0x3ac] sm:$0xff]
    %v4829 = vld [vmem:[#allocation12 + $0x3b4] sm:$0xf]
    %v4830 = vld [vmem:[#allocation12 + $0x3b8] sm:$0xff]
    %v4831 = vld [vmem:[#allocation12 + $0x3c0] sm:$0xff]
    %v4832 = vld [vmem:[#allocation12 + $0x3c8] sm:$0xff]
    %v4833 = vld [vmem:[#allocation12 + $0x3d0] sm:$0xff]
    %v4834 = vld [vmem:[#allocation12 + $0x3d8] sm:$0xff]
    %v4835 = vld [vmem:[#allocation12 + $0x3e0] sm:$0xff]
    %v4836 = vld [vmem:[#allocation12 + $0x3e8] sm:$0xff]
    %v4837 = vld [vmem:[#allocation12 + $0x3f0] sm:$0xff]
    %v4838 = vld [vmem:[#allocation12 + $0x3f8] sm:$0xf]
    %v4839 = vld [vmem:[#allocation12 + $0x3fc] sm:$0xff]
    %v4840 = vld [vmem:[#allocation12 + $0x404] sm:$0xff]
    %v4841 = vld [vmem:[#allocation12 + $0x40c] sm:$0xff]
    %v4842 = vld [vmem:[#allocation12 + $0x414] sm:$0xff]
    %v4843 = vld [vmem:[#allocation12 + $0x41c] sm:$0xff]
    %v4844 = vld [vmem:[#allocation12 + $0x424] sm:$0xff]
    %v4845 = vld [vmem:[#allocation12 + $0x42c] sm:$0xff]
    %v4846 = vld [vmem:[#allocation12 + $0x434] sm:$0xff]
    %v4847 = vld [vmem:[#allocation12 + $0x43c] sm:$0xf]
    %v4848 = vld [vmem:[#allocation12 + $0x440] sm:$0xff]
    %v4849 = vld [vmem:[#allocation12 + $0x448] sm:$0xff]
    %v4850 = vld [vmem:[#allocation12 + $0x450] sm:$0xff]
    %v4851 = vld [vmem:[#allocation12 + $0x458] sm:$0xff]
    %v4852 = vld [vmem:[#allocation12 + $0x460] sm:$0xff]
    %v4853 = vld [vmem:[#allocation12 + $0x468] sm:$0xff]
    %v4854 = vld [vmem:[#allocation12 + $0x470] sm:$0xff]
    %v4855 = vld [vmem:[#allocation12 + $0x478] sm:$0xff]
    %v4856 = vld [vmem:[#allocation12 + $0x480] sm:$0xf]
    %v4857 = vld [vmem:[#allocation12 + $0x484] sm:$0xff]
    %v4858 = vld [vmem:[#allocation12 + $0x48c] sm:$0xff]
    %v4859 = vld [vmem:[#allocation12 + $0x494] sm:$0xff]
    %v4860 = vld [vmem:[#allocation12 + $0x49c] sm:$0xff]
    %v4861 = vld [vmem:[#allocation12 + $0x4a4] sm:$0xff]
    %v4862 = vld [vmem:[#allocation12 + $0x4ac] sm:$0xff]
    %v4863 = vld [vmem:[#allocation12 + $0x4b4] sm:$0xff]
    %v4864 = vld [vmem:[#allocation12 + $0x4bc] sm:$0xff]
    %v4865 = vld [vmem:[#allocation12 + $0x4c4] sm:$0xf]
    %v4866 = vld [vmem:[#allocation12 + $0x4c8] sm:$0xff]
    %v4867 = vld [vmem:[#allocation12 + $0x4d0] sm:$0xff]
    %v4868 = vld [vmem:[#allocation12 + $0x4d8] sm:$0xff]
    %v4869 = vld [vmem:[#allocation12 + $0x4e0] sm:$0xff]
    %v4870 = vld [vmem:[#allocation12 + $0x4e8] sm:$0xff]
    %v4871 = vld [vmem:[#allocation12 + $0x4f0] sm:$0xff]
    %v4872 = vld [vmem:[#allocation12 + $0x4f8] sm:$0xff]
    %v4873 = vld [vmem:[#allocation12 + $0x500] sm:$0xff]
    %v4874 = vld [vmem:[#allocation12 + $0x508] sm:$0xf]
    %v4875 = vld [vmem:[#allocation12 + $0x50c] sm:$0xff]
    %v4876 = vld [vmem:[#allocation12 + $0x514] sm:$0xff]
    %v4877 = vld [vmem:[#allocation12 + $0x51c] sm:$0xff]
    %v4878 = vld [vmem:[#allocation12 + $0x524] sm:$0xff]
    %v4879 = vld [vmem:[#allocation12 + $0x52c] sm:$0xff]
    %v4880 = vld [vmem:[#allocation12 + $0x534] sm:$0xff]
    %v4881 = vld [vmem:[#allocation12 + $0x53c] sm:$0xff]
    %v4882 = vld [vmem:[#allocation12 + $0x544] sm:$0xff]
    %v4883 = vld [vmem:[#allocation12 + $0x54c] sm:$0xf]
    %v4884 = vld [vmem:[#allocation12 + $0x550] sm:$0xff]
    %v4885 = vld [vmem:[#allocation12 + $0x558] sm:$0xff]
    %v4886 = vld [vmem:[#allocation12 + $0x560] sm:$0xff]
    %v4887 = vld [vmem:[#allocation12 + $0x568] sm:$0xff]
    %v4888 = vld [vmem:[#allocation12 + $0x570] sm:$0xff]
    %v4889 = vld [vmem:[#allocation12 + $0x578] sm:$0xff]
    %v4890 = vld [vmem:[#allocation12 + $0x580] sm:$0xff]
    %v4891 = vld [vmem:[#allocation12 + $0x588] sm:$0xff]
    %v4892 = vld [vmem:[#allocation12 + $0x590] sm:$0xf]
    %v4893 = vld [vmem:[#allocation12 + $0x594] sm:$0xff]
    %v4894 = vld [vmem:[#allocation12 + $0x59c] sm:$0xff]
    %v4895 = vld [vmem:[#allocation12 + $0x5a4] sm:$0xff]
    %v4896 = vld [vmem:[#allocation12 + $0x5ac] sm:$0xff]
    %v4897 = vld [vmem:[#allocation12 + $0x5b4] sm:$0xff]
    %v4898 = vld [vmem:[#allocation12 + $0x5bc] sm:$0xff]
    %v4899 = vld [vmem:[#allocation12 + $0x5c4] sm:$0xff]
    %v4900 = vld [vmem:[#allocation12 + $0x5cc] sm:$0xff]
    %v4901 = vld [vmem:[#allocation12 + $0x5d4] sm:$0xf]
    %v4902 = vld [vmem:[#allocation12 + $0x5d8] sm:$0xff]
    %v4903 = vld [vmem:[#allocation12 + $0x5e0] sm:$0xff]
    %v4904 = vld [vmem:[#allocation12 + $0x5e8] sm:$0xff]
    %v4905 = vld [vmem:[#allocation12 + $0x5f0] sm:$0xff]
    %v4906 = vld [vmem:[#allocation12 + $0x5f8] sm:$0xff]
    %v4907 = vld [vmem:[#allocation12 + $0x600] sm:$0xff]
    %v4908 = vld [vmem:[#allocation12 + $0x608] sm:$0xff]
    %v4909 = vld [vmem:[#allocation12 + $0x610] sm:$0xff]
    %v4910 = vld [vmem:[#allocation12 + $0x618] sm:$0xf]
    %v4911 = vld [vmem:[#allocation12 + $0x61c] sm:$0xff]
    %v4912 = vld [vmem:[#allocation12 + $0x624] sm:$0xff]
    %v4913 = vld [vmem:[#allocation12 + $0x62c] sm:$0xff]
    %v4914 = vld [vmem:[#allocation12 + $0x634] sm:$0xff]
    %v4915 = vld [vmem:[#allocation12 + $0x63c] sm:$0xff]
    %v4916 = vld [vmem:[#allocation12 + $0x644] sm:$0xff]
    %v4917 = vld [vmem:[#allocation12 + $0x64c] sm:$0xff]
    %v4918 = vld [vmem:[#allocation12 + $0x654] sm:$0xff]
    %v4919 = vld [vmem:[#allocation12 + $0x65c] sm:$0xf]
    %v4920 = vld [vmem:[#allocation12 + $0x660] sm:$0xff]
    %v4921 = vld [vmem:[#allocation12 + $0x668] sm:$0xff]
    %v4922 = vld [vmem:[#allocation12 + $0x670] sm:$0xff]
    %v4923 = vld [vmem:[#allocation12 + $0x678] sm:$0xff]
    %v4924 = vld [vmem:[#allocation12 + $0x680] sm:$0xff]
    %v4925 = vld [vmem:[#allocation12 + $0x688] sm:$0xff]
    %v4926 = vld [vmem:[#allocation12 + $0x690] sm:$0xff]
    %v4927 = vld [vmem:[#allocation12 + $0x698] sm:$0xff]
    %v4928 = vld [vmem:[#allocation12 + $0x6a0] sm:$0xf]
    %v4929 = vld [vmem:[#allocation12 + $0x6a4] sm:$0xff]
    %v4930 = vld [vmem:[#allocation12 + $0x6ac] sm:$0xff]
    %v4931 = vld [vmem:[#allocation12 + $0x6b4] sm:$0xff]
    %v4932 = vld [vmem:[#allocation12 + $0x6bc] sm:$0xff]
    %v4933 = vld [vmem:[#allocation12 + $0x6c4] sm:$0xff]
    %v4934 = vld [vmem:[#allocation12 + $0x6cc] sm:$0xff]
    %v4935 = vld [vmem:[#allocation12 + $0x6d4] sm:$0xff]
    %v4936 = vld [vmem:[#allocation12 + $0x6dc] sm:$0xff]
    %v4937 = vld [vmem:[#allocation12 + $0x6e4] sm:$0xf]
    %v4938 = vld [vmem:[#allocation12 + $0x6e8] sm:$0xff]
    %v4939 = vld [vmem:[#allocation12 + $0x6f0] sm:$0xff]
    %v4940 = vld [vmem:[#allocation12 + $0x6f8] sm:$0xff]
    %v4941 = vld [vmem:[#allocation12 + $0x700] sm:$0xff]
    %v4942 = vld [vmem:[#allocation12 + $0x708] sm:$0xff]
    %v4943 = vld [vmem:[#allocation12 + $0x710] sm:$0xff]
    %v4944 = vld [vmem:[#allocation12 + $0x718] sm:$0xff]
    %v4945 = vld [vmem:[#allocation12 + $0x720] sm:$0xff]
    %v4946 = vld [vmem:[#allocation12 + $0x728] sm:$0xf]
    %v4947 = vld [vmem:[#allocation12 + $0x72c] sm:$0xff]
    %v4948 = vld [vmem:[#allocation12 + $0x734] sm:$0xff]
    %v4949 = vld [vmem:[#allocation12 + $0x73c] sm:$0xff]
    %v4950 = vld [vmem:[#allocation12 + $0x744] sm:$0xff]
    %v4951 = vld [vmem:[#allocation12 + $0x74c] sm:$0xff]
    %v4952 = vld [vmem:[#allocation12 + $0x754] sm:$0xff]
    %v4953 = vld [vmem:[#allocation12 + $0x75c] sm:$0xff]
    %v4954 = vld [vmem:[#allocation12 + $0x764] sm:$0xff]
    %v4955 = vld [vmem:[#allocation12 + $0x76c] sm:$0xf]
    %v4956 = vld [vmem:[#allocation12 + $0x770] sm:$0xff]
    %v4957 = vld [vmem:[#allocation12 + $0x778] sm:$0xff]
    %v4958 = vld [vmem:[#allocation12 + $0x780] sm:$0xff]
    %v4959 = vld [vmem:[#allocation12 + $0x788] sm:$0xff]
    %v4960 = vld [vmem:[#allocation12 + $0x790] sm:$0xff]
    %v4961 = vld [vmem:[#allocation12 + $0x798] sm:$0xff]
    %v4962 = vld [vmem:[#allocation12 + $0x7a0] sm:$0xff]
    %v4963 = vld [vmem:[#allocation12 + $0x7a8] sm:$0xff]
    %v4964 = vld [vmem:[#allocation12 + $0x7b0] sm:$0xf]
    %v4965 = vld [vmem:[#allocation12 + $0x7b4] sm:$0xff]
    %v4966 = vld [vmem:[#allocation12 + $0x7bc] sm:$0xff]
    %v4967 = vld [vmem:[#allocation12 + $0x7c4] sm:$0xff]
    %v4968 = vld [vmem:[#allocation12 + $0x7cc] sm:$0xff]
    %v4969 = vld [vmem:[#allocation12 + $0x7d4] sm:$0xff]
    %v4970 = vld [vmem:[#allocation12 + $0x7dc] sm:$0xff]
    %v4971 = vld [vmem:[#allocation12 + $0x7e4] sm:$0xff]
    %v4972 = vld [vmem:[#allocation12 + $0x7ec] sm:$0xff]
    %v4973 = vld [vmem:[#allocation12 + $0x7f4] sm:$0xf]
    %v4974 = vld [vmem:[#allocation12 + $0x7f8] sm:$0xff]
    %v4975 = vld [vmem:[#allocation12 + $0x800] sm:$0xff]
    %v4976 = vld [vmem:[#allocation12 + $0x808] sm:$0xff]
    %v4977 = vld [vmem:[#allocation12 + $0x810] sm:$0xff]
    %v4978 = vld [vmem:[#allocation12 + $0x818] sm:$0xff]
    %v4979 = vld [vmem:[#allocation12 + $0x820] sm:$0xff]
    %v4980 = vld [vmem:[#allocation12 + $0x828] sm:$0xff]
    %v4981 = vld [vmem:[#allocation12 + $0x830] sm:$0xff]
    %v4982 = vld [vmem:[#allocation12 + $0x838] sm:$0xf]
    %v4983 = vld [vmem:[#allocation12 + $0x83c] sm:$0xff]
    %v4984 = vld [vmem:[#allocation12 + $0x844] sm:$0xff]
    %v4985 = vld [vmem:[#allocation12 + $0x84c] sm:$0xff]
    %v4986 = vld [vmem:[#allocation12 + $0x854] sm:$0xff]
    %v4987 = vld [vmem:[#allocation12 + $0x85c] sm:$0xff]
    %v4988 = vld [vmem:[#allocation12 + $0x864] sm:$0xff]
    %v4989 = vld [vmem:[#allocation12 + $0x86c] sm:$0xff]
    %v4990 = vld [vmem:[#allocation12 + $0x874] sm:$0xff]
    %v4991 = vld [vmem:[#allocation12 + $0x87c] sm:$0xf]
    %v4992 = vld [vmem:[#allocation12 + $0x880] sm:$0xff]
    %v4993 = vld [vmem:[#allocation12 + $0x888] sm:$0xff]
    %v4994 = vld [vmem:[#allocation12 + $0x890] sm:$0xff]
    %v4995 = vld [vmem:[#allocation12 + $0x898] sm:$0xff]
    %v4996 = vld [vmem:[#allocation12 + $0x8a0] sm:$0xff]
    %v4997 = vld [vmem:[#allocation12 + $0x8a8] sm:$0xff]
    %v4998 = vld [vmem:[#allocation12 + $0x8b0] sm:$0xff]
    %v4999 = vld [vmem:[#allocation12 + $0x8b8] sm:$0xff]
    %v5000 = vld [vmem:[#allocation12 + $0x8c0] sm:$0xf]
    %v5001 = vld [vmem:[#allocation12 + $0x8c4] sm:$0xff]
    %v5002 = vld [vmem:[#allocation12 + $0x8cc] sm:$0xff]
    %v5003 = vld [vmem:[#allocation12 + $0x8d4] sm:$0xff]
    %v5004 = vld [vmem:[#allocation12 + $0x8dc] sm:$0xff]
    %v5005 = vld [vmem:[#allocation12 + $0x8e4] sm:$0xff]
    %v5006 = vld [vmem:[#allocation12 + $0x8ec] sm:$0xff]
    %v5007 = vld [vmem:[#allocation12 + $0x8f4] sm:$0xff]
    %v5008 = vld [vmem:[#allocation12 + $0x8fc] sm:$0xff]
    %v5009 = vld [vmem:[#allocation12 + $0x904] sm:$0xf]
    %v5010 = vld [vmem:[#allocation12 + $0x908] sm:$0xff]
    %v5011 = vld [vmem:[#allocation12 + $0x910] sm:$0xff]
    %v5012 = vld [vmem:[#allocation12 + $0x918] sm:$0xff]
    %v5013 = vld [vmem:[#allocation12 + $0x920] sm:$0xff]
    %v5014 = vld [vmem:[#allocation12 + $0x928] sm:$0xff]
    %v5015 = vld [vmem:[#allocation12 + $0x930] sm:$0xff]
    %v5016 = vld [vmem:[#allocation12 + $0x938] sm:$0xff]
    %v5017 = vld [vmem:[#allocation12 + $0x940] sm:$0xff]
    %v5018 = vld [vmem:[#allocation12 + $0x948] sm:$0xf]
    %v5019 = vld [vmem:[#allocation12 + $0x94c] sm:$0xff]
    %v5020 = vld [vmem:[#allocation12 + $0x954] sm:$0xff]
    %v5021 = vld [vmem:[#allocation12 + $0x95c] sm:$0xff]
    %v5022 = vld [vmem:[#allocation12 + $0x964] sm:$0xff]
    %v5023 = vld [vmem:[#allocation12 + $0x96c] sm:$0xff]
    %v5024 = vld [vmem:[#allocation12 + $0x974] sm:$0xff]
    %v5025 = vld [vmem:[#allocation12 + $0x97c] sm:$0xff]
    %v5026 = vld [vmem:[#allocation12 + $0x984] sm:$0xff]
    %v5027 = vld [vmem:[#allocation12 + $0x98c] sm:$0xf]
    %v5028 = vld [vmem:[#allocation12 + $0x990] sm:$0xff]
    %v5029 = vld [vmem:[#allocation12 + $0x998] sm:$0xff]
    %v5030 = vld [vmem:[#allocation12 + $0x9a0] sm:$0xff]
    %v5031 = vld [vmem:[#allocation12 + $0x9a8] sm:$0xff]
    %v5032 = vld [vmem:[#allocation12 + $0x9b0] sm:$0xff]
    %v5033 = vld [vmem:[#allocation12 + $0x9b8] sm:$0xff]
    %v5034 = vld [vmem:[#allocation12 + $0x9c0] sm:$0xff]
    %v5035 = vld [vmem:[#allocation12 + $0x9c8] sm:$0xff]
    %v5036 = vld [vmem:[#allocation12 + $0x9d0] sm:$0xf]
    %v5037 = vld [vmem:[#allocation12 + $0x9d4] sm:$0xff]
    %v5038 = vld [vmem:[#allocation12 + $0x9dc] sm:$0xff]
    %v5039 = vld [vmem:[#allocation12 + $0x9e4] sm:$0xff]
    %v5040 = vld [vmem:[#allocation12 + $0x9ec] sm:$0xff]
    %v5041 = vld [vmem:[#allocation12 + $0x9f4] sm:$0xff]
    %v5042 = vld [vmem:[#allocation12 + $0x9fc] sm:$0xff]
    %v5043 = vld [vmem:[#allocation12 + $0xa04] sm:$0xff]
    %v5044 = vld [vmem:[#allocation12 + $0xa0c] sm:$0xff]
    %v5045 = vld [vmem:[#allocation12 + $0xa14] sm:$0xf]
    %v5046 = vld [vmem:[#allocation12 + $0xa18] sm:$0xff]
    %v5047 = vld [vmem:[#allocation12 + $0xa20] sm:$0xff]
    %v5048 = vld [vmem:[#allocation12 + $0xa28] sm:$0xff]
    %v5049 = vld [vmem:[#allocation12 + $0xa30] sm:$0xff]
    %v5050 = vld [vmem:[#allocation12 + $0xa38] sm:$0xff]
    %v5051 = vld [vmem:[#allocation12 + $0xa40] sm:$0xff]
    %v5052 = vld [vmem:[#allocation12 + $0xa48] sm:$0xff]
    %v5053 = vld [vmem:[#allocation12 + $0xa50] sm:$0xff]
    %v5054 = vld [vmem:[#allocation12 + $0xa58] sm:$0xf]
    %v5055 = vld [vmem:[#allocation12 + $0xa5c] sm:$0xff]
    %v5056 = vld [vmem:[#allocation12 + $0xa64] sm:$0xff]
    %v5057 = vld [vmem:[#allocation12 + $0xa6c] sm:$0xff]
    %v5058 = vld [vmem:[#allocation12 + $0xa74] sm:$0xff]
    %v5059 = vld [vmem:[#allocation12 + $0xa7c] sm:$0xff]
    %v5060 = vld [vmem:[#allocation12 + $0xa84] sm:$0xff]
    %v5061 = vld [vmem:[#allocation12 + $0xa8c] sm:$0xff]
    %v5062 = vld [vmem:[#allocation12 + $0xa94] sm:$0xff]
    %v5063 = vld [vmem:[#allocation12 + $0xa9c] sm:$0xf]
    %v5064 = vld [vmem:[#allocation12 + $0xaa0] sm:$0xff]
    %v5065 = vld [vmem:[#allocation12 + $0xaa8] sm:$0xff]
    %v5066 = vld [vmem:[#allocation12 + $0xab0] sm:$0xff]
    %v5067 = vld [vmem:[#allocation12 + $0xab8] sm:$0xff]
    %v5068 = vld [vmem:[#allocation12 + $0xac0] sm:$0xff]
    %v5069 = vld [vmem:[#allocation12 + $0xac8] sm:$0xff]
    %v5070 = vld [vmem:[#allocation12 + $0xad0] sm:$0xff]
    %v5071 = vld [vmem:[#allocation12 + $0xad8] sm:$0xff]
    %v5072 = vld [vmem:[#allocation12 + $0xae0] sm:$0xf]
    %v5073 = vld [vmem:[#allocation12 + $0xae4] sm:$0xff]
    %v5074 = vld [vmem:[#allocation12 + $0xaec] sm:$0xff]
    %v5075 = vld [vmem:[#allocation12 + $0xaf4] sm:$0xff]
    %v5076 = vld [vmem:[#allocation12 + $0xafc] sm:$0xff]
    %v5077 = vld [vmem:[#allocation12 + $0xb04] sm:$0xff]
    %v5078 = vld [vmem:[#allocation12 + $0xb0c] sm:$0xff]
    %v5079 = vld [vmem:[#allocation12 + $0xb14] sm:$0xff]
    %v5080 = vld [vmem:[#allocation12 + $0xb1c] sm:$0xff]
    %v5081 = vld [vmem:[#allocation12 + $0xb24] sm:$0xf]
    %v5082 = vld [vmem:[#allocation12 + $0xb28] sm:$0xff]
    %v5083 = vld [vmem:[#allocation12 + $0xb30] sm:$0xff]
    %v5084 = vld [vmem:[#allocation12 + $0xb38] sm:$0xff]
    %v5085 = vld [vmem:[#allocation12 + $0xb40] sm:$0xff]
    %v5086 = vld [vmem:[#allocation12 + $0xb48] sm:$0xff]
    %v5087 = vld [vmem:[#allocation12 + $0xb50] sm:$0xff]
    %v5088 = vld [vmem:[#allocation12 + $0xb58] sm:$0xff]
    %v5089 = vld [vmem:[#allocation12 + $0xb60] sm:$0xff]
    %v5090 = vld [vmem:[#allocation12 + $0xb68] sm:$0xf]
    %v5091 = vld [vmem:[#allocation12 + $0xb6c] sm:$0xff]
    %v5092 = vld [vmem:[#allocation12 + $0xb74] sm:$0xff]
    %v5093 = vld [vmem:[#allocation12 + $0xb7c] sm:$0xff]
    %v5094 = vld [vmem:[#allocation12 + $0xb84] sm:$0xff]
    %v5095 = vld [vmem:[#allocation12 + $0xb8c] sm:$0xff]
    %v5096 = vld [vmem:[#allocation12 + $0xb94] sm:$0xff]
    %v5097 = vld [vmem:[#allocation12 + $0xb9c] sm:$0xff]
    %v5098 = vld [vmem:[#allocation12 + $0xba4] sm:$0xff]
    %v5099 = vld [vmem:[#allocation12 + $0xbac] sm:$0xf]
    %v5100 = vld [vmem:[#allocation12 + $0xbb0] sm:$0xff]
    %v5101 = vld [vmem:[#allocation12 + $0xbb8] sm:$0xff]
    %v5102 = vld [vmem:[#allocation12 + $0xbc0] sm:$0xff]
    %v5103 = vld [vmem:[#allocation12 + $0xbc8] sm:$0xff]
    %v5104 = vld [vmem:[#allocation12 + $0xbd0] sm:$0xff]
    %v5105 = vld [vmem:[#allocation12 + $0xbd8] sm:$0xff]
    %v5106 = vld [vmem:[#allocation12 + $0xbe0] sm:$0xff]
    %v5107 = vld [vmem:[#allocation12 + $0xbe8] sm:$0xff]
    %v5108 = vld [vmem:[#allocation12 + $0xbf0] sm:$0xf]
    %v5109 = vld [vmem:[#allocation12 + $0xbf4] sm:$0xff]
    %v5110 = vld [vmem:[#allocation12 + $0xbfc] sm:$0xff]
    %v5111 = vld [vmem:[#allocation12 + $0xc04] sm:$0xff]
    %v5112 = vld [vmem:[#allocation12 + $0xc0c] sm:$0xff]
    %v5113 = vld [vmem:[#allocation12 + $0xc14] sm:$0xff]
    %v5114 = vld [vmem:[#allocation12 + $0xc1c] sm:$0xff]
    %v5115 = vld [vmem:[#allocation12 + $0xc24] sm:$0xff]
    %v5116 = vld [vmem:[#allocation12 + $0xc2c] sm:$0xff]
    %v5117 = vld [vmem:[#allocation12 + $0xc34] sm:$0xf]
    %v5118 = vld [vmem:[#allocation12 + $0xc38] sm:$0xff]
    %v5119 = vld [vmem:[#allocation12 + $0xc40] sm:$0xff]
    %v5120 = vld [vmem:[#allocation12 + $0xc48] sm:$0xff]
    %v5121 = vld [vmem:[#allocation12 + $0xc50] sm:$0xff]
    %v5122 = vld [vmem:[#allocation12 + $0xc58] sm:$0xff]
    %v5123 = vld [vmem:[#allocation12 + $0xc60] sm:$0xff]
    %v5124 = vld [vmem:[#allocation12 + $0xc68] sm:$0xff]
    %v5125 = vld [vmem:[#allocation12 + $0xc70] sm:$0xff]
    %v5126 = vld [vmem:[#allocation12 + $0xc78] sm:$0xf]
    %v5127 = vld [vmem:[#allocation12 + $0xc7c] sm:$0xff]
    %v5128 = vld [vmem:[#allocation12 + $0xc84] sm:$0xff]
    %v5129 = vld [vmem:[#allocation12 + $0xc8c] sm:$0xff]
    %v5130 = vld [vmem:[#allocation12 + $0xc94] sm:$0xff]
    %v5131 = vld [vmem:[#allocation12 + $0xc9c] sm:$0xff]
    %v5132 = vld [vmem:[#allocation12 + $0xca4] sm:$0xff]
    %v5133 = vld [vmem:[#allocation12 + $0xcac] sm:$0xff]
    %v5134 = vld [vmem:[#allocation12 + $0xcb4] sm:$0xff]
    %v5135 = vld [vmem:[#allocation12 + $0xcbc] sm:$0xf]
    %v5136 = vld [vmem:[#allocation12 + $0xcc0] sm:$0xff]
    %v5137 = vld [vmem:[#allocation12 + $0xcc8] sm:$0xff]
    %v5138 = vld [vmem:[#allocation12 + $0xcd0] sm:$0xff]
    %v5139 = vld [vmem:[#allocation12 + $0xcd8] sm:$0xff]
    %v5140 = vld [vmem:[#allocation12 + $0xce0] sm:$0xff]
    %v5141 = vld [vmem:[#allocation12 + $0xce8] sm:$0xff]
    %v5142 = vld [vmem:[#allocation12 + $0xcf0] sm:$0xff]
    %v5143 = vld [vmem:[#allocation12 + $0xcf8] sm:$0xff]
    %v5144 = vld [vmem:[#allocation12 + $0xd00] sm:$0xf]
    %v5145 = vld [vmem:[#allocation12 + $0xd04] sm:$0xff]
    %v5146 = vld [vmem:[#allocation12 + $0xd0c] sm:$0xff]
    %v5147 = vld [vmem:[#allocation12 + $0xd14] sm:$0xff]
    %v5148 = vld [vmem:[#allocation12 + $0xd1c] sm:$0xff]
    %v5149 = vld [vmem:[#allocation12 + $0xd24] sm:$0xff]
    %v5150 = vld [vmem:[#allocation12 + $0xd2c] sm:$0xff]
    %v5151 = vld [vmem:[#allocation12 + $0xd34] sm:$0xff]
    %v5152 = vld [vmem:[#allocation12 + $0xd3c] sm:$0xff]
    %v5153 = vld [vmem:[#allocation12 + $0xd44] sm:$0xf]
    %v5154 = vld [vmem:[#allocation12 + $0xd48] sm:$0xff]
    %v5155 = vld [vmem:[#allocation12 + $0xd50] sm:$0xff]
    %v5156 = vld [vmem:[#allocation12 + $0xd58] sm:$0xff]
    %v5157 = vld [vmem:[#allocation12 + $0xd60] sm:$0xff]
    %v5158 = vld [vmem:[#allocation12 + $0xd68] sm:$0xff]
    %v5159 = vld [vmem:[#allocation12 + $0xd70] sm:$0xff]
    %v5160 = vld [vmem:[#allocation12 + $0xd78] sm:$0xff]
    %v5161 = vld [vmem:[#allocation12 + $0xd80] sm:$0xff]
    %v5162 = vld [vmem:[#allocation12 + $0xd88] sm:$0xf]
    %v5163 = vld [vmem:[#allocation12 + $0xd8c] sm:$0xff]
    %v5164 = vld [vmem:[#allocation12 + $0xd94] sm:$0xff]
    %v5165 = vld [vmem:[#allocation12 + $0xd9c] sm:$0xff]
    %v5166 = vld [vmem:[#allocation12 + $0xda4] sm:$0xff]
    %v5167 = vld [vmem:[#allocation12 + $0xdac] sm:$0xff]
    %v5168 = vld [vmem:[#allocation12 + $0xdb4] sm:$0xff]
    %v5169 = vld [vmem:[#allocation12 + $0xdbc] sm:$0xff]
    %v5170 = vld [vmem:[#allocation12 + $0xdc4] sm:$0xff]
    %v5171 = vld [vmem:[#allocation12 + $0xdcc] sm:$0xf]
    %v5172 = vld [vmem:[#allocation12 + $0xdd0] sm:$0xff]
    %v5173 = vld [vmem:[#allocation12 + $0xdd8] sm:$0xff]
    %v5174 = vld [vmem:[#allocation12 + $0xde0] sm:$0xff]
    %v5175 = vld [vmem:[#allocation12 + $0xde8] sm:$0xff]
    %v5176 = vld [vmem:[#allocation12 + $0xdf0] sm:$0xff]
    %v5177 = vld [vmem:[#allocation12 + $0xdf8] sm:$0xff]
    %v5178 = vld [vmem:[#allocation12 + $0xe00] sm:$0xff]
    %v5179 = vld [vmem:[#allocation12 + $0xe08] sm:$0xff]
    %v5180 = vld [vmem:[#allocation12 + $0xe10] sm:$0xf]
    %v5181 = vld [vmem:[#allocation12 + $0xe14] sm:$0xff]
    %v5182 = vld [vmem:[#allocation12 + $0xe1c] sm:$0xff]
    %v5183 = vld [vmem:[#allocation12 + $0xe24] sm:$0xff]
    %v5184 = vld [vmem:[#allocation12 + $0xe2c] sm:$0xff]
    %v5185 = vld [vmem:[#allocation12 + $0xe34] sm:$0xff]
    %v5186 = vld [vmem:[#allocation12 + $0xe3c] sm:$0xff]
    %v5187 = vld [vmem:[#allocation12 + $0xe44] sm:$0xff]
    %v5188 = vld [vmem:[#allocation12 + $0xe4c] sm:$0xff]
    %v5189 = vld [vmem:[#allocation12 + $0xe54] sm:$0xf]
    %v5190 = vld [vmem:[#allocation12 + $0xe58] sm:$0xff]
    %v5191 = vld [vmem:[#allocation12 + $0xe60] sm:$0xff]
    %v5192 = vld [vmem:[#allocation12 + $0xe68] sm:$0xff]
    %v5193 = vld [vmem:[#allocation12 + $0xe70] sm:$0xff]
    %v5194 = vld [vmem:[#allocation12 + $0xe78] sm:$0xff]
    %v5195 = vld [vmem:[#allocation12 + $0xe80] sm:$0xff]
    %v5196 = vld [vmem:[#allocation12 + $0xe88] sm:$0xff]
    %v5197 = vld [vmem:[#allocation12 + $0xe90] sm:$0xff]
    %v5198 = vld [vmem:[#allocation12 + $0xe98] sm:$0xf]
    %v5199 = vld [vmem:[#allocation12 + $0xe9c] sm:$0xff]
    %v5200 = vld [vmem:[#allocation12 + $0xea4] sm:$0xff]
    %v5201 = vld [vmem:[#allocation12 + $0xeac] sm:$0xff]
    %v5202 = vld [vmem:[#allocation12 + $0xeb4] sm:$0xff]
    %v5203 = vld [vmem:[#allocation12 + $0xebc] sm:$0xff]
    %v5204 = vld [vmem:[#allocation12 + $0xec4] sm:$0xff]
    %v5205 = vld [vmem:[#allocation12 + $0xecc] sm:$0xff]
    %v5206 = vld [vmem:[#allocation12 + $0xed4] sm:$0xff]
    %v5207 = vld [vmem:[#allocation12 + $0xedc] sm:$0xf]
    %v5208 = vld [vmem:[#allocation12 + $0xee0] sm:$0xff]
    %v5209 = vld [vmem:[#allocation12 + $0xee8] sm:$0xff]
    %v5210 = vld [vmem:[#allocation12 + $0xef0] sm:$0xff]
    %v5211 = vld [vmem:[#allocation12 + $0xef8] sm:$0xff]
    %v5212 = vld [vmem:[#allocation12 + $0xf00] sm:$0xff]
    %v5213 = vld [vmem:[#allocation12 + $0xf08] sm:$0xff]
    %v5214 = vld [vmem:[#allocation12 + $0xf10] sm:$0xff]
    %v5215 = vld [vmem:[#allocation12 + $0xf18] sm:$0xff]
    %v5216 = vld [vmem:[#allocation12 + $0xf20] sm:$0xf]
    %v5217 = vld [vmem:[#allocation12 + $0xf24] sm:$0xff]
    %v5218 = vld [vmem:[#allocation12 + $0xf2c] sm:$0xff]
    %v5219 = vld [vmem:[#allocation12 + $0xf34] sm:$0xff]
    %v5220 = vld [vmem:[#allocation12 + $0xf3c] sm:$0xff]
    %v5221 = vld [vmem:[#allocation12 + $0xf44] sm:$0xff]
    %v5222 = vld [vmem:[#allocation12 + $0xf4c] sm:$0xff]
    %v5223 = vld [vmem:[#allocation12 + $0xf54] sm:$0xff]
    %v5224 = vld [vmem:[#allocation12 + $0xf5c] sm:$0xff]
    %v5225 = vld [vmem:[#allocation12 + $0xf64] sm:$0xf]
    %v5226 = vld [vmem:[#allocation12 + $0xf68] sm:$0xff]
    %v5227 = vld [vmem:[#allocation12 + $0xf70] sm:$0xff]
    %v5228 = vld [vmem:[#allocation12 + $0xf78] sm:$0xff]
    %v5229 = vld [vmem:[#allocation12 + $0xf80] sm:$0xff]
    %v5230 = vld [vmem:[#allocation12 + $0xf88] sm:$0xff]
    %v5231 = vld [vmem:[#allocation12 + $0xf90] sm:$0xff]
    %v5232 = vld [vmem:[#allocation12 + $0xf98] sm:$0xff]
    %v5233 = vld [vmem:[#allocation12 + $0xfa0] sm:$0xff]
    %v5234 = vld [vmem:[#allocation12 + $0xfa8] sm:$0xf]
    %v5235 = vld [vmem:[#allocation12 + $0xfac] sm:$0xff]
    %v5236 = vld [vmem:[#allocation12 + $0xfb4] sm:$0xff]
    %v5237 = vld [vmem:[#allocation12 + $0xfbc] sm:$0xff]
    %v5238 = vld [vmem:[#allocation12 + $0xfc4] sm:$0xff]
    %v5239 = vld [vmem:[#allocation12 + $0xfcc] sm:$0xff]
    %v5240 = vld [vmem:[#allocation12 + $0xfd4] sm:$0xff]
    %v5241 = vld [vmem:[#allocation12 + $0xfdc] sm:$0xff]
    %v5242 = vld [vmem:[#allocation12 + $0xfe4] sm:$0xff]
    %v5243 = vld [vmem:[#allocation12 + $0xfec] sm:$0xf]
    %v5244 = vld [vmem:[#allocation12 + $0xff0] sm:$0xff]
    %v5245 = vld [vmem:[#allocation12 + $0xff8] sm:$0xff]
    %v5246 = vld [vmem:[#allocation12 + $0x1000] sm:$0xff]
    %v5247 = vld [vmem:[#allocation12 + $0x1008] sm:$0xff]
    %v5248 = vld [vmem:[#allocation12 + $0x1010] sm:$0xff]
    %v5249 = vld [vmem:[#allocation12 + $0x1018] sm:$0xff]
    %v5250 = vld [vmem:[#allocation12 + $0x1020] sm:$0xff]
    %v5251 = vld [vmem:[#allocation12 + $0x1028] sm:$0xff]
    %v5252 = vld [vmem:[#allocation12 + $0x1030] sm:$0xf]
    %v5253 = vld [vmem:[#allocation12 + $0x1034] sm:$0xff]
    %v5254 = vld [vmem:[#allocation12 + $0x103c] sm:$0xff]
    %v5255 = vld [vmem:[#allocation12 + $0x1044] sm:$0xff]
    %v5256 = vld [vmem:[#allocation12 + $0x104c] sm:$0xff]
    %v5257 = vld [vmem:[#allocation12 + $0x1054] sm:$0xff]
    %v5258 = vld [vmem:[#allocation12 + $0x105c] sm:$0xff]
    %v5259 = vld [vmem:[#allocation12 + $0x1064] sm:$0xff]
    %v5260 = vld [vmem:[#allocation12 + $0x106c] sm:$0xff]
    %v5261 = vld [vmem:[#allocation12 + $0x1074] sm:$0xf]
    %v5262 = vld [vmem:[#allocation12 + $0x1078] sm:$0xff]
    %v5263 = vld [vmem:[#allocation12 + $0x1080] sm:$0xff]
    %v5264 = vld [vmem:[#allocation12 + $0x1088] sm:$0xff]
    %v5265 = vld [vmem:[#allocation12 + $0x1090] sm:$0xff]
    %v5266 = vld [vmem:[#allocation12 + $0x1098] sm:$0xff]
    %v5267 = vld [vmem:[#allocation12 + $0x10a0] sm:$0xff]
    %v5268 = vld [vmem:[#allocation12 + $0x10a8] sm:$0xff]
    %v5269 = vld [vmem:[#allocation12 + $0x10b0] sm:$0xff]
    %v5270 = vld [vmem:[#allocation12 + $0x10b8] sm:$0xf]
    %v5271 = vld [vmem:[#allocation12 + $0x10bc] sm:$0xff]
    %v5272 = vld [vmem:[#allocation12 + $0x10c4] sm:$0xff]
    %v5273 = vld [vmem:[#allocation12 + $0x10cc] sm:$0xff]
    %v5274 = vld [vmem:[#allocation12 + $0x10d4] sm:$0xff]
    %v5275 = vld [vmem:[#allocation12 + $0x10dc] sm:$0xff]
    %v5276 = vld [vmem:[#allocation12 + $0x10e4] sm:$0xff]
    %v5277 = vld [vmem:[#allocation12 + $0x10ec] sm:$0xff]
    %v5278 = vld [vmem:[#allocation12 + $0x10f4] sm:$0xff]
    %v5279 = vld [vmem:[#allocation12 + $0x10fc] sm:$0xf]
    %v5280 = vld [vmem:[#allocation13] sm:$0xff]
    %v5281 = vld [vmem:[#allocation13 + $0x8] sm:$0xff]
    %v5282 = vld [vmem:[#allocation13 + $0x10] sm:$0x1]
    %v5286 = vperm.slane %v5280, 0
    %v5287 = vperm.slane %v5280, 1
    %v5288 = vperm.slane %v5280, 2
    %v5289 = vperm.slane %v5280, 3
    %v5290 = vperm.slane %v5280, 4
    %v5291 = vperm.slane %v5280, 5
    %v5292 = vperm.slane %v5280, 6
    %v5293 = vperm.slane %v5280, 7
    %v5294 = vperm.slane %v5281, 0
    %v5295 = vperm.slane %v5281, 1
    %v5296 = vperm.slane %v5281, 2
    %v5297 = vperm.slane %v5281, 3
    %v5298 = vperm.slane %v5281, 4
    %v5299 = vperm.slane %v5281, 5
    %v5300 = vperm.slane %v5281, 6
    %v5301 = vperm.slane %v5281, 7
    %v5302 = vperm.slane %v5282, 0
    %v5896 = vunpack.c.l.b16 %v4704
    %v5897 = vunpack.c.h.b16 %v4704
    %v5898 = vunpack.c.l.b16 %v4705
    %v5899 = vunpack.c.h.b16 %v4705
    %v5900 = vunpack.c.l.b16 %v4706
    %v5901 = vunpack.c.h.b16 %v4706
    %v5902 = vunpack.c.l.b16 %v4707
    %v5903 = vunpack.c.h.b16 %v4707
    %v5904 = vunpack.c.l.b16 %v4708
    %v5905 = vunpack.c.h.b16 %v4708
    %v5906 = vunpack.c.l.b16 %v4709
    %v5907 = vunpack.c.h.b16 %v4709
    %v5908 = vunpack.c.l.b16 %v4710
    %v5909 = vunpack.c.h.b16 %v4710
    %v5910 = vunpack.c.l.b16 %v4711
    %v5911 = vunpack.c.h.b16 %v4711
    %v5912 = vunpack.c.l.b16 %v4712
    %v5913 = vunpack.c.l.b16 %v4713
    %v5914 = vunpack.c.h.b16 %v4713
    %v5915 = vunpack.c.l.b16 %v4714
    %v5916 = vunpack.c.h.b16 %v4714
    %v5917 = vunpack.c.l.b16 %v4715
    %v5918 = vunpack.c.h.b16 %v4715
    %v5919 = vunpack.c.l.b16 %v4716
    %v5920 = vunpack.c.h.b16 %v4716
    %v5921 = vunpack.c.l.b16 %v4717
    %v5922 = vunpack.c.h.b16 %v4717
    %v5923 = vunpack.c.l.b16 %v4718
    %v5924 = vunpack.c.h.b16 %v4718
    %v5925 = vunpack.c.l.b16 %v4719
    %v5926 = vunpack.c.h.b16 %v4719
    %v5927 = vunpack.c.l.b16 %v4720
    %v5928 = vunpack.c.h.b16 %v4720
    %v5929 = vunpack.c.l.b16 %v4721
    %v5930 = vunpack.c.l.b16 %v4722
    %v5931 = vunpack.c.h.b16 %v4722
    %v5932 = vunpack.c.l.b16 %v4723
    %v5933 = vunpack.c.h.b16 %v4723
    %v5934 = vunpack.c.l.b16 %v4724
    %v5935 = vunpack.c.h.b16 %v4724
    %v5936 = vunpack.c.l.b16 %v4725
    %v5937 = vunpack.c.h.b16 %v4725
    %v5938 = vunpack.c.l.b16 %v4726
    %v5939 = vunpack.c.h.b16 %v4726
    %v5940 = vunpack.c.l.b16 %v4727
    %v5941 = vunpack.c.h.b16 %v4727
    %v5942 = vunpack.c.l.b16 %v4728
    %v5943 = vunpack.c.h.b16 %v4728
    %v5944 = vunpack.c.l.b16 %v4729
    %v5945 = vunpack.c.h.b16 %v4729
    %v5946 = vunpack.c.l.b16 %v4730
    %v5947 = vunpack.c.l.b16 %v4731
    %v5948 = vunpack.c.h.b16 %v4731
    %v5949 = vunpack.c.l.b16 %v4732
    %v5950 = vunpack.c.h.b16 %v4732
    %v5951 = vunpack.c.l.b16 %v4733
    %v5952 = vunpack.c.h.b16 %v4733
    %v5953 = vunpack.c.l.b16 %v4734
    %v5954 = vunpack.c.h.b16 %v4734
    %v5955 = vunpack.c.l.b16 %v4735
    %v5956 = vunpack.c.h.b16 %v4735
    %v5957 = vunpack.c.l.b16 %v4736
    %v5958 = vunpack.c.h.b16 %v4736
    %v5959 = vunpack.c.l.b16 %v4737
    %v5960 = vunpack.c.h.b16 %v4737
    %v5961 = vunpack.c.l.b16 %v4738
    %v5962 = vunpack.c.h.b16 %v4738
    %v5963 = vunpack.c.l.b16 %v4739
    %v5964 = vunpack.c.l.b16 %v4740
    %v5965 = vunpack.c.h.b16 %v4740
    %v5966 = vunpack.c.l.b16 %v4741
    %v5967 = vunpack.c.h.b16 %v4741
    %v5968 = vunpack.c.l.b16 %v4742
    %v5969 = vunpack.c.h.b16 %v4742
    %v5970 = vunpack.c.l.b16 %v4743
    %v5971 = vunpack.c.h.b16 %v4743
    %v5972 = vunpack.c.l.b16 %v4744
    %v5973 = vunpack.c.h.b16 %v4744
    %v5974 = vunpack.c.l.b16 %v4745
    %v5975 = vunpack.c.h.b16 %v4745
    %v5976 = vunpack.c.l.b16 %v4746
    %v5977 = vunpack.c.h.b16 %v4746
    %v5978 = vunpack.c.l.b16 %v4747
    %v5979 = vunpack.c.h.b16 %v4747
    %v5980 = vunpack.c.l.b16 %v4748
    %v5981 = vunpack.c.l.b16 %v4749
    %v5982 = vunpack.c.h.b16 %v4749
    %v5983 = vunpack.c.l.b16 %v4750
    %v5984 = vunpack.c.h.b16 %v4750
    %v5985 = vunpack.c.l.b16 %v4751
    %v5986 = vunpack.c.h.b16 %v4751
    %v5987 = vunpack.c.l.b16 %v4752
    %v5988 = vunpack.c.h.b16 %v4752
    %v5989 = vunpack.c.l.b16 %v4753
    %v5990 = vunpack.c.h.b16 %v4753
    %v5991 = vunpack.c.l.b16 %v4754
    %v5992 = vunpack.c.h.b16 %v4754
    %v5993 = vunpack.c.l.b16 %v4755
    %v5994 = vunpack.c.h.b16 %v4755
    %v5995 = vunpack.c.l.b16 %v4756
    %v5996 = vunpack.c.h.b16 %v4756
    %v5997 = vunpack.c.l.b16 %v4757
    %v5998 = vunpack.c.l.b16 %v4758
    %v5999 = vunpack.c.h.b16 %v4758
    %v6000 = vunpack.c.l.b16 %v4759
    %v6001 = vunpack.c.h.b16 %v4759
    %v6002 = vunpack.c.l.b16 %v4760
    %v6003 = vunpack.c.h.b16 %v4760
    %v6004 = vunpack.c.l.b16 %v4761
    %v6005 = vunpack.c.h.b16 %v4761
    %v6006 = vunpack.c.l.b16 %v4762
    %v6007 = vunpack.c.h.b16 %v4762
    %v6008 = vunpack.c.l.b16 %v4763
    %v6009 = vunpack.c.h.b16 %v4763
    %v6010 = vunpack.c.l.b16 %v4764
    %v6011 = vunpack.c.h.b16 %v4764
    %v6012 = vunpack.c.l.b16 %v4765
    %v6013 = vunpack.c.h.b16 %v4765
    %v6014 = vunpack.c.l.b16 %v4766
    %v6015 = vunpack.c.l.b16 %v4767
    %v6016 = vunpack.c.h.b16 %v4767
    %v6017 = vunpack.c.l.b16 %v4768
    %v6018 = vunpack.c.h.b16 %v4768
    %v6019 = vunpack.c.l.b16 %v4769
    %v6020 = vunpack.c.h.b16 %v4769
    %v6021 = vunpack.c.l.b16 %v4770
    %v6022 = vunpack.c.h.b16 %v4770
    %v6023 = vunpack.c.l.b16 %v4771
    %v6024 = vunpack.c.h.b16 %v4771
    %v6025 = vunpack.c.l.b16 %v4772
    %v6026 = vunpack.c.h.b16 %v4772
    %v6027 = vunpack.c.l.b16 %v4773
    %v6028 = vunpack.c.h.b16 %v4773
    %v6029 = vunpack.c.l.b16 %v4774
    %v6030 = vunpack.c.h.b16 %v4774
    %v6031 = vunpack.c.l.b16 %v4775
    %v6032 = vunpack.c.l.b16 %v4776
    %v6033 = vunpack.c.h.b16 %v4776
    %v6034 = vunpack.c.l.b16 %v4777
    %v6035 = vunpack.c.h.b16 %v4777
    %v6036 = vunpack.c.l.b16 %v4778
    %v6037 = vunpack.c.h.b16 %v4778
    %v6038 = vunpack.c.l.b16 %v4779
    %v6039 = vunpack.c.h.b16 %v4779
    %v6040 = vunpack.c.l.b16 %v4780
    %v6041 = vunpack.c.h.b16 %v4780
    %v6042 = vunpack.c.l.b16 %v4781
    %v6043 = vunpack.c.h.b16 %v4781
    %v6044 = vunpack.c.l.b16 %v4782
    %v6045 = vunpack.c.h.b16 %v4782
    %v6046 = vunpack.c.l.b16 %v4783
    %v6047 = vunpack.c.h.b16 %v4783
    %v6048 = vunpack.c.l.b16 %v4784
    %v6049 = vunpack.c.l.b16 %v4785
    %v6050 = vunpack.c.h.b16 %v4785
    %v6051 = vunpack.c.l.b16 %v4786
    %v6052 = vunpack.c.h.b16 %v4786
    %v6053 = vunpack.c.l.b16 %v4787
    %v6054 = vunpack.c.h.b16 %v4787
    %v6055 = vunpack.c.l.b16 %v4788
    %v6056 = vunpack.c.h.b16 %v4788
    %v6057 = vunpack.c.l.b16 %v4789
    %v6058 = vunpack.c.h.b16 %v4789
    %v6059 = vunpack.c.l.b16 %v4790
    %v6060 = vunpack.c.h.b16 %v4790
    %v6061 = vunpack.c.l.b16 %v4791
    %v6062 = vunpack.c.h.b16 %v4791
    %v6063 = vunpack.c.l.b16 %v4792
    %v6064 = vunpack.c.h.b16 %v4792
    %v6065 = vunpack.c.l.b16 %v4793
    %v6066 = vunpack.c.l.b16 %v4794
    %v6067 = vunpack.c.h.b16 %v4794
    %v6068 = vunpack.c.l.b16 %v4795
    %v6069 = vunpack.c.h.b16 %v4795
    %v6070 = vunpack.c.l.b16 %v4796
    %v6071 = vunpack.c.h.b16 %v4796
    %v6072 = vunpack.c.l.b16 %v4797
    %v6073 = vunpack.c.h.b16 %v4797
    %v6074 = vunpack.c.l.b16 %v4798
    %v6075 = vunpack.c.h.b16 %v4798
    %v6076 = vunpack.c.l.b16 %v4799
    %v6077 = vunpack.c.h.b16 %v4799
    %v6078 = vunpack.c.l.b16 %v4800
    %v6079 = vunpack.c.h.b16 %v4800
    %v6080 = vunpack.c.l.b16 %v4801
    %v6081 = vunpack.c.h.b16 %v4801
    %v6082 = vunpack.c.l.b16 %v4802
    %v6083 = vunpack.c.l.b16 %v4803
    %v6084 = vunpack.c.h.b16 %v4803
    %v6085 = vunpack.c.l.b16 %v4804
    %v6086 = vunpack.c.h.b16 %v4804
    %v6087 = vunpack.c.l.b16 %v4805
    %v6088 = vunpack.c.h.b16 %v4805
    %v6089 = vunpack.c.l.b16 %v4806
    %v6090 = vunpack.c.h.b16 %v4806
    %v6091 = vunpack.c.l.b16 %v4807
    %v6092 = vunpack.c.h.b16 %v4807
    %v6093 = vunpack.c.l.b16 %v4808
    %v6094 = vunpack.c.h.b16 %v4808
    %v6095 = vunpack.c.l.b16 %v4809
    %v6096 = vunpack.c.h.b16 %v4809
    %v6097 = vunpack.c.l.b16 %v4810
    %v6098 = vunpack.c.h.b16 %v4810
    %v6099 = vunpack.c.l.b16 %v4811
    %v6100 = vunpack.c.l.b16 %v4812
    %v6101 = vunpack.c.h.b16 %v4812
    %v6102 = vunpack.c.l.b16 %v4813
    %v6103 = vunpack.c.h.b16 %v4813
    %v6104 = vunpack.c.l.b16 %v4814
    %v6105 = vunpack.c.h.b16 %v4814
    %v6106 = vunpack.c.l.b16 %v4815
    %v6107 = vunpack.c.h.b16 %v4815
    %v6108 = vunpack.c.l.b16 %v4816
    %v6109 = vunpack.c.h.b16 %v4816
    %v6110 = vunpack.c.l.b16 %v4817
    %v6111 = vunpack.c.h.b16 %v4817
    %v6112 = vunpack.c.l.b16 %v4818
    %v6113 = vunpack.c.h.b16 %v4818
    %v6114 = vunpack.c.l.b16 %v4819
    %v6115 = vunpack.c.h.b16 %v4819
    %v6116 = vunpack.c.l.b16 %v4820
    %v6117 = vunpack.c.l.b16 %v4821
    %v6118 = vunpack.c.h.b16 %v4821
    %v6119 = vunpack.c.l.b16 %v4822
    %v6120 = vunpack.c.h.b16 %v4822
    %v6121 = vunpack.c.l.b16 %v4823
    %v6122 = vunpack.c.h.b16 %v4823
    %v6123 = vunpack.c.l.b16 %v4824
    %v6124 = vunpack.c.h.b16 %v4824
    %v6125 = vunpack.c.l.b16 %v4825
    %v6126 = vunpack.c.h.b16 %v4825
    %v6127 = vunpack.c.l.b16 %v4826
    %v6128 = vunpack.c.h.b16 %v4826
    %v6129 = vunpack.c.l.b16 %v4827
    %v6130 = vunpack.c.h.b16 %v4827
    %v6131 = vunpack.c.l.b16 %v4828
    %v6132 = vunpack.c.h.b16 %v4828
    %v6133 = vunpack.c.l.b16 %v4829
    %v6134 = vunpack.c.l.b16 %v4830
    %v6135 = vunpack.c.h.b16 %v4830
    %v6136 = vunpack.c.l.b16 %v4831
    %v6137 = vunpack.c.h.b16 %v4831
    %v6138 = vunpack.c.l.b16 %v4832
    %v6139 = vunpack.c.h.b16 %v4832
    %v6140 = vunpack.c.l.b16 %v4833
    %v6141 = vunpack.c.h.b16 %v4833
    %v6142 = vunpack.c.l.b16 %v4834
    %v6143 = vunpack.c.h.b16 %v4834
    %v6144 = vunpack.c.l.b16 %v4835
    %v6145 = vunpack.c.h.b16 %v4835
    %v6146 = vunpack.c.l.b16 %v4836
    %v6147 = vunpack.c.h.b16 %v4836
    %v6148 = vunpack.c.l.b16 %v4837
    %v6149 = vunpack.c.h.b16 %v4837
    %v6150 = vunpack.c.l.b16 %v4838
    %v6151 = vunpack.c.l.b16 %v4839
    %v6152 = vunpack.c.h.b16 %v4839
    %v6153 = vunpack.c.l.b16 %v4840
    %v6154 = vunpack.c.h.b16 %v4840
    %v6155 = vunpack.c.l.b16 %v4841
    %v6156 = vunpack.c.h.b16 %v4841
    %v6157 = vunpack.c.l.b16 %v4842
    %v6158 = vunpack.c.h.b16 %v4842
    %v6159 = vunpack.c.l.b16 %v4843
    %v6160 = vunpack.c.h.b16 %v4843
    %v6161 = vunpack.c.l.b16 %v4844
    %v6162 = vunpack.c.h.b16 %v4844
    %v6163 = vunpack.c.l.b16 %v4845
    %v6164 = vunpack.c.h.b16 %v4845
    %v6165 = vunpack.c.l.b16 %v4846
    %v6166 = vunpack.c.h.b16 %v4846
    %v6167 = vunpack.c.l.b16 %v4847
    %v6168 = vunpack.c.l.b16 %v4848
    %v6169 = vunpack.c.h.b16 %v4848
    %v6170 = vunpack.c.l.b16 %v4849
    %v6171 = vunpack.c.h.b16 %v4849
    %v6172 = vunpack.c.l.b16 %v4850
    %v6173 = vunpack.c.h.b16 %v4850
    %v6174 = vunpack.c.l.b16 %v4851
    %v6175 = vunpack.c.h.b16 %v4851
    %v6176 = vunpack.c.l.b16 %v4852
    %v6177 = vunpack.c.h.b16 %v4852
    %v6178 = vunpack.c.l.b16 %v4853
    %v6179 = vunpack.c.h.b16 %v4853
    %v6180 = vunpack.c.l.b16 %v4854
    %v6181 = vunpack.c.h.b16 %v4854
    %v6182 = vunpack.c.l.b16 %v4855
    %v6183 = vunpack.c.h.b16 %v4855
    %v6184 = vunpack.c.l.b16 %v4856
    %v6185 = vunpack.c.l.b16 %v4857
    %v6186 = vunpack.c.h.b16 %v4857
    %v6187 = vunpack.c.l.b16 %v4858
    %v6188 = vunpack.c.h.b16 %v4858
    %v6189 = vunpack.c.l.b16 %v4859
    %v6190 = vunpack.c.h.b16 %v4859
    %v6191 = vunpack.c.l.b16 %v4860
    %v6192 = vunpack.c.h.b16 %v4860
    %v6193 = vunpack.c.l.b16 %v4861
    %v6194 = vunpack.c.h.b16 %v4861
    %v6195 = vunpack.c.l.b16 %v4862
    %v6196 = vunpack.c.h.b16 %v4862
    %v6197 = vunpack.c.l.b16 %v4863
    %v6198 = vunpack.c.h.b16 %v4863
    %v6199 = vunpack.c.l.b16 %v4864
    %v6200 = vunpack.c.h.b16 %v4864
    %v6201 = vunpack.c.l.b16 %v4865
    %v6202 = vunpack.c.l.b16 %v4866
    %v6203 = vunpack.c.h.b16 %v4866
    %v6204 = vunpack.c.l.b16 %v4867
    %v6205 = vunpack.c.h.b16 %v4867
    %v6206 = vunpack.c.l.b16 %v4868
    %v6207 = vunpack.c.h.b16 %v4868
    %v6208 = vunpack.c.l.b16 %v4869
    %v6209 = vunpack.c.h.b16 %v4869
    %v6210 = vunpack.c.l.b16 %v4870
    %v6211 = vunpack.c.h.b16 %v4870
    %v6212 = vunpack.c.l.b16 %v4871
    %v6213 = vunpack.c.h.b16 %v4871
    %v6214 = vunpack.c.l.b16 %v4872
    %v6215 = vunpack.c.h.b16 %v4872
    %v6216 = vunpack.c.l.b16 %v4873
    %v6217 = vunpack.c.h.b16 %v4873
    %v6218 = vunpack.c.l.b16 %v4874
    %v6219 = vunpack.c.l.b16 %v4875
    %v6220 = vunpack.c.h.b16 %v4875
    %v6221 = vunpack.c.l.b16 %v4876
    %v6222 = vunpack.c.h.b16 %v4876
    %v6223 = vunpack.c.l.b16 %v4877
    %v6224 = vunpack.c.h.b16 %v4877
    %v6225 = vunpack.c.l.b16 %v4878
    %v6226 = vunpack.c.h.b16 %v4878
    %v6227 = vunpack.c.l.b16 %v4879
    %v6228 = vunpack.c.h.b16 %v4879
    %v6229 = vunpack.c.l.b16 %v4880
    %v6230 = vunpack.c.h.b16 %v4880
    %v6231 = vunpack.c.l.b16 %v4881
    %v6232 = vunpack.c.h.b16 %v4881
    %v6233 = vunpack.c.l.b16 %v4882
    %v6234 = vunpack.c.h.b16 %v4882
    %v6235 = vunpack.c.l.b16 %v4883
    %v6236 = vunpack.c.l.b16 %v4884
    %v6237 = vunpack.c.h.b16 %v4884
    %v6238 = vunpack.c.l.b16 %v4885
    %v6239 = vunpack.c.h.b16 %v4885
    %v6240 = vunpack.c.l.b16 %v4886
    %v6241 = vunpack.c.h.b16 %v4886
    %v6242 = vunpack.c.l.b16 %v4887
    %v6243 = vunpack.c.h.b16 %v4887
    %v6244 = vunpack.c.l.b16 %v4888
    %v6245 = vunpack.c.h.b16 %v4888
    %v6246 = vunpack.c.l.b16 %v4889
    %v6247 = vunpack.c.h.b16 %v4889
    %v6248 = vunpack.c.l.b16 %v4890
    %v6249 = vunpack.c.h.b16 %v4890
    %v6250 = vunpack.c.l.b16 %v4891
    %v6251 = vunpack.c.h.b16 %v4891
    %v6252 = vunpack.c.l.b16 %v4892
    %v6253 = vunpack.c.l.b16 %v4893
    %v6254 = vunpack.c.h.b16 %v4893
    %v6255 = vunpack.c.l.b16 %v4894
    %v6256 = vunpack.c.h.b16 %v4894
    %v6257 = vunpack.c.l.b16 %v4895
    %v6258 = vunpack.c.h.b16 %v4895
    %v6259 = vunpack.c.l.b16 %v4896
    %v6260 = vunpack.c.h.b16 %v4896
    %v6261 = vunpack.c.l.b16 %v4897
    %v6262 = vunpack.c.h.b16 %v4897
    %v6263 = vunpack.c.l.b16 %v4898
    %v6264 = vunpack.c.h.b16 %v4898
    %v6265 = vunpack.c.l.b16 %v4899
    %v6266 = vunpack.c.h.b16 %v4899
    %v6267 = vunpack.c.l.b16 %v4900
    %v6268 = vunpack.c.h.b16 %v4900
    %v6269 = vunpack.c.l.b16 %v4901
    %v6270 = vunpack.c.l.b16 %v4902
    %v6271 = vunpack.c.h.b16 %v4902
    %v6272 = vunpack.c.l.b16 %v4903
    %v6273 = vunpack.c.h.b16 %v4903
    %v6274 = vunpack.c.l.b16 %v4904
    %v6275 = vunpack.c.h.b16 %v4904
    %v6276 = vunpack.c.l.b16 %v4905
    %v6277 = vunpack.c.h.b16 %v4905
    %v6278 = vunpack.c.l.b16 %v4906
    %v6279 = vunpack.c.h.b16 %v4906
    %v6280 = vunpack.c.l.b16 %v4907
    %v6281 = vunpack.c.h.b16 %v4907
    %v6282 = vunpack.c.l.b16 %v4908
    %v6283 = vunpack.c.h.b16 %v4908
    %v6284 = vunpack.c.l.b16 %v4909
    %v6285 = vunpack.c.h.b16 %v4909
    %v6286 = vunpack.c.l.b16 %v4910
    %v6287 = vunpack.c.l.b16 %v4911
    %v6288 = vunpack.c.h.b16 %v4911
    %v6289 = vunpack.c.l.b16 %v4912
    %v6290 = vunpack.c.h.b16 %v4912
    %v6291 = vunpack.c.l.b16 %v4913
    %v6292 = vunpack.c.h.b16 %v4913
    %v6293 = vunpack.c.l.b16 %v4914
    %v6294 = vunpack.c.h.b16 %v4914
    %v6295 = vunpack.c.l.b16 %v4915
    %v6296 = vunpack.c.h.b16 %v4915
    %v6297 = vunpack.c.l.b16 %v4916
    %v6298 = vunpack.c.h.b16 %v4916
    %v6299 = vunpack.c.l.b16 %v4917
    %v6300 = vunpack.c.h.b16 %v4917
    %v6301 = vunpack.c.l.b16 %v4918
    %v6302 = vunpack.c.h.b16 %v4918
    %v6303 = vunpack.c.l.b16 %v4919
    %v6304 = vunpack.c.l.b16 %v4920
    %v6305 = vunpack.c.h.b16 %v4920
    %v6306 = vunpack.c.l.b16 %v4921
    %v6307 = vunpack.c.h.b16 %v4921
    %v6308 = vunpack.c.l.b16 %v4922
    %v6309 = vunpack.c.h.b16 %v4922
    %v6310 = vunpack.c.l.b16 %v4923
    %v6311 = vunpack.c.h.b16 %v4923
    %v6312 = vunpack.c.l.b16 %v4924
    %v6313 = vunpack.c.h.b16 %v4924
    %v6314 = vunpack.c.l.b16 %v4925
    %v6315 = vunpack.c.h.b16 %v4925
    %v6316 = vunpack.c.l.b16 %v4926
    %v6317 = vunpack.c.h.b16 %v4926
    %v6318 = vunpack.c.l.b16 %v4927
    %v6319 = vunpack.c.h.b16 %v4927
    %v6320 = vunpack.c.l.b16 %v4928
    %v6321 = vunpack.c.l.b16 %v4929
    %v6322 = vunpack.c.h.b16 %v4929
    %v6323 = vunpack.c.l.b16 %v4930
    %v6324 = vunpack.c.h.b16 %v4930
    %v6325 = vunpack.c.l.b16 %v4931
    %v6326 = vunpack.c.h.b16 %v4931
    %v6327 = vunpack.c.l.b16 %v4932
    %v6328 = vunpack.c.h.b16 %v4932
    %v6329 = vunpack.c.l.b16 %v4933
    %v6330 = vunpack.c.h.b16 %v4933
    %v6331 = vunpack.c.l.b16 %v4934
    %v6332 = vunpack.c.h.b16 %v4934
    %v6333 = vunpack.c.l.b16 %v4935
    %v6334 = vunpack.c.h.b16 %v4935
    %v6335 = vunpack.c.l.b16 %v4936
    %v6336 = vunpack.c.h.b16 %v4936
    %v6337 = vunpack.c.l.b16 %v4937
    %v6338 = vunpack.c.l.b16 %v4938
    %v6339 = vunpack.c.h.b16 %v4938
    %v6340 = vunpack.c.l.b16 %v4939
    %v6341 = vunpack.c.h.b16 %v4939
    %v6342 = vunpack.c.l.b16 %v4940
    %v6343 = vunpack.c.h.b16 %v4940
    %v6344 = vunpack.c.l.b16 %v4941
    %v6345 = vunpack.c.h.b16 %v4941
    %v6346 = vunpack.c.l.b16 %v4942
    %v6347 = vunpack.c.h.b16 %v4942
    %v6348 = vunpack.c.l.b16 %v4943
    %v6349 = vunpack.c.h.b16 %v4943
    %v6350 = vunpack.c.l.b16 %v4944
    %v6351 = vunpack.c.h.b16 %v4944
    %v6352 = vunpack.c.l.b16 %v4945
    %v6353 = vunpack.c.h.b16 %v4945
    %v6354 = vunpack.c.l.b16 %v4946
    %v6355 = vunpack.c.l.b16 %v4947
    %v6356 = vunpack.c.h.b16 %v4947
    %v6357 = vunpack.c.l.b16 %v4948
    %v6358 = vunpack.c.h.b16 %v4948
    %v6359 = vunpack.c.l.b16 %v4949
    %v6360 = vunpack.c.h.b16 %v4949
    %v6361 = vunpack.c.l.b16 %v4950
    %v6362 = vunpack.c.h.b16 %v4950
    %v6363 = vunpack.c.l.b16 %v4951
    %v6364 = vunpack.c.h.b16 %v4951
    %v6365 = vunpack.c.l.b16 %v4952
    %v6366 = vunpack.c.h.b16 %v4952
    %v6367 = vunpack.c.l.b16 %v4953
    %v6368 = vunpack.c.h.b16 %v4953
    %v6369 = vunpack.c.l.b16 %v4954
    %v6370 = vunpack.c.h.b16 %v4954
    %v6371 = vunpack.c.l.b16 %v4955
    %v6372 = vunpack.c.l.b16 %v4956
    %v6373 = vunpack.c.h.b16 %v4956
    %v6374 = vunpack.c.l.b16 %v4957
    %v6375 = vunpack.c.h.b16 %v4957
    %v6376 = vunpack.c.l.b16 %v4958
    %v6377 = vunpack.c.h.b16 %v4958
    %v6378 = vunpack.c.l.b16 %v4959
    %v6379 = vunpack.c.h.b16 %v4959
    %v6380 = vunpack.c.l.b16 %v4960
    %v6381 = vunpack.c.h.b16 %v4960
    %v6382 = vunpack.c.l.b16 %v4961
    %v6383 = vunpack.c.h.b16 %v4961
    %v6384 = vunpack.c.l.b16 %v4962
    %v6385 = vunpack.c.h.b16 %v4962
    %v6386 = vunpack.c.l.b16 %v4963
    %v6387 = vunpack.c.h.b16 %v4963
    %v6388 = vunpack.c.l.b16 %v4964
    %v6389 = vunpack.c.l.b16 %v4965
    %v6390 = vunpack.c.h.b16 %v4965
    %v6391 = vunpack.c.l.b16 %v4966
    %v6392 = vunpack.c.h.b16 %v4966
    %v6393 = vunpack.c.l.b16 %v4967
    %v6394 = vunpack.c.h.b16 %v4967
    %v6395 = vunpack.c.l.b16 %v4968
    %v6396 = vunpack.c.h.b16 %v4968
    %v6397 = vunpack.c.l.b16 %v4969
    %v6398 = vunpack.c.h.b16 %v4969
    %v6399 = vunpack.c.l.b16 %v4970
    %v6400 = vunpack.c.h.b16 %v4970
    %v6401 = vunpack.c.l.b16 %v4971
    %v6402 = vunpack.c.h.b16 %v4971
    %v6403 = vunpack.c.l.b16 %v4972
    %v6404 = vunpack.c.h.b16 %v4972
    %v6405 = vunpack.c.l.b16 %v4973
    %v6406 = vunpack.c.l.b16 %v4974
    %v6407 = vunpack.c.h.b16 %v4974
    %v6408 = vunpack.c.l.b16 %v4975
    %v6409 = vunpack.c.h.b16 %v4975
    %v6410 = vunpack.c.l.b16 %v4976
    %v6411 = vunpack.c.h.b16 %v4976
    %v6412 = vunpack.c.l.b16 %v4977
    %v6413 = vunpack.c.h.b16 %v4977
    %v6414 = vunpack.c.l.b16 %v4978
    %v6415 = vunpack.c.h.b16 %v4978
    %v6416 = vunpack.c.l.b16 %v4979
    %v6417 = vunpack.c.h.b16 %v4979
    %v6418 = vunpack.c.l.b16 %v4980
    %v6419 = vunpack.c.h.b16 %v4980
    %v6420 = vunpack.c.l.b16 %v4981
    %v6421 = vunpack.c.h.b16 %v4981
    %v6422 = vunpack.c.l.b16 %v4982
    %v6423 = vunpack.c.l.b16 %v4983
    %v6424 = vunpack.c.h.b16 %v4983
    %v6425 = vunpack.c.l.b16 %v4984
    %v6426 = vunpack.c.h.b16 %v4984
    %v6427 = vunpack.c.l.b16 %v4985
    %v6428 = vunpack.c.h.b16 %v4985
    %v6429 = vunpack.c.l.b16 %v4986
    %v6430 = vunpack.c.h.b16 %v4986
    %v6431 = vunpack.c.l.b16 %v4987
    %v6432 = vunpack.c.h.b16 %v4987
    %v6433 = vunpack.c.l.b16 %v4988
    %v6434 = vunpack.c.h.b16 %v4988
    %v6435 = vunpack.c.l.b16 %v4989
    %v6436 = vunpack.c.h.b16 %v4989
    %v6437 = vunpack.c.l.b16 %v4990
    %v6438 = vunpack.c.h.b16 %v4990
    %v6439 = vunpack.c.l.b16 %v4991
    %v6440 = vunpack.c.l.b16 %v4992
    %v6441 = vunpack.c.h.b16 %v4992
    %v6442 = vunpack.c.l.b16 %v4993
    %v6443 = vunpack.c.h.b16 %v4993
    %v6444 = vunpack.c.l.b16 %v4994
    %v6445 = vunpack.c.h.b16 %v4994
    %v6446 = vunpack.c.l.b16 %v4995
    %v6447 = vunpack.c.h.b16 %v4995
    %v6448 = vunpack.c.l.b16 %v4996
    %v6449 = vunpack.c.h.b16 %v4996
    %v6450 = vunpack.c.l.b16 %v4997
    %v6451 = vunpack.c.h.b16 %v4997
    %v6452 = vunpack.c.l.b16 %v4998
    %v6453 = vunpack.c.h.b16 %v4998
    %v6454 = vunpack.c.l.b16 %v4999
    %v6455 = vunpack.c.h.b16 %v4999
    %v6456 = vunpack.c.l.b16 %v5000
    %v6457 = vunpack.c.l.b16 %v5001
    %v6458 = vunpack.c.h.b16 %v5001
    %v6459 = vunpack.c.l.b16 %v5002
    %v6460 = vunpack.c.h.b16 %v5002
    %v6461 = vunpack.c.l.b16 %v5003
    %v6462 = vunpack.c.h.b16 %v5003
    %v6463 = vunpack.c.l.b16 %v5004
    %v6464 = vunpack.c.h.b16 %v5004
    %v6465 = vunpack.c.l.b16 %v5005
    %v6466 = vunpack.c.h.b16 %v5005
    %v6467 = vunpack.c.l.b16 %v5006
    %v6468 = vunpack.c.h.b16 %v5006
    %v6469 = vunpack.c.l.b16 %v5007
    %v6470 = vunpack.c.h.b16 %v5007
    %v6471 = vunpack.c.l.b16 %v5008
    %v6472 = vunpack.c.h.b16 %v5008
    %v6473 = vunpack.c.l.b16 %v5009
    %v6474 = vunpack.c.l.b16 %v5010
    %v6475 = vunpack.c.h.b16 %v5010
    %v6476 = vunpack.c.l.b16 %v5011
    %v6477 = vunpack.c.h.b16 %v5011
    %v6478 = vunpack.c.l.b16 %v5012
    %v6479 = vunpack.c.h.b16 %v5012
    %v6480 = vunpack.c.l.b16 %v5013
    %v6481 = vunpack.c.h.b16 %v5013
    %v6482 = vunpack.c.l.b16 %v5014
    %v6483 = vunpack.c.h.b16 %v5014
    %v6484 = vunpack.c.l.b16 %v5015
    %v6485 = vunpack.c.h.b16 %v5015
    %v6486 = vunpack.c.l.b16 %v5016
    %v6487 = vunpack.c.h.b16 %v5016
    %v6488 = vunpack.c.l.b16 %v5017
    %v6489 = vunpack.c.h.b16 %v5017
    %v6490 = vunpack.c.l.b16 %v5018
    %v6491 = vunpack.c.l.b16 %v5019
    %v6492 = vunpack.c.h.b16 %v5019
    %v6493 = vunpack.c.l.b16 %v5020
    %v6494 = vunpack.c.h.b16 %v5020
    %v6495 = vunpack.c.l.b16 %v5021
    %v6496 = vunpack.c.h.b16 %v5021
    %v6497 = vunpack.c.l.b16 %v5022
    %v6498 = vunpack.c.h.b16 %v5022
    %v6499 = vunpack.c.l.b16 %v5023
    %v6500 = vunpack.c.h.b16 %v5023
    %v6501 = vunpack.c.l.b16 %v5024
    %v6502 = vunpack.c.h.b16 %v5024
    %v6503 = vunpack.c.l.b16 %v5025
    %v6504 = vunpack.c.h.b16 %v5025
    %v6505 = vunpack.c.l.b16 %v5026
    %v6506 = vunpack.c.h.b16 %v5026
    %v6507 = vunpack.c.l.b16 %v5027
    %v6508 = vunpack.c.l.b16 %v5028
    %v6509 = vunpack.c.h.b16 %v5028
    %v6510 = vunpack.c.l.b16 %v5029
    %v6511 = vunpack.c.h.b16 %v5029
    %v6512 = vunpack.c.l.b16 %v5030
    %v6513 = vunpack.c.h.b16 %v5030
    %v6514 = vunpack.c.l.b16 %v5031
    %v6515 = vunpack.c.h.b16 %v5031
    %v6516 = vunpack.c.l.b16 %v5032
    %v6517 = vunpack.c.h.b16 %v5032
    %v6518 = vunpack.c.l.b16 %v5033
    %v6519 = vunpack.c.h.b16 %v5033
    %v6520 = vunpack.c.l.b16 %v5034
    %v6521 = vunpack.c.h.b16 %v5034
    %v6522 = vunpack.c.l.b16 %v5035
    %v6523 = vunpack.c.h.b16 %v5035
    %v6524 = vunpack.c.l.b16 %v5036
    %v6525 = vunpack.c.l.b16 %v5037
    %v6526 = vunpack.c.h.b16 %v5037
    %v6527 = vunpack.c.l.b16 %v5038
    %v6528 = vunpack.c.h.b16 %v5038
    %v6529 = vunpack.c.l.b16 %v5039
    %v6530 = vunpack.c.h.b16 %v5039
    %v6531 = vunpack.c.l.b16 %v5040
    %v6532 = vunpack.c.h.b16 %v5040
    %v6533 = vunpack.c.l.b16 %v5041
    %v6534 = vunpack.c.h.b16 %v5041
    %v6535 = vunpack.c.l.b16 %v5042
    %v6536 = vunpack.c.h.b16 %v5042
    %v6537 = vunpack.c.l.b16 %v5043
    %v6538 = vunpack.c.h.b16 %v5043
    %v6539 = vunpack.c.l.b16 %v5044
    %v6540 = vunpack.c.h.b16 %v5044
    %v6541 = vunpack.c.l.b16 %v5045
    %v6542 = vunpack.c.l.b16 %v5046
    %v6543 = vunpack.c.h.b16 %v5046
    %v6544 = vunpack.c.l.b16 %v5047
    %v6545 = vunpack.c.h.b16 %v5047
    %v6546 = vunpack.c.l.b16 %v5048
    %v6547 = vunpack.c.h.b16 %v5048
    %v6548 = vunpack.c.l.b16 %v5049
    %v6549 = vunpack.c.h.b16 %v5049
    %v6550 = vunpack.c.l.b16 %v5050
    %v6551 = vunpack.c.h.b16 %v5050
    %v6552 = vunpack.c.l.b16 %v5051
    %v6553 = vunpack.c.h.b16 %v5051
    %v6554 = vunpack.c.l.b16 %v5052
    %v6555 = vunpack.c.h.b16 %v5052
    %v6556 = vunpack.c.l.b16 %v5053
    %v6557 = vunpack.c.h.b16 %v5053
    %v6558 = vunpack.c.l.b16 %v5054
    %v6559 = vunpack.c.l.b16 %v5055
    %v6560 = vunpack.c.h.b16 %v5055
    %v6561 = vunpack.c.l.b16 %v5056
    %v6562 = vunpack.c.h.b16 %v5056
    %v6563 = vunpack.c.l.b16 %v5057
    %v6564 = vunpack.c.h.b16 %v5057
    %v6565 = vunpack.c.l.b16 %v5058
    %v6566 = vunpack.c.h.b16 %v5058
    %v6567 = vunpack.c.l.b16 %v5059
    %v6568 = vunpack.c.h.b16 %v5059
    %v6569 = vunpack.c.l.b16 %v5060
    %v6570 = vunpack.c.h.b16 %v5060
    %v6571 = vunpack.c.l.b16 %v5061
    %v6572 = vunpack.c.h.b16 %v5061
    %v6573 = vunpack.c.l.b16 %v5062
    %v6574 = vunpack.c.h.b16 %v5062
    %v6575 = vunpack.c.l.b16 %v5063
    %v6576 = vunpack.c.l.b16 %v5064
    %v6577 = vunpack.c.h.b16 %v5064
    %v6578 = vunpack.c.l.b16 %v5065
    %v6579 = vunpack.c.h.b16 %v5065
    %v6580 = vunpack.c.l.b16 %v5066
    %v6581 = vunpack.c.h.b16 %v5066
    %v6582 = vunpack.c.l.b16 %v5067
    %v6583 = vunpack.c.h.b16 %v5067
    %v6584 = vunpack.c.l.b16 %v5068
    %v6585 = vunpack.c.h.b16 %v5068
    %v6586 = vunpack.c.l.b16 %v5069
    %v6587 = vunpack.c.h.b16 %v5069
    %v6588 = vunpack.c.l.b16 %v5070
    %v6589 = vunpack.c.h.b16 %v5070
    %v6590 = vunpack.c.l.b16 %v5071
    %v6591 = vunpack.c.h.b16 %v5071
    %v6592 = vunpack.c.l.b16 %v5072
    %v6593 = vunpack.c.l.b16 %v5073
    %v6594 = vunpack.c.h.b16 %v5073
    %v6595 = vunpack.c.l.b16 %v5074
    %v6596 = vunpack.c.h.b16 %v5074
    %v6597 = vunpack.c.l.b16 %v5075
    %v6598 = vunpack.c.h.b16 %v5075
    %v6599 = vunpack.c.l.b16 %v5076
    %v6600 = vunpack.c.h.b16 %v5076
    %v6601 = vunpack.c.l.b16 %v5077
    %v6602 = vunpack.c.h.b16 %v5077
    %v6603 = vunpack.c.l.b16 %v5078
    %v6604 = vunpack.c.h.b16 %v5078
    %v6605 = vunpack.c.l.b16 %v5079
    %v6606 = vunpack.c.h.b16 %v5079
    %v6607 = vunpack.c.l.b16 %v5080
    %v6608 = vunpack.c.h.b16 %v5080
    %v6609 = vunpack.c.l.b16 %v5081
    %v6610 = vunpack.c.l.b16 %v5082
    %v6611 = vunpack.c.h.b16 %v5082
    %v6612 = vunpack.c.l.b16 %v5083
    %v6613 = vunpack.c.h.b16 %v5083
    %v6614 = vunpack.c.l.b16 %v5084
    %v6615 = vunpack.c.h.b16 %v5084
    %v6616 = vunpack.c.l.b16 %v5085
    %v6617 = vunpack.c.h.b16 %v5085
    %v6618 = vunpack.c.l.b16 %v5086
    %v6619 = vunpack.c.h.b16 %v5086
    %v6620 = vunpack.c.l.b16 %v5087
    %v6621 = vunpack.c.h.b16 %v5087
    %v6622 = vunpack.c.l.b16 %v5088
    %v6623 = vunpack.c.h.b16 %v5088
    %v6624 = vunpack.c.l.b16 %v5089
    %v6625 = vunpack.c.h.b16 %v5089
    %v6626 = vunpack.c.l.b16 %v5090
    %v6627 = vunpack.c.l.b16 %v5091
    %v6628 = vunpack.c.h.b16 %v5091
    %v6629 = vunpack.c.l.b16 %v5092
    %v6630 = vunpack.c.h.b16 %v5092
    %v6631 = vunpack.c.l.b16 %v5093
    %v6632 = vunpack.c.h.b16 %v5093
    %v6633 = vunpack.c.l.b16 %v5094
    %v6634 = vunpack.c.h.b16 %v5094
    %v6635 = vunpack.c.l.b16 %v5095
    %v6636 = vunpack.c.h.b16 %v5095
    %v6637 = vunpack.c.l.b16 %v5096
    %v6638 = vunpack.c.h.b16 %v5096
    %v6639 = vunpack.c.l.b16 %v5097
    %v6640 = vunpack.c.h.b16 %v5097
    %v6641 = vunpack.c.l.b16 %v5098
    %v6642 = vunpack.c.h.b16 %v5098
    %v6643 = vunpack.c.l.b16 %v5099
    %v6644 = vunpack.c.l.b16 %v5100
    %v6645 = vunpack.c.h.b16 %v5100
    %v6646 = vunpack.c.l.b16 %v5101
    %v6647 = vunpack.c.h.b16 %v5101
    %v6648 = vunpack.c.l.b16 %v5102
    %v6649 = vunpack.c.h.b16 %v5102
    %v6650 = vunpack.c.l.b16 %v5103
    %v6651 = vunpack.c.h.b16 %v5103
    %v6652 = vunpack.c.l.b16 %v5104
    %v6653 = vunpack.c.h.b16 %v5104
    %v6654 = vunpack.c.l.b16 %v5105
    %v6655 = vunpack.c.h.b16 %v5105
    %v6656 = vunpack.c.l.b16 %v5106
    %v6657 = vunpack.c.h.b16 %v5106
    %v6658 = vunpack.c.l.b16 %v5107
    %v6659 = vunpack.c.h.b16 %v5107
    %v6660 = vunpack.c.l.b16 %v5108
    %v6661 = vunpack.c.l.b16 %v5109
    %v6662 = vunpack.c.h.b16 %v5109
    %v6663 = vunpack.c.l.b16 %v5110
    %v6664 = vunpack.c.h.b16 %v5110
    %v6665 = vunpack.c.l.b16 %v5111
    %v6666 = vunpack.c.h.b16 %v5111
    %v6667 = vunpack.c.l.b16 %v5112
    %v6668 = vunpack.c.h.b16 %v5112
    %v6669 = vunpack.c.l.b16 %v5113
    %v6670 = vunpack.c.h.b16 %v5113
    %v6671 = vunpack.c.l.b16 %v5114
    %v6672 = vunpack.c.h.b16 %v5114
    %v6673 = vunpack.c.l.b16 %v5115
    %v6674 = vunpack.c.h.b16 %v5115
    %v6675 = vunpack.c.l.b16 %v5116
    %v6676 = vunpack.c.h.b16 %v5116
    %v6677 = vunpack.c.l.b16 %v5117
    %v6678 = vunpack.c.l.b16 %v5118
    %v6679 = vunpack.c.h.b16 %v5118
    %v6680 = vunpack.c.l.b16 %v5119
    %v6681 = vunpack.c.h.b16 %v5119
    %v6682 = vunpack.c.l.b16 %v5120
    %v6683 = vunpack.c.h.b16 %v5120
    %v6684 = vunpack.c.l.b16 %v5121
    %v6685 = vunpack.c.h.b16 %v5121
    %v6686 = vunpack.c.l.b16 %v5122
    %v6687 = vunpack.c.h.b16 %v5122
    %v6688 = vunpack.c.l.b16 %v5123
    %v6689 = vunpack.c.h.b16 %v5123
    %v6690 = vunpack.c.l.b16 %v5124
    %v6691 = vunpack.c.h.b16 %v5124
    %v6692 = vunpack.c.l.b16 %v5125
    %v6693 = vunpack.c.h.b16 %v5125
    %v6694 = vunpack.c.l.b16 %v5126
    %v6695 = vunpack.c.l.b16 %v5127
    %v6696 = vunpack.c.h.b16 %v5127
    %v6697 = vunpack.c.l.b16 %v5128
    %v6698 = vunpack.c.h.b16 %v5128
    %v6699 = vunpack.c.l.b16 %v5129
    %v6700 = vunpack.c.h.b16 %v5129
    %v6701 = vunpack.c.l.b16 %v5130
    %v6702 = vunpack.c.h.b16 %v5130
    %v6703 = vunpack.c.l.b16 %v5131
    %v6704 = vunpack.c.h.b16 %v5131
    %v6705 = vunpack.c.l.b16 %v5132
    %v6706 = vunpack.c.h.b16 %v5132
    %v6707 = vunpack.c.l.b16 %v5133
    %v6708 = vunpack.c.h.b16 %v5133
    %v6709 = vunpack.c.l.b16 %v5134
    %v6710 = vunpack.c.h.b16 %v5134
    %v6711 = vunpack.c.l.b16 %v5135
    %v6712 = vunpack.c.l.b16 %v5136
    %v6713 = vunpack.c.h.b16 %v5136
    %v6714 = vunpack.c.l.b16 %v5137
    %v6715 = vunpack.c.h.b16 %v5137
    %v6716 = vunpack.c.l.b16 %v5138
    %v6717 = vunpack.c.h.b16 %v5138
    %v6718 = vunpack.c.l.b16 %v5139
    %v6719 = vunpack.c.h.b16 %v5139
    %v6720 = vunpack.c.l.b16 %v5140
    %v6721 = vunpack.c.h.b16 %v5140
    %v6722 = vunpack.c.l.b16 %v5141
    %v6723 = vunpack.c.h.b16 %v5141
    %v6724 = vunpack.c.l.b16 %v5142
    %v6725 = vunpack.c.h.b16 %v5142
    %v6726 = vunpack.c.l.b16 %v5143
    %v6727 = vunpack.c.h.b16 %v5143
    %v6728 = vunpack.c.l.b16 %v5144
    %v6729 = vunpack.c.l.b16 %v5145
    %v6730 = vunpack.c.h.b16 %v5145
    %v6731 = vunpack.c.l.b16 %v5146
    %v6732 = vunpack.c.h.b16 %v5146
    %v6733 = vunpack.c.l.b16 %v5147
    %v6734 = vunpack.c.h.b16 %v5147
    %v6735 = vunpack.c.l.b16 %v5148
    %v6736 = vunpack.c.h.b16 %v5148
    %v6737 = vunpack.c.l.b16 %v5149
    %v6738 = vunpack.c.h.b16 %v5149
    %v6739 = vunpack.c.l.b16 %v5150
    %v6740 = vunpack.c.h.b16 %v5150
    %v6741 = vunpack.c.l.b16 %v5151
    %v6742 = vunpack.c.h.b16 %v5151
    %v6743 = vunpack.c.l.b16 %v5152
    %v6744 = vunpack.c.h.b16 %v5152
    %v6745 = vunpack.c.l.b16 %v5153
    %v6746 = vunpack.c.l.b16 %v5154
    %v6747 = vunpack.c.h.b16 %v5154
    %v6748 = vunpack.c.l.b16 %v5155
    %v6749 = vunpack.c.h.b16 %v5155
    %v6750 = vunpack.c.l.b16 %v5156
    %v6751 = vunpack.c.h.b16 %v5156
    %v6752 = vunpack.c.l.b16 %v5157
    %v6753 = vunpack.c.h.b16 %v5157
    %v6754 = vunpack.c.l.b16 %v5158
    %v6755 = vunpack.c.h.b16 %v5158
    %v6756 = vunpack.c.l.b16 %v5159
    %v6757 = vunpack.c.h.b16 %v5159
    %v6758 = vunpack.c.l.b16 %v5160
    %v6759 = vunpack.c.h.b16 %v5160
    %v6760 = vunpack.c.l.b16 %v5161
    %v6761 = vunpack.c.h.b16 %v5161
    %v6762 = vunpack.c.l.b16 %v5162
    %v6763 = vunpack.c.l.b16 %v5163
    %v6764 = vunpack.c.h.b16 %v5163
    %v6765 = vunpack.c.l.b16 %v5164
    %v6766 = vunpack.c.h.b16 %v5164
    %v6767 = vunpack.c.l.b16 %v5165
    %v6768 = vunpack.c.h.b16 %v5165
    %v6769 = vunpack.c.l.b16 %v5166
    %v6770 = vunpack.c.h.b16 %v5166
    %v6771 = vunpack.c.l.b16 %v5167
    %v6772 = vunpack.c.h.b16 %v5167
    %v6773 = vunpack.c.l.b16 %v5168
    %v6774 = vunpack.c.h.b16 %v5168
    %v6775 = vunpack.c.l.b16 %v5169
    %v6776 = vunpack.c.h.b16 %v5169
    %v6777 = vunpack.c.l.b16 %v5170
    %v6778 = vunpack.c.h.b16 %v5170
    %v6779 = vunpack.c.l.b16 %v5171
    %v6780 = vunpack.c.l.b16 %v5172
    %v6781 = vunpack.c.h.b16 %v5172
    %v6782 = vunpack.c.l.b16 %v5173
    %v6783 = vunpack.c.h.b16 %v5173
    %v6784 = vunpack.c.l.b16 %v5174
    %v6785 = vunpack.c.h.b16 %v5174
    %v6786 = vunpack.c.l.b16 %v5175
    %v6787 = vunpack.c.h.b16 %v5175
    %v6788 = vunpack.c.l.b16 %v5176
    %v6789 = vunpack.c.h.b16 %v5176
    %v6790 = vunpack.c.l.b16 %v5177
    %v6791 = vunpack.c.h.b16 %v5177
    %v6792 = vunpack.c.l.b16 %v5178
    %v6793 = vunpack.c.h.b16 %v5178
    %v6794 = vunpack.c.l.b16 %v5179
    %v6795 = vunpack.c.h.b16 %v5179
    %v6796 = vunpack.c.l.b16 %v5180
    %v6797 = vunpack.c.l.b16 %v5181
    %v6798 = vunpack.c.h.b16 %v5181
    %v6799 = vunpack.c.l.b16 %v5182
    %v6800 = vunpack.c.h.b16 %v5182
    %v6801 = vunpack.c.l.b16 %v5183
    %v6802 = vunpack.c.h.b16 %v5183
    %v6803 = vunpack.c.l.b16 %v5184
    %v6804 = vunpack.c.h.b16 %v5184
    %v6805 = vunpack.c.l.b16 %v5185
    %v6806 = vunpack.c.h.b16 %v5185
    %v6807 = vunpack.c.l.b16 %v5186
    %v6808 = vunpack.c.h.b16 %v5186
    %v6809 = vunpack.c.l.b16 %v5187
    %v6810 = vunpack.c.h.b16 %v5187
    %v6811 = vunpack.c.l.b16 %v5188
    %v6812 = vunpack.c.h.b16 %v5188
    %v6813 = vunpack.c.l.b16 %v5189
    %v6814 = vunpack.c.l.b16 %v5190
    %v6815 = vunpack.c.h.b16 %v5190
    %v6816 = vunpack.c.l.b16 %v5191
    %v6817 = vunpack.c.h.b16 %v5191
    %v6818 = vunpack.c.l.b16 %v5192
    %v6819 = vunpack.c.h.b16 %v5192
    %v6820 = vunpack.c.l.b16 %v5193
    %v6821 = vunpack.c.h.b16 %v5193
    %v6822 = vunpack.c.l.b16 %v5194
    %v6823 = vunpack.c.h.b16 %v5194
    %v6824 = vunpack.c.l.b16 %v5195
    %v6825 = vunpack.c.h.b16 %v5195
    %v6826 = vunpack.c.l.b16 %v5196
    %v6827 = vunpack.c.h.b16 %v5196
    %v6828 = vunpack.c.l.b16 %v5197
    %v6829 = vunpack.c.h.b16 %v5197
    %v6830 = vunpack.c.l.b16 %v5198
    %v6831 = vunpack.c.l.b16 %v5199
    %v6832 = vunpack.c.h.b16 %v5199
    %v6833 = vunpack.c.l.b16 %v5200
    %v6834 = vunpack.c.h.b16 %v5200
    %v6835 = vunpack.c.l.b16 %v5201
    %v6836 = vunpack.c.h.b16 %v5201
    %v6837 = vunpack.c.l.b16 %v5202
    %v6838 = vunpack.c.h.b16 %v5202
    %v6839 = vunpack.c.l.b16 %v5203
    %v6840 = vunpack.c.h.b16 %v5203
    %v6841 = vunpack.c.l.b16 %v5204
    %v6842 = vunpack.c.h.b16 %v5204
    %v6843 = vunpack.c.l.b16 %v5205
    %v6844 = vunpack.c.h.b16 %v5205
    %v6845 = vunpack.c.l.b16 %v5206
    %v6846 = vunpack.c.h.b16 %v5206
    %v6847 = vunpack.c.l.b16 %v5207
    %v6848 = vunpack.c.l.b16 %v5208
    %v6849 = vunpack.c.h.b16 %v5208
    %v6850 = vunpack.c.l.b16 %v5209
    %v6851 = vunpack.c.h.b16 %v5209
    %v6852 = vunpack.c.l.b16 %v5210
    %v6853 = vunpack.c.h.b16 %v5210
    %v6854 = vunpack.c.l.b16 %v5211
    %v6855 = vunpack.c.h.b16 %v5211
    %v6856 = vunpack.c.l.b16 %v5212
    %v6857 = vunpack.c.h.b16 %v5212
    %v6858 = vunpack.c.l.b16 %v5213
    %v6859 = vunpack.c.h.b16 %v5213
    %v6860 = vunpack.c.l.b16 %v5214
    %v6861 = vunpack.c.h.b16 %v5214
    %v6862 = vunpack.c.l.b16 %v5215
    %v6863 = vunpack.c.h.b16 %v5215
    %v6864 = vunpack.c.l.b16 %v5216
    %v6865 = vunpack.c.l.b16 %v5217
    %v6866 = vunpack.c.h.b16 %v5217
    %v6867 = vunpack.c.l.b16 %v5218
    %v6868 = vunpack.c.h.b16 %v5218
    %v6869 = vunpack.c.l.b16 %v5219
    %v6870 = vunpack.c.h.b16 %v5219
    %v6871 = vunpack.c.l.b16 %v5220
    %v6872 = vunpack.c.h.b16 %v5220
    %v6873 = vunpack.c.l.b16 %v5221
    %v6874 = vunpack.c.h.b16 %v5221
    %v6875 = vunpack.c.l.b16 %v5222
    %v6876 = vunpack.c.h.b16 %v5222
    %v6877 = vunpack.c.l.b16 %v5223
    %v6878 = vunpack.c.h.b16 %v5223
    %v6879 = vunpack.c.l.b16 %v5224
    %v6880 = vunpack.c.h.b16 %v5224
    %v6881 = vunpack.c.l.b16 %v5225
    %v6882 = vunpack.c.l.b16 %v5226
    %v6883 = vunpack.c.h.b16 %v5226
    %v6884 = vunpack.c.l.b16 %v5227
    %v6885 = vunpack.c.h.b16 %v5227
    %v6886 = vunpack.c.l.b16 %v5228
    %v6887 = vunpack.c.h.b16 %v5228
    %v6888 = vunpack.c.l.b16 %v5229
    %v6889 = vunpack.c.h.b16 %v5229
    %v6890 = vunpack.c.l.b16 %v5230
    %v6891 = vunpack.c.h.b16 %v5230
    %v6892 = vunpack.c.l.b16 %v5231
    %v6893 = vunpack.c.h.b16 %v5231
    %v6894 = vunpack.c.l.b16 %v5232
    %v6895 = vunpack.c.h.b16 %v5232
    %v6896 = vunpack.c.l.b16 %v5233
    %v6897 = vunpack.c.h.b16 %v5233
    %v6898 = vunpack.c.l.b16 %v5234
    %v6899 = vunpack.c.l.b16 %v5235
    %v6900 = vunpack.c.h.b16 %v5235
    %v6901 = vunpack.c.l.b16 %v5236
    %v6902 = vunpack.c.h.b16 %v5236
    %v6903 = vunpack.c.l.b16 %v5237
    %v6904 = vunpack.c.h.b16 %v5237
    %v6905 = vunpack.c.l.b16 %v5238
    %v6906 = vunpack.c.h.b16 %v5238
    %v6907 = vunpack.c.l.b16 %v5239
    %v6908 = vunpack.c.h.b16 %v5239
    %v6909 = vunpack.c.l.b16 %v5240
    %v6910 = vunpack.c.h.b16 %v5240
    %v6911 = vunpack.c.l.b16 %v5241
    %v6912 = vunpack.c.h.b16 %v5241
    %v6913 = vunpack.c.l.b16 %v5242
    %v6914 = vunpack.c.h.b16 %v5242
    %v6915 = vunpack.c.l.b16 %v5243
    %v6916 = vunpack.c.l.b16 %v5244
    %v6917 = vunpack.c.h.b16 %v5244
    %v6918 = vunpack.c.l.b16 %v5245
    %v6919 = vunpack.c.h.b16 %v5245
    %v6920 = vunpack.c.l.b16 %v5246
    %v6921 = vunpack.c.h.b16 %v5246
    %v6922 = vunpack.c.l.b16 %v5247
    %v6923 = vunpack.c.h.b16 %v5247
    %v6924 = vunpack.c.l.b16 %v5248
    %v6925 = vunpack.c.h.b16 %v5248
    %v6926 = vunpack.c.l.b16 %v5249
    %v6927 = vunpack.c.h.b16 %v5249
    %v6928 = vunpack.c.l.b16 %v5250
    %v6929 = vunpack.c.h.b16 %v5250
    %v6930 = vunpack.c.l.b16 %v5251
    %v6931 = vunpack.c.h.b16 %v5251
    %v6932 = vunpack.c.l.b16 %v5252
    %v6933 = vunpack.c.l.b16 %v5253
    %v6934 = vunpack.c.h.b16 %v5253
    %v6935 = vunpack.c.l.b16 %v5254
    %v6936 = vunpack.c.h.b16 %v5254
    %v6937 = vunpack.c.l.b16 %v5255
    %v6938 = vunpack.c.h.b16 %v5255
    %v6939 = vunpack.c.l.b16 %v5256
    %v6940 = vunpack.c.h.b16 %v5256
    %v6941 = vunpack.c.l.b16 %v5257
    %v6942 = vunpack.c.h.b16 %v5257
    %v6943 = vunpack.c.l.b16 %v5258
    %v6944 = vunpack.c.h.b16 %v5258
    %v6945 = vunpack.c.l.b16 %v5259
    %v6946 = vunpack.c.h.b16 %v5259
    %v6947 = vunpack.c.l.b16 %v5260
    %v6948 = vunpack.c.h.b16 %v5260
    %v6949 = vunpack.c.l.b16 %v5261
    %v6950 = vunpack.c.l.b16 %v5262
    %v6951 = vunpack.c.h.b16 %v5262
    %v6952 = vunpack.c.l.b16 %v5263
    %v6953 = vunpack.c.h.b16 %v5263
    %v6954 = vunpack.c.l.b16 %v5264
    %v6955 = vunpack.c.h.b16 %v5264
    %v6956 = vunpack.c.l.b16 %v5265
    %v6957 = vunpack.c.h.b16 %v5265
    %v6958 = vunpack.c.l.b16 %v5266
    %v6959 = vunpack.c.h.b16 %v5266
    %v6960 = vunpack.c.l.b16 %v5267
    %v6961 = vunpack.c.h.b16 %v5267
    %v6962 = vunpack.c.l.b16 %v5268
    %v6963 = vunpack.c.h.b16 %v5268
    %v6964 = vunpack.c.l.b16 %v5269
    %v6965 = vunpack.c.h.b16 %v5269
    %v6966 = vunpack.c.l.b16 %v5270
    %v6967 = vunpack.c.l.b16 %v5271
    %v6968 = vunpack.c.h.b16 %v5271
    %v6969 = vunpack.c.l.b16 %v5272
    %v6970 = vunpack.c.h.b16 %v5272
    %v6971 = vunpack.c.l.b16 %v5273
    %v6972 = vunpack.c.h.b16 %v5273
    %v6973 = vunpack.c.l.b16 %v5274
    %v6974 = vunpack.c.h.b16 %v5274
    %v6975 = vunpack.c.l.b16 %v5275
    %v6976 = vunpack.c.h.b16 %v5275
    %v6977 = vunpack.c.l.b16 %v5276
    %v6978 = vunpack.c.h.b16 %v5276
    %v6979 = vunpack.c.l.b16 %v5277
    %v6980 = vunpack.c.h.b16 %v5277
    %v6981 = vunpack.c.l.b16 %v5278
    %v6982 = vunpack.c.h.b16 %v5278
    %v6983 = vunpack.c.l.b16 %v5279
    %v6984 = vpack.c.b16 %v5913, %v5896
    %v6985 = vpack.c.b16 %v5914, %v5897
    %v6986 = vpack.c.b16 %v5915, %v5898
    %v6987 = vpack.c.b16 %v5916, %v5899
    %v6988 = vpack.c.b16 %v5917, %v5900
    %v6989 = vpack.c.b16 %v5918, %v5901
    %v6990 = vpack.c.b16 %v5919, %v5902
    %v6991 = vpack.c.b16 %v5920, %v5903
    %v6992 = vpack.c.b16 %v5921, %v5904
    %v6993 = vpack.c.b16 %v5922, %v5905
    %v6994 = vpack.c.b16 %v5923, %v5906
    %v6995 = vpack.c.b16 %v5924, %v5907
    %v6996 = vpack.c.b16 %v5925, %v5908
    %v6997 = vpack.c.b16 %v5926, %v5909
    %v6998 = vpack.c.b16 %v5927, %v5910
    %v6999 = vpack.c.b16 %v5928, %v5911
    %v7000 = vpack.c.b16 %v5929, %v5912
    %v7001 = vpack.c.b16 %v5947, %v5930
    %v7002 = vpack.c.b16 %v5948, %v5931
    %v7003 = vpack.c.b16 %v5949, %v5932
    %v7004 = vpack.c.b16 %v5950, %v5933
    %v7005 = vpack.c.b16 %v5951, %v5934
    %v7006 = vpack.c.b16 %v5952, %v5935
    %v7007 = vpack.c.b16 %v5953, %v5936
    %v7008 = vpack.c.b16 %v5954, %v5937
    %v7009 = vpack.c.b16 %v5955, %v5938
    %v7010 = vpack.c.b16 %v5956, %v5939
    %v7011 = vpack.c.b16 %v5957, %v5940
    %v7012 = vpack.c.b16 %v5958, %v5941
    %v7013 = vpack.c.b16 %v5959, %v5942
    %v7014 = vpack.c.b16 %v5960, %v5943
    %v7015 = vpack.c.b16 %v5961, %v5944
    %v7016 = vpack.c.b16 %v5962, %v5945
    %v7017 = vpack.c.b16 %v5963, %v5946
    %v7018 = vpack.c.b16 %v5981, %v5964
    %v7019 = vpack.c.b16 %v5982, %v5965
    %v7020 = vpack.c.b16 %v5983, %v5966
    %v7021 = vpack.c.b16 %v5984, %v5967
    %v7022 = vpack.c.b16 %v5985, %v5968
    %v7023 = vpack.c.b16 %v5986, %v5969
    %v7024 = vpack.c.b16 %v5987, %v5970
    %v7025 = vpack.c.b16 %v5988, %v5971
    %v7026 = vpack.c.b16 %v5989, %v5972
    %v7027 = vpack.c.b16 %v5990, %v5973
    %v7028 = vpack.c.b16 %v5991, %v5974
    %v7029 = vpack.c.b16 %v5992, %v5975
    %v7030 = vpack.c.b16 %v5993, %v5976
    %v7031 = vpack.c.b16 %v5994, %v5977
    %v7032 = vpack.c.b16 %v5995, %v5978
    %v7033 = vpack.c.b16 %v5996, %v5979
    %v7034 = vpack.c.b16 %v5997, %v5980
    %v7035 = vpack.c.b16 %v6015, %v5998
    %v7036 = vpack.c.b16 %v6016, %v5999
    %v7037 = vpack.c.b16 %v6017, %v6000
    %v7038 = vpack.c.b16 %v6018, %v6001
    %v7039 = vpack.c.b16 %v6019, %v6002
    %v7040 = vpack.c.b16 %v6020, %v6003
    %v7041 = vpack.c.b16 %v6021, %v6004
    %v7042 = vpack.c.b16 %v6022, %v6005
    %v7043 = vpack.c.b16 %v6023, %v6006
    %v7044 = vpack.c.b16 %v6024, %v6007
    %v7045 = vpack.c.b16 %v6025, %v6008
    %v7046 = vpack.c.b16 %v6026, %v6009
    %v7047 = vpack.c.b16 %v6027, %v6010
    %v7048 = vpack.c.b16 %v6028, %v6011
    %v7049 = vpack.c.b16 %v6029, %v6012
    %v7050 = vpack.c.b16 %v6030, %v6013
    %v7051 = vpack.c.b16 %v6031, %v6014
    %v7052 = vpack.c.b16 %v6049, %v6032
    %v7053 = vpack.c.b16 %v6050, %v6033
    %v7054 = vpack.c.b16 %v6051, %v6034
    %v7055 = vpack.c.b16 %v6052, %v6035
    %v7056 = vpack.c.b16 %v6053, %v6036
    %v7057 = vpack.c.b16 %v6054, %v6037
    %v7058 = vpack.c.b16 %v6055, %v6038
    %v7059 = vpack.c.b16 %v6056, %v6039
    %v7060 = vpack.c.b16 %v6057, %v6040
    %v7061 = vpack.c.b16 %v6058, %v6041
    %v7062 = vpack.c.b16 %v6059, %v6042
    %v7063 = vpack.c.b16 %v6060, %v6043
    %v7064 = vpack.c.b16 %v6061, %v6044
    %v7065 = vpack.c.b16 %v6062, %v6045
    %v7066 = vpack.c.b16 %v6063, %v6046
    %v7067 = vpack.c.b16 %v6064, %v6047
    %v7068 = vpack.c.b16 %v6065, %v6048
    %v7069 = vpack.c.b16 %v6083, %v6066
    %v7070 = vpack.c.b16 %v6084, %v6067
    %v7071 = vpack.c.b16 %v6085, %v6068
    %v7072 = vpack.c.b16 %v6086, %v6069
    %v7073 = vpack.c.b16 %v6087, %v6070
    %v7074 = vpack.c.b16 %v6088, %v6071
    %v7075 = vpack.c.b16 %v6089, %v6072
    %v7076 = vpack.c.b16 %v6090, %v6073
    %v7077 = vpack.c.b16 %v6091, %v6074
    %v7078 = vpack.c.b16 %v6092, %v6075
    %v7079 = vpack.c.b16 %v6093, %v6076
    %v7080 = vpack.c.b16 %v6094, %v6077
    %v7081 = vpack.c.b16 %v6095, %v6078
    %v7082 = vpack.c.b16 %v6096, %v6079
    %v7083 = vpack.c.b16 %v6097, %v6080
    %v7084 = vpack.c.b16 %v6098, %v6081
    %v7085 = vpack.c.b16 %v6099, %v6082
    %v7086 = vpack.c.b16 %v6117, %v6100
    %v7087 = vpack.c.b16 %v6118, %v6101
    %v7088 = vpack.c.b16 %v6119, %v6102
    %v7089 = vpack.c.b16 %v6120, %v6103
    %v7090 = vpack.c.b16 %v6121, %v6104
    %v7091 = vpack.c.b16 %v6122, %v6105
    %v7092 = vpack.c.b16 %v6123, %v6106
    %v7093 = vpack.c.b16 %v6124, %v6107
    %v7094 = vpack.c.b16 %v6125, %v6108
    %v7095 = vpack.c.b16 %v6126, %v6109
    %v7096 = vpack.c.b16 %v6127, %v6110
    %v7097 = vpack.c.b16 %v6128, %v6111
    %v7098 = vpack.c.b16 %v6129, %v6112
    %v7099 = vpack.c.b16 %v6130, %v6113
    %v7100 = vpack.c.b16 %v6131, %v6114
    %v7101 = vpack.c.b16 %v6132, %v6115
    %v7102 = vpack.c.b16 %v6133, %v6116
    %v7103 = vpack.c.b16 %v6151, %v6134
    %v7104 = vpack.c.b16 %v6152, %v6135
    %v7105 = vpack.c.b16 %v6153, %v6136
    %v7106 = vpack.c.b16 %v6154, %v6137
    %v7107 = vpack.c.b16 %v6155, %v6138
    %v7108 = vpack.c.b16 %v6156, %v6139
    %v7109 = vpack.c.b16 %v6157, %v6140
    %v7110 = vpack.c.b16 %v6158, %v6141
    %v7111 = vpack.c.b16 %v6159, %v6142
    %v7112 = vpack.c.b16 %v6160, %v6143
    %v7113 = vpack.c.b16 %v6161, %v6144
    %v7114 = vpack.c.b16 %v6162, %v6145
    %v7115 = vpack.c.b16 %v6163, %v6146
    %v7116 = vpack.c.b16 %v6164, %v6147
    %v7117 = vpack.c.b16 %v6165, %v6148
    %v7118 = vpack.c.b16 %v6166, %v6149
    %v7119 = vpack.c.b16 %v6167, %v6150
    %v7120 = vpack.c.b16 %v6185, %v6168
    %v7121 = vpack.c.b16 %v6186, %v6169
    %v7122 = vpack.c.b16 %v6187, %v6170
    %v7123 = vpack.c.b16 %v6188, %v6171
    %v7124 = vpack.c.b16 %v6189, %v6172
    %v7125 = vpack.c.b16 %v6190, %v6173
    %v7126 = vpack.c.b16 %v6191, %v6174
    %v7127 = vpack.c.b16 %v6192, %v6175
    %v7128 = vpack.c.b16 %v6193, %v6176
    %v7129 = vpack.c.b16 %v6194, %v6177
    %v7130 = vpack.c.b16 %v6195, %v6178
    %v7131 = vpack.c.b16 %v6196, %v6179
    %v7132 = vpack.c.b16 %v6197, %v6180
    %v7133 = vpack.c.b16 %v6198, %v6181
    %v7134 = vpack.c.b16 %v6199, %v6182
    %v7135 = vpack.c.b16 %v6200, %v6183
    %v7136 = vpack.c.b16 %v6201, %v6184
    %v7137 = vpack.c.b16 %v6219, %v6202
    %v7138 = vpack.c.b16 %v6220, %v6203
    %v7139 = vpack.c.b16 %v6221, %v6204
    %v7140 = vpack.c.b16 %v6222, %v6205
    %v7141 = vpack.c.b16 %v6223, %v6206
    %v7142 = vpack.c.b16 %v6224, %v6207
    %v7143 = vpack.c.b16 %v6225, %v6208
    %v7144 = vpack.c.b16 %v6226, %v6209
    %v7145 = vpack.c.b16 %v6227, %v6210
    %v7146 = vpack.c.b16 %v6228, %v6211
    %v7147 = vpack.c.b16 %v6229, %v6212
    %v7148 = vpack.c.b16 %v6230, %v6213
    %v7149 = vpack.c.b16 %v6231, %v6214
    %v7150 = vpack.c.b16 %v6232, %v6215
    %v7151 = vpack.c.b16 %v6233, %v6216
    %v7152 = vpack.c.b16 %v6234, %v6217
    %v7153 = vpack.c.b16 %v6235, %v6218
    %v7154 = vpack.c.b16 %v6253, %v6236
    %v7155 = vpack.c.b16 %v6254, %v6237
    %v7156 = vpack.c.b16 %v6255, %v6238
    %v7157 = vpack.c.b16 %v6256, %v6239
    %v7158 = vpack.c.b16 %v6257, %v6240
    %v7159 = vpack.c.b16 %v6258, %v6241
    %v7160 = vpack.c.b16 %v6259, %v6242
    %v7161 = vpack.c.b16 %v6260, %v6243
    %v7162 = vpack.c.b16 %v6261, %v6244
    %v7163 = vpack.c.b16 %v6262, %v6245
    %v7164 = vpack.c.b16 %v6263, %v6246
    %v7165 = vpack.c.b16 %v6264, %v6247
    %v7166 = vpack.c.b16 %v6265, %v6248
    %v7167 = vpack.c.b16 %v6266, %v6249
    %v7168 = vpack.c.b16 %v6267, %v6250
    %v7169 = vpack.c.b16 %v6268, %v6251
    %v7170 = vpack.c.b16 %v6269, %v6252
    %v7171 = vpack.c.b16 %v6287, %v6270
    %v7172 = vpack.c.b16 %v6288, %v6271
    %v7173 = vpack.c.b16 %v6289, %v6272
    %v7174 = vpack.c.b16 %v6290, %v6273
    %v7175 = vpack.c.b16 %v6291, %v6274
    %v7176 = vpack.c.b16 %v6292, %v6275
    %v7177 = vpack.c.b16 %v6293, %v6276
    %v7178 = vpack.c.b16 %v6294, %v6277
    %v7179 = vpack.c.b16 %v6295, %v6278
    %v7180 = vpack.c.b16 %v6296, %v6279
    %v7181 = vpack.c.b16 %v6297, %v6280
    %v7182 = vpack.c.b16 %v6298, %v6281
    %v7183 = vpack.c.b16 %v6299, %v6282
    %v7184 = vpack.c.b16 %v6300, %v6283
    %v7185 = vpack.c.b16 %v6301, %v6284
    %v7186 = vpack.c.b16 %v6302, %v6285
    %v7187 = vpack.c.b16 %v6303, %v6286
    %v7188 = vpack.c.b16 %v6321, %v6304
    %v7189 = vpack.c.b16 %v6322, %v6305
    %v7190 = vpack.c.b16 %v6323, %v6306
    %v7191 = vpack.c.b16 %v6324, %v6307
    %v7192 = vpack.c.b16 %v6325, %v6308
    %v7193 = vpack.c.b16 %v6326, %v6309
    %v7194 = vpack.c.b16 %v6327, %v6310
    %v7195 = vpack.c.b16 %v6328, %v6311
    %v7196 = vpack.c.b16 %v6329, %v6312
    %v7197 = vpack.c.b16 %v6330, %v6313
    %v7198 = vpack.c.b16 %v6331, %v6314
    %v7199 = vpack.c.b16 %v6332, %v6315
    %v7200 = vpack.c.b16 %v6333, %v6316
    %v7201 = vpack.c.b16 %v6334, %v6317
    %v7202 = vpack.c.b16 %v6335, %v6318
    %v7203 = vpack.c.b16 %v6336, %v6319
    %v7204 = vpack.c.b16 %v6337, %v6320
    %v7205 = vpack.c.b16 %v6355, %v6338
    %v7206 = vpack.c.b16 %v6356, %v6339
    %v7207 = vpack.c.b16 %v6357, %v6340
    %v7208 = vpack.c.b16 %v6358, %v6341
    %v7209 = vpack.c.b16 %v6359, %v6342
    %v7210 = vpack.c.b16 %v6360, %v6343
    %v7211 = vpack.c.b16 %v6361, %v6344
    %v7212 = vpack.c.b16 %v6362, %v6345
    %v7213 = vpack.c.b16 %v6363, %v6346
    %v7214 = vpack.c.b16 %v6364, %v6347
    %v7215 = vpack.c.b16 %v6365, %v6348
    %v7216 = vpack.c.b16 %v6366, %v6349
    %v7217 = vpack.c.b16 %v6367, %v6350
    %v7218 = vpack.c.b16 %v6368, %v6351
    %v7219 = vpack.c.b16 %v6369, %v6352
    %v7220 = vpack.c.b16 %v6370, %v6353
    %v7221 = vpack.c.b16 %v6371, %v6354
    %v7222 = vpack.c.b16 %v6389, %v6372
    %v7223 = vpack.c.b16 %v6390, %v6373
    %v7224 = vpack.c.b16 %v6391, %v6374
    %v7225 = vpack.c.b16 %v6392, %v6375
    %v7226 = vpack.c.b16 %v6393, %v6376
    %v7227 = vpack.c.b16 %v6394, %v6377
    %v7228 = vpack.c.b16 %v6395, %v6378
    %v7229 = vpack.c.b16 %v6396, %v6379
    %v7230 = vpack.c.b16 %v6397, %v6380
    %v7231 = vpack.c.b16 %v6398, %v6381
    %v7232 = vpack.c.b16 %v6399, %v6382
    %v7233 = vpack.c.b16 %v6400, %v6383
    %v7234 = vpack.c.b16 %v6401, %v6384
    %v7235 = vpack.c.b16 %v6402, %v6385
    %v7236 = vpack.c.b16 %v6403, %v6386
    %v7237 = vpack.c.b16 %v6404, %v6387
    %v7238 = vpack.c.b16 %v6405, %v6388
    %v7239 = vpack.c.b16 %v6423, %v6406
    %v7240 = vpack.c.b16 %v6424, %v6407
    %v7241 = vpack.c.b16 %v6425, %v6408
    %v7242 = vpack.c.b16 %v6426, %v6409
    %v7243 = vpack.c.b16 %v6427, %v6410
    %v7244 = vpack.c.b16 %v6428, %v6411
    %v7245 = vpack.c.b16 %v6429, %v6412
    %v7246 = vpack.c.b16 %v6430, %v6413
    %v7247 = vpack.c.b16 %v6431, %v6414
    %v7248 = vpack.c.b16 %v6432, %v6415
    %v7249 = vpack.c.b16 %v6433, %v6416
    %v7250 = vpack.c.b16 %v6434, %v6417
    %v7251 = vpack.c.b16 %v6435, %v6418
    %v7252 = vpack.c.b16 %v6436, %v6419
    %v7253 = vpack.c.b16 %v6437, %v6420
    %v7254 = vpack.c.b16 %v6438, %v6421
    %v7255 = vpack.c.b16 %v6439, %v6422
    %v7256 = vpack.c.b16 %v6457, %v6440
    %v7257 = vpack.c.b16 %v6458, %v6441
    %v7258 = vpack.c.b16 %v6459, %v6442
    %v7259 = vpack.c.b16 %v6460, %v6443
    %v7260 = vpack.c.b16 %v6461, %v6444
    %v7261 = vpack.c.b16 %v6462, %v6445
    %v7262 = vpack.c.b16 %v6463, %v6446
    %v7263 = vpack.c.b16 %v6464, %v6447
    %v7264 = vpack.c.b16 %v6465, %v6448
    %v7265 = vpack.c.b16 %v6466, %v6449
    %v7266 = vpack.c.b16 %v6467, %v6450
    %v7267 = vpack.c.b16 %v6468, %v6451
    %v7268 = vpack.c.b16 %v6469, %v6452
    %v7269 = vpack.c.b16 %v6470, %v6453
    %v7270 = vpack.c.b16 %v6471, %v6454
    %v7271 = vpack.c.b16 %v6472, %v6455
    %v7272 = vpack.c.b16 %v6473, %v6456
    %v7273 = vpack.c.b16 %v6491, %v6474
    %v7274 = vpack.c.b16 %v6492, %v6475
    %v7275 = vpack.c.b16 %v6493, %v6476
    %v7276 = vpack.c.b16 %v6494, %v6477
    %v7277 = vpack.c.b16 %v6495, %v6478
    %v7278 = vpack.c.b16 %v6496, %v6479
    %v7279 = vpack.c.b16 %v6497, %v6480
    %v7280 = vpack.c.b16 %v6498, %v6481
    %v7281 = vpack.c.b16 %v6499, %v6482
    %v7282 = vpack.c.b16 %v6500, %v6483
    %v7283 = vpack.c.b16 %v6501, %v6484
    %v7284 = vpack.c.b16 %v6502, %v6485
    %v7285 = vpack.c.b16 %v6503, %v6486
    %v7286 = vpack.c.b16 %v6504, %v6487
    %v7287 = vpack.c.b16 %v6505, %v6488
    %v7288 = vpack.c.b16 %v6506, %v6489
    %v7289 = vpack.c.b16 %v6507, %v6490
    %v7290 = vpack.c.b16 %v6525, %v6508
    %v7291 = vpack.c.b16 %v6526, %v6509
    %v7292 = vpack.c.b16 %v6527, %v6510
    %v7293 = vpack.c.b16 %v6528, %v6511
    %v7294 = vpack.c.b16 %v6529, %v6512
    %v7295 = vpack.c.b16 %v6530, %v6513
    %v7296 = vpack.c.b16 %v6531, %v6514
    %v7297 = vpack.c.b16 %v6532, %v6515
    %v7298 = vpack.c.b16 %v6533, %v6516
    %v7299 = vpack.c.b16 %v6534, %v6517
    %v7300 = vpack.c.b16 %v6535, %v6518
    %v7301 = vpack.c.b16 %v6536, %v6519
    %v7302 = vpack.c.b16 %v6537, %v6520
    %v7303 = vpack.c.b16 %v6538, %v6521
    %v7304 = vpack.c.b16 %v6539, %v6522
    %v7305 = vpack.c.b16 %v6540, %v6523
    %v7306 = vpack.c.b16 %v6541, %v6524
    %v7307 = vpack.c.b16 %v6559, %v6542
    %v7308 = vpack.c.b16 %v6560, %v6543
    %v7309 = vpack.c.b16 %v6561, %v6544
    %v7310 = vpack.c.b16 %v6562, %v6545
    %v7311 = vpack.c.b16 %v6563, %v6546
    %v7312 = vpack.c.b16 %v6564, %v6547
    %v7313 = vpack.c.b16 %v6565, %v6548
    %v7314 = vpack.c.b16 %v6566, %v6549
    %v7315 = vpack.c.b16 %v6567, %v6550
    %v7316 = vpack.c.b16 %v6568, %v6551
    %v7317 = vpack.c.b16 %v6569, %v6552
    %v7318 = vpack.c.b16 %v6570, %v6553
    %v7319 = vpack.c.b16 %v6571, %v6554
    %v7320 = vpack.c.b16 %v6572, %v6555
    %v7321 = vpack.c.b16 %v6573, %v6556
    %v7322 = vpack.c.b16 %v6574, %v6557
    %v7323 = vpack.c.b16 %v6575, %v6558
    %v7324 = vpack.c.b16 %v6593, %v6576
    %v7325 = vpack.c.b16 %v6594, %v6577
    %v7326 = vpack.c.b16 %v6595, %v6578
    %v7327 = vpack.c.b16 %v6596, %v6579
    %v7328 = vpack.c.b16 %v6597, %v6580
    %v7329 = vpack.c.b16 %v6598, %v6581
    %v7330 = vpack.c.b16 %v6599, %v6582
    %v7331 = vpack.c.b16 %v6600, %v6583
    %v7332 = vpack.c.b16 %v6601, %v6584
    %v7333 = vpack.c.b16 %v6602, %v6585
    %v7334 = vpack.c.b16 %v6603, %v6586
    %v7335 = vpack.c.b16 %v6604, %v6587
    %v7336 = vpack.c.b16 %v6605, %v6588
    %v7337 = vpack.c.b16 %v6606, %v6589
    %v7338 = vpack.c.b16 %v6607, %v6590
    %v7339 = vpack.c.b16 %v6608, %v6591
    %v7340 = vpack.c.b16 %v6609, %v6592
    %v7341 = vpack.c.b16 %v6627, %v6610
    %v7342 = vpack.c.b16 %v6628, %v6611
    %v7343 = vpack.c.b16 %v6629, %v6612
    %v7344 = vpack.c.b16 %v6630, %v6613
    %v7345 = vpack.c.b16 %v6631, %v6614
    %v7346 = vpack.c.b16 %v6632, %v6615
    %v7347 = vpack.c.b16 %v6633, %v6616
    %v7348 = vpack.c.b16 %v6634, %v6617
    %v7349 = vpack.c.b16 %v6635, %v6618
    %v7350 = vpack.c.b16 %v6636, %v6619
    %v7351 = vpack.c.b16 %v6637, %v6620
    %v7352 = vpack.c.b16 %v6638, %v6621
    %v7353 = vpack.c.b16 %v6639, %v6622
    %v7354 = vpack.c.b16 %v6640, %v6623
    %v7355 = vpack.c.b16 %v6641, %v6624
    %v7356 = vpack.c.b16 %v6642, %v6625
    %v7357 = vpack.c.b16 %v6643, %v6626
    %v7358 = vpack.c.b16 %v6661, %v6644
    %v7359 = vpack.c.b16 %v6662, %v6645
    %v7360 = vpack.c.b16 %v6663, %v6646
    %v7361 = vpack.c.b16 %v6664, %v6647
    %v7362 = vpack.c.b16 %v6665, %v6648
    %v7363 = vpack.c.b16 %v6666, %v6649
    %v7364 = vpack.c.b16 %v6667, %v6650
    %v7365 = vpack.c.b16 %v6668, %v6651
    %v7366 = vpack.c.b16 %v6669, %v6652
    %v7367 = vpack.c.b16 %v6670, %v6653
    %v7368 = vpack.c.b16 %v6671, %v6654
    %v7369 = vpack.c.b16 %v6672, %v6655
    %v7370 = vpack.c.b16 %v6673, %v6656
    %v7371 = vpack.c.b16 %v6674, %v6657
    %v7372 = vpack.c.b16 %v6675, %v6658
    %v7373 = vpack.c.b16 %v6676, %v6659
    %v7374 = vpack.c.b16 %v6677, %v6660
    %v7375 = vpack.c.b16 %v6695, %v6678
    %v7376 = vpack.c.b16 %v6696, %v6679
    %v7377 = vpack.c.b16 %v6697, %v6680
    %v7378 = vpack.c.b16 %v6698, %v6681
    %v7379 = vpack.c.b16 %v6699, %v6682
    %v7380 = vpack.c.b16 %v6700, %v6683
    %v7381 = vpack.c.b16 %v6701, %v6684
    %v7382 = vpack.c.b16 %v6702, %v6685
    %v7383 = vpack.c.b16 %v6703, %v6686
    %v7384 = vpack.c.b16 %v6704, %v6687
    %v7385 = vpack.c.b16 %v6705, %v6688
    %v7386 = vpack.c.b16 %v6706, %v6689
    %v7387 = vpack.c.b16 %v6707, %v6690
    %v7388 = vpack.c.b16 %v6708, %v6691
    %v7389 = vpack.c.b16 %v6709, %v6692
    %v7390 = vpack.c.b16 %v6710, %v6693
    %v7391 = vpack.c.b16 %v6711, %v6694
    %v7392 = vpack.c.b16 %v6729, %v6712
    %v7393 = vpack.c.b16 %v6730, %v6713
    %v7394 = vpack.c.b16 %v6731, %v6714
    %v7395 = vpack.c.b16 %v6732, %v6715
    %v7396 = vpack.c.b16 %v6733, %v6716
    %v7397 = vpack.c.b16 %v6734, %v6717
    %v7398 = vpack.c.b16 %v6735, %v6718
    %v7399 = vpack.c.b16 %v6736, %v6719
    %v7400 = vpack.c.b16 %v6737, %v6720
    %v7401 = vpack.c.b16 %v6738, %v6721
    %v7402 = vpack.c.b16 %v6739, %v6722
    %v7403 = vpack.c.b16 %v6740, %v6723
    %v7404 = vpack.c.b16 %v6741, %v6724
    %v7405 = vpack.c.b16 %v6742, %v6725
    %v7406 = vpack.c.b16 %v6743, %v6726
    %v7407 = vpack.c.b16 %v6744, %v6727
    %v7408 = vpack.c.b16 %v6745, %v6728
    %v7409 = vpack.c.b16 %v6763, %v6746
    %v7410 = vpack.c.b16 %v6764, %v6747
    %v7411 = vpack.c.b16 %v6765, %v6748
    %v7412 = vpack.c.b16 %v6766, %v6749
    %v7413 = vpack.c.b16 %v6767, %v6750
    %v7414 = vpack.c.b16 %v6768, %v6751
    %v7415 = vpack.c.b16 %v6769, %v6752
    %v7416 = vpack.c.b16 %v6770, %v6753
    %v7417 = vpack.c.b16 %v6771, %v6754
    %v7418 = vpack.c.b16 %v6772, %v6755
    %v7419 = vpack.c.b16 %v6773, %v6756
    %v7420 = vpack.c.b16 %v6774, %v6757
    %v7421 = vpack.c.b16 %v6775, %v6758
    %v7422 = vpack.c.b16 %v6776, %v6759
    %v7423 = vpack.c.b16 %v6777, %v6760
    %v7424 = vpack.c.b16 %v6778, %v6761
    %v7425 = vpack.c.b16 %v6779, %v6762
    %v7426 = vpack.c.b16 %v6797, %v6780
    %v7427 = vpack.c.b16 %v6798, %v6781
    %v7428 = vpack.c.b16 %v6799, %v6782
    %v7429 = vpack.c.b16 %v6800, %v6783
    %v7430 = vpack.c.b16 %v6801, %v6784
    %v7431 = vpack.c.b16 %v6802, %v6785
    %v7432 = vpack.c.b16 %v6803, %v6786
    %v7433 = vpack.c.b16 %v6804, %v6787
    %v7434 = vpack.c.b16 %v6805, %v6788
    %v7435 = vpack.c.b16 %v6806, %v6789
    %v7436 = vpack.c.b16 %v6807, %v6790
    %v7437 = vpack.c.b16 %v6808, %v6791
    %v7438 = vpack.c.b16 %v6809, %v6792
    %v7439 = vpack.c.b16 %v6810, %v6793
    %v7440 = vpack.c.b16 %v6811, %v6794
    %v7441 = vpack.c.b16 %v6812, %v6795
    %v7442 = vpack.c.b16 %v6813, %v6796
    %v7443 = vpack.c.b16 %v6831, %v6814
    %v7444 = vpack.c.b16 %v6832, %v6815
    %v7445 = vpack.c.b16 %v6833, %v6816
    %v7446 = vpack.c.b16 %v6834, %v6817
    %v7447 = vpack.c.b16 %v6835, %v6818
    %v7448 = vpack.c.b16 %v6836, %v6819
    %v7449 = vpack.c.b16 %v6837, %v6820
    %v7450 = vpack.c.b16 %v6838, %v6821
    %v7451 = vpack.c.b16 %v6839, %v6822
    %v7452 = vpack.c.b16 %v6840, %v6823
    %v7453 = vpack.c.b16 %v6841, %v6824
    %v7454 = vpack.c.b16 %v6842, %v6825
    %v7455 = vpack.c.b16 %v6843, %v6826
    %v7456 = vpack.c.b16 %v6844, %v6827
    %v7457 = vpack.c.b16 %v6845, %v6828
    %v7458 = vpack.c.b16 %v6846, %v6829
    %v7459 = vpack.c.b16 %v6847, %v6830
    %v7460 = vpack.c.b16 %v6865, %v6848
    %v7461 = vpack.c.b16 %v6866, %v6849
    %v7462 = vpack.c.b16 %v6867, %v6850
    %v7463 = vpack.c.b16 %v6868, %v6851
    %v7464 = vpack.c.b16 %v6869, %v6852
    %v7465 = vpack.c.b16 %v6870, %v6853
    %v7466 = vpack.c.b16 %v6871, %v6854
    %v7467 = vpack.c.b16 %v6872, %v6855
    %v7468 = vpack.c.b16 %v6873, %v6856
    %v7469 = vpack.c.b16 %v6874, %v6857
    %v7470 = vpack.c.b16 %v6875, %v6858
    %v7471 = vpack.c.b16 %v6876, %v6859
    %v7472 = vpack.c.b16 %v6877, %v6860
    %v7473 = vpack.c.b16 %v6878, %v6861
    %v7474 = vpack.c.b16 %v6879, %v6862
    %v7475 = vpack.c.b16 %v6880, %v6863
    %v7476 = vpack.c.b16 %v6881, %v6864
    %v7477 = vpack.c.b16 %v6899, %v6882
    %v7478 = vpack.c.b16 %v6900, %v6883
    %v7479 = vpack.c.b16 %v6901, %v6884
    %v7480 = vpack.c.b16 %v6902, %v6885
    %v7481 = vpack.c.b16 %v6903, %v6886
    %v7482 = vpack.c.b16 %v6904, %v6887
    %v7483 = vpack.c.b16 %v6905, %v6888
    %v7484 = vpack.c.b16 %v6906, %v6889
    %v7485 = vpack.c.b16 %v6907, %v6890
    %v7486 = vpack.c.b16 %v6908, %v6891
    %v7487 = vpack.c.b16 %v6909, %v6892
    %v7488 = vpack.c.b16 %v6910, %v6893
    %v7489 = vpack.c.b16 %v6911, %v6894
    %v7490 = vpack.c.b16 %v6912, %v6895
    %v7491 = vpack.c.b16 %v6913, %v6896
    %v7492 = vpack.c.b16 %v6914, %v6897
    %v7493 = vpack.c.b16 %v6915, %v6898
    %v7494 = vpack.c.b16 %v6933, %v6916
    %v7495 = vpack.c.b16 %v6934, %v6917
    %v7496 = vpack.c.b16 %v6935, %v6918
    %v7497 = vpack.c.b16 %v6936, %v6919
    %v7498 = vpack.c.b16 %v6937, %v6920
    %v7499 = vpack.c.b16 %v6938, %v6921
    %v7500 = vpack.c.b16 %v6939, %v6922
    %v7501 = vpack.c.b16 %v6940, %v6923
    %v7502 = vpack.c.b16 %v6941, %v6924
    %v7503 = vpack.c.b16 %v6942, %v6925
    %v7504 = vpack.c.b16 %v6943, %v6926
    %v7505 = vpack.c.b16 %v6944, %v6927
    %v7506 = vpack.c.b16 %v6945, %v6928
    %v7507 = vpack.c.b16 %v6946, %v6929
    %v7508 = vpack.c.b16 %v6947, %v6930
    %v7509 = vpack.c.b16 %v6948, %v6931
    %v7510 = vpack.c.b16 %v6949, %v6932
    %v7511 = vpack.c.b16 %v6967, %v6950
    %v7512 = vpack.c.b16 %v6968, %v6951
    %v7513 = vpack.c.b16 %v6969, %v6952
    %v7514 = vpack.c.b16 %v6970, %v6953
    %v7515 = vpack.c.b16 %v6971, %v6954
    %v7516 = vpack.c.b16 %v6972, %v6955
    %v7517 = vpack.c.b16 %v6973, %v6956
    %v7518 = vpack.c.b16 %v6974, %v6957
    %v7519 = vpack.c.b16 %v6975, %v6958
    %v7520 = vpack.c.b16 %v6976, %v6959
    %v7521 = vpack.c.b16 %v6977, %v6960
    %v7522 = vpack.c.b16 %v6978, %v6961
    %v7523 = vpack.c.b16 %v6979, %v6962
    %v7524 = vpack.c.b16 %v6980, %v6963
    %v7525 = vpack.c.b16 %v6981, %v6964
    %v7526 = vpack.c.b16 %v6982, %v6965
    %v7527 = vpack.c.b16 %v6983, %v6966
    %8072 = vmatpush.bf16.msra.mxu0 %v7103
    %8073 = vmatpush.bf16.msra.mxu0 %v7086
    %8074 = vmatpush.bf16.msra.mxu0 %v7069
    %8075 = vmatpush.bf16.msra.mxu0 %v7052
    %8076 = vmatpush.bf16.msra.mxu0 %v7035
    %8077 = vmatpush.bf16.msra.mxu0 %v7018
    %8078 = vmatpush.bf16.msra.mxu0 %v7001
    %8079 = vmatpush.bf16.msra.mxu0 %v6984
    %8080 = vmatmul.bf16.gmra.mxu0 %v4700
    %v8081 = vpop.f32.mrf.mxu0
    %v8082 = vadd.f32 %v5286, %v8081
    %v8083 = vpop.f32.mrf.mxu0
    %8084 = vdwg.mxu0
    %8085 = vmatpush.bf16.msra.mxu0 %v7239
    %8086 = vmatpush.bf16.msra.mxu0 %v7222
    %8087 = vmatpush.bf16.msra.mxu0 %v7205
    %8088 = vmatpush.bf16.msra.mxu0 %v7188
    %8089 = vmatpush.bf16.msra.mxu0 %v7171
    %8090 = vmatpush.bf16.msra.mxu0 %v7154
    %8091 = vmatpush.bf16.msra.mxu0 %v7137
    %8092 = vmatpush.bf16.msra.mxu0 %v7120
    %8093 = vmatmul.bf16.gmra.mxu0 %v4701
    %v8094 = vpop.f32.mrf.mxu0
    %v8095 = vadd.f32 %v8082, %v8094
    %v8096 = vpop.f32.mrf.mxu0
    %8097 = vdwg.mxu0
    %8098 = vmatpush.bf16.msra.mxu0 %v7375
    %8099 = vmatpush.bf16.msra.mxu0 %v7358
    %8100 = vmatpush.bf16.msra.mxu0 %v7341
    %8101 = vmatpush.bf16.msra.mxu0 %v7324
    %8102 = vmatpush.bf16.msra.mxu0 %v7307
    %8103 = vmatpush.bf16.msra.mxu0 %v7290
    %8104 = vmatpush.bf16.msra.mxu0 %v7273
    %8105 = vmatpush.bf16.msra.mxu0 %v7256
    %8106 = vmatmul.bf16.gmra.mxu0 %v4702
    %v8107 = vpop.f32.mrf.mxu0
    %v8108 = vadd.f32 %v8095, %v8107
    %v8109 = vpop.f32.mrf.mxu0
    %8110 = vdwg.mxu0
    %8111 = vmatpush.bf16.msra.mxu0 %v7511
    %8112 = vmatpush.bf16.msra.mxu0 %v7494
    %8113 = vmatpush.bf16.msra.mxu0 %v7477
    %8114 = vmatpush.bf16.msra.mxu0 %v7460
    %8115 = vmatpush.bf16.msra.mxu0 %v7443
    %8116 = vmatpush.bf16.msra.mxu0 %v7426
    %8117 = vmatpush.bf16.msra.mxu0 %v7409
    %8118 = vmatpush.bf16.msra.mxu0 %v7392
    %8119 = vmatmul.bf16.gmra.mxu0 %v4703
    %v8120 = vpop.f32.mrf.mxu0
    %v8121 = vadd.f32 %v8108, %v8120
    %v8122 = vpop.f32.mrf.mxu0
    %8123 = vdwg.mxu0
    %8124 = vmatpush.bf16.msra.mxu0 %v7104
    %8125 = vmatpush.bf16.msra.mxu0 %v7087
    %8126 = vmatpush.bf16.msra.mxu0 %v7070
    %8127 = vmatpush.bf16.msra.mxu0 %v7053
    %8128 = vmatpush.bf16.msra.mxu0 %v7036
    %8129 = vmatpush.bf16.msra.mxu0 %v7019
    %8130 = vmatpush.bf16.msra.mxu0 %v7002
    %8131 = vmatpush.bf16.msra.mxu0 %v6985
    %8132 = vmatmul.bf16.gmra.mxu0 %v4700
    %v8133 = vpop.f32.mrf.mxu0
    %v8134 = vadd.f32 %v5287, %v8133
    %v8135 = vpop.f32.mrf.mxu0
    %8136 = vdwg.mxu0
    %8137 = vmatpush.bf16.msra.mxu0 %v7240
    %8138 = vmatpush.bf16.msra.mxu0 %v7223
    %8139 = vmatpush.bf16.msra.mxu0 %v7206
    %8140 = vmatpush.bf16.msra.mxu0 %v7189
    %8141 = vmatpush.bf16.msra.mxu0 %v7172
    %8142 = vmatpush.bf16.msra.mxu0 %v7155
    %8143 = vmatpush.bf16.msra.mxu0 %v7138
    %8144 = vmatpush.bf16.msra.mxu0 %v7121
    %8145 = vmatmul.bf16.gmra.mxu0 %v4701
    %v8146 = vpop.f32.mrf.mxu0
    %v8147 = vadd.f32 %v8134, %v8146
    %v8148 = vpop.f32.mrf.mxu0
    %8149 = vdwg.mxu0
    %8150 = vmatpush.bf16.msra.mxu0 %v7376
    %8151 = vmatpush.bf16.msra.mxu0 %v7359
    %8152 = vmatpush.bf16.msra.mxu0 %v7342
    %8153 = vmatpush.bf16.msra.mxu0 %v7325
    %8154 = vmatpush.bf16.msra.mxu0 %v7308
    %8155 = vmatpush.bf16.msra.mxu0 %v7291
    %8156 = vmatpush.bf16.msra.mxu0 %v7274
    %8157 = vmatpush.bf16.msra.mxu0 %v7257
    %8158 = vmatmul.bf16.gmra.mxu0 %v4702
    %v8159 = vpop.f32.mrf.mxu0
    %v8160 = vadd.f32 %v8147, %v8159
    %v8161 = vpop.f32.mrf.mxu0
    %8162 = vdwg.mxu0
    %8163 = vmatpush.bf16.msra.mxu0 %v7512
    %8164 = vmatpush.bf16.msra.mxu0 %v7495
    %8165 = vmatpush.bf16.msra.mxu0 %v7478
    %8166 = vmatpush.bf16.msra.mxu0 %v7461
    %8167 = vmatpush.bf16.msra.mxu0 %v7444
    %8168 = vmatpush.bf16.msra.mxu0 %v7427
    %8169 = vmatpush.bf16.msra.mxu0 %v7410
    %8170 = vmatpush.bf16.msra.mxu0 %v7393
    %8171 = vmatmul.bf16.gmra.mxu0 %v4703
    %v8172 = vpop.f32.mrf.mxu0
    %v8173 = vadd.f32 %v8160, %v8172
    %v8174 = vpop.f32.mrf.mxu0
    %8175 = vdwg.mxu0
    %8176 = vmatpush.bf16.msra.mxu0 %v7105
    %8177 = vmatpush.bf16.msra.mxu0 %v7088
    %8178 = vmatpush.bf16.msra.mxu0 %v7071
    %8179 = vmatpush.bf16.msra.mxu0 %v7054
    %8180 = vmatpush.bf16.msra.mxu0 %v7037
    %8181 = vmatpush.bf16.msra.mxu0 %v7020
    %8182 = vmatpush.bf16.msra.mxu0 %v7003
    %8183 = vmatpush.bf16.msra.mxu0 %v6986
    %8184 = vmatmul.bf16.gmra.mxu0 %v4700
    %v8185 = vpop.f32.mrf.mxu0
    %v8186 = vadd.f32 %v5288, %v8185
    %v8187 = vpop.f32.mrf.mxu0
    %8188 = vdwg.mxu0
    %8189 = vmatpush.bf16.msra.mxu0 %v7241
    %8190 = vmatpush.bf16.msra.mxu0 %v7224
    %8191 = vmatpush.bf16.msra.mxu0 %v7207
    %8192 = vmatpush.bf16.msra.mxu0 %v7190
    %8193 = vmatpush.bf16.msra.mxu0 %v7173
    %8194 = vmatpush.bf16.msra.mxu0 %v7156
    %8195 = vmatpush.bf16.msra.mxu0 %v7139
    %8196 = vmatpush.bf16.msra.mxu0 %v7122
    %8197 = vmatmul.bf16.gmra.mxu0 %v4701
    %v8198 = vpop.f32.mrf.mxu0
    %v8199 = vadd.f32 %v8186, %v8198
    %v8200 = vpop.f32.mrf.mxu0
    %8201 = vdwg.mxu0
    %8202 = vmatpush.bf16.msra.mxu0 %v7377
    %8203 = vmatpush.bf16.msra.mxu0 %v7360
    %8204 = vmatpush.bf16.msra.mxu0 %v7343
    %8205 = vmatpush.bf16.msra.mxu0 %v7326
    %8206 = vmatpush.bf16.msra.mxu0 %v7309
    %8207 = vmatpush.bf16.msra.mxu0 %v7292
    %8208 = vmatpush.bf16.msra.mxu0 %v7275
    %8209 = vmatpush.bf16.msra.mxu0 %v7258
    %8210 = vmatmul.bf16.gmra.mxu0 %v4702
    %v8211 = vpop.f32.mrf.mxu0
    %v8212 = vadd.f32 %v8199, %v8211
    %v8213 = vpop.f32.mrf.mxu0
    %8214 = vdwg.mxu0
    %8215 = vmatpush.bf16.msra.mxu0 %v7513
    %8216 = vmatpush.bf16.msra.mxu0 %v7496
    %8217 = vmatpush.bf16.msra.mxu0 %v7479
    %8218 = vmatpush.bf16.msra.mxu0 %v7462
    %8219 = vmatpush.bf16.msra.mxu0 %v7445
    %8220 = vmatpush.bf16.msra.mxu0 %v7428
    %8221 = vmatpush.bf16.msra.mxu0 %v7411
    %8222 = vmatpush.bf16.msra.mxu0 %v7394
    %8223 = vmatmul.bf16.gmra.mxu0 %v4703
    %v8224 = vpop.f32.mrf.mxu0
    %v8225 = vadd.f32 %v8212, %v8224
    %v8226 = vpop.f32.mrf.mxu0
    %8227 = vdwg.mxu0
    %8228 = vmatpush.bf16.msra.mxu0 %v7106
    %8229 = vmatpush.bf16.msra.mxu0 %v7089
    %8230 = vmatpush.bf16.msra.mxu0 %v7072
    %8231 = vmatpush.bf16.msra.mxu0 %v7055
    %8232 = vmatpush.bf16.msra.mxu0 %v7038
    %8233 = vmatpush.bf16.msra.mxu0 %v7021
    %8234 = vmatpush.bf16.msra.mxu0 %v7004
    %8235 = vmatpush.bf16.msra.mxu0 %v6987
    %8236 = vmatmul.bf16.gmra.mxu0 %v4700
    %v8237 = vpop.f32.mrf.mxu0
    %v8238 = vadd.f32 %v5289, %v8237
    %v8239 = vpop.f32.mrf.mxu0
    %8240 = vdwg.mxu0
    %8241 = vmatpush.bf16.msra.mxu0 %v7242
    %8242 = vmatpush.bf16.msra.mxu0 %v7225
    %8243 = vmatpush.bf16.msra.mxu0 %v7208
    %8244 = vmatpush.bf16.msra.mxu0 %v7191
    %8245 = vmatpush.bf16.msra.mxu0 %v7174
    %8246 = vmatpush.bf16.msra.mxu0 %v7157
    %8247 = vmatpush.bf16.msra.mxu0 %v7140
    %8248 = vmatpush.bf16.msra.mxu0 %v7123
    %8249 = vmatmul.bf16.gmra.mxu0 %v4701
    %v8250 = vpop.f32.mrf.mxu0
    %v8251 = vadd.f32 %v8238, %v8250
    %v8252 = vpop.f32.mrf.mxu0
    %8253 = vdwg.mxu0
    %8254 = vmatpush.bf16.msra.mxu0 %v7378
    %8255 = vmatpush.bf16.msra.mxu0 %v7361
    %8256 = vmatpush.bf16.msra.mxu0 %v7344
    %8257 = vmatpush.bf16.msra.mxu0 %v7327
    %8258 = vmatpush.bf16.msra.mxu0 %v7310
    %8259 = vmatpush.bf16.msra.mxu0 %v7293
    %8260 = vmatpush.bf16.msra.mxu0 %v7276
    %8261 = vmatpush.bf16.msra.mxu0 %v7259
    %8262 = vmatmul.bf16.gmra.mxu0 %v4702
    %v8263 = vpop.f32.mrf.mxu0
    %v8264 = vadd.f32 %v8251, %v8263
    %v8265 = vpop.f32.mrf.mxu0
    %8266 = vdwg.mxu0
    %8267 = vmatpush.bf16.msra.mxu0 %v7514
    %8268 = vmatpush.bf16.msra.mxu0 %v7497
    %8269 = vmatpush.bf16.msra.mxu0 %v7480
    %8270 = vmatpush.bf16.msra.mxu0 %v7463
    %8271 = vmatpush.bf16.msra.mxu0 %v7446
    %8272 = vmatpush.bf16.msra.mxu0 %v7429
    %8273 = vmatpush.bf16.msra.mxu0 %v7412
    %8274 = vmatpush.bf16.msra.mxu0 %v7395
    %8275 = vmatmul.bf16.gmra.mxu0 %v4703
    %v8276 = vpop.f32.mrf.mxu0
    %v8277 = vadd.f32 %v8264, %v8276
    %v8278 = vpop.f32.mrf.mxu0
    %8279 = vdwg.mxu0
    %8280 = vmatpush.bf16.msra.mxu0 %v7107
    %8281 = vmatpush.bf16.msra.mxu0 %v7090
    %8282 = vmatpush.bf16.msra.mxu0 %v7073
    %8283 = vmatpush.bf16.msra.mxu0 %v7056
    %8284 = vmatpush.bf16.msra.mxu0 %v7039
    %8285 = vmatpush.bf16.msra.mxu0 %v7022
    %8286 = vmatpush.bf16.msra.mxu0 %v7005
    %8287 = vmatpush.bf16.msra.mxu0 %v6988
    %8288 = vmatmul.bf16.gmra.mxu0 %v4700
    %v8289 = vpop.f32.mrf.mxu0
    %v8290 = vadd.f32 %v5290, %v8289
    %v8291 = vpop.f32.mrf.mxu0
    %8292 = vdwg.mxu0
    %8293 = vmatpush.bf16.msra.mxu0 %v7243
    %8294 = vmatpush.bf16.msra.mxu0 %v7226
    %8295 = vmatpush.bf16.msra.mxu0 %v7209
    %8296 = vmatpush.bf16.msra.mxu0 %v7192
    %8297 = vmatpush.bf16.msra.mxu0 %v7175
    %8298 = vmatpush.bf16.msra.mxu0 %v7158
    %8299 = vmatpush.bf16.msra.mxu0 %v7141
    %8300 = vmatpush.bf16.msra.mxu0 %v7124
    %8301 = vmatmul.bf16.gmra.mxu0 %v4701
    %v8302 = vpop.f32.mrf.mxu0
    %v8303 = vadd.f32 %v8290, %v8302
    %v8304 = vpop.f32.mrf.mxu0
    %8305 = vdwg.mxu0
    %8306 = vmatpush.bf16.msra.mxu0 %v7379
    %8307 = vmatpush.bf16.msra.mxu0 %v7362
    %8308 = vmatpush.bf16.msra.mxu0 %v7345
    %8309 = vmatpush.bf16.msra.mxu0 %v7328
    %8310 = vmatpush.bf16.msra.mxu0 %v7311
    %8311 = vmatpush.bf16.msra.mxu0 %v7294
    %8312 = vmatpush.bf16.msra.mxu0 %v7277
    %8313 = vmatpush.bf16.msra.mxu0 %v7260
    %8314 = vmatmul.bf16.gmra.mxu0 %v4702
    %v8315 = vpop.f32.mrf.mxu0
    %v8316 = vadd.f32 %v8303, %v8315
    %v8317 = vpop.f32.mrf.mxu0
    %8318 = vdwg.mxu0
    %8319 = vmatpush.bf16.msra.mxu0 %v7515
    %8320 = vmatpush.bf16.msra.mxu0 %v7498
    %8321 = vmatpush.bf16.msra.mxu0 %v7481
    %8322 = vmatpush.bf16.msra.mxu0 %v7464
    %8323 = vmatpush.bf16.msra.mxu0 %v7447
    %8324 = vmatpush.bf16.msra.mxu0 %v7430
    %8325 = vmatpush.bf16.msra.mxu0 %v7413
    %8326 = vmatpush.bf16.msra.mxu0 %v7396
    %8327 = vmatmul.bf16.gmra.mxu0 %v4703
    %v8328 = vpop.f32.mrf.mxu0
    %v8329 = vadd.f32 %v8316, %v8328
    %v8330 = vpop.f32.mrf.mxu0
    %8331 = vdwg.mxu0
    %8332 = vmatpush.bf16.msra.mxu0 %v7108
    %8333 = vmatpush.bf16.msra.mxu0 %v7091
    %8334 = vmatpush.bf16.msra.mxu0 %v7074
    %8335 = vmatpush.bf16.msra.mxu0 %v7057
    %8336 = vmatpush.bf16.msra.mxu0 %v7040
    %8337 = vmatpush.bf16.msra.mxu0 %v7023
    %8338 = vmatpush.bf16.msra.mxu0 %v7006
    %8339 = vmatpush.bf16.msra.mxu0 %v6989
    %8340 = vmatmul.bf16.gmra.mxu0 %v4700
    %v8341 = vpop.f32.mrf.mxu0
    %v8342 = vadd.f32 %v5291, %v8341
    %v8343 = vpop.f32.mrf.mxu0
    %8344 = vdwg.mxu0
    %8345 = vmatpush.bf16.msra.mxu0 %v7244
    %8346 = vmatpush.bf16.msra.mxu0 %v7227
    %8347 = vmatpush.bf16.msra.mxu0 %v7210
    %8348 = vmatpush.bf16.msra.mxu0 %v7193
    %8349 = vmatpush.bf16.msra.mxu0 %v7176
    %8350 = vmatpush.bf16.msra.mxu0 %v7159
    %8351 = vmatpush.bf16.msra.mxu0 %v7142
    %8352 = vmatpush.bf16.msra.mxu0 %v7125
    %8353 = vmatmul.bf16.gmra.mxu0 %v4701
    %v8354 = vpop.f32.mrf.mxu0
    %v8355 = vadd.f32 %v8342, %v8354
    %v8356 = vpop.f32.mrf.mxu0
    %8357 = vdwg.mxu0
    %8358 = vmatpush.bf16.msra.mxu0 %v7380
    %8359 = vmatpush.bf16.msra.mxu0 %v7363
    %8360 = vmatpush.bf16.msra.mxu0 %v7346
    %8361 = vmatpush.bf16.msra.mxu0 %v7329
    %8362 = vmatpush.bf16.msra.mxu0 %v7312
    %8363 = vmatpush.bf16.msra.mxu0 %v7295
    %8364 = vmatpush.bf16.msra.mxu0 %v7278
    %8365 = vmatpush.bf16.msra.mxu0 %v7261
    %8366 = vmatmul.bf16.gmra.mxu0 %v4702
    %v8367 = vpop.f32.mrf.mxu0
    %v8368 = vadd.f32 %v8355, %v8367
    %v8369 = vpop.f32.mrf.mxu0
    %8370 = vdwg.mxu0
    %8371 = vmatpush.bf16.msra.mxu0 %v7516
    %8372 = vmatpush.bf16.msra.mxu0 %v7499
    %8373 = vmatpush.bf16.msra.mxu0 %v7482
    %8374 = vmatpush.bf16.msra.mxu0 %v7465
    %8375 = vmatpush.bf16.msra.mxu0 %v7448
    %8376 = vmatpush.bf16.msra.mxu0 %v7431
    %8377 = vmatpush.bf16.msra.mxu0 %v7414
    %8378 = vmatpush.bf16.msra.mxu0 %v7397
    %8379 = vmatmul.bf16.gmra.mxu0 %v4703
    %v8380 = vpop.f32.mrf.mxu0
    %v8381 = vadd.f32 %v8368, %v8380
    %v8382 = vpop.f32.mrf.mxu0
    %8383 = vdwg.mxu0
    %8384 = vmatpush.bf16.msra.mxu0 %v7109
    %8385 = vmatpush.bf16.msra.mxu0 %v7092
    %8386 = vmatpush.bf16.msra.mxu0 %v7075
    %8387 = vmatpush.bf16.msra.mxu0 %v7058
    %8388 = vmatpush.bf16.msra.mxu0 %v7041
    %8389 = vmatpush.bf16.msra.mxu0 %v7024
    %8390 = vmatpush.bf16.msra.mxu0 %v7007
    %8391 = vmatpush.bf16.msra.mxu0 %v6990
    %8392 = vmatmul.bf16.gmra.mxu0 %v4700
    %v8393 = vpop.f32.mrf.mxu0
    %v8394 = vadd.f32 %v5292, %v8393
    %v8395 = vpop.f32.mrf.mxu0
    %8396 = vdwg.mxu0
    %8397 = vmatpush.bf16.msra.mxu0 %v7245
    %8398 = vmatpush.bf16.msra.mxu0 %v7228
    %8399 = vmatpush.bf16.msra.mxu0 %v7211
    %8400 = vmatpush.bf16.msra.mxu0 %v7194
    %8401 = vmatpush.bf16.msra.mxu0 %v7177
    %8402 = vmatpush.bf16.msra.mxu0 %v7160
    %8403 = vmatpush.bf16.msra.mxu0 %v7143
    %8404 = vmatpush.bf16.msra.mxu0 %v7126
    %8405 = vmatmul.bf16.gmra.mxu0 %v4701
    %v8406 = vpop.f32.mrf.mxu0
    %v8407 = vadd.f32 %v8394, %v8406
    %v8408 = vpop.f32.mrf.mxu0
    %8409 = vdwg.mxu0
    %8410 = vmatpush.bf16.msra.mxu0 %v7381
    %8411 = vmatpush.bf16.msra.mxu0 %v7364
    %8412 = vmatpush.bf16.msra.mxu0 %v7347
    %8413 = vmatpush.bf16.msra.mxu0 %v7330
    %8414 = vmatpush.bf16.msra.mxu0 %v7313
    %8415 = vmatpush.bf16.msra.mxu0 %v7296
    %8416 = vmatpush.bf16.msra.mxu0 %v7279
    %8417 = vmatpush.bf16.msra.mxu0 %v7262
    %8418 = vmatmul.bf16.gmra.mxu0 %v4702
    %v8419 = vpop.f32.mrf.mxu0
    %v8420 = vadd.f32 %v8407, %v8419
    %v8421 = vpop.f32.mrf.mxu0
    %8422 = vdwg.mxu0
    %8423 = vmatpush.bf16.msra.mxu0 %v7517
    %8424 = vmatpush.bf16.msra.mxu0 %v7500
    %8425 = vmatpush.bf16.msra.mxu0 %v7483
    %8426 = vmatpush.bf16.msra.mxu0 %v7466
    %8427 = vmatpush.bf16.msra.mxu0 %v7449
    %8428 = vmatpush.bf16.msra.mxu0 %v7432
    %8429 = vmatpush.bf16.msra.mxu0 %v7415
    %8430 = vmatpush.bf16.msra.mxu0 %v7398
    %8431 = vmatmul.bf16.gmra.mxu0 %v4703
    %v8432 = vpop.f32.mrf.mxu0
    %v8433 = vadd.f32 %v8420, %v8432
    %v8434 = vpop.f32.mrf.mxu0
    %8435 = vdwg.mxu0
    %8436 = vmatpush.bf16.msra.mxu0 %v7110
    %8437 = vmatpush.bf16.msra.mxu0 %v7093
    %8438 = vmatpush.bf16.msra.mxu0 %v7076
    %8439 = vmatpush.bf16.msra.mxu0 %v7059
    %8440 = vmatpush.bf16.msra.mxu0 %v7042
    %8441 = vmatpush.bf16.msra.mxu0 %v7025
    %8442 = vmatpush.bf16.msra.mxu0 %v7008
    %8443 = vmatpush.bf16.msra.mxu0 %v6991
    %8444 = vmatmul.bf16.gmra.mxu0 %v4700
    %v8445 = vpop.f32.mrf.mxu0
    %v8446 = vadd.f32 %v5293, %v8445
    %v8447 = vpop.f32.mrf.mxu0
    %8448 = vdwg.mxu0
    %8449 = vmatpush.bf16.msra.mxu0 %v7246
    %8450 = vmatpush.bf16.msra.mxu0 %v7229
    %8451 = vmatpush.bf16.msra.mxu0 %v7212
    %8452 = vmatpush.bf16.msra.mxu0 %v7195
    %8453 = vmatpush.bf16.msra.mxu0 %v7178
    %8454 = vmatpush.bf16.msra.mxu0 %v7161
    %8455 = vmatpush.bf16.msra.mxu0 %v7144
    %8456 = vmatpush.bf16.msra.mxu0 %v7127
    %8457 = vmatmul.bf16.gmra.mxu0 %v4701
    %v8458 = vpop.f32.mrf.mxu0
    %v8459 = vadd.f32 %v8446, %v8458
    %v8460 = vpop.f32.mrf.mxu0
    %8461 = vdwg.mxu0
    %8462 = vmatpush.bf16.msra.mxu0 %v7382
    %8463 = vmatpush.bf16.msra.mxu0 %v7365
    %8464 = vmatpush.bf16.msra.mxu0 %v7348
    %8465 = vmatpush.bf16.msra.mxu0 %v7331
    %8466 = vmatpush.bf16.msra.mxu0 %v7314
    %8467 = vmatpush.bf16.msra.mxu0 %v7297
    %8468 = vmatpush.bf16.msra.mxu0 %v7280
    %8469 = vmatpush.bf16.msra.mxu0 %v7263
    %8470 = vmatmul.bf16.gmra.mxu0 %v4702
    %v8471 = vpop.f32.mrf.mxu0
    %v8472 = vadd.f32 %v8459, %v8471
    %v8473 = vpop.f32.mrf.mxu0
    %8474 = vdwg.mxu0
    %8475 = vmatpush.bf16.msra.mxu0 %v7518
    %8476 = vmatpush.bf16.msra.mxu0 %v7501
    %8477 = vmatpush.bf16.msra.mxu0 %v7484
    %8478 = vmatpush.bf16.msra.mxu0 %v7467
    %8479 = vmatpush.bf16.msra.mxu0 %v7450
    %8480 = vmatpush.bf16.msra.mxu0 %v7433
    %8481 = vmatpush.bf16.msra.mxu0 %v7416
    %8482 = vmatpush.bf16.msra.mxu0 %v7399
    %8483 = vmatmul.bf16.gmra.mxu0 %v4703
    %v8484 = vpop.f32.mrf.mxu0
    %v8485 = vadd.f32 %v8472, %v8484
    %v8486 = vpop.f32.mrf.mxu0
    %8487 = vdwg.mxu0
    %8488 = vmatpush.bf16.msra.mxu0 %v7111
    %8489 = vmatpush.bf16.msra.mxu0 %v7094
    %8490 = vmatpush.bf16.msra.mxu0 %v7077
    %8491 = vmatpush.bf16.msra.mxu0 %v7060
    %8492 = vmatpush.bf16.msra.mxu0 %v7043
    %8493 = vmatpush.bf16.msra.mxu0 %v7026
    %8494 = vmatpush.bf16.msra.mxu0 %v7009
    %8495 = vmatpush.bf16.msra.mxu0 %v6992
    %8496 = vmatmul.bf16.gmra.mxu0 %v4700
    %v8497 = vpop.f32.mrf.mxu0
    %v8498 = vadd.f32 %v5294, %v8497
    %v8499 = vpop.f32.mrf.mxu0
    %8500 = vdwg.mxu0
    %8501 = vmatpush.bf16.msra.mxu0 %v7247
    %8502 = vmatpush.bf16.msra.mxu0 %v7230
    %8503 = vmatpush.bf16.msra.mxu0 %v7213
    %8504 = vmatpush.bf16.msra.mxu0 %v7196
    %8505 = vmatpush.bf16.msra.mxu0 %v7179
    %8506 = vmatpush.bf16.msra.mxu0 %v7162
    %8507 = vmatpush.bf16.msra.mxu0 %v7145
    %8508 = vmatpush.bf16.msra.mxu0 %v7128
    %8509 = vmatmul.bf16.gmra.mxu0 %v4701
    %v8510 = vpop.f32.mrf.mxu0
    %v8511 = vadd.f32 %v8498, %v8510
    %v8512 = vpop.f32.mrf.mxu0
    %8513 = vdwg.mxu0
    %8514 = vmatpush.bf16.msra.mxu0 %v7383
    %8515 = vmatpush.bf16.msra.mxu0 %v7366
    %8516 = vmatpush.bf16.msra.mxu0 %v7349
    %8517 = vmatpush.bf16.msra.mxu0 %v7332
    %8518 = vmatpush.bf16.msra.mxu0 %v7315
    %8519 = vmatpush.bf16.msra.mxu0 %v7298
    %8520 = vmatpush.bf16.msra.mxu0 %v7281
    %8521 = vmatpush.bf16.msra.mxu0 %v7264
    %8522 = vmatmul.bf16.gmra.mxu0 %v4702
    %v8523 = vpop.f32.mrf.mxu0
    %v8524 = vadd.f32 %v8511, %v8523
    %v8525 = vpop.f32.mrf.mxu0
    %8526 = vdwg.mxu0
    %8527 = vmatpush.bf16.msra.mxu0 %v7519
    %8528 = vmatpush.bf16.msra.mxu0 %v7502
    %8529 = vmatpush.bf16.msra.mxu0 %v7485
    %8530 = vmatpush.bf16.msra.mxu0 %v7468
    %8531 = vmatpush.bf16.msra.mxu0 %v7451
    %8532 = vmatpush.bf16.msra.mxu0 %v7434
    %8533 = vmatpush.bf16.msra.mxu0 %v7417
    %8534 = vmatpush.bf16.msra.mxu0 %v7400
    %8535 = vmatmul.bf16.gmra.mxu0 %v4703
    %v8536 = vpop.f32.mrf.mxu0
    %v8537 = vadd.f32 %v8524, %v8536
    %v8538 = vpop.f32.mrf.mxu0
    %8539 = vdwg.mxu0
    %8540 = vmatpush.bf16.msra.mxu0 %v7112
    %8541 = vmatpush.bf16.msra.mxu0 %v7095
    %8542 = vmatpush.bf16.msra.mxu0 %v7078
    %8543 = vmatpush.bf16.msra.mxu0 %v7061
    %8544 = vmatpush.bf16.msra.mxu0 %v7044
    %8545 = vmatpush.bf16.msra.mxu0 %v7027
    %8546 = vmatpush.bf16.msra.mxu0 %v7010
    %8547 = vmatpush.bf16.msra.mxu0 %v6993
    %8548 = vmatmul.bf16.gmra.mxu0 %v4700
    %v8549 = vpop.f32.mrf.mxu0
    %v8550 = vadd.f32 %v5295, %v8549
    %v8551 = vpop.f32.mrf.mxu0
    %8552 = vdwg.mxu0
    %8553 = vmatpush.bf16.msra.mxu0 %v7248
    %8554 = vmatpush.bf16.msra.mxu0 %v7231
    %8555 = vmatpush.bf16.msra.mxu0 %v7214
    %8556 = vmatpush.bf16.msra.mxu0 %v7197
    %8557 = vmatpush.bf16.msra.mxu0 %v7180
    %8558 = vmatpush.bf16.msra.mxu0 %v7163
    %8559 = vmatpush.bf16.msra.mxu0 %v7146
    %8560 = vmatpush.bf16.msra.mxu0 %v7129
    %8561 = vmatmul.bf16.gmra.mxu0 %v4701
    %v8562 = vpop.f32.mrf.mxu0
    %v8563 = vadd.f32 %v8550, %v8562
    %v8564 = vpop.f32.mrf.mxu0
    %8565 = vdwg.mxu0
    %8566 = vmatpush.bf16.msra.mxu0 %v7384
    %8567 = vmatpush.bf16.msra.mxu0 %v7367
    %8568 = vmatpush.bf16.msra.mxu0 %v7350
    %8569 = vmatpush.bf16.msra.mxu0 %v7333
    %8570 = vmatpush.bf16.msra.mxu0 %v7316
    %8571 = vmatpush.bf16.msra.mxu0 %v7299
    %8572 = vmatpush.bf16.msra.mxu0 %v7282
    %8573 = vmatpush.bf16.msra.mxu0 %v7265
    %8574 = vmatmul.bf16.gmra.mxu0 %v4702
    %v8575 = vpop.f32.mrf.mxu0
    %v8576 = vadd.f32 %v8563, %v8575
    %v8577 = vpop.f32.mrf.mxu0
    %8578 = vdwg.mxu0
    %8579 = vmatpush.bf16.msra.mxu0 %v7520
    %8580 = vmatpush.bf16.msra.mxu0 %v7503
    %8581 = vmatpush.bf16.msra.mxu0 %v7486
    %8582 = vmatpush.bf16.msra.mxu0 %v7469
    %8583 = vmatpush.bf16.msra.mxu0 %v7452
    %8584 = vmatpush.bf16.msra.mxu0 %v7435
    %8585 = vmatpush.bf16.msra.mxu0 %v7418
    %8586 = vmatpush.bf16.msra.mxu0 %v7401
    %8587 = vmatmul.bf16.gmra.mxu0 %v4703
    %v8588 = vpop.f32.mrf.mxu0
    %v8589 = vadd.f32 %v8576, %v8588
    %v8590 = vpop.f32.mrf.mxu0
    %8591 = vdwg.mxu0
    %8592 = vmatpush.bf16.msra.mxu0 %v7113
    %8593 = vmatpush.bf16.msra.mxu0 %v7096
    %8594 = vmatpush.bf16.msra.mxu0 %v7079
    %8595 = vmatpush.bf16.msra.mxu0 %v7062
    %8596 = vmatpush.bf16.msra.mxu0 %v7045
    %8597 = vmatpush.bf16.msra.mxu0 %v7028
    %8598 = vmatpush.bf16.msra.mxu0 %v7011
    %8599 = vmatpush.bf16.msra.mxu0 %v6994
    %8600 = vmatmul.bf16.gmra.mxu0 %v4700
    %v8601 = vpop.f32.mrf.mxu0
    %v8602 = vadd.f32 %v5296, %v8601
    %v8603 = vpop.f32.mrf.mxu0
    %8604 = vdwg.mxu0
    %8605 = vmatpush.bf16.msra.mxu0 %v7249
    %8606 = vmatpush.bf16.msra.mxu0 %v7232
    %8607 = vmatpush.bf16.msra.mxu0 %v7215
    %8608 = vmatpush.bf16.msra.mxu0 %v7198
    %8609 = vmatpush.bf16.msra.mxu0 %v7181
    %8610 = vmatpush.bf16.msra.mxu0 %v7164
    %8611 = vmatpush.bf16.msra.mxu0 %v7147
    %8612 = vmatpush.bf16.msra.mxu0 %v7130
    %8613 = vmatmul.bf16.gmra.mxu0 %v4701
    %v8614 = vpop.f32.mrf.mxu0
    %v8615 = vadd.f32 %v8602, %v8614
    %v8616 = vpop.f32.mrf.mxu0
    %8617 = vdwg.mxu0
    %8618 = vmatpush.bf16.msra.mxu0 %v7385
    %8619 = vmatpush.bf16.msra.mxu0 %v7368
    %8620 = vmatpush.bf16.msra.mxu0 %v7351
    %8621 = vmatpush.bf16.msra.mxu0 %v7334
    %8622 = vmatpush.bf16.msra.mxu0 %v7317
    %8623 = vmatpush.bf16.msra.mxu0 %v7300
    %8624 = vmatpush.bf16.msra.mxu0 %v7283
    %8625 = vmatpush.bf16.msra.mxu0 %v7266
    %8626 = vmatmul.bf16.gmra.mxu0 %v4702
    %v8627 = vpop.f32.mrf.mxu0
    %v8628 = vadd.f32 %v8615, %v8627
    %v8629 = vpop.f32.mrf.mxu0
    %8630 = vdwg.mxu0
    %8631 = vmatpush.bf16.msra.mxu0 %v7521
    %8632 = vmatpush.bf16.msra.mxu0 %v7504
    %8633 = vmatpush.bf16.msra.mxu0 %v7487
    %8634 = vmatpush.bf16.msra.mxu0 %v7470
    %8635 = vmatpush.bf16.msra.mxu0 %v7453
    %8636 = vmatpush.bf16.msra.mxu0 %v7436
    %8637 = vmatpush.bf16.msra.mxu0 %v7419
    %8638 = vmatpush.bf16.msra.mxu0 %v7402
    %8639 = vmatmul.bf16.gmra.mxu0 %v4703
    %v8640 = vpop.f32.mrf.mxu0
    %v8641 = vadd.f32 %v8628, %v8640
    %v8642 = vpop.f32.mrf.mxu0
    %8643 = vdwg.mxu0
    %8644 = vmatpush.bf16.msra.mxu0 %v7114
    %8645 = vmatpush.bf16.msra.mxu0 %v7097
    %8646 = vmatpush.bf16.msra.mxu0 %v7080
    %8647 = vmatpush.bf16.msra.mxu0 %v7063
    %8648 = vmatpush.bf16.msra.mxu0 %v7046
    %8649 = vmatpush.bf16.msra.mxu0 %v7029
    %8650 = vmatpush.bf16.msra.mxu0 %v7012
    %8651 = vmatpush.bf16.msra.mxu0 %v6995
    %8652 = vmatmul.bf16.gmra.mxu0 %v4700
    %v8653 = vpop.f32.mrf.mxu0
    %v8654 = vadd.f32 %v5297, %v8653
    %v8655 = vpop.f32.mrf.mxu0
    %8656 = vdwg.mxu0
    %8657 = vmatpush.bf16.msra.mxu0 %v7250
    %8658 = vmatpush.bf16.msra.mxu0 %v7233
    %8659 = vmatpush.bf16.msra.mxu0 %v7216
    %8660 = vmatpush.bf16.msra.mxu0 %v7199
    %8661 = vmatpush.bf16.msra.mxu0 %v7182
    %8662 = vmatpush.bf16.msra.mxu0 %v7165
    %8663 = vmatpush.bf16.msra.mxu0 %v7148
    %8664 = vmatpush.bf16.msra.mxu0 %v7131
    %8665 = vmatmul.bf16.gmra.mxu0 %v4701
    %v8666 = vpop.f32.mrf.mxu0
    %v8667 = vadd.f32 %v8654, %v8666
    %v8668 = vpop.f32.mrf.mxu0
    %8669 = vdwg.mxu0
    %8670 = vmatpush.bf16.msra.mxu0 %v7386
    %8671 = vmatpush.bf16.msra.mxu0 %v7369
    %8672 = vmatpush.bf16.msra.mxu0 %v7352
    %8673 = vmatpush.bf16.msra.mxu0 %v7335
    %8674 = vmatpush.bf16.msra.mxu0 %v7318
    %8675 = vmatpush.bf16.msra.mxu0 %v7301
    %8676 = vmatpush.bf16.msra.mxu0 %v7284
    %8677 = vmatpush.bf16.msra.mxu0 %v7267
    %8678 = vmatmul.bf16.gmra.mxu0 %v4702
    %v8679 = vpop.f32.mrf.mxu0
    %v8680 = vadd.f32 %v8667, %v8679
    %v8681 = vpop.f32.mrf.mxu0
    %8682 = vdwg.mxu0
    %8683 = vmatpush.bf16.msra.mxu0 %v7522
    %8684 = vmatpush.bf16.msra.mxu0 %v7505
    %8685 = vmatpush.bf16.msra.mxu0 %v7488
    %8686 = vmatpush.bf16.msra.mxu0 %v7471
    %8687 = vmatpush.bf16.msra.mxu0 %v7454
    %8688 = vmatpush.bf16.msra.mxu0 %v7437
    %8689 = vmatpush.bf16.msra.mxu0 %v7420
    %8690 = vmatpush.bf16.msra.mxu0 %v7403
    %8691 = vmatmul.bf16.gmra.mxu0 %v4703
    %v8692 = vpop.f32.mrf.mxu0
    %v8693 = vadd.f32 %v8680, %v8692
    %v8694 = vpop.f32.mrf.mxu0
    %8695 = vdwg.mxu0
    %8696 = vmatpush.bf16.msra.mxu0 %v7115
    %8697 = vmatpush.bf16.msra.mxu0 %v7098
    %8698 = vmatpush.bf16.msra.mxu0 %v7081
    %8699 = vmatpush.bf16.msra.mxu0 %v7064
    %8700 = vmatpush.bf16.msra.mxu0 %v7047
    %8701 = vmatpush.bf16.msra.mxu0 %v7030
    %8702 = vmatpush.bf16.msra.mxu0 %v7013
    %8703 = vmatpush.bf16.msra.mxu0 %v6996
    %8704 = vmatmul.bf16.gmra.mxu0 %v4700
    %v8705 = vpop.f32.mrf.mxu0
    %v8706 = vadd.f32 %v5298, %v8705
    %v8707 = vpop.f32.mrf.mxu0
    %8708 = vdwg.mxu0
    %8709 = vmatpush.bf16.msra.mxu0 %v7251
    %8710 = vmatpush.bf16.msra.mxu0 %v7234
    %8711 = vmatpush.bf16.msra.mxu0 %v7217
    %8712 = vmatpush.bf16.msra.mxu0 %v7200
    %8713 = vmatpush.bf16.msra.mxu0 %v7183
    %8714 = vmatpush.bf16.msra.mxu0 %v7166
    %8715 = vmatpush.bf16.msra.mxu0 %v7149
    %8716 = vmatpush.bf16.msra.mxu0 %v7132
    %8717 = vmatmul.bf16.gmra.mxu0 %v4701
    %v8718 = vpop.f32.mrf.mxu0
    %v8719 = vadd.f32 %v8706, %v8718
    %v8720 = vpop.f32.mrf.mxu0
    %8721 = vdwg.mxu0
    %8722 = vmatpush.bf16.msra.mxu0 %v7387
    %8723 = vmatpush.bf16.msra.mxu0 %v7370
    %8724 = vmatpush.bf16.msra.mxu0 %v7353
    %8725 = vmatpush.bf16.msra.mxu0 %v7336
    %8726 = vmatpush.bf16.msra.mxu0 %v7319
    %8727 = vmatpush.bf16.msra.mxu0 %v7302
    %8728 = vmatpush.bf16.msra.mxu0 %v7285
    %8729 = vmatpush.bf16.msra.mxu0 %v7268
    %8730 = vmatmul.bf16.gmra.mxu0 %v4702
    %v8731 = vpop.f32.mrf.mxu0
    %v8732 = vadd.f32 %v8719, %v8731
    %v8733 = vpop.f32.mrf.mxu0
    %8734 = vdwg.mxu0
    %8735 = vmatpush.bf16.msra.mxu0 %v7523
    %8736 = vmatpush.bf16.msra.mxu0 %v7506
    %8737 = vmatpush.bf16.msra.mxu0 %v7489
    %8738 = vmatpush.bf16.msra.mxu0 %v7472
    %8739 = vmatpush.bf16.msra.mxu0 %v7455
    %8740 = vmatpush.bf16.msra.mxu0 %v7438
    %8741 = vmatpush.bf16.msra.mxu0 %v7421
    %8742 = vmatpush.bf16.msra.mxu0 %v7404
    %8743 = vmatmul.bf16.gmra.mxu0 %v4703
    %v8744 = vpop.f32.mrf.mxu0
    %v8745 = vadd.f32 %v8732, %v8744
    %v8746 = vpop.f32.mrf.mxu0
    %8747 = vdwg.mxu0
    %8748 = vmatpush.bf16.msra.mxu0 %v7116
    %8749 = vmatpush.bf16.msra.mxu0 %v7099
    %8750 = vmatpush.bf16.msra.mxu0 %v7082
    %8751 = vmatpush.bf16.msra.mxu0 %v7065
    %8752 = vmatpush.bf16.msra.mxu0 %v7048
    %8753 = vmatpush.bf16.msra.mxu0 %v7031
    %8754 = vmatpush.bf16.msra.mxu0 %v7014
    %8755 = vmatpush.bf16.msra.mxu0 %v6997
    %8756 = vmatmul.bf16.gmra.mxu0 %v4700
    %v8757 = vpop.f32.mrf.mxu0
    %v8758 = vadd.f32 %v5299, %v8757
    %v8759 = vpop.f32.mrf.mxu0
    %8760 = vdwg.mxu0
    %8761 = vmatpush.bf16.msra.mxu0 %v7252
    %8762 = vmatpush.bf16.msra.mxu0 %v7235
    %8763 = vmatpush.bf16.msra.mxu0 %v7218
    %8764 = vmatpush.bf16.msra.mxu0 %v7201
    %8765 = vmatpush.bf16.msra.mxu0 %v7184
    %8766 = vmatpush.bf16.msra.mxu0 %v7167
    %8767 = vmatpush.bf16.msra.mxu0 %v7150
    %8768 = vmatpush.bf16.msra.mxu0 %v7133
    %8769 = vmatmul.bf16.gmra.mxu0 %v4701
    %v8770 = vpop.f32.mrf.mxu0
    %v8771 = vadd.f32 %v8758, %v8770
    %v8772 = vpop.f32.mrf.mxu0
    %8773 = vdwg.mxu0
    %8774 = vmatpush.bf16.msra.mxu0 %v7388
    %8775 = vmatpush.bf16.msra.mxu0 %v7371
    %8776 = vmatpush.bf16.msra.mxu0 %v7354
    %8777 = vmatpush.bf16.msra.mxu0 %v7337
    %8778 = vmatpush.bf16.msra.mxu0 %v7320
    %8779 = vmatpush.bf16.msra.mxu0 %v7303
    %8780 = vmatpush.bf16.msra.mxu0 %v7286
    %8781 = vmatpush.bf16.msra.mxu0 %v7269
    %8782 = vmatmul.bf16.gmra.mxu0 %v4702
    %v8783 = vpop.f32.mrf.mxu0
    %v8784 = vadd.f32 %v8771, %v8783
    %v8785 = vpop.f32.mrf.mxu0
    %8786 = vdwg.mxu0
    %8787 = vmatpush.bf16.msra.mxu0 %v7524
    %8788 = vmatpush.bf16.msra.mxu0 %v7507
    %8789 = vmatpush.bf16.msra.mxu0 %v7490
    %8790 = vmatpush.bf16.msra.mxu0 %v7473
    %8791 = vmatpush.bf16.msra.mxu0 %v7456
    %8792 = vmatpush.bf16.msra.mxu0 %v7439
    %8793 = vmatpush.bf16.msra.mxu0 %v7422
    %8794 = vmatpush.bf16.msra.mxu0 %v7405
    %8795 = vmatmul.bf16.gmra.mxu0 %v4703
    %v8796 = vpop.f32.mrf.mxu0
    %v8797 = vadd.f32 %v8784, %v8796
    %v8798 = vpop.f32.mrf.mxu0
    %8799 = vdwg.mxu0
    %8800 = vmatpush.bf16.msra.mxu0 %v7117
    %8801 = vmatpush.bf16.msra.mxu0 %v7100
    %8802 = vmatpush.bf16.msra.mxu0 %v7083
    %8803 = vmatpush.bf16.msra.mxu0 %v7066
    %8804 = vmatpush.bf16.msra.mxu0 %v7049
    %8805 = vmatpush.bf16.msra.mxu0 %v7032
    %8806 = vmatpush.bf16.msra.mxu0 %v7015
    %8807 = vmatpush.bf16.msra.mxu0 %v6998
    %8808 = vmatmul.bf16.gmra.mxu0 %v4700
    %v8809 = vpop.f32.mrf.mxu0
    %v8810 = vadd.f32 %v5300, %v8809
    %v8811 = vpop.f32.mrf.mxu0
    %8812 = vdwg.mxu0
    %8813 = vmatpush.bf16.msra.mxu0 %v7253
    %8814 = vmatpush.bf16.msra.mxu0 %v7236
    %8815 = vmatpush.bf16.msra.mxu0 %v7219
    %8816 = vmatpush.bf16.msra.mxu0 %v7202
    %8817 = vmatpush.bf16.msra.mxu0 %v7185
    %8818 = vmatpush.bf16.msra.mxu0 %v7168
    %8819 = vmatpush.bf16.msra.mxu0 %v7151
    %8820 = vmatpush.bf16.msra.mxu0 %v7134
    %8821 = vmatmul.bf16.gmra.mxu0 %v4701
    %v8822 = vpop.f32.mrf.mxu0
    %v8823 = vadd.f32 %v8810, %v8822
    %v8824 = vpop.f32.mrf.mxu0
    %8825 = vdwg.mxu0
    %8826 = vmatpush.bf16.msra.mxu0 %v7389
    %8827 = vmatpush.bf16.msra.mxu0 %v7372
    %8828 = vmatpush.bf16.msra.mxu0 %v7355
    %8829 = vmatpush.bf16.msra.mxu0 %v7338
    %8830 = vmatpush.bf16.msra.mxu0 %v7321
    %8831 = vmatpush.bf16.msra.mxu0 %v7304
    %8832 = vmatpush.bf16.msra.mxu0 %v7287
    %8833 = vmatpush.bf16.msra.mxu0 %v7270
    %8834 = vmatmul.bf16.gmra.mxu0 %v4702
    %v8835 = vpop.f32.mrf.mxu0
    %v8836 = vadd.f32 %v8823, %v8835
    %v8837 = vpop.f32.mrf.mxu0
    %8838 = vdwg.mxu0
    %8839 = vmatpush.bf16.msra.mxu0 %v7525
    %8840 = vmatpush.bf16.msra.mxu0 %v7508
    %8841 = vmatpush.bf16.msra.mxu0 %v7491
    %8842 = vmatpush.bf16.msra.mxu0 %v7474
    %8843 = vmatpush.bf16.msra.mxu0 %v7457
    %8844 = vmatpush.bf16.msra.mxu0 %v7440
    %8845 = vmatpush.bf16.msra.mxu0 %v7423
    %8846 = vmatpush.bf16.msra.mxu0 %v7406
    %8847 = vmatmul.bf16.gmra.mxu0 %v4703
    %v8848 = vpop.f32.mrf.mxu0
    %v8849 = vadd.f32 %v8836, %v8848
    %v8850 = vpop.f32.mrf.mxu0
    %8851 = vdwg.mxu0
    %8852 = vmatpush.bf16.msra.mxu0 %v7118
    %8853 = vmatpush.bf16.msra.mxu0 %v7101
    %8854 = vmatpush.bf16.msra.mxu0 %v7084
    %8855 = vmatpush.bf16.msra.mxu0 %v7067
    %8856 = vmatpush.bf16.msra.mxu0 %v7050
    %8857 = vmatpush.bf16.msra.mxu0 %v7033
    %8858 = vmatpush.bf16.msra.mxu0 %v7016
    %8859 = vmatpush.bf16.msra.mxu0 %v6999
    %8860 = vmatmul.bf16.gmra.mxu0 %v4700
    %v8861 = vpop.f32.mrf.mxu0
    %v8862 = vadd.f32 %v5301, %v8861
    %v8863 = vpop.f32.mrf.mxu0
    %8864 = vdwg.mxu0
    %8865 = vmatpush.bf16.msra.mxu0 %v7254
    %8866 = vmatpush.bf16.msra.mxu0 %v7237
    %8867 = vmatpush.bf16.msra.mxu0 %v7220
    %8868 = vmatpush.bf16.msra.mxu0 %v7203
    %8869 = vmatpush.bf16.msra.mxu0 %v7186
    %8870 = vmatpush.bf16.msra.mxu0 %v7169
    %8871 = vmatpush.bf16.msra.mxu0 %v7152
    %8872 = vmatpush.bf16.msra.mxu0 %v7135
    %8873 = vmatmul.bf16.gmra.mxu0 %v4701
    %v8874 = vpop.f32.mrf.mxu0
    %v8875 = vadd.f32 %v8862, %v8874
    %v8876 = vpop.f32.mrf.mxu0
    %8877 = vdwg.mxu0
    %8878 = vmatpush.bf16.msra.mxu0 %v7390
    %8879 = vmatpush.bf16.msra.mxu0 %v7373
    %8880 = vmatpush.bf16.msra.mxu0 %v7356
    %8881 = vmatpush.bf16.msra.mxu0 %v7339
    %8882 = vmatpush.bf16.msra.mxu0 %v7322
    %8883 = vmatpush.bf16.msra.mxu0 %v7305
    %8884 = vmatpush.bf16.msra.mxu0 %v7288
    %8885 = vmatpush.bf16.msra.mxu0 %v7271
    %8886 = vmatmul.bf16.gmra.mxu0 %v4702
    %v8887 = vpop.f32.mrf.mxu0
    %v8888 = vadd.f32 %v8875, %v8887
    %v8889 = vpop.f32.mrf.mxu0
    %8890 = vdwg.mxu0
    %8891 = vmatpush.bf16.msra.mxu0 %v7526
    %8892 = vmatpush.bf16.msra.mxu0 %v7509
    %8893 = vmatpush.bf16.msra.mxu0 %v7492
    %8894 = vmatpush.bf16.msra.mxu0 %v7475
    %8895 = vmatpush.bf16.msra.mxu0 %v7458
    %8896 = vmatpush.bf16.msra.mxu0 %v7441
    %8897 = vmatpush.bf16.msra.mxu0 %v7424
    %8898 = vmatpush.bf16.msra.mxu0 %v7407
    %8899 = vmatmul.bf16.gmra.mxu0 %v4703
    %v8900 = vpop.f32.mrf.mxu0
    %v8901 = vadd.f32 %v8888, %v8900
    %v8902 = vpop.f32.mrf.mxu0
    %8903 = vdwg.mxu0
    %8904 = vmatpush.bf16.msra.mxu0 %v7119
    %8905 = vmatpush.bf16.msra.mxu0 %v7102
    %8906 = vmatpush.bf16.msra.mxu0 %v7085
    %8907 = vmatpush.bf16.msra.mxu0 %v7068
    %8908 = vmatpush.bf16.msra.mxu0 %v7051
    %8909 = vmatpush.bf16.msra.mxu0 %v7034
    %8910 = vmatpush.bf16.msra.mxu0 %v7017
    %8911 = vmatpush.bf16.msra.mxu0 %v7000
    %8912 = vmatmul.bf16.gmra.mxu0 %v4700
    %v8913 = vpop.f32.mrf.mxu0
    %v8914 = vadd.f32 %v5302, %v8913
    %v8915 = vpop.f32.mrf.mxu0
    %8916 = vdwg.mxu0
    %8917 = vmatpush.bf16.msra.mxu0 %v7255
    %8918 = vmatpush.bf16.msra.mxu0 %v7238
    %8919 = vmatpush.bf16.msra.mxu0 %v7221
    %8920 = vmatpush.bf16.msra.mxu0 %v7204
    %8921 = vmatpush.bf16.msra.mxu0 %v7187
    %8922 = vmatpush.bf16.msra.mxu0 %v7170
    %8923 = vmatpush.bf16.msra.mxu0 %v7153
    %8924 = vmatpush.bf16.msra.mxu0 %v7136
    %8925 = vmatmul.bf16.gmra.mxu0 %v4701
    %v8926 = vpop.f32.mrf.mxu0
    %v8927 = vadd.f32 %v8914, %v8926
    %v8928 = vpop.f32.mrf.mxu0
    %8929 = vdwg.mxu0
    %8930 = vmatpush.bf16.msra.mxu0 %v7391
    %8931 = vmatpush.bf16.msra.mxu0 %v7374
    %8932 = vmatpush.bf16.msra.mxu0 %v7357
    %8933 = vmatpush.bf16.msra.mxu0 %v7340
    %8934 = vmatpush.bf16.msra.mxu0 %v7323
    %8935 = vmatpush.bf16.msra.mxu0 %v7306
    %8936 = vmatpush.bf16.msra.mxu0 %v7289
    %8937 = vmatpush.bf16.msra.mxu0 %v7272
    %8938 = vmatmul.bf16.gmra.mxu0 %v4702
    %v8939 = vpop.f32.mrf.mxu0
    %v8940 = vadd.f32 %v8927, %v8939
    %v8941 = vpop.f32.mrf.mxu0
    %8942 = vdwg.mxu0
    %8943 = vmatpush.bf16.msra.mxu0 %v7527
    %8944 = vmatpush.bf16.msra.mxu0 %v7510
    %8945 = vmatpush.bf16.msra.mxu0 %v7493
    %8946 = vmatpush.bf16.msra.mxu0 %v7476
    %8947 = vmatpush.bf16.msra.mxu0 %v7459
    %8948 = vmatpush.bf16.msra.mxu0 %v7442
    %8949 = vmatpush.bf16.msra.mxu0 %v7425
    %8950 = vmatpush.bf16.msra.mxu0 %v7408
    %8951 = vmatmul.bf16.gmra.mxu0 %v4703
    %v8952 = vpop.f32.mrf.mxu0
    %v8953 = vadd.f32 %v8940, %v8952
    %v8954 = vpop.f32.mrf.mxu0
    %8955 = vdwg.mxu0
    %v8956 = vxor.u32 %v8121, 2147483648
    %v8957 = vxor.u32 %v8173, 2147483648
    %v8958 = vxor.u32 %v8225, 2147483648
    %v8959 = vxor.u32 %v8277, 2147483648
    %v8960 = vxor.u32 %v8329, 2147483648
    %v8961 = vxor.u32 %v8381, 2147483648
    %v8962 = vxor.u32 %v8433, 2147483648
    %v8963 = vxor.u32 %v8485, 2147483648
    %v8964 = vxor.u32 %v8537, 2147483648
    %v8965 = vxor.u32 %v8589, 2147483648
    %v8966 = vxor.u32 %v8641, 2147483648
    %v8967 = vxor.u32 %v8693, 2147483648
    %v8968 = vxor.u32 %v8745, 2147483648
    %v8969 = vxor.u32 %v8797, 2147483648
    %v8970 = vxor.u32 %v8849, 2147483648
    %v8971 = vxor.u32 %v8901, 2147483648
    %v8972 = vxor.u32 %v8953, 2147483648
    %v8973 = vmul.f32 %v8956, 1.442695
    %v8974 = vpow.pop %v8973
    %v8975 = vmul.f32 %v8957, 1.442695
    %v8976 = vpow.pop %v8975
    %v8977 = vmul.f32 %v8958, 1.442695
    %v8978 = vpow.pop %v8977
    %v8979 = vmul.f32 %v8959, 1.442695
    %v8980 = vpow.pop %v8979
    %v8981 = vmul.f32 %v8960, 1.442695
    %v8982 = vpow.pop %v8981
    %v8983 = vmul.f32 %v8961, 1.442695
    %v8984 = vpow.pop %v8983
    %v8985 = vmul.f32 %v8962, 1.442695
    %v8986 = vpow.pop %v8985
    %v8987 = vmul.f32 %v8963, 1.442695
    %v8988 = vpow.pop %v8987
    %v8989 = vmul.f32 %v8964, 1.442695
    %v8990 = vpow.pop %v8989
    %v8991 = vmul.f32 %v8965, 1.442695
    %v8992 = vpow.pop %v8991
    %v8993 = vmul.f32 %v8966, 1.442695
    %v8994 = vpow.pop %v8993
    %v8995 = vmul.f32 %v8967, 1.442695
    %v8996 = vpow.pop %v8995
    %v8997 = vmul.f32 %v8968, 1.442695
    %v8998 = vpow.pop %v8997
    %v8999 = vmul.f32 %v8969, 1.442695
    %v9000 = vpow.pop %v8999
    %v9001 = vmul.f32 %v8970, 1.442695
    %v9002 = vpow.pop %v9001
    %v9003 = vmul.f32 %v8971, 1.442695
    %v9004 = vpow.pop %v9003
    %v9005 = vmul.f32 %v8972, 1.442695
    %v9006 = vpow.pop %v9005
    %v9007 = vadd.f32 %v8974, 1.0
    %v9008 = vadd.f32 %v8976, 1.0
    %v9009 = vadd.f32 %v8978, 1.0
    %v9010 = vadd.f32 %v8980, 1.0
    %v9011 = vadd.f32 %v8982, 1.0
    %v9012 = vadd.f32 %v8984, 1.0
    %v9013 = vadd.f32 %v8986, 1.0
    %v9014 = vadd.f32 %v8988, 1.0
    %v9015 = vadd.f32 %v8990, 1.0
    %v9016 = vadd.f32 %v8992, 1.0
    %v9017 = vadd.f32 %v8994, 1.0
    %v9018 = vadd.f32 %v8996, 1.0
    %v9019 = vadd.f32 %v8998, 1.0
    %v9020 = vadd.f32 %v9000, 1.0
    %v9021 = vadd.f32 %v9002, 1.0
    %v9022 = vadd.f32 %v9004, 1.0
    %v9023 = vadd.f32 %v9006, 1.0
    %v9024 = vrcp.pop %v9007
    %v9025 = vmul.f32 %v9007, %v9024
    %v9026 = vsub.f32 1.0, %v9025
    %v9027 = vmul.f32 %v9024, %v9026
    %v9028 = vadd.f32 %v9024, %v9027
    %vm9029 = vweird.f32 %v9007
    %vm9030 = vweird.f32 %v9024
    %vm9031 = vmor %vm9029, %vm9030
    %v9032 = vsel %vm9031, %v9024, %v9028
    %v9033 = vand.u32 2147483647, %v9007
    %vm9034 = vcmp.eq.f32.partialorder %v9033, 8.507059e+37
    %v9035 = vand.u32 %v9007, 2147483648
    %v9036 = vor.u32 1.1754944e-38, %v9035
    %v9037 = vsel %vm9034, %v9036, %v9032
    %v9038 = vmul.f32 1.0, %v9037
    %v9039 = vrcp.pop %v9008
    %v9040 = vmul.f32 %v9008, %v9039
    %v9041 = vsub.f32 1.0, %v9040
    %v9042 = vmul.f32 %v9039, %v9041
    %v9043 = vadd.f32 %v9039, %v9042
    %vm9044 = vweird.f32 %v9008
    %vm9045 = vweird.f32 %v9039
    %vm9046 = vmor %vm9044, %vm9045
    %v9047 = vsel %vm9046, %v9039, %v9043
    %v9048 = vand.u32 2147483647, %v9008
    %vm9049 = vcmp.eq.f32.partialorder %v9048, 8.507059e+37
    %v9050 = vand.u32 %v9008, 2147483648
    %v9051 = vor.u32 1.1754944e-38, %v9050
    %v9052 = vsel %vm9049, %v9051, %v9047
    %v9053 = vmul.f32 1.0, %v9052
    %v9054 = vrcp.pop %v9009
    %v9055 = vmul.f32 %v9009, %v9054
    %v9056 = vsub.f32 1.0, %v9055
    %v9057 = vmul.f32 %v9054, %v9056
    %v9058 = vadd.f32 %v9054, %v9057
    %vm9059 = vweird.f32 %v9009
    %vm9060 = vweird.f32 %v9054
    %vm9061 = vmor %vm9059, %vm9060
    %v9062 = vsel %vm9061, %v9054, %v9058
    %v9063 = vand.u32 2147483647, %v9009
    %vm9064 = vcmp.eq.f32.partialorder %v9063, 8.507059e+37
    %v9065 = vand.u32 %v9009, 2147483648
    %v9066 = vor.u32 1.1754944e-38, %v9065
    %v9067 = vsel %vm9064, %v9066, %v9062
    %v9068 = vmul.f32 1.0, %v9067
    %v9069 = vrcp.pop %v9010
    %v9070 = vmul.f32 %v9010, %v9069
    %v9071 = vsub.f32 1.0, %v9070
    %v9072 = vmul.f32 %v9069, %v9071
    %v9073 = vadd.f32 %v9069, %v9072
    %vm9074 = vweird.f32 %v9010
    %vm9075 = vweird.f32 %v9069
    %vm9076 = vmor %vm9074, %vm9075
    %v9077 = vsel %vm9076, %v9069, %v9073
    %v9078 = vand.u32 2147483647, %v9010
    %vm9079 = vcmp.eq.f32.partialorder %v9078, 8.507059e+37
    %v9080 = vand.u32 %v9010, 2147483648
    %v9081 = vor.u32 1.1754944e-38, %v9080
    %v9082 = vsel %vm9079, %v9081, %v9077
    %v9083 = vmul.f32 1.0, %v9082
    %v9084 = vrcp.pop %v9011
    %v9085 = vmul.f32 %v9011, %v9084
    %v9086 = vsub.f32 1.0, %v9085
    %v9087 = vmul.f32 %v9084, %v9086
    %v9088 = vadd.f32 %v9084, %v9087
    %vm9089 = vweird.f32 %v9011
    %vm9090 = vweird.f32 %v9084
    %vm9091 = vmor %vm9089, %vm9090
    %v9092 = vsel %vm9091, %v9084, %v9088
    %v9093 = vand.u32 2147483647, %v9011
    %vm9094 = vcmp.eq.f32.partialorder %v9093, 8.507059e+37
    %v9095 = vand.u32 %v9011, 2147483648
    %v9096 = vor.u32 1.1754944e-38, %v9095
    %v9097 = vsel %vm9094, %v9096, %v9092
    %v9098 = vmul.f32 1.0, %v9097
    %v9099 = vrcp.pop %v9012
    %v9100 = vmul.f32 %v9012, %v9099
    %v9101 = vsub.f32 1.0, %v9100
    %v9102 = vmul.f32 %v9099, %v9101
    %v9103 = vadd.f32 %v9099, %v9102
    %vm9104 = vweird.f32 %v9012
    %vm9105 = vweird.f32 %v9099
    %vm9106 = vmor %vm9104, %vm9105
    %v9107 = vsel %vm9106, %v9099, %v9103
    %v9108 = vand.u32 2147483647, %v9012
    %vm9109 = vcmp.eq.f32.partialorder %v9108, 8.507059e+37
    %v9110 = vand.u32 %v9012, 2147483648
    %v9111 = vor.u32 1.1754944e-38, %v9110
    %v9112 = vsel %vm9109, %v9111, %v9107
    %v9113 = vmul.f32 1.0, %v9112
    %v9114 = vrcp.pop %v9013
    %v9115 = vmul.f32 %v9013, %v9114
    %v9116 = vsub.f32 1.0, %v9115
    %v9117 = vmul.f32 %v9114, %v9116
    %v9118 = vadd.f32 %v9114, %v9117
    %vm9119 = vweird.f32 %v9013
    %vm9120 = vweird.f32 %v9114
    %vm9121 = vmor %vm9119, %vm9120
    %v9122 = vsel %vm9121, %v9114, %v9118
    %v9123 = vand.u32 2147483647, %v9013
    %vm9124 = vcmp.eq.f32.partialorder %v9123, 8.507059e+37
    %v9125 = vand.u32 %v9013, 2147483648
    %v9126 = vor.u32 1.1754944e-38, %v9125
    %v9127 = vsel %vm9124, %v9126, %v9122
    %v9128 = vmul.f32 1.0, %v9127
    %v9129 = vrcp.pop %v9014
    %v9130 = vmul.f32 %v9014, %v9129
    %v9131 = vsub.f32 1.0, %v9130
    %v9132 = vmul.f32 %v9129, %v9131
    %v9133 = vadd.f32 %v9129, %v9132
    %vm9134 = vweird.f32 %v9014
    %vm9135 = vweird.f32 %v9129
    %vm9136 = vmor %vm9134, %vm9135
    %v9137 = vsel %vm9136, %v9129, %v9133
    %v9138 = vand.u32 2147483647, %v9014
    %vm9139 = vcmp.eq.f32.partialorder %v9138, 8.507059e+37
    %v9140 = vand.u32 %v9014, 2147483648
    %v9141 = vor.u32 1.1754944e-38, %v9140
    %v9142 = vsel %vm9139, %v9141, %v9137
    %v9143 = vmul.f32 1.0, %v9142
    %v9144 = vrcp.pop %v9015
    %v9145 = vmul.f32 %v9015, %v9144
    %v9146 = vsub.f32 1.0, %v9145
    %v9147 = vmul.f32 %v9144, %v9146
    %v9148 = vadd.f32 %v9144, %v9147
    %vm9149 = vweird.f32 %v9015
    %vm9150 = vweird.f32 %v9144
    %vm9151 = vmor %vm9149, %vm9150
    %v9152 = vsel %vm9151, %v9144, %v9148
    %v9153 = vand.u32 2147483647, %v9015
    %vm9154 = vcmp.eq.f32.partialorder %v9153, 8.507059e+37
    %v9155 = vand.u32 %v9015, 2147483648
    %v9156 = vor.u32 1.1754944e-38, %v9155
    %v9157 = vsel %vm9154, %v9156, %v9152
    %v9158 = vmul.f32 1.0, %v9157
    %v9159 = vrcp.pop %v9016
    %v9160 = vmul.f32 %v9016, %v9159
    %v9161 = vsub.f32 1.0, %v9160
    %v9162 = vmul.f32 %v9159, %v9161
    %v9163 = vadd.f32 %v9159, %v9162
    %vm9164 = vweird.f32 %v9016
    %vm9165 = vweird.f32 %v9159
    %vm9166 = vmor %vm9164, %vm9165
    %v9167 = vsel %vm9166, %v9159, %v9163
    %v9168 = vand.u32 2147483647, %v9016
    %vm9169 = vcmp.eq.f32.partialorder %v9168, 8.507059e+37
    %v9170 = vand.u32 %v9016, 2147483648
    %v9171 = vor.u32 1.1754944e-38, %v9170
    %v9172 = vsel %vm9169, %v9171, %v9167
    %v9173 = vmul.f32 1.0, %v9172
    %v9174 = vrcp.pop %v9017
    %v9175 = vmul.f32 %v9017, %v9174
    %v9176 = vsub.f32 1.0, %v9175
    %v9177 = vmul.f32 %v9174, %v9176
    %v9178 = vadd.f32 %v9174, %v9177
    %vm9179 = vweird.f32 %v9017
    %vm9180 = vweird.f32 %v9174
    %vm9181 = vmor %vm9179, %vm9180
    %v9182 = vsel %vm9181, %v9174, %v9178
    %v9183 = vand.u32 2147483647, %v9017
    %vm9184 = vcmp.eq.f32.partialorder %v9183, 8.507059e+37
    %v9185 = vand.u32 %v9017, 2147483648
    %v9186 = vor.u32 1.1754944e-38, %v9185
    %v9187 = vsel %vm9184, %v9186, %v9182
    %v9188 = vmul.f32 1.0, %v9187
    %v9189 = vrcp.pop %v9018
    %v9190 = vmul.f32 %v9018, %v9189
    %v9191 = vsub.f32 1.0, %v9190
    %v9192 = vmul.f32 %v9189, %v9191
    %v9193 = vadd.f32 %v9189, %v9192
    %vm9194 = vweird.f32 %v9018
    %vm9195 = vweird.f32 %v9189
    %vm9196 = vmor %vm9194, %vm9195
    %v9197 = vsel %vm9196, %v9189, %v9193
    %v9198 = vand.u32 2147483647, %v9018
    %vm9199 = vcmp.eq.f32.partialorder %v9198, 8.507059e+37
    %v9200 = vand.u32 %v9018, 2147483648
    %v9201 = vor.u32 1.1754944e-38, %v9200
    %v9202 = vsel %vm9199, %v9201, %v9197
    %v9203 = vmul.f32 1.0, %v9202
    %v9204 = vrcp.pop %v9019
    %v9205 = vmul.f32 %v9019, %v9204
    %v9206 = vsub.f32 1.0, %v9205
    %v9207 = vmul.f32 %v9204, %v9206
    %v9208 = vadd.f32 %v9204, %v9207
    %vm9209 = vweird.f32 %v9019
    %vm9210 = vweird.f32 %v9204
    %vm9211 = vmor %vm9209, %vm9210
    %v9212 = vsel %vm9211, %v9204, %v9208
    %v9213 = vand.u32 2147483647, %v9019
    %vm9214 = vcmp.eq.f32.partialorder %v9213, 8.507059e+37
    %v9215 = vand.u32 %v9019, 2147483648
    %v9216 = vor.u32 1.1754944e-38, %v9215
    %v9217 = vsel %vm9214, %v9216, %v9212
    %v9218 = vmul.f32 1.0, %v9217
    %v9219 = vrcp.pop %v9020
    %v9220 = vmul.f32 %v9020, %v9219
    %v9221 = vsub.f32 1.0, %v9220
    %v9222 = vmul.f32 %v9219, %v9221
    %v9223 = vadd.f32 %v9219, %v9222
    %vm9224 = vweird.f32 %v9020
    %vm9225 = vweird.f32 %v9219
    %vm9226 = vmor %vm9224, %vm9225
    %v9227 = vsel %vm9226, %v9219, %v9223
    %v9228 = vand.u32 2147483647, %v9020
    %vm9229 = vcmp.eq.f32.partialorder %v9228, 8.507059e+37
    %v9230 = vand.u32 %v9020, 2147483648
    %v9231 = vor.u32 1.1754944e-38, %v9230
    %v9232 = vsel %vm9229, %v9231, %v9227
    %v9233 = vmul.f32 1.0, %v9232
    %v9234 = vrcp.pop %v9021
    %v9235 = vmul.f32 %v9021, %v9234
    %v9236 = vsub.f32 1.0, %v9235
    %v9237 = vmul.f32 %v9234, %v9236
    %v9238 = vadd.f32 %v9234, %v9237
    %vm9239 = vweird.f32 %v9021
    %vm9240 = vweird.f32 %v9234
    %vm9241 = vmor %vm9239, %vm9240
    %v9242 = vsel %vm9241, %v9234, %v9238
    %v9243 = vand.u32 2147483647, %v9021
    %vm9244 = vcmp.eq.f32.partialorder %v9243, 8.507059e+37
    %v9245 = vand.u32 %v9021, 2147483648
    %v9246 = vor.u32 1.1754944e-38, %v9245
    %v9247 = vsel %vm9244, %v9246, %v9242
    %v9248 = vmul.f32 1.0, %v9247
    %v9249 = vrcp.pop %v9022
    %v9250 = vmul.f32 %v9022, %v9249
    %v9251 = vsub.f32 1.0, %v9250
    %v9252 = vmul.f32 %v9249, %v9251
    %v9253 = vadd.f32 %v9249, %v9252
    %vm9254 = vweird.f32 %v9022
    %vm9255 = vweird.f32 %v9249
    %vm9256 = vmor %vm9254, %vm9255
    %v9257 = vsel %vm9256, %v9249, %v9253
    %v9258 = vand.u32 2147483647, %v9022
    %vm9259 = vcmp.eq.f32.partialorder %v9258, 8.507059e+37
    %v9260 = vand.u32 %v9022, 2147483648
    %v9261 = vor.u32 1.1754944e-38, %v9260
    %v9262 = vsel %vm9259, %v9261, %v9257
    %v9263 = vmul.f32 1.0, %v9262
    %v9264 = vrcp.pop %v9023
    %v9265 = vmul.f32 %v9023, %v9264
    %v9266 = vsub.f32 1.0, %v9265
    %v9267 = vmul.f32 %v9264, %v9266
    %v9268 = vadd.f32 %v9264, %v9267
    %vm9269 = vweird.f32 %v9023
    %vm9270 = vweird.f32 %v9264
    %vm9271 = vmor %vm9269, %vm9270
    %v9272 = vsel %vm9271, %v9264, %v9268
    %v9273 = vand.u32 2147483647, %v9023
    %vm9274 = vcmp.eq.f32.partialorder %v9273, 8.507059e+37
    %v9275 = vand.u32 %v9023, 2147483648
    %v9276 = vor.u32 1.1754944e-38, %v9275
    %v9277 = vsel %vm9274, %v9276, %v9272
    %v9278 = vmul.f32 1.0, %v9277
    %9279 = vst [vmem:[%s10] sm:$0xff] %v9038
    %9280 = vst [vmem:[%s10 + $0x8] sm:$0xff] %v9053
    %9281 = vst [vmem:[%s10 + $0x10] sm:$0xff] %v9068
    %9282 = vst [vmem:[%s10 + $0x18] sm:$0xff] %v9083
    %9283 = vst [vmem:[%s10 + $0x20] sm:$0xff] %v9098
    %9284 = vst [vmem:[%s10 + $0x28] sm:$0xff] %v9113
    %9285 = vst [vmem:[%s10 + $0x30] sm:$0xff] %v9128
    %9286 = vst [vmem:[%s10 + $0x38] sm:$0xff] %v9143
    %9287 = vst [vmem:[%s10 + $0x40] sm:$0xff] %v9158
    %9288 = vst [vmem:[%s10 + $0x48] sm:$0xff] %v9173
    %9289 = vst [vmem:[%s10 + $0x50] sm:$0xff] %v9188
    %9290 = vst [vmem:[%s10 + $0x58] sm:$0xff] %v9203
    %9291 = vst [vmem:[%s10 + $0x60] sm:$0xff] %v9218
    %9292 = vst [vmem:[%s10 + $0x68] sm:$0xff] %v9233
    %9293 = vst [vmem:[%s10 + $0x70] sm:$0xff] %v9248
    %9294 = vst [vmem:[%s10 + $0x78] sm:$0xff] %v9263
    %9295 = vst [vmem:[%s10 + $0x80] sm:$0xff] %v9278
    // Predicated region
    $region74: #{autoencoder_forward.1} parent=1 // pred_check
      _
    $region75: #{autoencoder_forward.1} parent=1 // pred_check_branch
      %9297 = sbr.rel (0) target = $region77
    $region76: #{autoencoder_forward.1} parent=1 // pred_region
      _
    $region77: #{autoencoder_forward.1} parent=1 // pred_fallthru
      _
    // Predicated region
    $region78: #{autoencoder_forward.1} parent=1 // pred_check
      _
    $region79: #{autoencoder_forward.1} parent=1 // pred_check_branch
      %9299 = sbr.rel (0) target = $region81
    $region80: #{autoencoder_forward.1} parent=1 // pred_region
      _
    $region81: #{autoencoder_forward.1} parent=1 // pred_fallthru
      _
    // Predicated region
    $region82: #{autoencoder_forward.1} parent=1 // pred_check
      _
    $region83: #{autoencoder_forward.1} parent=1 // pred_check_branch
      %9301 = sbr.rel (0) target = $region85
    $region84: #{autoencoder_forward.1} parent=1 // pred_region
      _
    $region85: #{autoencoder_forward.1} parent=1 // pred_fallthru
      _
    // Predicated region
    $region86: #{autoencoder_forward.1} parent=1 // pred_check
      _
    $region87: #{autoencoder_forward.1} parent=1 // pred_check_branch
      %9303 = sbr.rel (0) target = $region89
    $region88: #{autoencoder_forward.1} parent=1 // pred_region
      _
    $region89: #{autoencoder_forward.1} parent=1 // pred_fallthru
      _
    %9304 = vsyncpa [#allocation3], 1
    %9305 = vsyncpa [#allocation5], 1
    %9306 = vsyncpa [#allocation8], 1
    %9307 = vsyncpa [#allocation11], 1
    %9308 = vsyncpa [#allocation14], 1

</llo_original>
